<compile_context>
chip_gen: v5e
topology: v5e:2x2
jax: 0.10.0
libtpu: 0.0.40
codegen_flags: <defaults>
</compile_context>

<pallas_src>
import jax
import jax.numpy as jnp
from jax import lax
from jax.experimental import pallas as pl
from jax.experimental.pallas import tpu as pltpu


def basic_block_kernel(xpad_ref, w1_ref, w2_ref, b1_ref, b2_ref,
                       out_ref, hpad_ref, col_ref):
    # xpad_ref : (1, H+2, W+2, C)  bf16  zero-padded input image (NHWC block)
    # w1_ref   : (3, 3*C, C)       bf16  conv1 weight * bn1 scale; [dy, dx*C+c, o]
    # w2_ref   : (3, 3*C, C)       bf16  conv2 weight * bn2 scale
    # b1_ref   : (1, C)            f32   folded bn1 bias
    # b2_ref   : (1, C)            f32   folded bn2 bias
    # out_ref  : (1, H, W, C)      f32
    # hpad_ref : (H+2, W+2, C)     bf16  scratch: zero-padded conv1 activation
    # col_ref  : (H+2, W, 3*C)     bf16  scratch: dx-only partial im2col slab
    _, Hp, Wp, C = xpad_ref.shape
    H, W = Hp - 2, Wp - 2

    def conv3x3(load_tap, w_ref):
        # Build the dx-only partial im2col slab: col[r, x, dx*C + c] = src[r, x+dx, c].
        # 3 lane-aligned (C is a multiple of 128) lane-slice stores, fed by
        # Ref-sliced loads so no whole-image value is ever materialized.
        for dx in range(3):
            col_ref[:, :, dx * C:(dx + 1) * C] = load_tap(dx)
        # Accumulate 3 MXU matmuls over dy; the dy operand is a leading-dim
        # (row-offset) slice of the slab, which is layout-free.
        acc = jnp.zeros((H * W, C), jnp.float32)
        for dy in range(3):
            lhs = col_ref[dy:dy + H, :, :].reshape(H * W, 3 * C)
            acc = acc + jnp.dot(lhs, w_ref[dy],
                                preferred_element_type=jnp.float32)
        return acc

    # ---- conv1 (bn1 scale folded into weights) -> bias -> relu, in f32
    y1 = conv3x3(lambda dx: xpad_ref[0, :, dx:dx + W, :], w1_ref)
    y1 = jnp.maximum(y1 + b1_ref[...], 0.0)

    # Zero only the 1-pixel halo of the intermediate (the interior is fully
    # overwritten below).  Done every grid step so the kernel stays correct
    # when the batch axis is sharded across TensorCores (per-core scratch).
    zrow = jnp.zeros((Wp, C), hpad_ref.dtype)
    hpad_ref[0] = zrow
    hpad_ref[H + 1] = zrow
    zcol = jnp.zeros((H, 1, C), hpad_ref.dtype)
    hpad_ref[1:H + 1, 0:1, :] = zcol
    hpad_ref[1:H + 1, W + 1:W + 2, :] = zcol
    hpad_ref[1:H + 1, 1:W + 1, :] = y1.reshape(H, W, C).astype(hpad_ref.dtype)

    # ---- conv2 (bn2 scale folded) -> bias -> (+ identity) -> relu, in f32
    y2 = conv3x3(lambda dx: hpad_ref[:, dx:dx + W, :], w2_ref)
    identity = xpad_ref[0, 1:H + 1, 1:W + 1, :].astype(jnp.float32)
    out = jnp.maximum(y2 + b2_ref[...] + identity.reshape(H * W, C), 0.0)
    out_ref[0] = out.reshape(H, W, C).astype(out_ref.dtype)


def fold_bn(gamma, beta, mean, var, eps=1e-5):
    scale = gamma / jnp.sqrt(var + eps)
    bias = beta - mean * scale
    return scale, bias


def basic_block_pallas(x_nchw, w1_oihw, w2_oihw, bn1, bn2, eps=1e-5):
    """x_nchw: (N, Cin, H, W); weights in OIHW like nn.Conv2d. Returns NCHW f32."""
    N, Cin, H, W = x_nchw.shape
    Cout = w1_oihw.shape[0]
    assert Cin == Cout, "stride=1 / downsample=None BasicBlock requires Cin == Cout"
    C = Cout
    # Lane-align channels: pad C up to a multiple of 128 so every im2col tap
    # slot and the output store are lane-dense, unmasked stores.
    Cp = ((C + 127) // 128) * 128

    x = jnp.transpose(x_nchw, (0, 2, 3, 1))                           # NHWC
    xpad = jnp.pad(x, ((0, 0), (1, 1), (1, 1), (0, Cp - C))).astype(jnp.bfloat16)

    s1, b1 = fold_bn(*bn1, eps=eps)
    s2, b2 = fold_bn(*bn2, eps=eps)

    def pack_w(w_oihw, scale):
        # (O, I, 3, 3) -> (ky, kx, I, O), fold the BN scale into the output
        # columns, zero-pad both channel axes to Cp, reshape to (3, 3*Cp, Cp)
        # with K index (kx*Cp + i) matching the kernel's dx-slab ordering.
        w = jnp.transpose(w_oihw, (2, 3, 1, 0)) * scale[None, None, None, :]
        w = jnp.pad(w, ((0, 0), (0, 0), (0, Cp - C), (0, Cp - C)))
        return w.reshape(3, 3 * Cp, Cp).astype(jnp.bfloat16)

    w1p = pack_w(w1_oihw, s1)
    w2p = pack_w(w2_oihw, s2)
    b1p = jnp.pad(b1, (0, Cp - C)).reshape(1, Cp).astype(jnp.float32)
    b2p = jnp.pad(b2, (0, Cp - C)).reshape(1, Cp).astype(jnp.float32)

    def const_spec(shape):
        return pl.BlockSpec(shape, lambda n: (0,) * len(shape))

    # Explicit VMEM limit from the per-step footprint (double-buffered IO +
    # constants + scratch), with headroom; clamp to [16 MiB, 64 MiB] so it is
    # never below v5e's default scoped limit nor above v7x's physical VMEM.
    bf16, f32 = 2, 4
    step_bytes = (
        2 * ((H + 2) * (W + 2) * Cp * bf16            # input block
             + H * W * Cp * f32                       # output block
             + 2 * 3 * 3 * Cp * Cp * bf16             # w1 + w2
             + 2 * Cp * f32)                          # b1 + b2
        + (H + 2) * (W + 2) * Cp * bf16               # hpad scratch
        + (H + 2) * W * 3 * Cp * bf16                 # col scratch
    )
    vmem_limit = int(min(max(2 * step_bytes, 16 << 20), 64 << 20))

    out_nhwc = pl.pallas_call(
        basic_block_kernel,
        out_shape=jax.ShapeDtypeStruct((N, H, W, Cp), jnp.float32),
        grid_spec=pltpu.PrefetchScalarGridSpec(
            num_scalar_prefetch=0,
            grid=(N,),
            in_specs=[
                pl.BlockSpec((1, H + 2, W + 2, Cp), lambda n: (n, 0, 0, 0)),
                const_spec((3, 3 * Cp, Cp)),   # w1 (bn1 scale folded)
                const_spec((3, 3 * Cp, Cp)),   # w2 (bn2 scale folded)
                const_spec((1, Cp)),           # b1
                const_spec((1, Cp)),           # b2
            ],
            out_specs=pl.BlockSpec((1, H, W, Cp), lambda n: (n, 0, 0, 0)),
            scratch_shapes=[
                pltpu.VMEM((H + 2, W + 2, Cp), jnp.bfloat16),    # padded conv1 act
                pltpu.VMEM((H + 2, W, 3 * Cp), jnp.bfloat16),    # dx-only im2col slab
            ],
        ),
        compiler_params=pltpu.CompilerParams(
            dimension_semantics=("parallel",),
            vmem_limit_bytes=vmem_limit,
        ),
    )(xpad, w1p, w2p, b1p, b2p)

    return jnp.transpose(out_nhwc[..., :C], (0, 3, 1, 2))             # back to NCHW


def basic_block_ref(x_nchw, w1, w2, bn1, bn2, eps=1e-5):
    """Pure-JAX reference in NCHW, matching the PyTorch forward (eval-mode BN)."""
    dn = lax.conv_dimension_numbers(x_nchw.shape, w1.shape,
                                    ('NCHW', 'OIHW', 'NCHW'))

    def bn(h, params):
        s, b = fold_bn(*params, eps=eps)
        return h * s[None, :, None, None] + b[None, :, None, None]

    h = lax.conv_general_dilated(x_nchw, w1, (1, 1), ((1, 1), (1, 1)),
                                 dimension_numbers=dn,
                                 precision=lax.Precision.HIGHEST)
    h = jnp.maximum(bn(h, bn1), 0.0)
    h = lax.conv_general_dilated(h, w2, (1, 1), ((1, 1), (1, 1)),
                                 dimension_numbers=dn,
                                 precision=lax.Precision.HIGHEST)
    h = bn(h, bn2) + x_nchw
    return jnp.maximum(h, 0.0)


if __name__ == "__main__":
    N, C, H, W = 2, 4, 16, 16   # in_channels = out_channels = 4, stride=1, expansion=1
    key = jax.random.PRNGKey(0)
    ks = jax.random.split(key, 11)

    x = jax.random.normal(ks[0], (N, C, H, W), jnp.float32)

    # Deterministic synthetic parameters (shapes per BasicBlock.__init__).
    w1 = 0.2 * jax.random.normal(ks[1], (C, C, 3, 3), jnp.float32)   # conv1 weight
    w2 = 0.2 * jax.random.normal(ks[2], (C, C, 3, 3), jnp.float32)   # conv2 weight

    bn1 = (1.0 + 0.1 * jax.random.normal(ks[3], (C,), jnp.float32),            # gamma
           0.1 * jax.random.normal(ks[4], (C,), jnp.float32),                  # beta
           0.1 * jax.random.normal(ks[5], (C,), jnp.float32),                  # running_mean
           jnp.abs(jax.random.normal(ks[6], (C,), jnp.float32)) + 0.5)         # running_var
    bn2 = (1.0 + 0.1 * jax.random.normal(ks[7], (C,), jnp.float32),
           0.1 * jax.random.normal(ks[8], (C,), jnp.float32),
           0.1 * jax.random.normal(ks[9], (C,), jnp.float32),
           jnp.abs(jax.random.normal(ks[10], (C,), jnp.float32)) + 0.5)

    out = basic_block_pallas(x, w1, w2, bn1, bn2)
    out = jax.block_until_ready(out)

    ref = basic_block_ref(x, w1, w2, bn1, bn2)
    assert out.shape == (N, C, H, W)
    max_err = float(jnp.max(jnp.abs(out - ref)))
    # Kernel runs the bf16 MXU path (bf16 activations/weights, f32 accumulation);
    # reference uses f32 HIGHEST, so allow a bf16-level tolerance.
    assert jnp.allclose(out, ref, atol=5e-2, rtol=5e-2), max_err
    print("KERNEL_OK")
</pallas_src>

<mosaic_0001>
module attributes {stable_mosaic.version = 11 : i64} {
  func.func @basic_block_kernel(%arg0: i32, %arg1: memref<1x18x18x128xbf16, #tpu.memory_space<vmem>>, %arg2: memref<3x384x128xbf16, #tpu.memory_space<vmem>>, %arg3: memref<3x384x128xbf16, #tpu.memory_space<vmem>>, %arg4: memref<1x128xf32, #tpu.memory_space<vmem>>, %arg5: memref<1x128xf32, #tpu.memory_space<vmem>>, %arg6: memref<1x16x16x128xf32, #tpu.memory_space<vmem>>, %arg7: memref<18x18x128xbf16, #tpu.memory_space<vmem>>, %arg8: memref<18x16x384xbf16, #tpu.memory_space<vmem>>) attributes {dimension_semantics = [#tpu.dimension_semantics<parallel>], iteration_bounds = array<i64: 2>, scalar_prefetch = 0 : i64, scratch_operands = 2 : i64, tpu.core_type = #tpu.core_type<tc>, window_params = [{transform_indices = @transform_0, window_bounds = array<i64: 1, 18, 18, 128>}, {pipeline_mode = #tpu.pipeline_mode<synchronous>, transform_indices = @transform_1, window_bounds = array<i64: 3, 384, 128>}, {pipeline_mode = #tpu.pipeline_mode<synchronous>, transform_indices = @transform_2, window_bounds = array<i64: 3, 384, 128>}, {pipeline_mode = #tpu.pipeline_mode<synchronous>, transform_indices = @transform_3, window_bounds = array<i64: 1, 128>}, {pipeline_mode = #tpu.pipeline_mode<synchronous>, transform_indices = @transform_4, window_bounds = array<i64: 1, 128>}, {transform_indices = @transform_5, window_bounds = array<i64: 1, 16, 16, 128>}]} {
    %c0 = arith.constant 0 : index
    %c0_0 = arith.constant 0 : index
    %c0_1 = arith.constant 0 : index
    %c0_2 = arith.constant 0 : index
    %0 = vector.load %arg1[%c0, %c0_0, %c0_1, %c0_2] : memref<1x18x18x128xbf16, #tpu.memory_space<vmem>>, vector<1x18x16x128xbf16>
    %1 = vector.shape_cast %0 : vector<1x18x16x128xbf16> to vector<18x16x128xbf16>
    %c0_3 = arith.constant 0 : index
    %c0_4 = arith.constant 0 : index
    %c0_5 = arith.constant 0 : index
    %2 = vector.load %arg8[%c0_3, %c0_4, %c0_5] : memref<18x16x384xbf16, #tpu.memory_space<vmem>>, vector<18x16x128xbf16>
    tpu.vector_store %arg8[%c0_3, %c0_4, %c0_5], %1 {strides = array<i32>} : memref<18x16x384xbf16, #tpu.memory_space<vmem>>, vector<18x16x128xbf16>,
    %c0_6 = arith.constant 0 : index
    %c0_7 = arith.constant 0 : index
    %c1 = arith.constant 1 : index
    %c0_8 = arith.constant 0 : index
    %3 = vector.load %arg1[%c0_6, %c0_7, %c1, %c0_8] : memref<1x18x18x128xbf16, #tpu.memory_space<vmem>>, vector<1x18x16x128xbf16>
    %4 = vector.shape_cast %3 : vector<1x18x16x128xbf16> to vector<18x16x128xbf16>
    %c0_9 = arith.constant 0 : index
    %c0_10 = arith.constant 0 : index
    %c128 = arith.constant 128 : index
    %5 = vector.load %arg8[%c0_9, %c0_10, %c128] : memref<18x16x384xbf16, #tpu.memory_space<vmem>>, vector<18x16x128xbf16>
    tpu.vector_store %arg8[%c0_9, %c0_10, %c128], %4 {strides = array<i32>} : memref<18x16x384xbf16, #tpu.memory_space<vmem>>, vector<18x16x128xbf16>,
    %c0_11 = arith.constant 0 : index
    %c0_12 = arith.constant 0 : index
    %c2 = arith.constant 2 : index
    %c0_13 = arith.constant 0 : index
    %6 = vector.load %arg1[%c0_11, %c0_12, %c2, %c0_13] : memref<1x18x18x128xbf16, #tpu.memory_space<vmem>>, vector<1x18x16x128xbf16>
    %7 = vector.shape_cast %6 : vector<1x18x16x128xbf16> to vector<18x16x128xbf16>
    %c0_14 = arith.constant 0 : index
    %c0_15 = arith.constant 0 : index
    %c256 = arith.constant 256 : index
    %8 = vector.load %arg8[%c0_14, %c0_15, %c256] : memref<18x16x384xbf16, #tpu.memory_space<vmem>>, vector<18x16x128xbf16>
    tpu.vector_store %arg8[%c0_14, %c0_15, %c256], %7 {strides = array<i32>} : memref<18x16x384xbf16, #tpu.memory_space<vmem>>, vector<18x16x128xbf16>,
    %cst = arith.constant 0.000000e+00 : f32
    %9 = vector.broadcast %cst : f32 to vector<256x128xf32>
    %c0_16 = arith.constant 0 : index
    %c0_17 = arith.constant 0 : index
    %c0_18 = arith.constant 0 : index
    %10 = vector.load %arg8[%c0_16, %c0_17, %c0_18] : memref<18x16x384xbf16, #tpu.memory_space<vmem>>, vector<16x16x384xbf16>
    %11 = vector.shape_cast %10 : vector<16x16x384xbf16> to vector<256x384xbf16>
    %c0_19 = arith.constant 0 : index
    %c0_20 = arith.constant 0 : index
    %c0_21 = arith.constant 0 : index
    %12 = vector.load %arg2[%c0_19, %c0_20, %c0_21] : memref<3x384x128xbf16, #tpu.memory_space<vmem>>, vector<1x384x128xbf16>
    %13 = vector.shape_cast %12 : vector<1x384x128xbf16> to vector<384x128xbf16>
    %cst_22 = arith.constant dense<0.000000e+00> : vector<256x128xf32>
    %14 = tpu.matmul %11, %13, %cst_22 {dimension_numbers = #tpu.dot_dimension_numbers<[1], [0], [0], [1], [0, 0, 1, 1], [], []>} : vector<256x384xbf16>, vector<384x128xbf16>, vector<256x128xf32> -> vector<256x128xf32>
    %15 = arith.addf %9, %14 : vector<256x128xf32>
    %c1_23 = arith.constant 1 : index
    %c0_24 = arith.constant 0 : index
    %c0_25 = arith.constant 0 : index
    %16 = vector.load %arg8[%c1_23, %c0_24, %c0_25] : memref<18x16x384xbf16, #tpu.memory_space<vmem>>, vector<16x16x384xbf16>
    %17 = vector.shape_cast %16 : vector<16x16x384xbf16> to vector<256x384xbf16>
    %c1_26 = arith.constant 1 : index
    %c0_27 = arith.constant 0 : index
    %c0_28 = arith.constant 0 : index
    %18 = vector.load %arg2[%c1_26, %c0_27, %c0_28] : memref<3x384x128xbf16, #tpu.memory_space<vmem>>, vector<1x384x128xbf16>
    %19 = vector.shape_cast %18 : vector<1x384x128xbf16> to vector<384x128xbf16>
    %cst_29 = arith.constant dense<0.000000e+00> : vector<256x128xf32>
    %20 = tpu.matmul %17, %19, %cst_29 {dimension_numbers = #tpu.dot_dimension_numbers<[1], [0], [0], [1], [0, 0, 1, 1], [], []>} : vector<256x384xbf16>, vector<384x128xbf16>, vector<256x128xf32> -> vector<256x128xf32>
    %21 = arith.addf %15, %20 : vector<256x128xf32>
    %c2_30 = arith.constant 2 : index
    %c0_31 = arith.constant 0 : index
    %c0_32 = arith.constant 0 : index
    %22 = vector.load %arg8[%c2_30, %c0_31, %c0_32] : memref<18x16x384xbf16, #tpu.memory_space<vmem>>, vector<16x16x384xbf16>
    %23 = vector.shape_cast %22 : vector<16x16x384xbf16> to vector<256x384xbf16>
    %c2_33 = arith.constant 2 : index
    %c0_34 = arith.constant 0 : index
    %c0_35 = arith.constant 0 : index
    %24 = vector.load %arg2[%c2_33, %c0_34, %c0_35] : memref<3x384x128xbf16, #tpu.memory_space<vmem>>, vector<1x384x128xbf16>
    %25 = vector.shape_cast %24 : vector<1x384x128xbf16> to vector<384x128xbf16>
    %cst_36 = arith.constant dense<0.000000e+00> : vector<256x128xf32>
    %26 = tpu.matmul %23, %25, %cst_36 {dimension_numbers = #tpu.dot_dimension_numbers<[1], [0], [0], [1], [0, 0, 1, 1], [], []>} : vector<256x384xbf16>, vector<384x128xbf16>, vector<256x128xf32> -> vector<256x128xf32>
    %27 = arith.addf %21, %26 : vector<256x128xf32>
    %c0_37 = arith.constant 0 : index
    %c0_38 = arith.constant 0 : index
    %28 = vector.load %arg4[%c0_37, %c0_38] : memref<1x128xf32, #tpu.memory_space<vmem>>, vector<1x128xf32>
    %29 = vector.broadcast %28 : vector<1x128xf32> to vector<256x128xf32>
    %30 = arith.addf %27, %29 : vector<256x128xf32>
    %cst_39 = arith.constant 0.000000e+00 : f32
    %31 = vector.broadcast %cst_39 : f32 to vector<256x128xf32>
    %32 = arith.maximumf %30, %31 : vector<256x128xf32>
    %cst_40 = arith.constant 0.000000e+00 : bf16
    %33 = vector.broadcast %cst_40 : bf16 to vector<18x128xbf16>
    %c0_41 = arith.constant 0 : index
    %c0_42 = arith.constant 0 : index
    %c0_43 = arith.constant 0 : index
    %34 = vector.load %arg7[%c0_41, %c0_42, %c0_43] : memref<18x18x128xbf16, #tpu.memory_space<vmem>>, vector<1x18x128xbf16>
    %35 = vector.shape_cast %34 : vector<1x18x128xbf16> to vector<18x128xbf16>
    %36 = vector.shape_cast %33 : vector<18x128xbf16> to vector<1x18x128xbf16>
    tpu.vector_store %arg7[%c0_41, %c0_42, %c0_43], %36 {strides = array<i32>} : memref<18x18x128xbf16, #tpu.memory_space<vmem>>, vector<1x18x128xbf16>,
    %c17 = arith.constant 17 : index
    %c0_44 = arith.constant 0 : index
    %c0_45 = arith.constant 0 : index
    %37 = vector.load %arg7[%c17, %c0_44, %c0_45] : memref<18x18x128xbf16, #tpu.memory_space<vmem>>, vector<1x18x128xbf16>
    %38 = vector.shape_cast %37 : vector<1x18x128xbf16> to vector<18x128xbf16>
    %39 = vector.shape_cast %33 : vector<18x128xbf16> to vector<1x18x128xbf16>
    tpu.vector_store %arg7[%c17, %c0_44, %c0_45], %39 {strides = array<i32>} : memref<18x18x128xbf16, #tpu.memory_space<vmem>>, vector<1x18x128xbf16>,
    %cst_46 = arith.constant 0.000000e+00 : bf16
    %40 = vector.broadcast %cst_46 : bf16 to vector<16x1x128xbf16>
    %c1_47 = arith.constant 1 : index
    %c0_48 = arith.constant 0 : index
    %c0_49 = arith.constant 0 : index
    %41 = vector.load %arg7[%c1_47, %c0_48, %c0_49] : memref<18x18x128xbf16, #tpu.memory_space<vmem>>, vector<16x1x128xbf16>
    tpu.vector_store %arg7[%c1_47, %c0_48, %c0_49], %40 {strides = array<i32>} : memref<18x18x128xbf16, #tpu.memory_space<vmem>>, vector<16x1x128xbf16>,
    %c1_50 = arith.constant 1 : index
    %c17_51 = arith.constant 17 : index
    %c0_52 = arith.constant 0 : index
    %42 = vector.load %arg7[%c1_50, %c17_51, %c0_52] : memref<18x18x128xbf16, #tpu.memory_space<vmem>>, vector<16x1x128xbf16>
    tpu.vector_store %arg7[%c1_50, %c17_51, %c0_52], %40 {strides = array<i32>} : memref<18x18x128xbf16, #tpu.memory_space<vmem>>, vector<16x1x128xbf16>,
    %43 = vector.shape_cast %32 : vector<256x128xf32> to vector<16x16x128xf32>
    %44 = arith.truncf %43 : vector<16x16x128xf32> to vector<16x16x128xbf16>
    %c1_53 = arith.constant 1 : index
    %c1_54 = arith.constant 1 : index
    %c0_55 = arith.constant 0 : index
    %45 = vector.load %arg7[%c1_53, %c1_54, %c0_55] : memref<18x18x128xbf16, #tpu.memory_space<vmem>>, vector<16x16x128xbf16>
    tpu.vector_store %arg7[%c1_53, %c1_54, %c0_55], %44 {strides = array<i32>} : memref<18x18x128xbf16, #tpu.memory_space<vmem>>, vector<16x16x128xbf16>,
    %c0_56 = arith.constant 0 : index
    %c0_57 = arith.constant 0 : index
    %c0_58 = arith.constant 0 : index
    %46 = vector.load %arg7[%c0_56, %c0_57, %c0_58] : memref<18x18x128xbf16, #tpu.memory_space<vmem>>, vector<18x16x128xbf16>
    %c0_59 = arith.constant 0 : index
    %c0_60 = arith.constant 0 : index
    %c0_61 = arith.constant 0 : index
    %47 = vector.load %arg8[%c0_59, %c0_60, %c0_61] : memref<18x16x384xbf16, #tpu.memory_space<vmem>>, vector<18x16x128xbf16>
    tpu.vector_store %arg8[%c0_59, %c0_60, %c0_61], %46 {strides = array<i32>} : memref<18x16x384xbf16, #tpu.memory_space<vmem>>, vector<18x16x128xbf16>,
    %c0_62 = arith.constant 0 : index
    %c1_63 = arith.constant 1 : index
    %c0_64 = arith.constant 0 : index
    %48 = vector.load %arg7[%c0_62, %c1_63, %c0_64] : memref<18x18x128xbf16, #tpu.memory_space<vmem>>, vector<18x16x128xbf16>
    %c0_65 = arith.constant 0 : index
    %c0_66 = arith.constant 0 : index
    %c128_67 = arith.constant 128 : index
    %49 = vector.load %arg8[%c0_65, %c0_66, %c128_67] : memref<18x16x384xbf16, #tpu.memory_space<vmem>>, vector<18x16x128xbf16>
    tpu.vector_store %arg8[%c0_65, %c0_66, %c128_67], %48 {strides = array<i32>} : memref<18x16x384xbf16, #tpu.memory_space<vmem>>, vector<18x16x128xbf16>,
    %c0_68 = arith.constant 0 : index
    %c2_69 = arith.constant 2 : index
    %c0_70 = arith.constant 0 : index
    %50 = vector.load %arg7[%c0_68, %c2_69, %c0_70] : memref<18x18x128xbf16, #tpu.memory_space<vmem>>, vector<18x16x128xbf16>
    %c0_71 = arith.constant 0 : index
    %c0_72 = arith.constant 0 : index
    %c256_73 = arith.constant 256 : index
    %51 = vector.load %arg8[%c0_71, %c0_72, %c256_73] : memref<18x16x384xbf16, #tpu.memory_space<vmem>>, vector<18x16x128xbf16>
    tpu.vector_store %arg8[%c0_71, %c0_72, %c256_73], %50 {strides = array<i32>} : memref<18x16x384xbf16, #tpu.memory_space<vmem>>, vector<18x16x128xbf16>,
    %cst_74 = arith.constant 0.000000e+00 : f32
    %52 = vector.broadcast %cst_74 : f32 to vector<256x128xf32>
    %c0_75 = arith.constant 0 : index
    %c0_76 = arith.constant 0 : index
    %c0_77 = arith.constant 0 : index
    %53 = vector.load %arg8[%c0_75, %c0_76, %c0_77] : memref<18x16x384xbf16, #tpu.memory_space<vmem>>, vector<16x16x384xbf16>
    %54 = vector.shape_cast %53 : vector<16x16x384xbf16> to vector<256x384xbf16>
    %c0_78 = arith.constant 0 : index
    %c0_79 = arith.constant 0 : index
    %c0_80 = arith.constant 0 : index
    %55 = vector.load %arg3[%c0_78, %c0_79, %c0_80] : memref<3x384x128xbf16, #tpu.memory_space<vmem>>, vector<1x384x128xbf16>
    %56 = vector.shape_cast %55 : vector<1x384x128xbf16> to vector<384x128xbf16>
    %cst_81 = arith.constant dense<0.000000e+00> : vector<256x128xf32>
    %57 = tpu.matmul %54, %56, %cst_81 {dimension_numbers = #tpu.dot_dimension_numbers<[1], [0], [0], [1], [0, 0, 1, 1], [], []>} : vector<256x384xbf16>, vector<384x128xbf16>, vector<256x128xf32> -> vector<256x128xf32>
    %58 = arith.addf %52, %57 : vector<256x128xf32>
    %c1_82 = arith.constant 1 : index
    %c0_83 = arith.constant 0 : index
    %c0_84 = arith.constant 0 : index
    %59 = vector.load %arg8[%c1_82, %c0_83, %c0_84] : memref<18x16x384xbf16, #tpu.memory_space<vmem>>, vector<16x16x384xbf16>
    %60 = vector.shape_cast %59 : vector<16x16x384xbf16> to vector<256x384xbf16>
    %c1_85 = arith.constant 1 : index
    %c0_86 = arith.constant 0 : index
    %c0_87 = arith.constant 0 : index
    %61 = vector.load %arg3[%c1_85, %c0_86, %c0_87] : memref<3x384x128xbf16, #tpu.memory_space<vmem>>, vector<1x384x128xbf16>
    %62 = vector.shape_cast %61 : vector<1x384x128xbf16> to vector<384x128xbf16>
    %cst_88 = arith.constant dense<0.000000e+00> : vector<256x128xf32>
    %63 = tpu.matmul %60, %62, %cst_88 {dimension_numbers = #tpu.dot_dimension_numbers<[1], [0], [0], [1], [0, 0, 1, 1], [], []>} : vector<256x384xbf16>, vector<384x128xbf16>, vector<256x128xf32> -> vector<256x128xf32>
    %64 = arith.addf %58, %63 : vector<256x128xf32>
    %c2_89 = arith.constant 2 : index
    %c0_90 = arith.constant 0 : index
    %c0_91 = arith.constant 0 : index
    %65 = vector.load %arg8[%c2_89, %c0_90, %c0_91] : memref<18x16x384xbf16, #tpu.memory_space<vmem>>, vector<16x16x384xbf16>
    %66 = vector.shape_cast %65 : vector<16x16x384xbf16> to vector<256x384xbf16>
    %c2_92 = arith.constant 2 : index
    %c0_93 = arith.constant 0 : index
    %c0_94 = arith.constant 0 : index
    %67 = vector.load %arg3[%c2_92, %c0_93, %c0_94] : memref<3x384x128xbf16, #tpu.memory_space<vmem>>, vector<1x384x128xbf16>
    %68 = vector.shape_cast %67 : vector<1x384x128xbf16> to vector<384x128xbf16>
    %cst_95 = arith.constant dense<0.000000e+00> : vector<256x128xf32>
    %69 = tpu.matmul %66, %68, %cst_95 {dimension_numbers = #tpu.dot_dimension_numbers<[1], [0], [0], [1], [0, 0, 1, 1], [], []>} : vector<256x384xbf16>, vector<384x128xbf16>, vector<256x128xf32> -> vector<256x128xf32>
    %70 = arith.addf %64, %69 : vector<256x128xf32>
    %c0_96 = arith.constant 0 : index
    %c1_97 = arith.constant 1 : index
    %c1_98 = arith.constant 1 : index
    %c0_99 = arith.constant 0 : index
    %71 = vector.load %arg1[%c0_96, %c1_97, %c1_98, %c0_99] : memref<1x18x18x128xbf16, #tpu.memory_space<vmem>>, vector<1x16x16x128xbf16>
    %72 = vector.shape_cast %71 : vector<1x16x16x128xbf16> to vector<16x16x128xbf16>
    %73 = arith.extf %72 : vector<16x16x128xbf16> to vector<16x16x128xf32>
    %c0_100 = arith.constant 0 : index
    %c0_101 = arith.constant 0 : index
    %74 = vector.load %arg5[%c0_100, %c0_101] : memref<1x128xf32, #tpu.memory_space<vmem>>, vector<1x128xf32>
    %75 = vector.broadcast %74 : vector<1x128xf32> to vector<256x128xf32>
    %76 = arith.addf %70, %75 : vector<256x128xf32>
    %77 = vector.shape_cast %73 : vector<16x16x128xf32> to vector<256x128xf32>
    %78 = arith.addf %76, %77 : vector<256x128xf32>
    %cst_102 = arith.constant 0.000000e+00 : f32
    %79 = vector.broadcast %cst_102 : f32 to vector<256x128xf32>
    %80 = arith.maximumf %78, %79 : vector<256x128xf32>
    %81 = vector.shape_cast %80 : vector<256x128xf32> to vector<16x16x128xf32>
    %c0_103 = arith.constant 0 : index
    %c0_104 = arith.constant 0 : index
    %c0_105 = arith.constant 0 : index
    %c0_106 = arith.constant 0 : index
    %82 = vector.load %arg6[%c0_103, %c0_104, %c0_105, %c0_106] : memref<1x16x16x128xf32, #tpu.memory_space<vmem>>, vector<1x16x16x128xf32>
    %83 = vector.shape_cast %82 : vector<1x16x16x128xf32> to vector<16x16x128xf32>
    %84 = vector.shape_cast %81 : vector<16x16x128xf32> to vector<1x16x16x128xf32>
    tpu.vector_store %arg6[%c0_103, %c0_104, %c0_105, %c0_106], %84 {strides = array<i32>} : memref<1x16x16x128xf32, #tpu.memory_space<vmem>>, vector<1x16x16x128xf32>,
    return
  }
  func.func @transform_0(%arg0: i32) -> (i32, i32, i32, i32) {
    %c0_i32 = arith.constant 0 : i32
    %c0_i32_0 = arith.constant 0 : i32
    %c0_i32_1 = arith.constant 0 : i32
    %c0_i32_2 = arith.constant 0 : i32
    return %arg0, %c0_i32, %c0_i32_0, %c0_i32_1 : i32, i32, i32, i32
  }
  func.func @transform_1(%arg0: i32) -> (i32, i32, i32) {
    %c0_i32 = arith.constant 0 : i32
    %c0_i32_0 = arith.constant 0 : i32
    %c0_i32_1 = arith.constant 0 : i32
    %c0_i32_2 = arith.constant 0 : i32
    return %c0_i32, %c0_i32_0, %c0_i32_1 : i32, i32, i32
  }
  func.func @transform_2(%arg0: i32) -> (i32, i32, i32) {
    %c0_i32 = arith.constant 0 : i32
    %c0_i32_0 = arith.constant 0 : i32
    %c0_i32_1 = arith.constant 0 : i32
    %c0_i32_2 = arith.constant 0 : i32
    return %c0_i32, %c0_i32_0, %c0_i32_1 : i32, i32, i32
  }
  func.func @transform_3(%arg0: i32) -> (i32, i32) {
    %c0_i32 = arith.constant 0 : i32
    %c0_i32_0 = arith.constant 0 : i32
    %c0_i32_1 = arith.constant 0 : i32
    return %c0_i32, %c0_i32_0 : i32, i32
  }
  func.func @transform_4(%arg0: i32) -> (i32, i32) {
    %c0_i32 = arith.constant 0 : i32
    %c0_i32_0 = arith.constant 0 : i32
    %c0_i32_1 = arith.constant 0 : i32
    return %c0_i32, %c0_i32_0 : i32, i32
  }
  func.func @transform_5(%arg0: i32) -> (i32, i32, i32, i32) {
    %c0_i32 = arith.constant 0 : i32
    %c0_i32_0 = arith.constant 0 : i32
    %c0_i32_1 = arith.constant 0 : i32
    %c0_i32_2 = arith.constant 0 : i32
    return %arg0, %c0_i32, %c0_i32_0, %c0_i32_1 : i32, i32, i32, i32
  }
}

</mosaic_0001>

<llo_original>
// kernel: tpu_custom_call.1
$region0: #{tpu_custom_call.1}
  #allocation0 [shape = 'u32[]', space=smem, size = 0x4, offset = 0x4, fixed_abs, tag = 'smem constant byte address 0x4 - core index']
  #allocation1 [shape = 'u32[72,128]{1,0:T(1,128)}', space=vmem, size = 0x9000, scoped, tag = 'internal scratch']
  #allocation2 [shape = 'bf16[18,18,128]{2,1,0:T(8,128)(2,1)}', space=vmem, size = 0x1b000, scoped, tag = 'scratch operand']
  #allocation3 [shape = 'bf16[18,16,384]{2,1,0:T(8,128)(2,1)}', space=vmem, size = 0x36000, scoped, tag = 'scratch operand']
  %s0 = inlined_call_operand.vmem [shape: bf16[2,18,18,128], index: 0, kind: input, shape index: {}]
  %s1 = inlined_call_operand.vmem [shape: bf16[3,384,128], index: 1, kind: input, shape index: {}]
  %s2 = inlined_call_operand.hbm [shape: bf16[3,384,128], index: 2, kind: input, shape index: {}]
  %s3 = inlined_call_operand.vmem [shape: f32[1,128], index: 3, kind: input, shape index: {}]
  %s4 = inlined_call_operand.vmem [shape: f32[1,128], index: 4, kind: input, shape index: {}]
  %s5 = inlined_call_operand.hbm [shape: f32[2,16,16,128], index: 5, kind: output, shape index: {}]
  %s6 = sld [smem:[#allocation0]]
  $region57: #{tpu_custom_call.1} parent=0
    _
  %s8 = ssub.s32 1, %s6
  %s9 = scalar_select 0, %s8, %s6
  $region1: #{tpu_custom_call.1} parent=0
    #allocation4 [shape = 'u8[294912]{0}', space=vmem, size = 0x48000, scoped, tag = 'input window, operand 2, single buffered']
    #allocation5 [shape = 's32[2]{0}', space=sflag, size = 0x8, scoped, tag = 'scoped memory for tpu_custom_call.1']
    #allocation6 [shape = 's32[2]{0}', space=sflag, size = 0x8, scoped, tag = 'scoped memory for tpu_custom_call.1']
    #allocation7 [shape = 'u8[262144]{0}', space=vmem, size = 0x40000, scoped, tag = 'output window, operand 0']
    %10 = vsyncpa [#allocation5], 0
    %11 = vsyncpa [#allocation6], 0
    %s12 = scalar_lea.sflag [#allocation6], 1
    %13 = vsyncpa %s12, 0
    loop: start=0, step=1, limit=4
    $region2: #{tpu_custom_call.1} parent=1 // loop_pre_header
      _
    $region3: #{tpu_custom_call.1} parent=1 // loop_header
      %s15 = sphi 0, %s19
      %p16 = scmp.ge.s32.totalorder %s15, 4
      %s25 = sphi 0, %s27
      %s28 = sphi 0, %s25
      %s29 = sphi 0, %s28
      %s45 = sphi 0, %s29
      %s49 = sphi 0, %s49
      %s51 = sphi 0, %s49
      %s52 = sphi 0, %s51
      %s66 = sphi 0, %s52
      %s70 = sphi 0, %s70
      %s72 = sphi 0, %s70
      %s73 = sphi 0, %s72
      %s87 = sphi 0, %s73
      %s91 = sphi 0, %s91
      %s93 = sphi 0, %s91
      %s94 = sphi 0, %s93
      %s108 = sphi 0, %s94
      %s112 = sphi 0, %s112
      %s114 = sphi 0, %s112
      %s115 = sphi 0, %s114
      %s129 = sphi 0, %s115
      %s135 = sphi 0, %s137
      %s138 = sphi 0, %s135
      %s139 = sphi 0, %s138
      %s155 = sphi 0, %s139
    $region4: #{tpu_custom_call.1} parent=1 // loop_header_branch
      %18 = sbr.rel (%p16) target = $region8
    $region5: #{tpu_custom_call.1} parent=1 // loop_body
      %s20 = ssub.s32 %s15, 1
      %s21 = ssub.s32 %s15, 2
      %s22 = sadd.s32 %s15, 1
      %s23 = ssub.s32 %s15, %s22
      %p24 = scmp.eq.s32.totalorder %s23, 0
      %s26 = sadd.s32 %s25, 1
      %s27 = scalar_select %p24, %s25, %s26
      %p30 = pneg %p24
      %p31 = scmp.eq.s32.totalorder %s15, 1
      %p32 = por %p30, %p31
      %p33 = scmp.ne.s32.totalorder %s25, %s28
      %p34 = scmp.eq.s32.totalorder %s15, 0
      %p35 = por %p33, %p34
      %p36 = scmp.ne.s32.totalorder %s25, %s28
      %p37 = scmp.eq.s32.totalorder %s20, 1
      %p38 = por %p36, %p37
      %p39 = scmp.ne.s32.totalorder %s28, %s29
      %p40 = scmp.eq.s32.totalorder %s20, 0
      %p41 = por %p39, %p40
      %p42 = scmp.ne.s32.totalorder %s28, %s29
      %p43 = scmp.eq.s32.totalorder %s21, 1
      %p44 = por %p42, %p43
      %p46 = scmp.ne.s32.totalorder %s29, %s45
      %p47 = scmp.eq.s32.totalorder %s21, 0
      %p48 = por %p46, %p47
      %s50 = sadd.s32 %s49, 1
      %p53 = scmp.eq.s32.totalorder %s15, 1
      %p54 = scmp.ne.s32.totalorder %s49, %s51
      %p55 = scmp.eq.s32.totalorder %s15, 0
      %p56 = por %p54, %p55
      %p57 = scmp.ne.s32.totalorder %s49, %s51
      %p58 = scmp.eq.s32.totalorder %s20, 1
      %p59 = por %p57, %p58
      %p60 = scmp.ne.s32.totalorder %s51, %s52
      %p61 = scmp.eq.s32.totalorder %s20, 0
      %p62 = por %p60, %p61
      %p63 = scmp.ne.s32.totalorder %s51, %s52
      %p64 = scmp.eq.s32.totalorder %s21, 1
      %p65 = por %p63, %p64
      %p67 = scmp.ne.s32.totalorder %s52, %s66
      %p68 = scmp.eq.s32.totalorder %s21, 0
      %p69 = por %p67, %p68
      %s71 = sadd.s32 %s70, 1
      %p74 = scmp.eq.s32.totalorder %s15, 1
      %p75 = scmp.ne.s32.totalorder %s70, %s72
      %p76 = scmp.eq.s32.totalorder %s15, 0
      %p77 = por %p75, %p76
      %p78 = scmp.ne.s32.totalorder %s70, %s72
      %p79 = scmp.eq.s32.totalorder %s20, 1
      %p80 = por %p78, %p79
      %p81 = scmp.ne.s32.totalorder %s72, %s73
      %p82 = scmp.eq.s32.totalorder %s20, 0
      %p83 = por %p81, %p82
      %p84 = scmp.ne.s32.totalorder %s72, %s73
      %p85 = scmp.eq.s32.totalorder %s21, 1
      %p86 = por %p84, %p85
      %p88 = scmp.ne.s32.totalorder %s73, %s87
      %p89 = scmp.eq.s32.totalorder %s21, 0
      %p90 = por %p88, %p89
      %s92 = sadd.s32 %s91, 1
      %p95 = scmp.eq.s32.totalorder %s15, 1
      %p96 = scmp.ne.s32.totalorder %s91, %s93
      %p97 = scmp.eq.s32.totalorder %s15, 0
      %p98 = por %p96, %p97
      %p99 = scmp.ne.s32.totalorder %s91, %s93
      %p100 = scmp.eq.s32.totalorder %s20, 1
      %p101 = por %p99, %p100
      %p102 = scmp.ne.s32.totalorder %s93, %s94
      %p103 = scmp.eq.s32.totalorder %s20, 0
      %p104 = por %p102, %p103
      %p105 = scmp.ne.s32.totalorder %s93, %s94
      %p106 = scmp.eq.s32.totalorder %s21, 1
      %p107 = por %p105, %p106
      %p109 = scmp.ne.s32.totalorder %s94, %s108
      %p110 = scmp.eq.s32.totalorder %s21, 0
      %p111 = por %p109, %p110
      %s113 = sadd.s32 %s112, 1
      %p116 = scmp.eq.s32.totalorder %s15, 1
      %p117 = scmp.ne.s32.totalorder %s112, %s114
      %p118 = scmp.eq.s32.totalorder %s15, 0
      %p119 = por %p117, %p118
      %p120 = scmp.ne.s32.totalorder %s112, %s114
      %p121 = scmp.eq.s32.totalorder %s20, 1
      %p122 = por %p120, %p121
      %p123 = scmp.ne.s32.totalorder %s114, %s115
      %p124 = scmp.eq.s32.totalorder %s20, 0
      %p125 = por %p123, %p124
      %p126 = scmp.ne.s32.totalorder %s114, %s115
      %p127 = scmp.eq.s32.totalorder %s21, 1
      %p128 = por %p126, %p127
      %p130 = scmp.ne.s32.totalorder %s115, %s129
      %p131 = scmp.eq.s32.totalorder %s21, 0
      %p132 = por %p130, %p131
      %s133 = ssub.s32 %s15, %s22
      %p134 = scmp.eq.s32.totalorder %s133, 0
      %s136 = sadd.s32 %s135, 1
      %s137 = scalar_select %p134, %s135, %s136
      %p140 = pneg %p134
      %p141 = scmp.eq.s32.totalorder %s15, 1
      %p142 = por %p140, %p141
      %p143 = scmp.ne.s32.totalorder %s135, %s138
      %p144 = scmp.eq.s32.totalorder %s15, 0
      %p145 = por %p143, %p144
      %p146 = scmp.ne.s32.totalorder %s135, %s138
      %p147 = scmp.eq.s32.totalorder %s20, 1
      %p148 = por %p146, %p147
      %p149 = scmp.ne.s32.totalorder %s138, %s139
      %p150 = scmp.eq.s32.totalorder %s20, 0
      %p151 = por %p149, %p150
      %p152 = scmp.ne.s32.totalorder %s138, %s139
      %p153 = scmp.eq.s32.totalorder %s21, 1
      %p154 = por %p152, %p153
      %p156 = scmp.ne.s32.totalorder %s139, %s155
      %p157 = scmp.eq.s32.totalorder %s21, 0
      %p158 = por %p156, %p157
      %p159 = scmp.le.s32.totalorder 1, %s15
      %p160 = scmp.lt.s32.totalorder %s15, 3
      %p161 = pnand %p159, %p160
      %p162 = pneg %p161
      // Predicated region
      $region9: #{tpu_custom_call.1} parent=5 // pred_check
        _
      $region10: #{tpu_custom_call.1} parent=5 // pred_check_branch
        %164 = sbr.rel (%p161) target = $region12
      $region11: #{tpu_custom_call.1} parent=5 // pred_region
        %s165 = ssub.s32 %s15, 1
        // Predicated region
        $region13: #{tpu_custom_call.1} parent=11 // pred_check
          %p166 = pneg %p62
        $region14: #{tpu_custom_call.1} parent=11 // pred_check_branch
          %168 = sbr.rel (%p166) target = $region16
        $region15: #{tpu_custom_call.1} parent=11 // pred_region
          _
        $region16: #{tpu_custom_call.1} parent=11 // pred_fallthru
          _
        // Predicated region
        $region17: #{tpu_custom_call.1} parent=11 // pred_check
          %p169 = pneg %p83
        $region18: #{tpu_custom_call.1} parent=11 // pred_check_branch
          %171 = sbr.rel (%p169) target = $region20
        $region19: #{tpu_custom_call.1} parent=11 // pred_region
          %173 = vsyncadd [#allocation5], 0
          %s174 = sshll.u32 %s2, 4
          %s175 = int_to_ptr.hbm [resolvable:$true] %s174
          %s176 = sshll.u32 [#allocation4], 4
          %s177 = int_to_ptr.vmem [resolvable:$true] %s176
          %182 = dma.hbm_to_vmem [thread:$0]  %s175, 9216, %s177, [#allocation5], 64, 64, 4
        $region20: #{tpu_custom_call.1} parent=11 // pred_fallthru
          _
        // Predicated region
        $region21: #{tpu_custom_call.1} parent=11 // pred_check
          %p183 = pneg %p104
        $region22: #{tpu_custom_call.1} parent=11 // pred_check_branch
          %185 = sbr.rel (%p183) target = $region24
        $region23: #{tpu_custom_call.1} parent=11 // pred_region
          _
        $region24: #{tpu_custom_call.1} parent=11 // pred_fallthru
          _
        // Predicated region
        $region25: #{tpu_custom_call.1} parent=11 // pred_check
          %p186 = pneg %p125
        $region26: #{tpu_custom_call.1} parent=11 // pred_check_branch
          %188 = sbr.rel (%p186) target = $region28
        $region27: #{tpu_custom_call.1} parent=11 // pred_region
          _
        $region28: #{tpu_custom_call.1} parent=11 // pred_fallthru
          _
      $region12: #{tpu_custom_call.1} parent=5 // pred_fallthru
        _
      %p189 = scmp.lt.s32.totalorder %s15, 2
      // Predicated region
      $region29: #{tpu_custom_call.1} parent=5 // pred_check
        %p190 = pneg %p189
      $region30: #{tpu_custom_call.1} parent=5 // pred_check_branch
        %192 = sbr.rel (%p190) target = $region32
      $region31: #{tpu_custom_call.1} parent=5 // pred_region
        // Predicated region
        $region33: #{tpu_custom_call.1} parent=31 // pred_check
          %p193 = pneg %p35
        $region34: #{tpu_custom_call.1} parent=31 // pred_check_branch
          %195 = sbr.rel (%p193) target = $region36
        $region35: #{tpu_custom_call.1} parent=31 // pred_region
          %p196 = scmp.lt.s32.totalorder %s15, 1
          %s197 = scalar_select %p196, %s15, 1
          %s198 = smul.addr %s197, 54
          %s199 = smul.addr %s198, 4
          %s200 = scalar_lea.vmem %s0, %s199
        $region36: #{tpu_custom_call.1} parent=31 // pred_fallthru
          _
      $region32: #{tpu_custom_call.1} parent=5 // pred_fallthru
        _
      %p201 = scmp.le.s32.totalorder 1, %s15
      %p202 = scmp.lt.s32.totalorder %s15, 3
      %p203 = pnand %p201, %p202
      %p204 = pneg %p203
      // Predicated region
      $region37: #{tpu_custom_call.1} parent=5 // pred_check
        _
      $region38: #{tpu_custom_call.1} parent=5 // pred_check_branch
        %206 = sbr.rel (%p203) target = $region40
      $region39: #{tpu_custom_call.1} parent=5 // pred_region
        %s207 = ssub.s32 %s15, 1
        // Predicated region
        $region41: #{tpu_custom_call.1} parent=39 // pred_check
          %p208 = pneg %p83
        $region42: #{tpu_custom_call.1} parent=39 // pred_check_branch
          %210 = sbr.rel (%p208) target = $region44
        $region43: #{tpu_custom_call.1} parent=39 // pred_region
          %212 = dma.done [#allocation5], 9216
        $region44: #{tpu_custom_call.1} parent=39 // pred_fallthru
          _
        %p213 = scmp.lt.s32.totalorder %s20, 1
        %s214 = scalar_select %p213, %s20, 1
        %s215 = smul.addr %s214, 54
        %s216 = smul.addr %s215, 4
        %s217 = scalar_lea.vmem %s0, %s216
        %p218 = pneg %p41
        %p219 = pneg %p38
        %p220 = pneg %p62
        %p221 = pneg %p59
        %p222 = pneg %p83
        %p223 = pneg %p80
        %p224 = pneg %p104
        %p225 = pneg %p101
        %p226 = pneg %p125
        %p227 = pneg %p122
        %p228 = pneg %p151
        %p229 = pneg %p148
        %s230 = sand.u32 %s138, 1
        %s231 = scalar_lea.sflag [#allocation6], %s230
        %s232 = sand.u32 %s138, 1
        %s233 = smul.addr %s232, 256
        %s234 = scalar_lea.vmem [#allocation7], %s233
        %p235 = scmp.lt.s32.totalorder %s20, 1
        %s236 = scalar_select %p235, %s20, 1
        %s237 = smul.addr %s236, 54
        %s238 = smul.addr %s237, 4
        %s239 = scalar_lea.vmem %s0, %s238
        %v241 = vld [vmem:[%s239] sm:$0xf]
        %v242 = vld [vmem:[%s239 + $0x4] sm:$0xf]
        %v243 = vld [vmem:[%s239 + $0xc] sm:$0xf]
        %v244 = vld [vmem:[%s239 + $0x10] sm:$0xf]
        %v245 = vld [vmem:[%s239 + $0x18] sm:$0xf]
        %v246 = vld [vmem:[%s239 + $0x1c] sm:$0xf]
        %v247 = vld [vmem:[%s239 + $0x24] sm:$0xf]
        %v248 = vld [vmem:[%s239 + $0x28] sm:$0xf]
        %v249 = vld [vmem:[%s239 + $0x30] sm:$0xf]
        %v250 = vld [vmem:[%s239 + $0x34] sm:$0xf]
        %v251 = vld [vmem:[%s239 + $0x3c] sm:$0xf]
        %v252 = vld [vmem:[%s239 + $0x40] sm:$0xf]
        %v253 = vld [vmem:[%s239 + $0x48] sm:$0xf]
        %v254 = vld [vmem:[%s239 + $0x4c] sm:$0xf]
        %v255 = vld [vmem:[%s239 + $0x54] sm:$0xf]
        %v256 = vld [vmem:[%s239 + $0x58] sm:$0xf]
        %v257 = vld [vmem:[%s239 + $0x60] sm:$0xf]
        %v258 = vld [vmem:[%s239 + $0x64] sm:$0xf]
        %v259 = vld [vmem:[%s239 + $0x6c] sm:$0xf]
        %v260 = vld [vmem:[%s239 + $0x70] sm:$0xf]
        %v261 = vld [vmem:[%s239 + $0x78] sm:$0xf]
        %v262 = vld [vmem:[%s239 + $0x7c] sm:$0xf]
        %v263 = vld [vmem:[%s239 + $0x84] sm:$0xf]
        %v264 = vld [vmem:[%s239 + $0x88] sm:$0xf]
        %v265 = vld [vmem:[%s239 + $0x90] sm:$0xf]
        %v266 = vld [vmem:[%s239 + $0x94] sm:$0xf]
        %v267 = vld [vmem:[%s239 + $0x9c] sm:$0xf]
        %v268 = vld [vmem:[%s239 + $0xa0] sm:$0xf]
        %v269 = vld [vmem:[%s239 + $0xa8] sm:$0xf]
        %v270 = vld [vmem:[%s239 + $0xac] sm:$0xf]
        %v271 = vld [vmem:[%s239 + $0xb4] sm:$0xf]
        %v272 = vld [vmem:[%s239 + $0xb8] sm:$0xf]
        %v273 = vld [vmem:[%s239 + $0xc0] sm:$0xf]
        %v274 = vld [vmem:[%s239 + $0xc4] sm:$0xf]
        %v275 = vld [vmem:[%s239 + $0xcc] sm:$0xf]
        %v276 = vld [vmem:[%s239 + $0xd0] sm:$0xf]
        %277 = vst [vmem:[#allocation3] sm:$0xf] %v241
        %278 = vst [vmem:[#allocation3 + $0xc] sm:$0xf] %v242
        %279 = vst [vmem:[#allocation3 + $0x18] sm:$0xf] %v243
        %280 = vst [vmem:[#allocation3 + $0x24] sm:$0xf] %v244
        %281 = vst [vmem:[#allocation3 + $0x30] sm:$0xf] %v245
        %282 = vst [vmem:[#allocation3 + $0x3c] sm:$0xf] %v246
        %283 = vst [vmem:[#allocation3 + $0x48] sm:$0xf] %v247
        %284 = vst [vmem:[#allocation3 + $0x54] sm:$0xf] %v248
        %285 = vst [vmem:[#allocation3 + $0x60] sm:$0xf] %v249
        %286 = vst [vmem:[#allocation3 + $0x6c] sm:$0xf] %v250
        %287 = vst [vmem:[#allocation3 + $0x78] sm:$0xf] %v251
        %288 = vst [vmem:[#allocation3 + $0x84] sm:$0xf] %v252
        %289 = vst [vmem:[#allocation3 + $0x90] sm:$0xf] %v253
        %290 = vst [vmem:[#allocation3 + $0x9c] sm:$0xf] %v254
        %291 = vst [vmem:[#allocation3 + $0xa8] sm:$0xf] %v255
        %292 = vst [vmem:[#allocation3 + $0xb4] sm:$0xf] %v256
        %293 = vst [vmem:[#allocation3 + $0xc0] sm:$0xf] %v257
        %294 = vst [vmem:[#allocation3 + $0xcc] sm:$0xf] %v258
        %295 = vst [vmem:[#allocation3 + $0xd8] sm:$0xf] %v259
        %296 = vst [vmem:[#allocation3 + $0xe4] sm:$0xf] %v260
        %297 = vst [vmem:[#allocation3 + $0xf0] sm:$0xf] %v261
        %298 = vst [vmem:[#allocation3 + $0xfc] sm:$0xf] %v262
        %299 = vst [vmem:[#allocation3 + $0x108] sm:$0xf] %v263
        %300 = vst [vmem:[#allocation3 + $0x114] sm:$0xf] %v264
        %301 = vst [vmem:[#allocation3 + $0x120] sm:$0xf] %v265
        %302 = vst [vmem:[#allocation3 + $0x12c] sm:$0xf] %v266
        %303 = vst [vmem:[#allocation3 + $0x138] sm:$0xf] %v267
        %304 = vst [vmem:[#allocation3 + $0x144] sm:$0xf] %v268
        %305 = vst [vmem:[#allocation3 + $0x150] sm:$0xf] %v269
        %306 = vst [vmem:[#allocation3 + $0x15c] sm:$0xf] %v270
        %307 = vst [vmem:[#allocation3 + $0x168] sm:$0xf] %v271
        %308 = vst [vmem:[#allocation3 + $0x174] sm:$0xf] %v272
        %309 = vst [vmem:[#allocation3 + $0x180] sm:$0xf] %v273
        %310 = vst [vmem:[#allocation3 + $0x18c] sm:$0xf] %v274
        %311 = vst [vmem:[#allocation3 + $0x198] sm:$0xf] %v275
        %312 = vst [vmem:[#allocation3 + $0x1a4] sm:$0xf] %v276
        %v313 = vld [vmem:[%s239] sm:$0xf]
        %v314 = vld [vmem:[%s239 + $0x4] sm:$0xf]
        %v315 = vld [vmem:[%s239 + $0x8] sm:$0x1]
        %v316 = vld [vmem:[%s239 + $0xc] sm:$0xf]
        %v317 = vld [vmem:[%s239 + $0x10] sm:$0xf]
        %v318 = vld [vmem:[%s239 + $0x14] sm:$0x1]
        %v319 = vld [vmem:[%s239 + $0x18] sm:$0xf]
        %v320 = vld [vmem:[%s239 + $0x1c] sm:$0xf]
        %v321 = vld [vmem:[%s239 + $0x20] sm:$0x1]
        %v322 = vld [vmem:[%s239 + $0x24] sm:$0xf]
        %v323 = vld [vmem:[%s239 + $0x28] sm:$0xf]
        %v324 = vld [vmem:[%s239 + $0x2c] sm:$0x1]
        %v325 = vld [vmem:[%s239 + $0x30] sm:$0xf]
        %v326 = vld [vmem:[%s239 + $0x34] sm:$0xf]
        %v327 = vld [vmem:[%s239 + $0x38] sm:$0x1]
        %v328 = vld [vmem:[%s239 + $0x3c] sm:$0xf]
        %v329 = vld [vmem:[%s239 + $0x40] sm:$0xf]
        %v330 = vld [vmem:[%s239 + $0x44] sm:$0x1]
        %v331 = vld [vmem:[%s239 + $0x48] sm:$0xf]
        %v332 = vld [vmem:[%s239 + $0x4c] sm:$0xf]
        %v333 = vld [vmem:[%s239 + $0x50] sm:$0x1]
        %v334 = vld [vmem:[%s239 + $0x54] sm:$0xf]
        %v335 = vld [vmem:[%s239 + $0x58] sm:$0xf]
        %v336 = vld [vmem:[%s239 + $0x5c] sm:$0x1]
        %v337 = vld [vmem:[%s239 + $0x60] sm:$0xf]
        %v338 = vld [vmem:[%s239 + $0x64] sm:$0xf]
        %v339 = vld [vmem:[%s239 + $0x68] sm:$0x1]
        %v340 = vld [vmem:[%s239 + $0x6c] sm:$0xf]
        %v341 = vld [vmem:[%s239 + $0x70] sm:$0xf]
        %v342 = vld [vmem:[%s239 + $0x74] sm:$0x1]
        %v343 = vld [vmem:[%s239 + $0x78] sm:$0xf]
        %v344 = vld [vmem:[%s239 + $0x7c] sm:$0xf]
        %v345 = vld [vmem:[%s239 + $0x80] sm:$0x1]
        %v346 = vld [vmem:[%s239 + $0x84] sm:$0xf]
        %v347 = vld [vmem:[%s239 + $0x88] sm:$0xf]
        %v348 = vld [vmem:[%s239 + $0x8c] sm:$0x1]
        %v349 = vld [vmem:[%s239 + $0x90] sm:$0xf]
        %v350 = vld [vmem:[%s239 + $0x94] sm:$0xf]
        %v351 = vld [vmem:[%s239 + $0x98] sm:$0x1]
        %v352 = vld [vmem:[%s239 + $0x9c] sm:$0xf]
        %v353 = vld [vmem:[%s239 + $0xa0] sm:$0xf]
        %v354 = vld [vmem:[%s239 + $0xa4] sm:$0x1]
        %v355 = vld [vmem:[%s239 + $0xa8] sm:$0xf]
        %v356 = vld [vmem:[%s239 + $0xac] sm:$0xf]
        %v357 = vld [vmem:[%s239 + $0xb0] sm:$0x1]
        %v358 = vld [vmem:[%s239 + $0xb4] sm:$0xf]
        %v359 = vld [vmem:[%s239 + $0xb8] sm:$0xf]
        %v360 = vld [vmem:[%s239 + $0xbc] sm:$0x1]
        %v361 = vld [vmem:[%s239 + $0xc0] sm:$0xf]
        %v362 = vld [vmem:[%s239 + $0xc4] sm:$0xf]
        %v363 = vld [vmem:[%s239 + $0xc8] sm:$0x1]
        %v364 = vld [vmem:[%s239 + $0xcc] sm:$0xf]
        %v365 = vld [vmem:[%s239 + $0xd0] sm:$0xf]
        %v366 = vld [vmem:[%s239 + $0xd4] sm:$0x1]
        %vm367 = vsmask.f32 3328
        %vm368 = vsmask.f32 7440
        %vm369 = vmor %vm367, %vm368
        %v371 = vshrl.u32 %v313, 16
        %v373 = vrot.slane %v371, 4
        %v374 = vshll.u32 %v313, 16
        %v376 = vrot.slane %v374, 5
        %v377 = vor.u32 %v373, %v376
        %v378 = vrot.slane %v377, 4
        %v380 = vshll.u32 %v314, 16
        %v382 = vrot.slane %v380, 5
        %v383 = vsel %vm369, %v378, %v382
        %v384 = vshrl.u32 %v314, 16
        %v386 = vrot.slane %v384, 4
        %v387 = vor.u32 %v386, %v382
        %v388 = vrot.slane %v387, 4
        %v390 = vshll.u32 %v315, 16
        %v392 = vrot.slane %v390, 5
        %v393 = vsel %vm369, %v388, %v392
        %v395 = vshrl.u32 %v316, 16
        %v397 = vrot.slane %v395, 4
        %v398 = vshll.u32 %v316, 16
        %v400 = vrot.slane %v398, 5
        %v401 = vor.u32 %v397, %v400
        %v402 = vrot.slane %v401, 4
        %v404 = vshll.u32 %v317, 16
        %v406 = vrot.slane %v404, 5
        %v407 = vsel %vm369, %v402, %v406
        %v408 = vshrl.u32 %v317, 16
        %v410 = vrot.slane %v408, 4
        %v411 = vor.u32 %v410, %v406
        %v412 = vrot.slane %v411, 4
        %v414 = vshll.u32 %v318, 16
        %v416 = vrot.slane %v414, 5
        %v417 = vsel %vm369, %v412, %v416
        %v419 = vshrl.u32 %v319, 16
        %v421 = vrot.slane %v419, 4
        %v422 = vshll.u32 %v319, 16
        %v424 = vrot.slane %v422, 5
        %v425 = vor.u32 %v421, %v424
        %v426 = vrot.slane %v425, 4
        %v428 = vshll.u32 %v320, 16
        %v430 = vrot.slane %v428, 5
        %v431 = vsel %vm369, %v426, %v430
        %v432 = vshrl.u32 %v320, 16
        %v434 = vrot.slane %v432, 4
        %v435 = vor.u32 %v434, %v430
        %v436 = vrot.slane %v435, 4
        %v438 = vshll.u32 %v321, 16
        %v440 = vrot.slane %v438, 5
        %v441 = vsel %vm369, %v436, %v440
        %v443 = vshrl.u32 %v322, 16
        %v445 = vrot.slane %v443, 4
        %v446 = vshll.u32 %v322, 16
        %v448 = vrot.slane %v446, 5
        %v449 = vor.u32 %v445, %v448
        %v450 = vrot.slane %v449, 4
        %v452 = vshll.u32 %v323, 16
        %v454 = vrot.slane %v452, 5
        %v455 = vsel %vm369, %v450, %v454
        %v456 = vshrl.u32 %v323, 16
        %v458 = vrot.slane %v456, 4
        %v459 = vor.u32 %v458, %v454
        %v460 = vrot.slane %v459, 4
        %v462 = vshll.u32 %v324, 16
        %v464 = vrot.slane %v462, 5
        %v465 = vsel %vm369, %v460, %v464
        %v467 = vshrl.u32 %v325, 16
        %v469 = vrot.slane %v467, 4
        %v470 = vshll.u32 %v325, 16
        %v472 = vrot.slane %v470, 5
        %v473 = vor.u32 %v469, %v472
        %v474 = vrot.slane %v473, 4
        %v476 = vshll.u32 %v326, 16
        %v478 = vrot.slane %v476, 5
        %v479 = vsel %vm369, %v474, %v478
        %v480 = vshrl.u32 %v326, 16
        %v482 = vrot.slane %v480, 4
        %v483 = vor.u32 %v482, %v478
        %v484 = vrot.slane %v483, 4
        %v486 = vshll.u32 %v327, 16
        %v488 = vrot.slane %v486, 5
        %v489 = vsel %vm369, %v484, %v488
        %v491 = vshrl.u32 %v328, 16
        %v493 = vrot.slane %v491, 4
        %v494 = vshll.u32 %v328, 16
        %v496 = vrot.slane %v494, 5
        %v497 = vor.u32 %v493, %v496
        %v498 = vrot.slane %v497, 4
        %v500 = vshll.u32 %v329, 16
        %v502 = vrot.slane %v500, 5
        %v503 = vsel %vm369, %v498, %v502
        %v504 = vshrl.u32 %v329, 16
        %v506 = vrot.slane %v504, 4
        %v507 = vor.u32 %v506, %v502
        %v508 = vrot.slane %v507, 4
        %v510 = vshll.u32 %v330, 16
        %v512 = vrot.slane %v510, 5
        %v513 = vsel %vm369, %v508, %v512
        %v515 = vshrl.u32 %v331, 16
        %v517 = vrot.slane %v515, 4
        %v518 = vshll.u32 %v331, 16
        %v520 = vrot.slane %v518, 5
        %v521 = vor.u32 %v517, %v520
        %v522 = vrot.slane %v521, 4
        %v524 = vshll.u32 %v332, 16
        %v526 = vrot.slane %v524, 5
        %v527 = vsel %vm369, %v522, %v526
        %v528 = vshrl.u32 %v332, 16
        %v530 = vrot.slane %v528, 4
        %v531 = vor.u32 %v530, %v526
        %v532 = vrot.slane %v531, 4
        %v534 = vshll.u32 %v333, 16
        %v536 = vrot.slane %v534, 5
        %v537 = vsel %vm369, %v532, %v536
        %v539 = vshrl.u32 %v334, 16
        %v541 = vrot.slane %v539, 4
        %v542 = vshll.u32 %v334, 16
        %v544 = vrot.slane %v542, 5
        %v545 = vor.u32 %v541, %v544
        %v546 = vrot.slane %v545, 4
        %v548 = vshll.u32 %v335, 16
        %v550 = vrot.slane %v548, 5
        %v551 = vsel %vm369, %v546, %v550
        %v552 = vshrl.u32 %v335, 16
        %v554 = vrot.slane %v552, 4
        %v555 = vor.u32 %v554, %v550
        %v556 = vrot.slane %v555, 4
        %v558 = vshll.u32 %v336, 16
        %v560 = vrot.slane %v558, 5
        %v561 = vsel %vm369, %v556, %v560
        %v563 = vshrl.u32 %v337, 16
        %v565 = vrot.slane %v563, 4
        %v566 = vshll.u32 %v337, 16
        %v568 = vrot.slane %v566, 5
        %v569 = vor.u32 %v565, %v568
        %v570 = vrot.slane %v569, 4
        %v572 = vshll.u32 %v338, 16
        %v574 = vrot.slane %v572, 5
        %v575 = vsel %vm369, %v570, %v574
        %v576 = vshrl.u32 %v338, 16
        %v578 = vrot.slane %v576, 4
        %v579 = vor.u32 %v578, %v574
        %v580 = vrot.slane %v579, 4
        %v582 = vshll.u32 %v339, 16
        %v584 = vrot.slane %v582, 5
        %v585 = vsel %vm369, %v580, %v584
        %v587 = vshrl.u32 %v340, 16
        %v589 = vrot.slane %v587, 4
        %v590 = vshll.u32 %v340, 16
        %v592 = vrot.slane %v590, 5
        %v593 = vor.u32 %v589, %v592
        %v594 = vrot.slane %v593, 4
        %v596 = vshll.u32 %v341, 16
        %v598 = vrot.slane %v596, 5
        %v599 = vsel %vm369, %v594, %v598
        %v600 = vshrl.u32 %v341, 16
        %v602 = vrot.slane %v600, 4
        %v603 = vor.u32 %v602, %v598
        %v604 = vrot.slane %v603, 4
        %v606 = vshll.u32 %v342, 16
        %v608 = vrot.slane %v606, 5
        %v609 = vsel %vm369, %v604, %v608
        %v611 = vshrl.u32 %v343, 16
        %v613 = vrot.slane %v611, 4
        %v614 = vshll.u32 %v343, 16
        %v616 = vrot.slane %v614, 5
        %v617 = vor.u32 %v613, %v616
        %v618 = vrot.slane %v617, 4
        %v620 = vshll.u32 %v344, 16
        %v622 = vrot.slane %v620, 5
        %v623 = vsel %vm369, %v618, %v622
        %v624 = vshrl.u32 %v344, 16
        %v626 = vrot.slane %v624, 4
        %v627 = vor.u32 %v626, %v622
        %v628 = vrot.slane %v627, 4
        %v630 = vshll.u32 %v345, 16
        %v632 = vrot.slane %v630, 5
        %v633 = vsel %vm369, %v628, %v632
        %v635 = vshrl.u32 %v346, 16
        %v637 = vrot.slane %v635, 4
        %v638 = vshll.u32 %v346, 16
        %v640 = vrot.slane %v638, 5
        %v641 = vor.u32 %v637, %v640
        %v642 = vrot.slane %v641, 4
        %v644 = vshll.u32 %v347, 16
        %v646 = vrot.slane %v644, 5
        %v647 = vsel %vm369, %v642, %v646
        %v648 = vshrl.u32 %v347, 16
        %v650 = vrot.slane %v648, 4
        %v651 = vor.u32 %v650, %v646
        %v652 = vrot.slane %v651, 4
        %v654 = vshll.u32 %v348, 16
        %v656 = vrot.slane %v654, 5
        %v657 = vsel %vm369, %v652, %v656
        %v659 = vshrl.u32 %v349, 16
        %v661 = vrot.slane %v659, 4
        %v662 = vshll.u32 %v349, 16
        %v664 = vrot.slane %v662, 5
        %v665 = vor.u32 %v661, %v664
        %v666 = vrot.slane %v665, 4
        %v668 = vshll.u32 %v350, 16
        %v670 = vrot.slane %v668, 5
        %v671 = vsel %vm369, %v666, %v670
        %v672 = vshrl.u32 %v350, 16
        %v674 = vrot.slane %v672, 4
        %v675 = vor.u32 %v674, %v670
        %v676 = vrot.slane %v675, 4
        %v678 = vshll.u32 %v351, 16
        %v680 = vrot.slane %v678, 5
        %v681 = vsel %vm369, %v676, %v680
        %v683 = vshrl.u32 %v352, 16
        %v685 = vrot.slane %v683, 4
        %v686 = vshll.u32 %v352, 16
        %v688 = vrot.slane %v686, 5
        %v689 = vor.u32 %v685, %v688
        %v690 = vrot.slane %v689, 4
        %v692 = vshll.u32 %v353, 16
        %v694 = vrot.slane %v692, 5
        %v695 = vsel %vm369, %v690, %v694
        %v696 = vshrl.u32 %v353, 16
        %v698 = vrot.slane %v696, 4
        %v699 = vor.u32 %v698, %v694
        %v700 = vrot.slane %v699, 4
        %v702 = vshll.u32 %v354, 16
        %v704 = vrot.slane %v702, 5
        %v705 = vsel %vm369, %v700, %v704
        %v707 = vshrl.u32 %v355, 16
        %v709 = vrot.slane %v707, 4
        %v710 = vshll.u32 %v355, 16
        %v712 = vrot.slane %v710, 5
        %v713 = vor.u32 %v709, %v712
        %v714 = vrot.slane %v713, 4
        %v716 = vshll.u32 %v356, 16
        %v718 = vrot.slane %v716, 5
        %v719 = vsel %vm369, %v714, %v718
        %v720 = vshrl.u32 %v356, 16
        %v722 = vrot.slane %v720, 4
        %v723 = vor.u32 %v722, %v718
        %v724 = vrot.slane %v723, 4
        %v726 = vshll.u32 %v357, 16
        %v728 = vrot.slane %v726, 5
        %v729 = vsel %vm369, %v724, %v728
        %v731 = vshrl.u32 %v358, 16
        %v733 = vrot.slane %v731, 4
        %v734 = vshll.u32 %v358, 16
        %v736 = vrot.slane %v734, 5
        %v737 = vor.u32 %v733, %v736
        %v738 = vrot.slane %v737, 4
        %v740 = vshll.u32 %v359, 16
        %v742 = vrot.slane %v740, 5
        %v743 = vsel %vm369, %v738, %v742
        %v744 = vshrl.u32 %v359, 16
        %v746 = vrot.slane %v744, 4
        %v747 = vor.u32 %v746, %v742
        %v748 = vrot.slane %v747, 4
        %v750 = vshll.u32 %v360, 16
        %v752 = vrot.slane %v750, 5
        %v753 = vsel %vm369, %v748, %v752
        %v755 = vshrl.u32 %v361, 16
        %v757 = vrot.slane %v755, 4
        %v758 = vshll.u32 %v361, 16
        %v760 = vrot.slane %v758, 5
        %v761 = vor.u32 %v757, %v760
        %v762 = vrot.slane %v761, 4
        %v764 = vshll.u32 %v362, 16
        %v766 = vrot.slane %v764, 5
        %v767 = vsel %vm369, %v762, %v766
        %v768 = vshrl.u32 %v362, 16
        %v770 = vrot.slane %v768, 4
        %v771 = vor.u32 %v770, %v766
        %v772 = vrot.slane %v771, 4
        %v774 = vshll.u32 %v363, 16
        %v776 = vrot.slane %v774, 5
        %v777 = vsel %vm369, %v772, %v776
        %v779 = vshrl.u32 %v364, 16
        %v781 = vrot.slane %v779, 4
        %v782 = vshll.u32 %v364, 16
        %v784 = vrot.slane %v782, 5
        %v785 = vor.u32 %v781, %v784
        %v786 = vrot.slane %v785, 4
        %v788 = vshll.u32 %v365, 16
        %v790 = vrot.slane %v788, 5
        %v791 = vsel %vm369, %v786, %v790
        %v792 = vshrl.u32 %v365, 16
        %v794 = vrot.slane %v792, 4
        %v795 = vor.u32 %v794, %v790
        %v796 = vrot.slane %v795, 4
        %v798 = vshll.u32 %v366, 16
        %v800 = vrot.slane %v798, 5
        %v801 = vsel %vm369, %v796, %v800
        %838 = vst [vmem:[#allocation3 + $0x4] sm:$0xf] %v383
        %839 = vst [vmem:[#allocation3 + $0x10] sm:$0xf] %v393
        %840 = vst [vmem:[#allocation3 + $0x1c] sm:$0xf] %v407
        %841 = vst [vmem:[#allocation3 + $0x28] sm:$0xf] %v417
        %842 = vst [vmem:[#allocation3 + $0x34] sm:$0xf] %v431
        %843 = vst [vmem:[#allocation3 + $0x40] sm:$0xf] %v441
        %844 = vst [vmem:[#allocation3 + $0x4c] sm:$0xf] %v455
        %845 = vst [vmem:[#allocation3 + $0x58] sm:$0xf] %v465
        %846 = vst [vmem:[#allocation3 + $0x64] sm:$0xf] %v479
        %847 = vst [vmem:[#allocation3 + $0x70] sm:$0xf] %v489
        %848 = vst [vmem:[#allocation3 + $0x7c] sm:$0xf] %v503
        %849 = vst [vmem:[#allocation3 + $0x88] sm:$0xf] %v513
        %850 = vst [vmem:[#allocation3 + $0x94] sm:$0xf] %v527
        %851 = vst [vmem:[#allocation3 + $0xa0] sm:$0xf] %v537
        %852 = vst [vmem:[#allocation3 + $0xac] sm:$0xf] %v551
        %853 = vst [vmem:[#allocation3 + $0xb8] sm:$0xf] %v561
        %854 = vst [vmem:[#allocation3 + $0xc4] sm:$0xf] %v575
        %855 = vst [vmem:[#allocation3 + $0xd0] sm:$0xf] %v585
        %856 = vst [vmem:[#allocation3 + $0xdc] sm:$0xf] %v599
        %857 = vst [vmem:[#allocation3 + $0xe8] sm:$0xf] %v609
        %858 = vst [vmem:[#allocation3 + $0xf4] sm:$0xf] %v623
        %859 = vst [vmem:[#allocation3 + $0x100] sm:$0xf] %v633
        %860 = vst [vmem:[#allocation3 + $0x10c] sm:$0xf] %v647
        %861 = vst [vmem:[#allocation3 + $0x118] sm:$0xf] %v657
        %862 = vst [vmem:[#allocation3 + $0x124] sm:$0xf] %v671
        %863 = vst [vmem:[#allocation3 + $0x130] sm:$0xf] %v681
        %864 = vst [vmem:[#allocation3 + $0x13c] sm:$0xf] %v695
        %865 = vst [vmem:[#allocation3 + $0x148] sm:$0xf] %v705
        %866 = vst [vmem:[#allocation3 + $0x154] sm:$0xf] %v719
        %867 = vst [vmem:[#allocation3 + $0x160] sm:$0xf] %v729
        %868 = vst [vmem:[#allocation3 + $0x16c] sm:$0xf] %v743
        %869 = vst [vmem:[#allocation3 + $0x178] sm:$0xf] %v753
        %870 = vst [vmem:[#allocation3 + $0x184] sm:$0xf] %v767
        %871 = vst [vmem:[#allocation3 + $0x190] sm:$0xf] %v777
        %872 = vst [vmem:[#allocation3 + $0x19c] sm:$0xf] %v791
        %873 = vst [vmem:[#allocation3 + $0x1a8] sm:$0xf] %v801
        %v874 = vld [vmem:[%s239] sm:$0xe]
        %v875 = vld [vmem:[%s239 + $0x4] sm:$0xf]
        %v876 = vld [vmem:[%s239 + $0x8] sm:$0x1]
        %v877 = vld [vmem:[%s239 + $0xc] sm:$0xe]
        %v878 = vld [vmem:[%s239 + $0x10] sm:$0xf]
        %v879 = vld [vmem:[%s239 + $0x14] sm:$0x1]
        %v880 = vld [vmem:[%s239 + $0x18] sm:$0xe]
        %v881 = vld [vmem:[%s239 + $0x1c] sm:$0xf]
        %v882 = vld [vmem:[%s239 + $0x20] sm:$0x1]
        %v883 = vld [vmem:[%s239 + $0x24] sm:$0xe]
        %v884 = vld [vmem:[%s239 + $0x28] sm:$0xf]
        %v885 = vld [vmem:[%s239 + $0x2c] sm:$0x1]
        %v886 = vld [vmem:[%s239 + $0x30] sm:$0xe]
        %v887 = vld [vmem:[%s239 + $0x34] sm:$0xf]
        %v888 = vld [vmem:[%s239 + $0x38] sm:$0x1]
        %v889 = vld [vmem:[%s239 + $0x3c] sm:$0xe]
        %v890 = vld [vmem:[%s239 + $0x40] sm:$0xf]
        %v891 = vld [vmem:[%s239 + $0x44] sm:$0x1]
        %v892 = vld [vmem:[%s239 + $0x48] sm:$0xe]
        %v893 = vld [vmem:[%s239 + $0x4c] sm:$0xf]
        %v894 = vld [vmem:[%s239 + $0x50] sm:$0x1]
        %v895 = vld [vmem:[%s239 + $0x54] sm:$0xe]
        %v896 = vld [vmem:[%s239 + $0x58] sm:$0xf]
        %v897 = vld [vmem:[%s239 + $0x5c] sm:$0x1]
        %v898 = vld [vmem:[%s239 + $0x60] sm:$0xe]
        %v899 = vld [vmem:[%s239 + $0x64] sm:$0xf]
        %v900 = vld [vmem:[%s239 + $0x68] sm:$0x1]
        %v901 = vld [vmem:[%s239 + $0x6c] sm:$0xe]
        %v902 = vld [vmem:[%s239 + $0x70] sm:$0xf]
        %v903 = vld [vmem:[%s239 + $0x74] sm:$0x1]
        %v904 = vld [vmem:[%s239 + $0x78] sm:$0xe]
        %v905 = vld [vmem:[%s239 + $0x7c] sm:$0xf]
        %v906 = vld [vmem:[%s239 + $0x80] sm:$0x1]
        %v907 = vld [vmem:[%s239 + $0x84] sm:$0xe]
        %v908 = vld [vmem:[%s239 + $0x88] sm:$0xf]
        %v909 = vld [vmem:[%s239 + $0x8c] sm:$0x1]
        %v910 = vld [vmem:[%s239 + $0x90] sm:$0xe]
        %v911 = vld [vmem:[%s239 + $0x94] sm:$0xf]
        %v912 = vld [vmem:[%s239 + $0x98] sm:$0x1]
        %v913 = vld [vmem:[%s239 + $0x9c] sm:$0xe]
        %v914 = vld [vmem:[%s239 + $0xa0] sm:$0xf]
        %v915 = vld [vmem:[%s239 + $0xa4] sm:$0x1]
        %v916 = vld [vmem:[%s239 + $0xa8] sm:$0xe]
        %v917 = vld [vmem:[%s239 + $0xac] sm:$0xf]
        %v918 = vld [vmem:[%s239 + $0xb0] sm:$0x1]
        %v919 = vld [vmem:[%s239 + $0xb4] sm:$0xe]
        %v920 = vld [vmem:[%s239 + $0xb8] sm:$0xf]
        %v921 = vld [vmem:[%s239 + $0xbc] sm:$0x1]
        %v922 = vld [vmem:[%s239 + $0xc0] sm:$0xe]
        %v923 = vld [vmem:[%s239 + $0xc4] sm:$0xf]
        %v924 = vld [vmem:[%s239 + $0xc8] sm:$0x1]
        %v925 = vld [vmem:[%s239 + $0xcc] sm:$0xe]
        %v926 = vld [vmem:[%s239 + $0xd0] sm:$0xf]
        %v927 = vld [vmem:[%s239 + $0xd4] sm:$0x1]
        %vm982 = vcmask 1042432
        %vm983 = vcmask 1046532
        %vm984 = vmor %vm982, %vm983
        %v985 = vrot.slane %v874, 5
        %v986 = vrot.slane %v985, 4
        %v987 = vrot.slane %v875, 5
        %v988 = vsel %vm984, %v986, %v987
        %v989 = vrot.slane %v987, 4
        %v990 = vrot.slane %v876, 5
        %v991 = vsel %vm984, %v989, %v990
        %v992 = vrot.slane %v877, 5
        %v993 = vrot.slane %v992, 4
        %v994 = vrot.slane %v878, 5
        %v995 = vsel %vm984, %v993, %v994
        %v996 = vrot.slane %v994, 4
        %v997 = vrot.slane %v879, 5
        %v998 = vsel %vm984, %v996, %v997
        %v999 = vrot.slane %v880, 5
        %v1000 = vrot.slane %v999, 4
        %v1001 = vrot.slane %v881, 5
        %v1002 = vsel %vm984, %v1000, %v1001
        %v1003 = vrot.slane %v1001, 4
        %v1004 = vrot.slane %v882, 5
        %v1005 = vsel %vm984, %v1003, %v1004
        %v1006 = vrot.slane %v883, 5
        %v1007 = vrot.slane %v1006, 4
        %v1008 = vrot.slane %v884, 5
        %v1009 = vsel %vm984, %v1007, %v1008
        %v1010 = vrot.slane %v1008, 4
        %v1011 = vrot.slane %v885, 5
        %v1012 = vsel %vm984, %v1010, %v1011
        %v1013 = vrot.slane %v886, 5
        %v1014 = vrot.slane %v1013, 4
        %v1015 = vrot.slane %v887, 5
        %v1016 = vsel %vm984, %v1014, %v1015
        %v1017 = vrot.slane %v1015, 4
        %v1018 = vrot.slane %v888, 5
        %v1019 = vsel %vm984, %v1017, %v1018
        %v1020 = vrot.slane %v889, 5
        %v1021 = vrot.slane %v1020, 4
        %v1022 = vrot.slane %v890, 5
        %v1023 = vsel %vm984, %v1021, %v1022
        %v1024 = vrot.slane %v1022, 4
        %v1025 = vrot.slane %v891, 5
        %v1026 = vsel %vm984, %v1024, %v1025
        %v1027 = vrot.slane %v892, 5
        %v1028 = vrot.slane %v1027, 4
        %v1029 = vrot.slane %v893, 5
        %v1030 = vsel %vm984, %v1028, %v1029
        %v1031 = vrot.slane %v1029, 4
        %v1032 = vrot.slane %v894, 5
        %v1033 = vsel %vm984, %v1031, %v1032
        %v1034 = vrot.slane %v895, 5
        %v1035 = vrot.slane %v1034, 4
        %v1036 = vrot.slane %v896, 5
        %v1037 = vsel %vm984, %v1035, %v1036
        %v1038 = vrot.slane %v1036, 4
        %v1039 = vrot.slane %v897, 5
        %v1040 = vsel %vm984, %v1038, %v1039
        %v1041 = vrot.slane %v898, 5
        %v1042 = vrot.slane %v1041, 4
        %v1043 = vrot.slane %v899, 5
        %v1044 = vsel %vm984, %v1042, %v1043
        %v1045 = vrot.slane %v1043, 4
        %v1046 = vrot.slane %v900, 5
        %v1047 = vsel %vm984, %v1045, %v1046
        %v1048 = vrot.slane %v901, 5
        %v1049 = vrot.slane %v1048, 4
        %v1050 = vrot.slane %v902, 5
        %v1051 = vsel %vm984, %v1049, %v1050
        %v1052 = vrot.slane %v1050, 4
        %v1053 = vrot.slane %v903, 5
        %v1054 = vsel %vm984, %v1052, %v1053
        %v1055 = vrot.slane %v904, 5
        %v1056 = vrot.slane %v1055, 4
        %v1057 = vrot.slane %v905, 5
        %v1058 = vsel %vm984, %v1056, %v1057
        %v1059 = vrot.slane %v1057, 4
        %v1060 = vrot.slane %v906, 5
        %v1061 = vsel %vm984, %v1059, %v1060
        %v1062 = vrot.slane %v907, 5
        %v1063 = vrot.slane %v1062, 4
        %v1064 = vrot.slane %v908, 5
        %v1065 = vsel %vm984, %v1063, %v1064
        %v1066 = vrot.slane %v1064, 4
        %v1067 = vrot.slane %v909, 5
        %v1068 = vsel %vm984, %v1066, %v1067
        %v1069 = vrot.slane %v910, 5
        %v1070 = vrot.slane %v1069, 4
        %v1071 = vrot.slane %v911, 5
        %v1072 = vsel %vm984, %v1070, %v1071
        %v1073 = vrot.slane %v1071, 4
        %v1074 = vrot.slane %v912, 5
        %v1075 = vsel %vm984, %v1073, %v1074
        %v1076 = vrot.slane %v913, 5
        %v1077 = vrot.slane %v1076, 4
        %v1078 = vrot.slane %v914, 5
        %v1079 = vsel %vm984, %v1077, %v1078
        %v1080 = vrot.slane %v1078, 4
        %v1081 = vrot.slane %v915, 5
        %v1082 = vsel %vm984, %v1080, %v1081
        %v1083 = vrot.slane %v916, 5
        %v1084 = vrot.slane %v1083, 4
        %v1085 = vrot.slane %v917, 5
        %v1086 = vsel %vm984, %v1084, %v1085
        %v1087 = vrot.slane %v1085, 4
        %v1088 = vrot.slane %v918, 5
        %v1089 = vsel %vm984, %v1087, %v1088
        %v1090 = vrot.slane %v919, 5
        %v1091 = vrot.slane %v1090, 4
        %v1092 = vrot.slane %v920, 5
        %v1093 = vsel %vm984, %v1091, %v1092
        %v1094 = vrot.slane %v1092, 4
        %v1095 = vrot.slane %v921, 5
        %v1096 = vsel %vm984, %v1094, %v1095
        %v1097 = vrot.slane %v922, 5
        %v1098 = vrot.slane %v1097, 4
        %v1099 = vrot.slane %v923, 5
        %v1100 = vsel %vm984, %v1098, %v1099
        %v1101 = vrot.slane %v1099, 4
        %v1102 = vrot.slane %v924, 5
        %v1103 = vsel %vm984, %v1101, %v1102
        %v1104 = vrot.slane %v925, 5
        %v1105 = vrot.slane %v1104, 4
        %v1106 = vrot.slane %v926, 5
        %v1107 = vsel %vm984, %v1105, %v1106
        %v1108 = vrot.slane %v1106, 4
        %v1109 = vrot.slane %v927, 5
        %v1110 = vsel %vm984, %v1108, %v1109
        %1147 = vst [vmem:[#allocation3 + $0x8] sm:$0xf] %v988
        %1148 = vst [vmem:[#allocation3 + $0x14] sm:$0xf] %v991
        %1149 = vst [vmem:[#allocation3 + $0x20] sm:$0xf] %v995
        %1150 = vst [vmem:[#allocation3 + $0x2c] sm:$0xf] %v998
        %1151 = vst [vmem:[#allocation3 + $0x38] sm:$0xf] %v1002
        %1152 = vst [vmem:[#allocation3 + $0x44] sm:$0xf] %v1005
        %1153 = vst [vmem:[#allocation3 + $0x50] sm:$0xf] %v1009
        %1154 = vst [vmem:[#allocation3 + $0x5c] sm:$0xf] %v1012
        %1155 = vst [vmem:[#allocation3 + $0x68] sm:$0xf] %v1016
        %1156 = vst [vmem:[#allocation3 + $0x74] sm:$0xf] %v1019
        %1157 = vst [vmem:[#allocation3 + $0x80] sm:$0xf] %v1023
        %1158 = vst [vmem:[#allocation3 + $0x8c] sm:$0xf] %v1026
        %1159 = vst [vmem:[#allocation3 + $0x98] sm:$0xf] %v1030
        %1160 = vst [vmem:[#allocation3 + $0xa4] sm:$0xf] %v1033
        %1161 = vst [vmem:[#allocation3 + $0xb0] sm:$0xf] %v1037
        %1162 = vst [vmem:[#allocation3 + $0xbc] sm:$0xf] %v1040
        %1163 = vst [vmem:[#allocation3 + $0xc8] sm:$0xf] %v1044
        %1164 = vst [vmem:[#allocation3 + $0xd4] sm:$0xf] %v1047
        %1165 = vst [vmem:[#allocation3 + $0xe0] sm:$0xf] %v1051
        %1166 = vst [vmem:[#allocation3 + $0xec] sm:$0xf] %v1054
        %1167 = vst [vmem:[#allocation3 + $0xf8] sm:$0xf] %v1058
        %1168 = vst [vmem:[#allocation3 + $0x104] sm:$0xf] %v1061
        %1169 = vst [vmem:[#allocation3 + $0x110] sm:$0xf] %v1065
        %1170 = vst [vmem:[#allocation3 + $0x11c] sm:$0xf] %v1068
        %1171 = vst [vmem:[#allocation3 + $0x128] sm:$0xf] %v1072
        %1172 = vst [vmem:[#allocation3 + $0x134] sm:$0xf] %v1075
        %1173 = vst [vmem:[#allocation3 + $0x140] sm:$0xf] %v1079
        %1174 = vst [vmem:[#allocation3 + $0x14c] sm:$0xf] %v1082
        %1175 = vst [vmem:[#allocation3 + $0x158] sm:$0xf] %v1086
        %1176 = vst [vmem:[#allocation3 + $0x164] sm:$0xf] %v1089
        %1177 = vst [vmem:[#allocation3 + $0x170] sm:$0xf] %v1093
        %1178 = vst [vmem:[#allocation3 + $0x17c] sm:$0xf] %v1096
        %1179 = vst [vmem:[#allocation3 + $0x188] sm:$0xf] %v1100
        %1180 = vst [vmem:[#allocation3 + $0x194] sm:$0xf] %v1103
        %1181 = vst [vmem:[#allocation3 + $0x1a0] sm:$0xf] %v1107
        %1182 = vst [vmem:[#allocation3 + $0x1ac] sm:$0xf] %v1110
        %v1183 = vld [vmem:[#allocation3] sm:$0xff]
        %v1184 = vld [vmem:[#allocation3 + $0x8] sm:$0xf]
        %v1185 = vld [vmem:[#allocation3 + $0xc] sm:$0xff]
        %v1186 = vld [vmem:[#allocation3 + $0x14] sm:$0xf]
        %v1187 = vld [vmem:[#allocation3 + $0x18] sm:$0xff]
        %v1188 = vld [vmem:[#allocation3 + $0x20] sm:$0xf]
        %v1189 = vld [vmem:[#allocation3 + $0x24] sm:$0xff]
        %v1190 = vld [vmem:[#allocation3 + $0x2c] sm:$0xf]
        %v1191 = vld [vmem:[#allocation3 + $0x30] sm:$0xff]
        %v1192 = vld [vmem:[#allocation3 + $0x38] sm:$0xf]
        %v1193 = vld [vmem:[#allocation3 + $0x3c] sm:$0xff]
        %v1194 = vld [vmem:[#allocation3 + $0x44] sm:$0xf]
        %v1195 = vld [vmem:[#allocation3 + $0x48] sm:$0xff]
        %v1196 = vld [vmem:[#allocation3 + $0x50] sm:$0xf]
        %v1197 = vld [vmem:[#allocation3 + $0x54] sm:$0xff]
        %v1198 = vld [vmem:[#allocation3 + $0x5c] sm:$0xf]
        %v1199 = vld [vmem:[#allocation3 + $0x60] sm:$0xff]
        %v1200 = vld [vmem:[#allocation3 + $0x68] sm:$0xf]
        %v1201 = vld [vmem:[#allocation3 + $0x6c] sm:$0xff]
        %v1202 = vld [vmem:[#allocation3 + $0x74] sm:$0xf]
        %v1203 = vld [vmem:[#allocation3 + $0x78] sm:$0xff]
        %v1204 = vld [vmem:[#allocation3 + $0x80] sm:$0xf]
        %v1205 = vld [vmem:[#allocation3 + $0x84] sm:$0xff]
        %v1206 = vld [vmem:[#allocation3 + $0x8c] sm:$0xf]
        %v1207 = vld [vmem:[#allocation3 + $0x90] sm:$0xff]
        %v1208 = vld [vmem:[#allocation3 + $0x98] sm:$0xf]
        %v1209 = vld [vmem:[#allocation3 + $0x9c] sm:$0xff]
        %v1210 = vld [vmem:[#allocation3 + $0xa4] sm:$0xf]
        %v1211 = vld [vmem:[#allocation3 + $0xa8] sm:$0xff]
        %v1212 = vld [vmem:[#allocation3 + $0xb0] sm:$0xf]
        %v1213 = vld [vmem:[#allocation3 + $0xb4] sm:$0xff]
        %v1214 = vld [vmem:[#allocation3 + $0xbc] sm:$0xf]
        %v1215 = vld [vmem:[#allocation3 + $0xc0] sm:$0xff]
        %v1216 = vld [vmem:[#allocation3 + $0xc8] sm:$0xf]
        %v1217 = vld [vmem:[#allocation3 + $0xcc] sm:$0xff]
        %v1218 = vld [vmem:[#allocation3 + $0xd4] sm:$0xf]
        %v1219 = vld [vmem:[#allocation3 + $0xd8] sm:$0xff]
        %v1220 = vld [vmem:[#allocation3 + $0xe0] sm:$0xf]
        %v1221 = vld [vmem:[#allocation3 + $0xe4] sm:$0xff]
        %v1222 = vld [vmem:[#allocation3 + $0xec] sm:$0xf]
        %v1223 = vld [vmem:[#allocation3 + $0xf0] sm:$0xff]
        %v1224 = vld [vmem:[#allocation3 + $0xf8] sm:$0xf]
        %v1225 = vld [vmem:[#allocation3 + $0xfc] sm:$0xff]
        %v1226 = vld [vmem:[#allocation3 + $0x104] sm:$0xf]
        %v1227 = vld [vmem:[#allocation3 + $0x108] sm:$0xff]
        %v1228 = vld [vmem:[#allocation3 + $0x110] sm:$0xf]
        %v1229 = vld [vmem:[#allocation3 + $0x114] sm:$0xff]
        %v1230 = vld [vmem:[#allocation3 + $0x11c] sm:$0xf]
        %v1231 = vld [vmem:[#allocation3 + $0x120] sm:$0xff]
        %v1232 = vld [vmem:[#allocation3 + $0x128] sm:$0xf]
        %v1233 = vld [vmem:[#allocation3 + $0x12c] sm:$0xff]
        %v1234 = vld [vmem:[#allocation3 + $0x134] sm:$0xf]
        %v1235 = vld [vmem:[#allocation3 + $0x138] sm:$0xff]
        %v1236 = vld [vmem:[#allocation3 + $0x140] sm:$0xf]
        %v1237 = vld [vmem:[#allocation3 + $0x144] sm:$0xff]
        %v1238 = vld [vmem:[#allocation3 + $0x14c] sm:$0xf]
        %v1239 = vld [vmem:[#allocation3 + $0x150] sm:$0xff]
        %v1240 = vld [vmem:[#allocation3 + $0x158] sm:$0xf]
        %v1241 = vld [vmem:[#allocation3 + $0x15c] sm:$0xff]
        %v1242 = vld [vmem:[#allocation3 + $0x164] sm:$0xf]
        %v1243 = vld [vmem:[#allocation3 + $0x168] sm:$0xff]
        %v1244 = vld [vmem:[#allocation3 + $0x170] sm:$0xf]
        %v1245 = vld [vmem:[#allocation3 + $0x174] sm:$0xff]
        %v1246 = vld [vmem:[#allocation3 + $0x17c] sm:$0xf]
        %v1247 = vld [vmem:[%s1] sm:$0xf]
        %v1248 = vld [vmem:[%s1 + $0x4] sm:$0xf]
        %v1249 = vld [vmem:[%s1 + $0x8] sm:$0xf]
        %v1250 = vld [vmem:[%s1 + $0xc] sm:$0xf]
        %v1251 = vld [vmem:[%s1 + $0x10] sm:$0xf]
        %v1252 = vld [vmem:[%s1 + $0x14] sm:$0xf]
        %v1253 = vld [vmem:[%s1 + $0x18] sm:$0xf]
        %v1254 = vld [vmem:[%s1 + $0x1c] sm:$0xf]
        %v1255 = vld [vmem:[%s1 + $0x20] sm:$0xf]
        %v1256 = vld [vmem:[%s1 + $0x24] sm:$0xf]
        %v1257 = vld [vmem:[%s1 + $0x28] sm:$0xf]
        %v1258 = vld [vmem:[%s1 + $0x2c] sm:$0xf]
        %v1259 = vld [vmem:[%s1 + $0x30] sm:$0xf]
        %v1260 = vld [vmem:[%s1 + $0x34] sm:$0xf]
        %v1261 = vld [vmem:[%s1 + $0x38] sm:$0xf]
        %v1262 = vld [vmem:[%s1 + $0x3c] sm:$0xf]
        %v1263 = vld [vmem:[%s1 + $0x40] sm:$0xf]
        %v1264 = vld [vmem:[%s1 + $0x44] sm:$0xf]
        %v1265 = vld [vmem:[%s1 + $0x48] sm:$0xf]
        %v1266 = vld [vmem:[%s1 + $0x4c] sm:$0xf]
        %v1267 = vld [vmem:[%s1 + $0x50] sm:$0xf]
        %v1268 = vld [vmem:[%s1 + $0x54] sm:$0xf]
        %v1269 = vld [vmem:[%s1 + $0x58] sm:$0xf]
        %v1270 = vld [vmem:[%s1 + $0x5c] sm:$0xf]
        %v1271 = vld [vmem:[%s1 + $0x60] sm:$0xf]
        %v1272 = vld [vmem:[%s1 + $0x64] sm:$0xf]
        %v1273 = vld [vmem:[%s1 + $0x68] sm:$0xf]
        %v1274 = vld [vmem:[%s1 + $0x6c] sm:$0xf]
        %v1275 = vld [vmem:[%s1 + $0x70] sm:$0xf]
        %v1276 = vld [vmem:[%s1 + $0x74] sm:$0xf]
        %v1277 = vld [vmem:[%s1 + $0x78] sm:$0xf]
        %v1278 = vld [vmem:[%s1 + $0x7c] sm:$0xf]
        %v1279 = vld [vmem:[%s1 + $0x80] sm:$0xf]
        %v1280 = vld [vmem:[%s1 + $0x84] sm:$0xf]
        %v1281 = vld [vmem:[%s1 + $0x88] sm:$0xf]
        %v1282 = vld [vmem:[%s1 + $0x8c] sm:$0xf]
        %v1283 = vld [vmem:[%s1 + $0x90] sm:$0xf]
        %v1284 = vld [vmem:[%s1 + $0x94] sm:$0xf]
        %v1285 = vld [vmem:[%s1 + $0x98] sm:$0xf]
        %v1286 = vld [vmem:[%s1 + $0x9c] sm:$0xf]
        %v1287 = vld [vmem:[%s1 + $0xa0] sm:$0xf]
        %v1288 = vld [vmem:[%s1 + $0xa4] sm:$0xf]
        %v1289 = vld [vmem:[%s1 + $0xa8] sm:$0xf]
        %v1290 = vld [vmem:[%s1 + $0xac] sm:$0xf]
        %v1291 = vld [vmem:[%s1 + $0xb0] sm:$0xf]
        %v1292 = vld [vmem:[%s1 + $0xb4] sm:$0xf]
        %v1293 = vld [vmem:[%s1 + $0xb8] sm:$0xf]
        %v1294 = vld [vmem:[%s1 + $0xbc] sm:$0xf]
        %s1295 = scalar_lea.vmem [#allocation3], 24
        %v1296 = vld [vmem:[%s1295] sm:$0xff]
        %v1297 = vld [vmem:[%s1295 + $0x8] sm:$0xf]
        %v1298 = vld [vmem:[%s1295 + $0xc] sm:$0xff]
        %v1299 = vld [vmem:[%s1295 + $0x14] sm:$0xf]
        %v1300 = vld [vmem:[%s1295 + $0x18] sm:$0xff]
        %v1301 = vld [vmem:[%s1295 + $0x20] sm:$0xf]
        %v1302 = vld [vmem:[%s1295 + $0x24] sm:$0xff]
        %v1303 = vld [vmem:[%s1295 + $0x2c] sm:$0xf]
        %v1304 = vld [vmem:[%s1295 + $0x30] sm:$0xff]
        %v1305 = vld [vmem:[%s1295 + $0x38] sm:$0xf]
        %v1306 = vld [vmem:[%s1295 + $0x3c] sm:$0xff]
        %v1307 = vld [vmem:[%s1295 + $0x44] sm:$0xf]
        %v1308 = vld [vmem:[%s1295 + $0x48] sm:$0xff]
        %v1309 = vld [vmem:[%s1295 + $0x50] sm:$0xf]
        %v1310 = vld [vmem:[%s1295 + $0x54] sm:$0xff]
        %v1311 = vld [vmem:[%s1295 + $0x5c] sm:$0xf]
        %v1312 = vld [vmem:[%s1295 + $0x60] sm:$0xff]
        %v1313 = vld [vmem:[%s1295 + $0x68] sm:$0xf]
        %v1314 = vld [vmem:[%s1295 + $0x6c] sm:$0xff]
        %v1315 = vld [vmem:[%s1295 + $0x74] sm:$0xf]
        %v1316 = vld [vmem:[%s1295 + $0x78] sm:$0xff]
        %v1317 = vld [vmem:[%s1295 + $0x80] sm:$0xf]
        %v1318 = vld [vmem:[%s1295 + $0x84] sm:$0xff]
        %v1319 = vld [vmem:[%s1295 + $0x8c] sm:$0xf]
        %v1320 = vld [vmem:[%s1295 + $0x90] sm:$0xff]
        %v1321 = vld [vmem:[%s1295 + $0x98] sm:$0xf]
        %v1322 = vld [vmem:[%s1295 + $0x9c] sm:$0xff]
        %v1323 = vld [vmem:[%s1295 + $0xa4] sm:$0xf]
        %v1324 = vld [vmem:[%s1295 + $0xa8] sm:$0xff]
        %v1325 = vld [vmem:[%s1295 + $0xb0] sm:$0xf]
        %v1326 = vld [vmem:[%s1295 + $0xb4] sm:$0xff]
        %v1327 = vld [vmem:[%s1295 + $0xbc] sm:$0xf]
        %v1328 = vld [vmem:[%s1295 + $0xc0] sm:$0xff]
        %v1329 = vld [vmem:[%s1295 + $0xc8] sm:$0xf]
        %v1330 = vld [vmem:[%s1295 + $0xcc] sm:$0xff]
        %v1331 = vld [vmem:[%s1295 + $0xd4] sm:$0xf]
        %v1332 = vld [vmem:[%s1295 + $0xd8] sm:$0xff]
        %v1333 = vld [vmem:[%s1295 + $0xe0] sm:$0xf]
        %v1334 = vld [vmem:[%s1295 + $0xe4] sm:$0xff]
        %v1335 = vld [vmem:[%s1295 + $0xec] sm:$0xf]
        %v1336 = vld [vmem:[%s1295 + $0xf0] sm:$0xff]
        %v1337 = vld [vmem:[%s1295 + $0xf8] sm:$0xf]
        %v1338 = vld [vmem:[%s1295 + $0xfc] sm:$0xff]
        %v1339 = vld [vmem:[%s1295 + $0x104] sm:$0xf]
        %v1340 = vld [vmem:[%s1295 + $0x108] sm:$0xff]
        %v1341 = vld [vmem:[%s1295 + $0x110] sm:$0xf]
        %v1342 = vld [vmem:[%s1295 + $0x114] sm:$0xff]
        %v1343 = vld [vmem:[%s1295 + $0x11c] sm:$0xf]
        %v1344 = vld [vmem:[%s1295 + $0x120] sm:$0xff]
        %v1345 = vld [vmem:[%s1295 + $0x128] sm:$0xf]
        %v1346 = vld [vmem:[%s1295 + $0x12c] sm:$0xff]
        %v1347 = vld [vmem:[%s1295 + $0x134] sm:$0xf]
        %v1348 = vld [vmem:[%s1295 + $0x138] sm:$0xff]
        %v1349 = vld [vmem:[%s1295 + $0x140] sm:$0xf]
        %v1350 = vld [vmem:[%s1295 + $0x144] sm:$0xff]
        %v1351 = vld [vmem:[%s1295 + $0x14c] sm:$0xf]
        %v1352 = vld [vmem:[%s1295 + $0x150] sm:$0xff]
        %v1353 = vld [vmem:[%s1295 + $0x158] sm:$0xf]
        %v1354 = vld [vmem:[%s1295 + $0x15c] sm:$0xff]
        %v1355 = vld [vmem:[%s1295 + $0x164] sm:$0xf]
        %v1356 = vld [vmem:[%s1295 + $0x168] sm:$0xff]
        %v1357 = vld [vmem:[%s1295 + $0x170] sm:$0xf]
        %v1358 = vld [vmem:[%s1295 + $0x174] sm:$0xff]
        %v1359 = vld [vmem:[%s1295 + $0x17c] sm:$0xf]
        %s1360 = scalar_lea.vmem %s1, 192
        %v1361 = vld [vmem:[%s1360] sm:$0xf]
        %v1362 = vld [vmem:[%s1360 + $0x4] sm:$0xf]
        %v1363 = vld [vmem:[%s1360 + $0x8] sm:$0xf]
        %v1364 = vld [vmem:[%s1360 + $0xc] sm:$0xf]
        %v1365 = vld [vmem:[%s1360 + $0x10] sm:$0xf]
        %v1366 = vld [vmem:[%s1360 + $0x14] sm:$0xf]
        %v1367 = vld [vmem:[%s1360 + $0x18] sm:$0xf]
        %v1368 = vld [vmem:[%s1360 + $0x1c] sm:$0xf]
        %v1369 = vld [vmem:[%s1360 + $0x20] sm:$0xf]
        %v1370 = vld [vmem:[%s1360 + $0x24] sm:$0xf]
        %v1371 = vld [vmem:[%s1360 + $0x28] sm:$0xf]
        %v1372 = vld [vmem:[%s1360 + $0x2c] sm:$0xf]
        %v1373 = vld [vmem:[%s1360 + $0x30] sm:$0xf]
        %v1374 = vld [vmem:[%s1360 + $0x34] sm:$0xf]
        %v1375 = vld [vmem:[%s1360 + $0x38] sm:$0xf]
        %v1376 = vld [vmem:[%s1360 + $0x3c] sm:$0xf]
        %v1377 = vld [vmem:[%s1360 + $0x40] sm:$0xf]
        %v1378 = vld [vmem:[%s1360 + $0x44] sm:$0xf]
        %v1379 = vld [vmem:[%s1360 + $0x48] sm:$0xf]
        %v1380 = vld [vmem:[%s1360 + $0x4c] sm:$0xf]
        %v1381 = vld [vmem:[%s1360 + $0x50] sm:$0xf]
        %v1382 = vld [vmem:[%s1360 + $0x54] sm:$0xf]
        %v1383 = vld [vmem:[%s1360 + $0x58] sm:$0xf]
        %v1384 = vld [vmem:[%s1360 + $0x5c] sm:$0xf]
        %v1385 = vld [vmem:[%s1360 + $0x60] sm:$0xf]
        %v1386 = vld [vmem:[%s1360 + $0x64] sm:$0xf]
        %v1387 = vld [vmem:[%s1360 + $0x68] sm:$0xf]
        %v1388 = vld [vmem:[%s1360 + $0x6c] sm:$0xf]
        %v1389 = vld [vmem:[%s1360 + $0x70] sm:$0xf]
        %v1390 = vld [vmem:[%s1360 + $0x74] sm:$0xf]
        %v1391 = vld [vmem:[%s1360 + $0x78] sm:$0xf]
        %v1392 = vld [vmem:[%s1360 + $0x7c] sm:$0xf]
        %v1393 = vld [vmem:[%s1360 + $0x80] sm:$0xf]
        %v1394 = vld [vmem:[%s1360 + $0x84] sm:$0xf]
        %v1395 = vld [vmem:[%s1360 + $0x88] sm:$0xf]
        %v1396 = vld [vmem:[%s1360 + $0x8c] sm:$0xf]
        %v1397 = vld [vmem:[%s1360 + $0x90] sm:$0xf]
        %v1398 = vld [vmem:[%s1360 + $0x94] sm:$0xf]
        %v1399 = vld [vmem:[%s1360 + $0x98] sm:$0xf]
        %v1400 = vld [vmem:[%s1360 + $0x9c] sm:$0xf]
        %v1401 = vld [vmem:[%s1360 + $0xa0] sm:$0xf]
        %v1402 = vld [vmem:[%s1360 + $0xa4] sm:$0xf]
        %v1403 = vld [vmem:[%s1360 + $0xa8] sm:$0xf]
        %v1404 = vld [vmem:[%s1360 + $0xac] sm:$0xf]
        %v1405 = vld [vmem:[%s1360 + $0xb0] sm:$0xf]
        %v1406 = vld [vmem:[%s1360 + $0xb4] sm:$0xf]
        %v1407 = vld [vmem:[%s1360 + $0xb8] sm:$0xf]
        %v1408 = vld [vmem:[%s1360 + $0xbc] sm:$0xf]
        %v1473 = vunpack.c.l.b16 %v1296
        %v1474 = vunpack.c.h.b16 %v1296
        %v1475 = vunpack.c.l.b16 %v1297
        %v1476 = vunpack.c.l.b16 %v1298
        %v1477 = vunpack.c.h.b16 %v1298
        %v1478 = vunpack.c.l.b16 %v1299
        %v1479 = vunpack.c.l.b16 %v1300
        %v1480 = vunpack.c.h.b16 %v1300
        %v1481 = vunpack.c.l.b16 %v1301
        %v1482 = vunpack.c.l.b16 %v1302
        %v1483 = vunpack.c.h.b16 %v1302
        %v1484 = vunpack.c.l.b16 %v1303
        %v1485 = vunpack.c.l.b16 %v1304
        %v1486 = vunpack.c.h.b16 %v1304
        %v1487 = vunpack.c.l.b16 %v1305
        %v1488 = vunpack.c.l.b16 %v1306
        %v1489 = vunpack.c.h.b16 %v1306
        %v1490 = vunpack.c.l.b16 %v1307
        %v1491 = vunpack.c.l.b16 %v1308
        %v1492 = vunpack.c.h.b16 %v1308
        %v1493 = vunpack.c.l.b16 %v1309
        %v1494 = vunpack.c.l.b16 %v1310
        %v1495 = vunpack.c.h.b16 %v1310
        %v1496 = vunpack.c.l.b16 %v1311
        %v1497 = vunpack.c.l.b16 %v1312
        %v1498 = vunpack.c.h.b16 %v1312
        %v1499 = vunpack.c.l.b16 %v1313
        %v1500 = vunpack.c.l.b16 %v1314
        %v1501 = vunpack.c.h.b16 %v1314
        %v1502 = vunpack.c.l.b16 %v1315
        %v1503 = vunpack.c.l.b16 %v1316
        %v1504 = vunpack.c.h.b16 %v1316
        %v1505 = vunpack.c.l.b16 %v1317
        %v1506 = vunpack.c.l.b16 %v1318
        %v1507 = vunpack.c.h.b16 %v1318
        %v1508 = vunpack.c.l.b16 %v1319
        %v1509 = vunpack.c.l.b16 %v1320
        %v1510 = vunpack.c.h.b16 %v1320
        %v1511 = vunpack.c.l.b16 %v1321
        %v1512 = vunpack.c.l.b16 %v1322
        %v1513 = vunpack.c.h.b16 %v1322
        %v1514 = vunpack.c.l.b16 %v1323
        %v1515 = vunpack.c.l.b16 %v1324
        %v1516 = vunpack.c.h.b16 %v1324
        %v1517 = vunpack.c.l.b16 %v1325
        %v1518 = vunpack.c.l.b16 %v1326
        %v1519 = vunpack.c.h.b16 %v1326
        %v1520 = vunpack.c.l.b16 %v1327
        %v1521 = vunpack.c.l.b16 %v1328
        %v1522 = vunpack.c.h.b16 %v1328
        %v1523 = vunpack.c.l.b16 %v1329
        %v1524 = vunpack.c.l.b16 %v1330
        %v1525 = vunpack.c.h.b16 %v1330
        %v1526 = vunpack.c.l.b16 %v1331
        %v1527 = vunpack.c.l.b16 %v1332
        %v1528 = vunpack.c.h.b16 %v1332
        %v1529 = vunpack.c.l.b16 %v1333
        %v1530 = vunpack.c.l.b16 %v1334
        %v1531 = vunpack.c.h.b16 %v1334
        %v1532 = vunpack.c.l.b16 %v1335
        %v1533 = vunpack.c.l.b16 %v1336
        %v1534 = vunpack.c.h.b16 %v1336
        %v1535 = vunpack.c.l.b16 %v1337
        %v1536 = vunpack.c.l.b16 %v1338
        %v1537 = vunpack.c.h.b16 %v1338
        %v1538 = vunpack.c.l.b16 %v1339
        %v1539 = vunpack.c.l.b16 %v1340
        %v1540 = vunpack.c.h.b16 %v1340
        %v1541 = vunpack.c.l.b16 %v1341
        %v1542 = vunpack.c.l.b16 %v1342
        %v1543 = vunpack.c.h.b16 %v1342
        %v1544 = vunpack.c.l.b16 %v1343
        %v1545 = vunpack.c.l.b16 %v1344
        %v1546 = vunpack.c.h.b16 %v1344
        %v1547 = vunpack.c.l.b16 %v1345
        %v1548 = vunpack.c.l.b16 %v1346
        %v1549 = vunpack.c.h.b16 %v1346
        %v1550 = vunpack.c.l.b16 %v1347
        %v1551 = vunpack.c.l.b16 %v1348
        %v1552 = vunpack.c.h.b16 %v1348
        %v1553 = vunpack.c.l.b16 %v1349
        %v1554 = vunpack.c.l.b16 %v1350
        %v1555 = vunpack.c.h.b16 %v1350
        %v1556 = vunpack.c.l.b16 %v1351
        %v1557 = vunpack.c.l.b16 %v1352
        %v1558 = vunpack.c.h.b16 %v1352
        %v1559 = vunpack.c.l.b16 %v1353
        %v1560 = vunpack.c.l.b16 %v1354
        %v1561 = vunpack.c.h.b16 %v1354
        %v1562 = vunpack.c.l.b16 %v1355
        %v1563 = vunpack.c.l.b16 %v1356
        %v1564 = vunpack.c.h.b16 %v1356
        %v1565 = vunpack.c.l.b16 %v1357
        %v1566 = vunpack.c.l.b16 %v1358
        %v1567 = vunpack.c.h.b16 %v1358
        %v1568 = vunpack.c.l.b16 %v1359
        %v1569 = vpack.c.b16 %v1476, %v1473
        %v1570 = vpack.c.b16 %v1477, %v1474
        %v1571 = vpack.c.b16 %v1478, %v1475
        %v1572 = vpack.c.b16 %v1482, %v1479
        %v1573 = vpack.c.b16 %v1483, %v1480
        %v1574 = vpack.c.b16 %v1484, %v1481
        %v1575 = vpack.c.b16 %v1488, %v1485
        %v1576 = vpack.c.b16 %v1489, %v1486
        %v1577 = vpack.c.b16 %v1490, %v1487
        %v1578 = vpack.c.b16 %v1494, %v1491
        %v1579 = vpack.c.b16 %v1495, %v1492
        %v1580 = vpack.c.b16 %v1496, %v1493
        %v1581 = vpack.c.b16 %v1500, %v1497
        %v1582 = vpack.c.b16 %v1501, %v1498
        %v1583 = vpack.c.b16 %v1502, %v1499
        %v1584 = vpack.c.b16 %v1506, %v1503
        %v1585 = vpack.c.b16 %v1507, %v1504
        %v1586 = vpack.c.b16 %v1508, %v1505
        %v1587 = vpack.c.b16 %v1512, %v1509
        %v1588 = vpack.c.b16 %v1513, %v1510
        %v1589 = vpack.c.b16 %v1514, %v1511
        %v1590 = vpack.c.b16 %v1518, %v1515
        %v1591 = vpack.c.b16 %v1519, %v1516
        %v1592 = vpack.c.b16 %v1520, %v1517
        %v1593 = vpack.c.b16 %v1524, %v1521
        %v1594 = vpack.c.b16 %v1525, %v1522
        %v1595 = vpack.c.b16 %v1526, %v1523
        %v1596 = vpack.c.b16 %v1530, %v1527
        %v1597 = vpack.c.b16 %v1531, %v1528
        %v1598 = vpack.c.b16 %v1532, %v1529
        %v1599 = vpack.c.b16 %v1536, %v1533
        %v1600 = vpack.c.b16 %v1537, %v1534
        %v1601 = vpack.c.b16 %v1538, %v1535
        %v1602 = vpack.c.b16 %v1542, %v1539
        %v1603 = vpack.c.b16 %v1543, %v1540
        %v1604 = vpack.c.b16 %v1544, %v1541
        %v1605 = vpack.c.b16 %v1548, %v1545
        %v1606 = vpack.c.b16 %v1549, %v1546
        %v1607 = vpack.c.b16 %v1550, %v1547
        %v1608 = vpack.c.b16 %v1554, %v1551
        %v1609 = vpack.c.b16 %v1555, %v1552
        %v1610 = vpack.c.b16 %v1556, %v1553
        %v1611 = vpack.c.b16 %v1560, %v1557
        %v1612 = vpack.c.b16 %v1561, %v1558
        %v1613 = vpack.c.b16 %v1562, %v1559
        %v1614 = vpack.c.b16 %v1566, %v1563
        %v1615 = vpack.c.b16 %v1567, %v1564
        %v1616 = vpack.c.b16 %v1568, %v1565
        %v1713 = vunpack.c.l.b16 %v1361
        %v1714 = vunpack.c.l.b16 %v1362
        %v1715 = vunpack.c.l.b16 %v1363
        %v1716 = vunpack.c.l.b16 %v1364
        %v1717 = vunpack.c.l.b16 %v1365
        %v1718 = vunpack.c.l.b16 %v1366
        %v1719 = vunpack.c.l.b16 %v1367
        %v1720 = vunpack.c.l.b16 %v1368
        %v1721 = vunpack.c.l.b16 %v1369
        %v1722 = vunpack.c.l.b16 %v1370
        %v1723 = vunpack.c.l.b16 %v1371
        %v1724 = vunpack.c.l.b16 %v1372
        %v1725 = vunpack.c.l.b16 %v1373
        %v1726 = vunpack.c.l.b16 %v1374
        %v1727 = vunpack.c.l.b16 %v1375
        %v1728 = vunpack.c.l.b16 %v1376
        %v1729 = vunpack.c.l.b16 %v1377
        %v1730 = vunpack.c.l.b16 %v1378
        %v1731 = vunpack.c.l.b16 %v1379
        %v1732 = vunpack.c.l.b16 %v1380
        %v1733 = vunpack.c.l.b16 %v1381
        %v1734 = vunpack.c.l.b16 %v1382
        %v1735 = vunpack.c.l.b16 %v1383
        %v1736 = vunpack.c.l.b16 %v1384
        %v1737 = vunpack.c.l.b16 %v1385
        %v1738 = vunpack.c.l.b16 %v1386
        %v1739 = vunpack.c.l.b16 %v1387
        %v1740 = vunpack.c.l.b16 %v1388
        %v1741 = vunpack.c.l.b16 %v1389
        %v1742 = vunpack.c.l.b16 %v1390
        %v1743 = vunpack.c.l.b16 %v1391
        %v1744 = vunpack.c.l.b16 %v1392
        %v1745 = vunpack.c.l.b16 %v1393
        %v1746 = vunpack.c.l.b16 %v1394
        %v1747 = vunpack.c.l.b16 %v1395
        %v1748 = vunpack.c.l.b16 %v1396
        %v1749 = vunpack.c.l.b16 %v1397
        %v1750 = vunpack.c.l.b16 %v1398
        %v1751 = vunpack.c.l.b16 %v1399
        %v1752 = vunpack.c.l.b16 %v1400
        %v1753 = vunpack.c.l.b16 %v1401
        %v1754 = vunpack.c.l.b16 %v1402
        %v1755 = vunpack.c.l.b16 %v1403
        %v1756 = vunpack.c.l.b16 %v1404
        %v1757 = vunpack.c.l.b16 %v1405
        %v1758 = vunpack.c.l.b16 %v1406
        %v1759 = vunpack.c.l.b16 %v1407
        %v1760 = vunpack.c.l.b16 %v1408
        %v1761 = vpack.c.b16 %v1714, %v1713
        %v1762 = vpack.c.b16 %v1716, %v1715
        %v1763 = vpack.c.b16 %v1718, %v1717
        %v1764 = vpack.c.b16 %v1720, %v1719
        %v1765 = vpack.c.b16 %v1722, %v1721
        %v1766 = vpack.c.b16 %v1724, %v1723
        %v1767 = vpack.c.b16 %v1726, %v1725
        %v1768 = vpack.c.b16 %v1728, %v1727
        %v1769 = vpack.c.b16 %v1730, %v1729
        %v1770 = vpack.c.b16 %v1732, %v1731
        %v1771 = vpack.c.b16 %v1734, %v1733
        %v1772 = vpack.c.b16 %v1736, %v1735
        %v1773 = vpack.c.b16 %v1738, %v1737
        %v1774 = vpack.c.b16 %v1740, %v1739
        %v1775 = vpack.c.b16 %v1742, %v1741
        %v1776 = vpack.c.b16 %v1744, %v1743
        %v1777 = vpack.c.b16 %v1746, %v1745
        %v1778 = vpack.c.b16 %v1748, %v1747
        %v1779 = vpack.c.b16 %v1750, %v1749
        %v1780 = vpack.c.b16 %v1752, %v1751
        %v1781 = vpack.c.b16 %v1754, %v1753
        %v1782 = vpack.c.b16 %v1756, %v1755
        %v1783 = vpack.c.b16 %v1758, %v1757
        %v1784 = vpack.c.b16 %v1760, %v1759
        %1809 = vmatpush.bf16.msra.mxu0 %v1768
        %1810 = vmatpush.bf16.msra.mxu0 %v1767
        %1811 = vmatpush.bf16.msra.mxu0 %v1766
        %1812 = vmatpush.bf16.msra.mxu0 %v1765
        %1813 = vmatpush.bf16.msra.mxu0 %v1764
        %1814 = vmatpush.bf16.msra.mxu0 %v1763
        %1815 = vmatpush.bf16.msra.mxu0 %v1762
        %1816 = vmatpush.bf16.msra.mxu0 %v1761
        %1817 = vmatmul.bf16.gmra.mxu0 %v1569
        %v1818 = vpop.f32.mrf.mxu0
        %v1819 = vadd.f32 0.0, %v1818
        %v1820 = vpop.f32.mrf.mxu0
        %v1821 = vadd.f32 0.0, %v1820
        %1822 = vmatmul.bf16.gmra.mxu0 %v1572
        %v1823 = vpop.f32.mrf.mxu0
        %v1824 = vadd.f32 0.0, %v1823
        %v1825 = vpop.f32.mrf.mxu0
        %v1826 = vadd.f32 0.0, %v1825
        %1827 = vmatmul.bf16.gmra.mxu0 %v1575
        %v1828 = vpop.f32.mrf.mxu0
        %v1829 = vadd.f32 0.0, %v1828
        %v1830 = vpop.f32.mrf.mxu0
        %v1831 = vadd.f32 0.0, %v1830
        %1832 = vmatmul.bf16.gmra.mxu0 %v1578
        %v1833 = vpop.f32.mrf.mxu0
        %v1834 = vadd.f32 0.0, %v1833
        %v1835 = vpop.f32.mrf.mxu0
        %v1836 = vadd.f32 0.0, %v1835
        %1837 = vmatmul.bf16.gmra.mxu0 %v1581
        %v1838 = vpop.f32.mrf.mxu0
        %v1839 = vadd.f32 0.0, %v1838
        %v1840 = vpop.f32.mrf.mxu0
        %v1841 = vadd.f32 0.0, %v1840
        %1842 = vmatmul.bf16.gmra.mxu0 %v1584
        %v1843 = vpop.f32.mrf.mxu0
        %v1844 = vadd.f32 0.0, %v1843
        %v1845 = vpop.f32.mrf.mxu0
        %v1846 = vadd.f32 0.0, %v1845
        %1847 = vmatmul.bf16.gmra.mxu0 %v1587
        %v1848 = vpop.f32.mrf.mxu0
        %v1849 = vadd.f32 0.0, %v1848
        %v1850 = vpop.f32.mrf.mxu0
        %v1851 = vadd.f32 0.0, %v1850
        %1852 = vmatmul.bf16.gmra.mxu0 %v1590
        %v1853 = vpop.f32.mrf.mxu0
        %v1854 = vadd.f32 0.0, %v1853
        %v1855 = vpop.f32.mrf.mxu0
        %v1856 = vadd.f32 0.0, %v1855
        %1857 = vmatmul.bf16.gmra.mxu0 %v1593
        %v1858 = vpop.f32.mrf.mxu0
        %v1859 = vadd.f32 0.0, %v1858
        %v1860 = vpop.f32.mrf.mxu0
        %v1861 = vadd.f32 0.0, %v1860
        %1862 = vmatmul.bf16.gmra.mxu0 %v1596
        %v1863 = vpop.f32.mrf.mxu0
        %v1864 = vadd.f32 0.0, %v1863
        %v1865 = vpop.f32.mrf.mxu0
        %v1866 = vadd.f32 0.0, %v1865
        %1867 = vmatmul.bf16.gmra.mxu0 %v1599
        %v1868 = vpop.f32.mrf.mxu0
        %v1869 = vadd.f32 0.0, %v1868
        %v1870 = vpop.f32.mrf.mxu0
        %v1871 = vadd.f32 0.0, %v1870
        %1872 = vmatmul.bf16.gmra.mxu0 %v1602
        %v1873 = vpop.f32.mrf.mxu0
        %v1874 = vadd.f32 0.0, %v1873
        %v1875 = vpop.f32.mrf.mxu0
        %v1876 = vadd.f32 0.0, %v1875
        %1877 = vmatmul.bf16.gmra.mxu0 %v1605
        %v1878 = vpop.f32.mrf.mxu0
        %v1879 = vadd.f32 0.0, %v1878
        %v1880 = vpop.f32.mrf.mxu0
        %v1881 = vadd.f32 0.0, %v1880
        %1882 = vmatmul.bf16.gmra.mxu0 %v1608
        %v1883 = vpop.f32.mrf.mxu0
        %v1884 = vadd.f32 0.0, %v1883
        %v1885 = vpop.f32.mrf.mxu0
        %v1886 = vadd.f32 0.0, %v1885
        %1887 = vmatmul.bf16.gmra.mxu0 %v1611
        %v1888 = vpop.f32.mrf.mxu0
        %v1889 = vadd.f32 0.0, %v1888
        %v1890 = vpop.f32.mrf.mxu0
        %v1891 = vadd.f32 0.0, %v1890
        %1892 = vmatmul.bf16.gmra.mxu0 %v1614
        %v1893 = vpop.f32.mrf.mxu0
        %v1894 = vadd.f32 0.0, %v1893
        %v1895 = vpop.f32.mrf.mxu0
        %v1896 = vadd.f32 0.0, %v1895
        %1897 = vdwg.mxu0
        %1898 = vmatpush.bf16.msra.mxu0 %v1776
        %1899 = vmatpush.bf16.msra.mxu0 %v1775
        %1900 = vmatpush.bf16.msra.mxu0 %v1774
        %1901 = vmatpush.bf16.msra.mxu0 %v1773
        %1902 = vmatpush.bf16.msra.mxu0 %v1772
        %1903 = vmatpush.bf16.msra.mxu0 %v1771
        %1904 = vmatpush.bf16.msra.mxu0 %v1770
        %1905 = vmatpush.bf16.msra.mxu0 %v1769
        %1906 = vmatmul.bf16.gmra.mxu0 %v1570
        %v1907 = vpop.f32.mrf.mxu0
        %v1908 = vadd.f32 %v1819, %v1907
        %v1909 = vpop.f32.mrf.mxu0
        %v1910 = vadd.f32 %v1821, %v1909
        %1911 = vmatmul.bf16.gmra.mxu0 %v1573
        %v1912 = vpop.f32.mrf.mxu0
        %v1913 = vadd.f32 %v1824, %v1912
        %v1914 = vpop.f32.mrf.mxu0
        %v1915 = vadd.f32 %v1826, %v1914
        %1916 = vmatmul.bf16.gmra.mxu0 %v1576
        %v1917 = vpop.f32.mrf.mxu0
        %v1918 = vadd.f32 %v1829, %v1917
        %v1919 = vpop.f32.mrf.mxu0
        %v1920 = vadd.f32 %v1831, %v1919
        %1921 = vmatmul.bf16.gmra.mxu0 %v1579
        %v1922 = vpop.f32.mrf.mxu0
        %v1923 = vadd.f32 %v1834, %v1922
        %v1924 = vpop.f32.mrf.mxu0
        %v1925 = vadd.f32 %v1836, %v1924
        %1926 = vmatmul.bf16.gmra.mxu0 %v1582
        %v1927 = vpop.f32.mrf.mxu0
        %v1928 = vadd.f32 %v1839, %v1927
        %v1929 = vpop.f32.mrf.mxu0
        %v1930 = vadd.f32 %v1841, %v1929
        %1931 = vmatmul.bf16.gmra.mxu0 %v1585
        %v1932 = vpop.f32.mrf.mxu0
        %v1933 = vadd.f32 %v1844, %v1932
        %v1934 = vpop.f32.mrf.mxu0
        %v1935 = vadd.f32 %v1846, %v1934
        %1936 = vmatmul.bf16.gmra.mxu0 %v1588
        %v1937 = vpop.f32.mrf.mxu0
        %v1938 = vadd.f32 %v1849, %v1937
        %v1939 = vpop.f32.mrf.mxu0
        %v1940 = vadd.f32 %v1851, %v1939
        %1941 = vmatmul.bf16.gmra.mxu0 %v1591
        %v1942 = vpop.f32.mrf.mxu0
        %v1943 = vadd.f32 %v1854, %v1942
        %v1944 = vpop.f32.mrf.mxu0
        %v1945 = vadd.f32 %v1856, %v1944
        %1946 = vmatmul.bf16.gmra.mxu0 %v1594
        %v1947 = vpop.f32.mrf.mxu0
        %v1948 = vadd.f32 %v1859, %v1947
        %v1949 = vpop.f32.mrf.mxu0
        %v1950 = vadd.f32 %v1861, %v1949
        %1951 = vmatmul.bf16.gmra.mxu0 %v1597
        %v1952 = vpop.f32.mrf.mxu0
        %v1953 = vadd.f32 %v1864, %v1952
        %v1954 = vpop.f32.mrf.mxu0
        %v1955 = vadd.f32 %v1866, %v1954
        %1956 = vmatmul.bf16.gmra.mxu0 %v1600
        %v1957 = vpop.f32.mrf.mxu0
        %v1958 = vadd.f32 %v1869, %v1957
        %v1959 = vpop.f32.mrf.mxu0
        %v1960 = vadd.f32 %v1871, %v1959
        %1961 = vmatmul.bf16.gmra.mxu0 %v1603
        %v1962 = vpop.f32.mrf.mxu0
        %v1963 = vadd.f32 %v1874, %v1962
        %v1964 = vpop.f32.mrf.mxu0
        %v1965 = vadd.f32 %v1876, %v1964
        %1966 = vmatmul.bf16.gmra.mxu0 %v1606
        %v1967 = vpop.f32.mrf.mxu0
        %v1968 = vadd.f32 %v1879, %v1967
        %v1969 = vpop.f32.mrf.mxu0
        %v1970 = vadd.f32 %v1881, %v1969
        %1971 = vmatmul.bf16.gmra.mxu0 %v1609
        %v1972 = vpop.f32.mrf.mxu0
        %v1973 = vadd.f32 %v1884, %v1972
        %v1974 = vpop.f32.mrf.mxu0
        %v1975 = vadd.f32 %v1886, %v1974
        %1976 = vmatmul.bf16.gmra.mxu0 %v1612
        %v1977 = vpop.f32.mrf.mxu0
        %v1978 = vadd.f32 %v1889, %v1977
        %v1979 = vpop.f32.mrf.mxu0
        %v1980 = vadd.f32 %v1891, %v1979
        %1981 = vmatmul.bf16.gmra.mxu0 %v1615
        %v1982 = vpop.f32.mrf.mxu0
        %v1983 = vadd.f32 %v1894, %v1982
        %v1984 = vpop.f32.mrf.mxu0
        %v1985 = vadd.f32 %v1896, %v1984
        %1986 = vdwg.mxu0
        %1987 = vmatpush.bf16.msra.mxu0 %v1784
        %1988 = vmatpush.bf16.msra.mxu0 %v1783
        %1989 = vmatpush.bf16.msra.mxu0 %v1782
        %1990 = vmatpush.bf16.msra.mxu0 %v1781
        %1991 = vmatpush.bf16.msra.mxu0 %v1780
        %1992 = vmatpush.bf16.msra.mxu0 %v1779
        %1993 = vmatpush.bf16.msra.mxu0 %v1778
        %1994 = vmatpush.bf16.msra.mxu0 %v1777
        %1995 = vmatmul.bf16.gmra.mxu0 %v1571
        %v1996 = vpop.f32.mrf.mxu0
        %v1997 = vadd.f32 %v1908, %v1996
        %v1998 = vpop.f32.mrf.mxu0
        %v1999 = vadd.f32 %v1910, %v1998
        %2000 = vmatmul.bf16.gmra.mxu0 %v1574
        %v2001 = vpop.f32.mrf.mxu0
        %v2002 = vadd.f32 %v1913, %v2001
        %v2003 = vpop.f32.mrf.mxu0
        %v2004 = vadd.f32 %v1915, %v2003
        %2005 = vmatmul.bf16.gmra.mxu0 %v1577
        %v2006 = vpop.f32.mrf.mxu0
        %v2007 = vadd.f32 %v1918, %v2006
        %v2008 = vpop.f32.mrf.mxu0
        %v2009 = vadd.f32 %v1920, %v2008
        %2010 = vmatmul.bf16.gmra.mxu0 %v1580
        %v2011 = vpop.f32.mrf.mxu0
        %v2012 = vadd.f32 %v1923, %v2011
        %v2013 = vpop.f32.mrf.mxu0
        %v2014 = vadd.f32 %v1925, %v2013
        %2015 = vmatmul.bf16.gmra.mxu0 %v1583
        %v2016 = vpop.f32.mrf.mxu0
        %v2017 = vadd.f32 %v1928, %v2016
        %v2018 = vpop.f32.mrf.mxu0
        %v2019 = vadd.f32 %v1930, %v2018
        %2020 = vmatmul.bf16.gmra.mxu0 %v1586
        %v2021 = vpop.f32.mrf.mxu0
        %v2022 = vadd.f32 %v1933, %v2021
        %v2023 = vpop.f32.mrf.mxu0
        %v2024 = vadd.f32 %v1935, %v2023
        %2025 = vmatmul.bf16.gmra.mxu0 %v1589
        %v2026 = vpop.f32.mrf.mxu0
        %v2027 = vadd.f32 %v1938, %v2026
        %v2028 = vpop.f32.mrf.mxu0
        %v2029 = vadd.f32 %v1940, %v2028
        %2030 = vmatmul.bf16.gmra.mxu0 %v1592
        %v2031 = vpop.f32.mrf.mxu0
        %v2032 = vadd.f32 %v1943, %v2031
        %v2033 = vpop.f32.mrf.mxu0
        %v2034 = vadd.f32 %v1945, %v2033
        %2035 = vmatmul.bf16.gmra.mxu0 %v1595
        %v2036 = vpop.f32.mrf.mxu0
        %v2037 = vadd.f32 %v1948, %v2036
        %v2038 = vpop.f32.mrf.mxu0
        %v2039 = vadd.f32 %v1950, %v2038
        %2040 = vmatmul.bf16.gmra.mxu0 %v1598
        %v2041 = vpop.f32.mrf.mxu0
        %v2042 = vadd.f32 %v1953, %v2041
        %v2043 = vpop.f32.mrf.mxu0
        %v2044 = vadd.f32 %v1955, %v2043
        %2045 = vmatmul.bf16.gmra.mxu0 %v1601
        %v2046 = vpop.f32.mrf.mxu0
        %v2047 = vadd.f32 %v1958, %v2046
        %v2048 = vpop.f32.mrf.mxu0
        %v2049 = vadd.f32 %v1960, %v2048
        %2050 = vmatmul.bf16.gmra.mxu0 %v1604
        %v2051 = vpop.f32.mrf.mxu0
        %v2052 = vadd.f32 %v1963, %v2051
        %v2053 = vpop.f32.mrf.mxu0
        %v2054 = vadd.f32 %v1965, %v2053
        %2055 = vmatmul.bf16.gmra.mxu0 %v1607
        %v2056 = vpop.f32.mrf.mxu0
        %v2057 = vadd.f32 %v1968, %v2056
        %v2058 = vpop.f32.mrf.mxu0
        %v2059 = vadd.f32 %v1970, %v2058
        %2060 = vmatmul.bf16.gmra.mxu0 %v1610
        %v2061 = vpop.f32.mrf.mxu0
        %v2062 = vadd.f32 %v1973, %v2061
        %v2063 = vpop.f32.mrf.mxu0
        %v2064 = vadd.f32 %v1975, %v2063
        %2065 = vmatmul.bf16.gmra.mxu0 %v1613
        %v2066 = vpop.f32.mrf.mxu0
        %v2067 = vadd.f32 %v1978, %v2066
        %v2068 = vpop.f32.mrf.mxu0
        %v2069 = vadd.f32 %v1980, %v2068
        %2070 = vmatmul.bf16.gmra.mxu0 %v1616
        %v2071 = vpop.f32.mrf.mxu0
        %v2072 = vadd.f32 %v1983, %v2071
        %v2073 = vpop.f32.mrf.mxu0
        %v2074 = vadd.f32 %v1985, %v2073
        %2075 = vdwg.mxu0
        %v2140 = vunpack.c.l.b16 %v1183
        %v2141 = vunpack.c.h.b16 %v1183
        %v2142 = vunpack.c.l.b16 %v1184
        %v2143 = vunpack.c.l.b16 %v1185
        %v2144 = vunpack.c.h.b16 %v1185
        %v2145 = vunpack.c.l.b16 %v1186
        %v2146 = vunpack.c.l.b16 %v1187
        %v2147 = vunpack.c.h.b16 %v1187
        %v2148 = vunpack.c.l.b16 %v1188
        %v2149 = vunpack.c.l.b16 %v1189
        %v2150 = vunpack.c.h.b16 %v1189
        %v2151 = vunpack.c.l.b16 %v1190
        %v2152 = vunpack.c.l.b16 %v1191
        %v2153 = vunpack.c.h.b16 %v1191
        %v2154 = vunpack.c.l.b16 %v1192
        %v2155 = vunpack.c.l.b16 %v1193
        %v2156 = vunpack.c.h.b16 %v1193
        %v2157 = vunpack.c.l.b16 %v1194
        %v2158 = vunpack.c.l.b16 %v1195
        %v2159 = vunpack.c.h.b16 %v1195
        %v2160 = vunpack.c.l.b16 %v1196
        %v2161 = vunpack.c.l.b16 %v1197
        %v2162 = vunpack.c.h.b16 %v1197
        %v2163 = vunpack.c.l.b16 %v1198
        %v2164 = vunpack.c.l.b16 %v1199
        %v2165 = vunpack.c.h.b16 %v1199
        %v2166 = vunpack.c.l.b16 %v1200
        %v2167 = vunpack.c.l.b16 %v1201
        %v2168 = vunpack.c.h.b16 %v1201
        %v2169 = vunpack.c.l.b16 %v1202
        %v2170 = vunpack.c.l.b16 %v1203
        %v2171 = vunpack.c.h.b16 %v1203
        %v2172 = vunpack.c.l.b16 %v1204
        %v2173 = vunpack.c.l.b16 %v1205
        %v2174 = vunpack.c.h.b16 %v1205
        %v2175 = vunpack.c.l.b16 %v1206
        %v2176 = vunpack.c.l.b16 %v1207
        %v2177 = vunpack.c.h.b16 %v1207
        %v2178 = vunpack.c.l.b16 %v1208
        %v2179 = vunpack.c.l.b16 %v1209
        %v2180 = vunpack.c.h.b16 %v1209
        %v2181 = vunpack.c.l.b16 %v1210
        %v2182 = vunpack.c.l.b16 %v1211
        %v2183 = vunpack.c.h.b16 %v1211
        %v2184 = vunpack.c.l.b16 %v1212
        %v2185 = vunpack.c.l.b16 %v1213
        %v2186 = vunpack.c.h.b16 %v1213
        %v2187 = vunpack.c.l.b16 %v1214
        %v2188 = vunpack.c.l.b16 %v1215
        %v2189 = vunpack.c.h.b16 %v1215
        %v2190 = vunpack.c.l.b16 %v1216
        %v2191 = vunpack.c.l.b16 %v1217
        %v2192 = vunpack.c.h.b16 %v1217
        %v2193 = vunpack.c.l.b16 %v1218
        %v2194 = vunpack.c.l.b16 %v1219
        %v2195 = vunpack.c.h.b16 %v1219
        %v2196 = vunpack.c.l.b16 %v1220
        %v2197 = vunpack.c.l.b16 %v1221
        %v2198 = vunpack.c.h.b16 %v1221
        %v2199 = vunpack.c.l.b16 %v1222
        %v2200 = vunpack.c.l.b16 %v1223
        %v2201 = vunpack.c.h.b16 %v1223
        %v2202 = vunpack.c.l.b16 %v1224
        %v2203 = vunpack.c.l.b16 %v1225
        %v2204 = vunpack.c.h.b16 %v1225
        %v2205 = vunpack.c.l.b16 %v1226
        %v2206 = vunpack.c.l.b16 %v1227
        %v2207 = vunpack.c.h.b16 %v1227
        %v2208 = vunpack.c.l.b16 %v1228
        %v2209 = vunpack.c.l.b16 %v1229
        %v2210 = vunpack.c.h.b16 %v1229
        %v2211 = vunpack.c.l.b16 %v1230
        %v2212 = vunpack.c.l.b16 %v1231
        %v2213 = vunpack.c.h.b16 %v1231
        %v2214 = vunpack.c.l.b16 %v1232
        %v2215 = vunpack.c.l.b16 %v1233
        %v2216 = vunpack.c.h.b16 %v1233
        %v2217 = vunpack.c.l.b16 %v1234
        %v2218 = vunpack.c.l.b16 %v1235
        %v2219 = vunpack.c.h.b16 %v1235
        %v2220 = vunpack.c.l.b16 %v1236
        %v2221 = vunpack.c.l.b16 %v1237
        %v2222 = vunpack.c.h.b16 %v1237
        %v2223 = vunpack.c.l.b16 %v1238
        %v2224 = vunpack.c.l.b16 %v1239
        %v2225 = vunpack.c.h.b16 %v1239
        %v2226 = vunpack.c.l.b16 %v1240
        %v2227 = vunpack.c.l.b16 %v1241
        %v2228 = vunpack.c.h.b16 %v1241
        %v2229 = vunpack.c.l.b16 %v1242
        %v2230 = vunpack.c.l.b16 %v1243
        %v2231 = vunpack.c.h.b16 %v1243
        %v2232 = vunpack.c.l.b16 %v1244
        %v2233 = vunpack.c.l.b16 %v1245
        %v2234 = vunpack.c.h.b16 %v1245
        %v2235 = vunpack.c.l.b16 %v1246
        %v2236 = vpack.c.b16 %v2143, %v2140
        %v2237 = vpack.c.b16 %v2144, %v2141
        %v2238 = vpack.c.b16 %v2145, %v2142
        %v2239 = vpack.c.b16 %v2149, %v2146
        %v2240 = vpack.c.b16 %v2150, %v2147
        %v2241 = vpack.c.b16 %v2151, %v2148
        %v2242 = vpack.c.b16 %v2155, %v2152
        %v2243 = vpack.c.b16 %v2156, %v2153
        %v2244 = vpack.c.b16 %v2157, %v2154
        %v2245 = vpack.c.b16 %v2161, %v2158
        %v2246 = vpack.c.b16 %v2162, %v2159
        %v2247 = vpack.c.b16 %v2163, %v2160
        %v2248 = vpack.c.b16 %v2167, %v2164
        %v2249 = vpack.c.b16 %v2168, %v2165
        %v2250 = vpack.c.b16 %v2169, %v2166
        %v2251 = vpack.c.b16 %v2173, %v2170
        %v2252 = vpack.c.b16 %v2174, %v2171
        %v2253 = vpack.c.b16 %v2175, %v2172
        %v2254 = vpack.c.b16 %v2179, %v2176
        %v2255 = vpack.c.b16 %v2180, %v2177
        %v2256 = vpack.c.b16 %v2181, %v2178
        %v2257 = vpack.c.b16 %v2185, %v2182
        %v2258 = vpack.c.b16 %v2186, %v2183
        %v2259 = vpack.c.b16 %v2187, %v2184
        %v2260 = vpack.c.b16 %v2191, %v2188
        %v2261 = vpack.c.b16 %v2192, %v2189
        %v2262 = vpack.c.b16 %v2193, %v2190
        %v2263 = vpack.c.b16 %v2197, %v2194
        %v2264 = vpack.c.b16 %v2198, %v2195
        %v2265 = vpack.c.b16 %v2199, %v2196
        %v2266 = vpack.c.b16 %v2203, %v2200
        %v2267 = vpack.c.b16 %v2204, %v2201
        %v2268 = vpack.c.b16 %v2205, %v2202
        %v2269 = vpack.c.b16 %v2209, %v2206
        %v2270 = vpack.c.b16 %v2210, %v2207
        %v2271 = vpack.c.b16 %v2211, %v2208
        %v2272 = vpack.c.b16 %v2215, %v2212
        %v2273 = vpack.c.b16 %v2216, %v2213
        %v2274 = vpack.c.b16 %v2217, %v2214
        %v2275 = vpack.c.b16 %v2221, %v2218
        %v2276 = vpack.c.b16 %v2222, %v2219
        %v2277 = vpack.c.b16 %v2223, %v2220
        %v2278 = vpack.c.b16 %v2227, %v2224
        %v2279 = vpack.c.b16 %v2228, %v2225
        %v2280 = vpack.c.b16 %v2229, %v2226
        %v2281 = vpack.c.b16 %v2233, %v2230
        %v2282 = vpack.c.b16 %v2234, %v2231
        %v2283 = vpack.c.b16 %v2235, %v2232
        %v2380 = vunpack.c.l.b16 %v1247
        %v2381 = vunpack.c.l.b16 %v1248
        %v2382 = vunpack.c.l.b16 %v1249
        %v2383 = vunpack.c.l.b16 %v1250
        %v2384 = vunpack.c.l.b16 %v1251
        %v2385 = vunpack.c.l.b16 %v1252
        %v2386 = vunpack.c.l.b16 %v1253
        %v2387 = vunpack.c.l.b16 %v1254
        %v2388 = vunpack.c.l.b16 %v1255
        %v2389 = vunpack.c.l.b16 %v1256
        %v2390 = vunpack.c.l.b16 %v1257
        %v2391 = vunpack.c.l.b16 %v1258
        %v2392 = vunpack.c.l.b16 %v1259
        %v2393 = vunpack.c.l.b16 %v1260
        %v2394 = vunpack.c.l.b16 %v1261
        %v2395 = vunpack.c.l.b16 %v1262
        %v2396 = vunpack.c.l.b16 %v1263
        %v2397 = vunpack.c.l.b16 %v1264
        %v2398 = vunpack.c.l.b16 %v1265
        %v2399 = vunpack.c.l.b16 %v1266
        %v2400 = vunpack.c.l.b16 %v1267
        %v2401 = vunpack.c.l.b16 %v1268
        %v2402 = vunpack.c.l.b16 %v1269
        %v2403 = vunpack.c.l.b16 %v1270
        %v2404 = vunpack.c.l.b16 %v1271
        %v2405 = vunpack.c.l.b16 %v1272
        %v2406 = vunpack.c.l.b16 %v1273
        %v2407 = vunpack.c.l.b16 %v1274
        %v2408 = vunpack.c.l.b16 %v1275
        %v2409 = vunpack.c.l.b16 %v1276
        %v2410 = vunpack.c.l.b16 %v1277
        %v2411 = vunpack.c.l.b16 %v1278
        %v2412 = vunpack.c.l.b16 %v1279
        %v2413 = vunpack.c.l.b16 %v1280
        %v2414 = vunpack.c.l.b16 %v1281
        %v2415 = vunpack.c.l.b16 %v1282
        %v2416 = vunpack.c.l.b16 %v1283
        %v2417 = vunpack.c.l.b16 %v1284
        %v2418 = vunpack.c.l.b16 %v1285
        %v2419 = vunpack.c.l.b16 %v1286
        %v2420 = vunpack.c.l.b16 %v1287
        %v2421 = vunpack.c.l.b16 %v1288
        %v2422 = vunpack.c.l.b16 %v1289
        %v2423 = vunpack.c.l.b16 %v1290
        %v2424 = vunpack.c.l.b16 %v1291
        %v2425 = vunpack.c.l.b16 %v1292
        %v2426 = vunpack.c.l.b16 %v1293
        %v2427 = vunpack.c.l.b16 %v1294
        %v2428 = vpack.c.b16 %v2381, %v2380
        %v2429 = vpack.c.b16 %v2383, %v2382
        %v2430 = vpack.c.b16 %v2385, %v2384
        %v2431 = vpack.c.b16 %v2387, %v2386
        %v2432 = vpack.c.b16 %v2389, %v2388
        %v2433 = vpack.c.b16 %v2391, %v2390
        %v2434 = vpack.c.b16 %v2393, %v2392
        %v2435 = vpack.c.b16 %v2395, %v2394
        %v2436 = vpack.c.b16 %v2397, %v2396
        %v2437 = vpack.c.b16 %v2399, %v2398
        %v2438 = vpack.c.b16 %v2401, %v2400
        %v2439 = vpack.c.b16 %v2403, %v2402
        %v2440 = vpack.c.b16 %v2405, %v2404
        %v2441 = vpack.c.b16 %v2407, %v2406
        %v2442 = vpack.c.b16 %v2409, %v2408
        %v2443 = vpack.c.b16 %v2411, %v2410
        %v2444 = vpack.c.b16 %v2413, %v2412
        %v2445 = vpack.c.b16 %v2415, %v2414
        %v2446 = vpack.c.b16 %v2417, %v2416
        %v2447 = vpack.c.b16 %v2419, %v2418
        %v2448 = vpack.c.b16 %v2421, %v2420
        %v2449 = vpack.c.b16 %v2423, %v2422
        %v2450 = vpack.c.b16 %v2425, %v2424
        %v2451 = vpack.c.b16 %v2427, %v2426
        %2476 = vmatpush.bf16.msra.mxu0 %v2435
        %2477 = vmatpush.bf16.msra.mxu0 %v2434
        %2478 = vmatpush.bf16.msra.mxu0 %v2433
        %2479 = vmatpush.bf16.msra.mxu0 %v2432
        %2480 = vmatpush.bf16.msra.mxu0 %v2431
        %2481 = vmatpush.bf16.msra.mxu0 %v2430
        %2482 = vmatpush.bf16.msra.mxu0 %v2429
        %2483 = vmatpush.bf16.msra.mxu0 %v2428
        %2484 = vmatmul.bf16.gmra.mxu0 %v2236
        %v2485 = vpop.f32.mrf.mxu0
        %v2486 = vadd.f32 %v1997, %v2485
        %v2487 = vpop.f32.mrf.mxu0
        %v2488 = vadd.f32 %v1999, %v2487
        %2489 = vmatmul.bf16.gmra.mxu0 %v2239
        %v2490 = vpop.f32.mrf.mxu0
        %v2491 = vadd.f32 %v2002, %v2490
        %v2492 = vpop.f32.mrf.mxu0
        %v2493 = vadd.f32 %v2004, %v2492
        %2494 = vmatmul.bf16.gmra.mxu0 %v2242
        %v2495 = vpop.f32.mrf.mxu0
        %v2496 = vadd.f32 %v2007, %v2495
        %v2497 = vpop.f32.mrf.mxu0
        %v2498 = vadd.f32 %v2009, %v2497
        %2499 = vmatmul.bf16.gmra.mxu0 %v2245
        %v2500 = vpop.f32.mrf.mxu0
        %v2501 = vadd.f32 %v2012, %v2500
        %v2502 = vpop.f32.mrf.mxu0
        %v2503 = vadd.f32 %v2014, %v2502
        %2504 = vmatmul.bf16.gmra.mxu0 %v2248
        %v2505 = vpop.f32.mrf.mxu0
        %v2506 = vadd.f32 %v2017, %v2505
        %v2507 = vpop.f32.mrf.mxu0
        %v2508 = vadd.f32 %v2019, %v2507
        %2509 = vmatmul.bf16.gmra.mxu0 %v2251
        %v2510 = vpop.f32.mrf.mxu0
        %v2511 = vadd.f32 %v2022, %v2510
        %v2512 = vpop.f32.mrf.mxu0
        %v2513 = vadd.f32 %v2024, %v2512
        %2514 = vmatmul.bf16.gmra.mxu0 %v2254
        %v2515 = vpop.f32.mrf.mxu0
        %v2516 = vadd.f32 %v2027, %v2515
        %v2517 = vpop.f32.mrf.mxu0
        %v2518 = vadd.f32 %v2029, %v2517
        %2519 = vmatmul.bf16.gmra.mxu0 %v2257
        %v2520 = vpop.f32.mrf.mxu0
        %v2521 = vadd.f32 %v2032, %v2520
        %v2522 = vpop.f32.mrf.mxu0
        %v2523 = vadd.f32 %v2034, %v2522
        %2524 = vmatmul.bf16.gmra.mxu0 %v2260
        %v2525 = vpop.f32.mrf.mxu0
        %v2526 = vadd.f32 %v2037, %v2525
        %v2527 = vpop.f32.mrf.mxu0
        %v2528 = vadd.f32 %v2039, %v2527
        %2529 = vmatmul.bf16.gmra.mxu0 %v2263
        %v2530 = vpop.f32.mrf.mxu0
        %v2531 = vadd.f32 %v2042, %v2530
        %v2532 = vpop.f32.mrf.mxu0
        %v2533 = vadd.f32 %v2044, %v2532
        %2534 = vmatmul.bf16.gmra.mxu0 %v2266
        %v2535 = vpop.f32.mrf.mxu0
        %v2536 = vadd.f32 %v2047, %v2535
        %v2537 = vpop.f32.mrf.mxu0
        %v2538 = vadd.f32 %v2049, %v2537
        %2539 = vmatmul.bf16.gmra.mxu0 %v2269
        %v2540 = vpop.f32.mrf.mxu0
        %v2541 = vadd.f32 %v2052, %v2540
        %v2542 = vpop.f32.mrf.mxu0
        %v2543 = vadd.f32 %v2054, %v2542
        %2544 = vmatmul.bf16.gmra.mxu0 %v2272
        %v2545 = vpop.f32.mrf.mxu0
        %v2546 = vadd.f32 %v2057, %v2545
        %v2547 = vpop.f32.mrf.mxu0
        %v2548 = vadd.f32 %v2059, %v2547
        %2549 = vmatmul.bf16.gmra.mxu0 %v2275
        %v2550 = vpop.f32.mrf.mxu0
        %v2551 = vadd.f32 %v2062, %v2550
        %v2552 = vpop.f32.mrf.mxu0
        %v2553 = vadd.f32 %v2064, %v2552
        %2554 = vmatmul.bf16.gmra.mxu0 %v2278
        %v2555 = vpop.f32.mrf.mxu0
        %v2556 = vadd.f32 %v2067, %v2555
        %v2557 = vpop.f32.mrf.mxu0
        %v2558 = vadd.f32 %v2069, %v2557
        %2559 = vmatmul.bf16.gmra.mxu0 %v2281
        %v2560 = vpop.f32.mrf.mxu0
        %v2561 = vadd.f32 %v2072, %v2560
        %v2562 = vpop.f32.mrf.mxu0
        %v2563 = vadd.f32 %v2074, %v2562
        %2564 = vdwg.mxu0
        %2565 = vmatpush.bf16.msra.mxu0 %v2443
        %2566 = vmatpush.bf16.msra.mxu0 %v2442
        %2567 = vmatpush.bf16.msra.mxu0 %v2441
        %2568 = vmatpush.bf16.msra.mxu0 %v2440
        %2569 = vmatpush.bf16.msra.mxu0 %v2439
        %2570 = vmatpush.bf16.msra.mxu0 %v2438
        %2571 = vmatpush.bf16.msra.mxu0 %v2437
        %2572 = vmatpush.bf16.msra.mxu0 %v2436
        %2573 = vmatmul.bf16.gmra.mxu0 %v2237
        %v2574 = vpop.f32.mrf.mxu0
        %v2575 = vadd.f32 %v2486, %v2574
        %v2576 = vpop.f32.mrf.mxu0
        %v2577 = vadd.f32 %v2488, %v2576
        %2578 = vmatmul.bf16.gmra.mxu0 %v2240
        %v2579 = vpop.f32.mrf.mxu0
        %v2580 = vadd.f32 %v2491, %v2579
        %v2581 = vpop.f32.mrf.mxu0
        %v2582 = vadd.f32 %v2493, %v2581
        %2583 = vmatmul.bf16.gmra.mxu0 %v2243
        %v2584 = vpop.f32.mrf.mxu0
        %v2585 = vadd.f32 %v2496, %v2584
        %v2586 = vpop.f32.mrf.mxu0
        %v2587 = vadd.f32 %v2498, %v2586
        %2588 = vmatmul.bf16.gmra.mxu0 %v2246
        %v2589 = vpop.f32.mrf.mxu0
        %v2590 = vadd.f32 %v2501, %v2589
        %v2591 = vpop.f32.mrf.mxu0
        %v2592 = vadd.f32 %v2503, %v2591
        %2593 = vmatmul.bf16.gmra.mxu0 %v2249
        %v2594 = vpop.f32.mrf.mxu0
        %v2595 = vadd.f32 %v2506, %v2594
        %v2596 = vpop.f32.mrf.mxu0
        %v2597 = vadd.f32 %v2508, %v2596
        %2598 = vmatmul.bf16.gmra.mxu0 %v2252
        %v2599 = vpop.f32.mrf.mxu0
        %v2600 = vadd.f32 %v2511, %v2599
        %v2601 = vpop.f32.mrf.mxu0
        %v2602 = vadd.f32 %v2513, %v2601
        %2603 = vmatmul.bf16.gmra.mxu0 %v2255
        %v2604 = vpop.f32.mrf.mxu0
        %v2605 = vadd.f32 %v2516, %v2604
        %v2606 = vpop.f32.mrf.mxu0
        %v2607 = vadd.f32 %v2518, %v2606
        %2608 = vmatmul.bf16.gmra.mxu0 %v2258
        %v2609 = vpop.f32.mrf.mxu0
        %v2610 = vadd.f32 %v2521, %v2609
        %v2611 = vpop.f32.mrf.mxu0
        %v2612 = vadd.f32 %v2523, %v2611
        %2613 = vmatmul.bf16.gmra.mxu0 %v2261
        %v2614 = vpop.f32.mrf.mxu0
        %v2615 = vadd.f32 %v2526, %v2614
        %v2616 = vpop.f32.mrf.mxu0
        %v2617 = vadd.f32 %v2528, %v2616
        %2618 = vmatmul.bf16.gmra.mxu0 %v2264
        %v2619 = vpop.f32.mrf.mxu0
        %v2620 = vadd.f32 %v2531, %v2619
        %v2621 = vpop.f32.mrf.mxu0
        %v2622 = vadd.f32 %v2533, %v2621
        %2623 = vmatmul.bf16.gmra.mxu0 %v2267
        %v2624 = vpop.f32.mrf.mxu0
        %v2625 = vadd.f32 %v2536, %v2624
        %v2626 = vpop.f32.mrf.mxu0
        %v2627 = vadd.f32 %v2538, %v2626
        %2628 = vmatmul.bf16.gmra.mxu0 %v2270
        %v2629 = vpop.f32.mrf.mxu0
        %v2630 = vadd.f32 %v2541, %v2629
        %v2631 = vpop.f32.mrf.mxu0
        %v2632 = vadd.f32 %v2543, %v2631
        %2633 = vmatmul.bf16.gmra.mxu0 %v2273
        %v2634 = vpop.f32.mrf.mxu0
        %v2635 = vadd.f32 %v2546, %v2634
        %v2636 = vpop.f32.mrf.mxu0
        %v2637 = vadd.f32 %v2548, %v2636
        %2638 = vmatmul.bf16.gmra.mxu0 %v2276
        %v2639 = vpop.f32.mrf.mxu0
        %v2640 = vadd.f32 %v2551, %v2639
        %v2641 = vpop.f32.mrf.mxu0
        %v2642 = vadd.f32 %v2553, %v2641
        %2643 = vmatmul.bf16.gmra.mxu0 %v2279
        %v2644 = vpop.f32.mrf.mxu0
        %v2645 = vadd.f32 %v2556, %v2644
        %v2646 = vpop.f32.mrf.mxu0
        %v2647 = vadd.f32 %v2558, %v2646
        %2648 = vmatmul.bf16.gmra.mxu0 %v2282
        %v2649 = vpop.f32.mrf.mxu0
        %v2650 = vadd.f32 %v2561, %v2649
        %v2651 = vpop.f32.mrf.mxu0
        %v2652 = vadd.f32 %v2563, %v2651
        %2653 = vdwg.mxu0
        %2654 = vmatpush.bf16.msra.mxu0 %v2451
        %2655 = vmatpush.bf16.msra.mxu0 %v2450
        %2656 = vmatpush.bf16.msra.mxu0 %v2449
        %2657 = vmatpush.bf16.msra.mxu0 %v2448
        %2658 = vmatpush.bf16.msra.mxu0 %v2447
        %2659 = vmatpush.bf16.msra.mxu0 %v2446
        %2660 = vmatpush.bf16.msra.mxu0 %v2445
        %2661 = vmatpush.bf16.msra.mxu0 %v2444
        %2662 = vmatmul.bf16.gmra.mxu0 %v2238
        %v2663 = vpop.f32.mrf.mxu0
        %v2664 = vadd.f32 %v2575, %v2663
        %v2665 = vpop.f32.mrf.mxu0
        %v2666 = vadd.f32 %v2577, %v2665
        %2667 = vmatmul.bf16.gmra.mxu0 %v2241
        %v2668 = vpop.f32.mrf.mxu0
        %v2669 = vadd.f32 %v2580, %v2668
        %v2670 = vpop.f32.mrf.mxu0
        %v2671 = vadd.f32 %v2582, %v2670
        %2672 = vmatmul.bf16.gmra.mxu0 %v2244
        %v2673 = vpop.f32.mrf.mxu0
        %v2674 = vadd.f32 %v2585, %v2673
        %v2675 = vpop.f32.mrf.mxu0
        %v2676 = vadd.f32 %v2587, %v2675
        %2677 = vmatmul.bf16.gmra.mxu0 %v2247
        %v2678 = vpop.f32.mrf.mxu0
        %v2679 = vadd.f32 %v2590, %v2678
        %v2680 = vpop.f32.mrf.mxu0
        %v2681 = vadd.f32 %v2592, %v2680
        %2682 = vmatmul.bf16.gmra.mxu0 %v2250
        %v2683 = vpop.f32.mrf.mxu0
        %v2684 = vadd.f32 %v2595, %v2683
        %v2685 = vpop.f32.mrf.mxu0
        %v2686 = vadd.f32 %v2597, %v2685
        %2687 = vmatmul.bf16.gmra.mxu0 %v2253
        %v2688 = vpop.f32.mrf.mxu0
        %v2689 = vadd.f32 %v2600, %v2688
        %v2690 = vpop.f32.mrf.mxu0
        %v2691 = vadd.f32 %v2602, %v2690
        %2692 = vmatmul.bf16.gmra.mxu0 %v2256
        %v2693 = vpop.f32.mrf.mxu0
        %v2694 = vadd.f32 %v2605, %v2693
        %v2695 = vpop.f32.mrf.mxu0
        %v2696 = vadd.f32 %v2607, %v2695
        %2697 = vmatmul.bf16.gmra.mxu0 %v2259
        %v2698 = vpop.f32.mrf.mxu0
        %v2699 = vadd.f32 %v2610, %v2698
        %v2700 = vpop.f32.mrf.mxu0
        %v2701 = vadd.f32 %v2612, %v2700
        %2702 = vmatmul.bf16.gmra.mxu0 %v2262
        %v2703 = vpop.f32.mrf.mxu0
        %v2704 = vadd.f32 %v2615, %v2703
        %v2705 = vpop.f32.mrf.mxu0
        %v2706 = vadd.f32 %v2617, %v2705
        %2707 = vmatmul.bf16.gmra.mxu0 %v2265
        %v2708 = vpop.f32.mrf.mxu0
        %v2709 = vadd.f32 %v2620, %v2708
        %v2710 = vpop.f32.mrf.mxu0
        %v2711 = vadd.f32 %v2622, %v2710
        %2712 = vmatmul.bf16.gmra.mxu0 %v2268
        %v2713 = vpop.f32.mrf.mxu0
        %v2714 = vadd.f32 %v2625, %v2713
        %v2715 = vpop.f32.mrf.mxu0
        %v2716 = vadd.f32 %v2627, %v2715
        %2717 = vmatmul.bf16.gmra.mxu0 %v2271
        %v2718 = vpop.f32.mrf.mxu0
        %v2719 = vadd.f32 %v2630, %v2718
        %v2720 = vpop.f32.mrf.mxu0
        %v2721 = vadd.f32 %v2632, %v2720
        %2722 = vmatmul.bf16.gmra.mxu0 %v2274
        %v2723 = vpop.f32.mrf.mxu0
        %v2724 = vadd.f32 %v2635, %v2723
        %v2725 = vpop.f32.mrf.mxu0
        %v2726 = vadd.f32 %v2637, %v2725
        %2727 = vmatmul.bf16.gmra.mxu0 %v2277
        %v2728 = vpop.f32.mrf.mxu0
        %v2729 = vadd.f32 %v2640, %v2728
        %v2730 = vpop.f32.mrf.mxu0
        %v2731 = vadd.f32 %v2642, %v2730
        %2732 = vmatmul.bf16.gmra.mxu0 %v2280
        %v2733 = vpop.f32.mrf.mxu0
        %v2734 = vadd.f32 %v2645, %v2733
        %v2735 = vpop.f32.mrf.mxu0
        %v2736 = vadd.f32 %v2647, %v2735
        %2737 = vmatmul.bf16.gmra.mxu0 %v2283
        %v2738 = vpop.f32.mrf.mxu0
        %v2739 = vadd.f32 %v2650, %v2738
        %v2740 = vpop.f32.mrf.mxu0
        %v2741 = vadd.f32 %v2652, %v2740
        %2742 = vdwg.mxu0
        %s2743 = scalar_lea.vmem [#allocation3], 48
        %v2744 = vld [vmem:[%s2743] sm:$0xff]
        %v2745 = vld [vmem:[%s2743 + $0x8] sm:$0xf]
        %v2746 = vld [vmem:[%s2743 + $0xc] sm:$0xff]
        %v2747 = vld [vmem:[%s2743 + $0x14] sm:$0xf]
        %v2748 = vld [vmem:[%s2743 + $0x18] sm:$0xff]
        %v2749 = vld [vmem:[%s2743 + $0x20] sm:$0xf]
        %v2750 = vld [vmem:[%s2743 + $0x24] sm:$0xff]
        %v2751 = vld [vmem:[%s2743 + $0x2c] sm:$0xf]
        %v2752 = vld [vmem:[%s2743 + $0x30] sm:$0xff]
        %v2753 = vld [vmem:[%s2743 + $0x38] sm:$0xf]
        %v2754 = vld [vmem:[%s2743 + $0x3c] sm:$0xff]
        %v2755 = vld [vmem:[%s2743 + $0x44] sm:$0xf]
        %v2756 = vld [vmem:[%s2743 + $0x48] sm:$0xff]
        %v2757 = vld [vmem:[%s2743 + $0x50] sm:$0xf]
        %v2758 = vld [vmem:[%s2743 + $0x54] sm:$0xff]
        %v2759 = vld [vmem:[%s2743 + $0x5c] sm:$0xf]
        %v2760 = vld [vmem:[%s2743 + $0x60] sm:$0xff]
        %v2761 = vld [vmem:[%s2743 + $0x68] sm:$0xf]
        %v2762 = vld [vmem:[%s2743 + $0x6c] sm:$0xff]
        %v2763 = vld [vmem:[%s2743 + $0x74] sm:$0xf]
        %v2764 = vld [vmem:[%s2743 + $0x78] sm:$0xff]
        %v2765 = vld [vmem:[%s2743 + $0x80] sm:$0xf]
        %v2766 = vld [vmem:[%s2743 + $0x84] sm:$0xff]
        %v2767 = vld [vmem:[%s2743 + $0x8c] sm:$0xf]
        %v2768 = vld [vmem:[%s2743 + $0x90] sm:$0xff]
        %v2769 = vld [vmem:[%s2743 + $0x98] sm:$0xf]
        %v2770 = vld [vmem:[%s2743 + $0x9c] sm:$0xff]
        %v2771 = vld [vmem:[%s2743 + $0xa4] sm:$0xf]
        %v2772 = vld [vmem:[%s2743 + $0xa8] sm:$0xff]
        %v2773 = vld [vmem:[%s2743 + $0xb0] sm:$0xf]
        %v2774 = vld [vmem:[%s2743 + $0xb4] sm:$0xff]
        %v2775 = vld [vmem:[%s2743 + $0xbc] sm:$0xf]
        %v2776 = vld [vmem:[%s2743 + $0xc0] sm:$0xff]
        %v2777 = vld [vmem:[%s2743 + $0xc8] sm:$0xf]
        %v2778 = vld [vmem:[%s2743 + $0xcc] sm:$0xff]
        %v2779 = vld [vmem:[%s2743 + $0xd4] sm:$0xf]
        %v2780 = vld [vmem:[%s2743 + $0xd8] sm:$0xff]
        %v2781 = vld [vmem:[%s2743 + $0xe0] sm:$0xf]
        %v2782 = vld [vmem:[%s2743 + $0xe4] sm:$0xff]
        %v2783 = vld [vmem:[%s2743 + $0xec] sm:$0xf]
        %v2784 = vld [vmem:[%s2743 + $0xf0] sm:$0xff]
        %v2785 = vld [vmem:[%s2743 + $0xf8] sm:$0xf]
        %v2786 = vld [vmem:[%s2743 + $0xfc] sm:$0xff]
        %v2787 = vld [vmem:[%s2743 + $0x104] sm:$0xf]
        %v2788 = vld [vmem:[%s2743 + $0x108] sm:$0xff]
        %v2789 = vld [vmem:[%s2743 + $0x110] sm:$0xf]
        %v2790 = vld [vmem:[%s2743 + $0x114] sm:$0xff]
        %v2791 = vld [vmem:[%s2743 + $0x11c] sm:$0xf]
        %v2792 = vld [vmem:[%s2743 + $0x120] sm:$0xff]
        %v2793 = vld [vmem:[%s2743 + $0x128] sm:$0xf]
        %v2794 = vld [vmem:[%s2743 + $0x12c] sm:$0xff]
        %v2795 = vld [vmem:[%s2743 + $0x134] sm:$0xf]
        %v2796 = vld [vmem:[%s2743 + $0x138] sm:$0xff]
        %v2797 = vld [vmem:[%s2743 + $0x140] sm:$0xf]
        %v2798 = vld [vmem:[%s2743 + $0x144] sm:$0xff]
        %v2799 = vld [vmem:[%s2743 + $0x14c] sm:$0xf]
        %v2800 = vld [vmem:[%s2743 + $0x150] sm:$0xff]
        %v2801 = vld [vmem:[%s2743 + $0x158] sm:$0xf]
        %v2802 = vld [vmem:[%s2743 + $0x15c] sm:$0xff]
        %v2803 = vld [vmem:[%s2743 + $0x164] sm:$0xf]
        %v2804 = vld [vmem:[%s2743 + $0x168] sm:$0xff]
        %v2805 = vld [vmem:[%s2743 + $0x170] sm:$0xf]
        %v2806 = vld [vmem:[%s2743 + $0x174] sm:$0xff]
        %v2807 = vld [vmem:[%s2743 + $0x17c] sm:$0xf]
        %s2808 = scalar_lea.vmem %s1, 384
        %v2809 = vld [vmem:[%s2808] sm:$0xf]
        %v2810 = vld [vmem:[%s2808 + $0x4] sm:$0xf]
        %v2811 = vld [vmem:[%s2808 + $0x8] sm:$0xf]
        %v2812 = vld [vmem:[%s2808 + $0xc] sm:$0xf]
        %v2813 = vld [vmem:[%s2808 + $0x10] sm:$0xf]
        %v2814 = vld [vmem:[%s2808 + $0x14] sm:$0xf]
        %v2815 = vld [vmem:[%s2808 + $0x18] sm:$0xf]
        %v2816 = vld [vmem:[%s2808 + $0x1c] sm:$0xf]
        %v2817 = vld [vmem:[%s2808 + $0x20] sm:$0xf]
        %v2818 = vld [vmem:[%s2808 + $0x24] sm:$0xf]
        %v2819 = vld [vmem:[%s2808 + $0x28] sm:$0xf]
        %v2820 = vld [vmem:[%s2808 + $0x2c] sm:$0xf]
        %v2821 = vld [vmem:[%s2808 + $0x30] sm:$0xf]
        %v2822 = vld [vmem:[%s2808 + $0x34] sm:$0xf]
        %v2823 = vld [vmem:[%s2808 + $0x38] sm:$0xf]
        %v2824 = vld [vmem:[%s2808 + $0x3c] sm:$0xf]
        %v2825 = vld [vmem:[%s2808 + $0x40] sm:$0xf]
        %v2826 = vld [vmem:[%s2808 + $0x44] sm:$0xf]
        %v2827 = vld [vmem:[%s2808 + $0x48] sm:$0xf]
        %v2828 = vld [vmem:[%s2808 + $0x4c] sm:$0xf]
        %v2829 = vld [vmem:[%s2808 + $0x50] sm:$0xf]
        %v2830 = vld [vmem:[%s2808 + $0x54] sm:$0xf]
        %v2831 = vld [vmem:[%s2808 + $0x58] sm:$0xf]
        %v2832 = vld [vmem:[%s2808 + $0x5c] sm:$0xf]
        %v2833 = vld [vmem:[%s2808 + $0x60] sm:$0xf]
        %v2834 = vld [vmem:[%s2808 + $0x64] sm:$0xf]
        %v2835 = vld [vmem:[%s2808 + $0x68] sm:$0xf]
        %v2836 = vld [vmem:[%s2808 + $0x6c] sm:$0xf]
        %v2837 = vld [vmem:[%s2808 + $0x70] sm:$0xf]
        %v2838 = vld [vmem:[%s2808 + $0x74] sm:$0xf]
        %v2839 = vld [vmem:[%s2808 + $0x78] sm:$0xf]
        %v2840 = vld [vmem:[%s2808 + $0x7c] sm:$0xf]
        %v2841 = vld [vmem:[%s2808 + $0x80] sm:$0xf]
        %v2842 = vld [vmem:[%s2808 + $0x84] sm:$0xf]
        %v2843 = vld [vmem:[%s2808 + $0x88] sm:$0xf]
        %v2844 = vld [vmem:[%s2808 + $0x8c] sm:$0xf]
        %v2845 = vld [vmem:[%s2808 + $0x90] sm:$0xf]
        %v2846 = vld [vmem:[%s2808 + $0x94] sm:$0xf]
        %v2847 = vld [vmem:[%s2808 + $0x98] sm:$0xf]
        %v2848 = vld [vmem:[%s2808 + $0x9c] sm:$0xf]
        %v2849 = vld [vmem:[%s2808 + $0xa0] sm:$0xf]
        %v2850 = vld [vmem:[%s2808 + $0xa4] sm:$0xf]
        %v2851 = vld [vmem:[%s2808 + $0xa8] sm:$0xf]
        %v2852 = vld [vmem:[%s2808 + $0xac] sm:$0xf]
        %v2853 = vld [vmem:[%s2808 + $0xb0] sm:$0xf]
        %v2854 = vld [vmem:[%s2808 + $0xb4] sm:$0xf]
        %v2855 = vld [vmem:[%s2808 + $0xb8] sm:$0xf]
        %v2856 = vld [vmem:[%s2808 + $0xbc] sm:$0xf]
        %v2921 = vunpack.c.l.b16 %v2744
        %v2922 = vunpack.c.h.b16 %v2744
        %v2923 = vunpack.c.l.b16 %v2745
        %v2924 = vunpack.c.l.b16 %v2746
        %v2925 = vunpack.c.h.b16 %v2746
        %v2926 = vunpack.c.l.b16 %v2747
        %v2927 = vunpack.c.l.b16 %v2748
        %v2928 = vunpack.c.h.b16 %v2748
        %v2929 = vunpack.c.l.b16 %v2749
        %v2930 = vunpack.c.l.b16 %v2750
        %v2931 = vunpack.c.h.b16 %v2750
        %v2932 = vunpack.c.l.b16 %v2751
        %v2933 = vunpack.c.l.b16 %v2752
        %v2934 = vunpack.c.h.b16 %v2752
        %v2935 = vunpack.c.l.b16 %v2753
        %v2936 = vunpack.c.l.b16 %v2754
        %v2937 = vunpack.c.h.b16 %v2754
        %v2938 = vunpack.c.l.b16 %v2755
        %v2939 = vunpack.c.l.b16 %v2756
        %v2940 = vunpack.c.h.b16 %v2756
        %v2941 = vunpack.c.l.b16 %v2757
        %v2942 = vunpack.c.l.b16 %v2758
        %v2943 = vunpack.c.h.b16 %v2758
        %v2944 = vunpack.c.l.b16 %v2759
        %v2945 = vunpack.c.l.b16 %v2760
        %v2946 = vunpack.c.h.b16 %v2760
        %v2947 = vunpack.c.l.b16 %v2761
        %v2948 = vunpack.c.l.b16 %v2762
        %v2949 = vunpack.c.h.b16 %v2762
        %v2950 = vunpack.c.l.b16 %v2763
        %v2951 = vunpack.c.l.b16 %v2764
        %v2952 = vunpack.c.h.b16 %v2764
        %v2953 = vunpack.c.l.b16 %v2765
        %v2954 = vunpack.c.l.b16 %v2766
        %v2955 = vunpack.c.h.b16 %v2766
        %v2956 = vunpack.c.l.b16 %v2767
        %v2957 = vunpack.c.l.b16 %v2768
        %v2958 = vunpack.c.h.b16 %v2768
        %v2959 = vunpack.c.l.b16 %v2769
        %v2960 = vunpack.c.l.b16 %v2770
        %v2961 = vunpack.c.h.b16 %v2770
        %v2962 = vunpack.c.l.b16 %v2771
        %v2963 = vunpack.c.l.b16 %v2772
        %v2964 = vunpack.c.h.b16 %v2772
        %v2965 = vunpack.c.l.b16 %v2773
        %v2966 = vunpack.c.l.b16 %v2774
        %v2967 = vunpack.c.h.b16 %v2774
        %v2968 = vunpack.c.l.b16 %v2775
        %v2969 = vunpack.c.l.b16 %v2776
        %v2970 = vunpack.c.h.b16 %v2776
        %v2971 = vunpack.c.l.b16 %v2777
        %v2972 = vunpack.c.l.b16 %v2778
        %v2973 = vunpack.c.h.b16 %v2778
        %v2974 = vunpack.c.l.b16 %v2779
        %v2975 = vunpack.c.l.b16 %v2780
        %v2976 = vunpack.c.h.b16 %v2780
        %v2977 = vunpack.c.l.b16 %v2781
        %v2978 = vunpack.c.l.b16 %v2782
        %v2979 = vunpack.c.h.b16 %v2782
        %v2980 = vunpack.c.l.b16 %v2783
        %v2981 = vunpack.c.l.b16 %v2784
        %v2982 = vunpack.c.h.b16 %v2784
        %v2983 = vunpack.c.l.b16 %v2785
        %v2984 = vunpack.c.l.b16 %v2786
        %v2985 = vunpack.c.h.b16 %v2786
        %v2986 = vunpack.c.l.b16 %v2787
        %v2987 = vunpack.c.l.b16 %v2788
        %v2988 = vunpack.c.h.b16 %v2788
        %v2989 = vunpack.c.l.b16 %v2789
        %v2990 = vunpack.c.l.b16 %v2790
        %v2991 = vunpack.c.h.b16 %v2790
        %v2992 = vunpack.c.l.b16 %v2791
        %v2993 = vunpack.c.l.b16 %v2792
        %v2994 = vunpack.c.h.b16 %v2792
        %v2995 = vunpack.c.l.b16 %v2793
        %v2996 = vunpack.c.l.b16 %v2794
        %v2997 = vunpack.c.h.b16 %v2794
        %v2998 = vunpack.c.l.b16 %v2795
        %v2999 = vunpack.c.l.b16 %v2796
        %v3000 = vunpack.c.h.b16 %v2796
        %v3001 = vunpack.c.l.b16 %v2797
        %v3002 = vunpack.c.l.b16 %v2798
        %v3003 = vunpack.c.h.b16 %v2798
        %v3004 = vunpack.c.l.b16 %v2799
        %v3005 = vunpack.c.l.b16 %v2800
        %v3006 = vunpack.c.h.b16 %v2800
        %v3007 = vunpack.c.l.b16 %v2801
        %v3008 = vunpack.c.l.b16 %v2802
        %v3009 = vunpack.c.h.b16 %v2802
        %v3010 = vunpack.c.l.b16 %v2803
        %v3011 = vunpack.c.l.b16 %v2804
        %v3012 = vunpack.c.h.b16 %v2804
        %v3013 = vunpack.c.l.b16 %v2805
        %v3014 = vunpack.c.l.b16 %v2806
        %v3015 = vunpack.c.h.b16 %v2806
        %v3016 = vunpack.c.l.b16 %v2807
        %v3017 = vpack.c.b16 %v2924, %v2921
        %v3018 = vpack.c.b16 %v2925, %v2922
        %v3019 = vpack.c.b16 %v2926, %v2923
        %v3020 = vpack.c.b16 %v2930, %v2927
        %v3021 = vpack.c.b16 %v2931, %v2928
        %v3022 = vpack.c.b16 %v2932, %v2929
        %v3023 = vpack.c.b16 %v2936, %v2933
        %v3024 = vpack.c.b16 %v2937, %v2934
        %v3025 = vpack.c.b16 %v2938, %v2935
        %v3026 = vpack.c.b16 %v2942, %v2939
        %v3027 = vpack.c.b16 %v2943, %v2940
        %v3028 = vpack.c.b16 %v2944, %v2941
        %v3029 = vpack.c.b16 %v2948, %v2945
        %v3030 = vpack.c.b16 %v2949, %v2946
        %v3031 = vpack.c.b16 %v2950, %v2947
        %v3032 = vpack.c.b16 %v2954, %v2951
        %v3033 = vpack.c.b16 %v2955, %v2952
        %v3034 = vpack.c.b16 %v2956, %v2953
        %v3035 = vpack.c.b16 %v2960, %v2957
        %v3036 = vpack.c.b16 %v2961, %v2958
        %v3037 = vpack.c.b16 %v2962, %v2959
        %v3038 = vpack.c.b16 %v2966, %v2963
        %v3039 = vpack.c.b16 %v2967, %v2964
        %v3040 = vpack.c.b16 %v2968, %v2965
        %v3041 = vpack.c.b16 %v2972, %v2969
        %v3042 = vpack.c.b16 %v2973, %v2970
        %v3043 = vpack.c.b16 %v2974, %v2971
        %v3044 = vpack.c.b16 %v2978, %v2975
        %v3045 = vpack.c.b16 %v2979, %v2976
        %v3046 = vpack.c.b16 %v2980, %v2977
        %v3047 = vpack.c.b16 %v2984, %v2981
        %v3048 = vpack.c.b16 %v2985, %v2982
        %v3049 = vpack.c.b16 %v2986, %v2983
        %v3050 = vpack.c.b16 %v2990, %v2987
        %v3051 = vpack.c.b16 %v2991, %v2988
        %v3052 = vpack.c.b16 %v2992, %v2989
        %v3053 = vpack.c.b16 %v2996, %v2993
        %v3054 = vpack.c.b16 %v2997, %v2994
        %v3055 = vpack.c.b16 %v2998, %v2995
        %v3056 = vpack.c.b16 %v3002, %v2999
        %v3057 = vpack.c.b16 %v3003, %v3000
        %v3058 = vpack.c.b16 %v3004, %v3001
        %v3059 = vpack.c.b16 %v3008, %v3005
        %v3060 = vpack.c.b16 %v3009, %v3006
        %v3061 = vpack.c.b16 %v3010, %v3007
        %v3062 = vpack.c.b16 %v3014, %v3011
        %v3063 = vpack.c.b16 %v3015, %v3012
        %v3064 = vpack.c.b16 %v3016, %v3013
        %v3161 = vunpack.c.l.b16 %v2809
        %v3162 = vunpack.c.l.b16 %v2810
        %v3163 = vunpack.c.l.b16 %v2811
        %v3164 = vunpack.c.l.b16 %v2812
        %v3165 = vunpack.c.l.b16 %v2813
        %v3166 = vunpack.c.l.b16 %v2814
        %v3167 = vunpack.c.l.b16 %v2815
        %v3168 = vunpack.c.l.b16 %v2816
        %v3169 = vunpack.c.l.b16 %v2817
        %v3170 = vunpack.c.l.b16 %v2818
        %v3171 = vunpack.c.l.b16 %v2819
        %v3172 = vunpack.c.l.b16 %v2820
        %v3173 = vunpack.c.l.b16 %v2821
        %v3174 = vunpack.c.l.b16 %v2822
        %v3175 = vunpack.c.l.b16 %v2823
        %v3176 = vunpack.c.l.b16 %v2824
        %v3177 = vunpack.c.l.b16 %v2825
        %v3178 = vunpack.c.l.b16 %v2826
        %v3179 = vunpack.c.l.b16 %v2827
        %v3180 = vunpack.c.l.b16 %v2828
        %v3181 = vunpack.c.l.b16 %v2829
        %v3182 = vunpack.c.l.b16 %v2830
        %v3183 = vunpack.c.l.b16 %v2831
        %v3184 = vunpack.c.l.b16 %v2832
        %v3185 = vunpack.c.l.b16 %v2833
        %v3186 = vunpack.c.l.b16 %v2834
        %v3187 = vunpack.c.l.b16 %v2835
        %v3188 = vunpack.c.l.b16 %v2836
        %v3189 = vunpack.c.l.b16 %v2837
        %v3190 = vunpack.c.l.b16 %v2838
        %v3191 = vunpack.c.l.b16 %v2839
        %v3192 = vunpack.c.l.b16 %v2840
        %v3193 = vunpack.c.l.b16 %v2841
        %v3194 = vunpack.c.l.b16 %v2842
        %v3195 = vunpack.c.l.b16 %v2843
        %v3196 = vunpack.c.l.b16 %v2844
        %v3197 = vunpack.c.l.b16 %v2845
        %v3198 = vunpack.c.l.b16 %v2846
        %v3199 = vunpack.c.l.b16 %v2847
        %v3200 = vunpack.c.l.b16 %v2848
        %v3201 = vunpack.c.l.b16 %v2849
        %v3202 = vunpack.c.l.b16 %v2850
        %v3203 = vunpack.c.l.b16 %v2851
        %v3204 = vunpack.c.l.b16 %v2852
        %v3205 = vunpack.c.l.b16 %v2853
        %v3206 = vunpack.c.l.b16 %v2854
        %v3207 = vunpack.c.l.b16 %v2855
        %v3208 = vunpack.c.l.b16 %v2856
        %v3209 = vpack.c.b16 %v3162, %v3161
        %v3210 = vpack.c.b16 %v3164, %v3163
        %v3211 = vpack.c.b16 %v3166, %v3165
        %v3212 = vpack.c.b16 %v3168, %v3167
        %v3213 = vpack.c.b16 %v3170, %v3169
        %v3214 = vpack.c.b16 %v3172, %v3171
        %v3215 = vpack.c.b16 %v3174, %v3173
        %v3216 = vpack.c.b16 %v3176, %v3175
        %v3217 = vpack.c.b16 %v3178, %v3177
        %v3218 = vpack.c.b16 %v3180, %v3179
        %v3219 = vpack.c.b16 %v3182, %v3181
        %v3220 = vpack.c.b16 %v3184, %v3183
        %v3221 = vpack.c.b16 %v3186, %v3185
        %v3222 = vpack.c.b16 %v3188, %v3187
        %v3223 = vpack.c.b16 %v3190, %v3189
        %v3224 = vpack.c.b16 %v3192, %v3191
        %v3225 = vpack.c.b16 %v3194, %v3193
        %v3226 = vpack.c.b16 %v3196, %v3195
        %v3227 = vpack.c.b16 %v3198, %v3197
        %v3228 = vpack.c.b16 %v3200, %v3199
        %v3229 = vpack.c.b16 %v3202, %v3201
        %v3230 = vpack.c.b16 %v3204, %v3203
        %v3231 = vpack.c.b16 %v3206, %v3205
        %v3232 = vpack.c.b16 %v3208, %v3207
        %3257 = vmatpush.bf16.msra.mxu0 %v3216
        %3258 = vmatpush.bf16.msra.mxu0 %v3215
        %3259 = vmatpush.bf16.msra.mxu0 %v3214
        %3260 = vmatpush.bf16.msra.mxu0 %v3213
        %3261 = vmatpush.bf16.msra.mxu0 %v3212
        %3262 = vmatpush.bf16.msra.mxu0 %v3211
        %3263 = vmatpush.bf16.msra.mxu0 %v3210
        %3264 = vmatpush.bf16.msra.mxu0 %v3209
        %3265 = vmatmul.bf16.gmra.mxu0 %v3017
        %v3266 = vpop.f32.mrf.mxu0
        %v3267 = vadd.f32 0.0, %v3266
        %v3268 = vpop.f32.mrf.mxu0
        %v3269 = vadd.f32 0.0, %v3268
        %3270 = vmatmul.bf16.gmra.mxu0 %v3020
        %v3271 = vpop.f32.mrf.mxu0
        %v3272 = vadd.f32 0.0, %v3271
        %v3273 = vpop.f32.mrf.mxu0
        %v3274 = vadd.f32 0.0, %v3273
        %3275 = vmatmul.bf16.gmra.mxu0 %v3023
        %v3276 = vpop.f32.mrf.mxu0
        %v3277 = vadd.f32 0.0, %v3276
        %v3278 = vpop.f32.mrf.mxu0
        %v3279 = vadd.f32 0.0, %v3278
        %3280 = vmatmul.bf16.gmra.mxu0 %v3026
        %v3281 = vpop.f32.mrf.mxu0
        %v3282 = vadd.f32 0.0, %v3281
        %v3283 = vpop.f32.mrf.mxu0
        %v3284 = vadd.f32 0.0, %v3283
        %3285 = vmatmul.bf16.gmra.mxu0 %v3029
        %v3286 = vpop.f32.mrf.mxu0
        %v3287 = vadd.f32 0.0, %v3286
        %v3288 = vpop.f32.mrf.mxu0
        %v3289 = vadd.f32 0.0, %v3288
        %3290 = vmatmul.bf16.gmra.mxu0 %v3032
        %v3291 = vpop.f32.mrf.mxu0
        %v3292 = vadd.f32 0.0, %v3291
        %v3293 = vpop.f32.mrf.mxu0
        %v3294 = vadd.f32 0.0, %v3293
        %3295 = vmatmul.bf16.gmra.mxu0 %v3035
        %v3296 = vpop.f32.mrf.mxu0
        %v3297 = vadd.f32 0.0, %v3296
        %v3298 = vpop.f32.mrf.mxu0
        %v3299 = vadd.f32 0.0, %v3298
        %3300 = vmatmul.bf16.gmra.mxu0 %v3038
        %v3301 = vpop.f32.mrf.mxu0
        %v3302 = vadd.f32 0.0, %v3301
        %v3303 = vpop.f32.mrf.mxu0
        %v3304 = vadd.f32 0.0, %v3303
        %3305 = vmatmul.bf16.gmra.mxu0 %v3041
        %v3306 = vpop.f32.mrf.mxu0
        %v3307 = vadd.f32 0.0, %v3306
        %v3308 = vpop.f32.mrf.mxu0
        %v3309 = vadd.f32 0.0, %v3308
        %3310 = vmatmul.bf16.gmra.mxu0 %v3044
        %v3311 = vpop.f32.mrf.mxu0
        %v3312 = vadd.f32 0.0, %v3311
        %v3313 = vpop.f32.mrf.mxu0
        %v3314 = vadd.f32 0.0, %v3313
        %3315 = vmatmul.bf16.gmra.mxu0 %v3047
        %v3316 = vpop.f32.mrf.mxu0
        %v3317 = vadd.f32 0.0, %v3316
        %v3318 = vpop.f32.mrf.mxu0
        %v3319 = vadd.f32 0.0, %v3318
        %3320 = vmatmul.bf16.gmra.mxu0 %v3050
        %v3321 = vpop.f32.mrf.mxu0
        %v3322 = vadd.f32 0.0, %v3321
        %v3323 = vpop.f32.mrf.mxu0
        %v3324 = vadd.f32 0.0, %v3323
        %3325 = vmatmul.bf16.gmra.mxu0 %v3053
        %v3326 = vpop.f32.mrf.mxu0
        %v3327 = vadd.f32 0.0, %v3326
        %v3328 = vpop.f32.mrf.mxu0
        %v3329 = vadd.f32 0.0, %v3328
        %3330 = vmatmul.bf16.gmra.mxu0 %v3056
        %v3331 = vpop.f32.mrf.mxu0
        %v3332 = vadd.f32 0.0, %v3331
        %v3333 = vpop.f32.mrf.mxu0
        %v3334 = vadd.f32 0.0, %v3333
        %3335 = vmatmul.bf16.gmra.mxu0 %v3059
        %v3336 = vpop.f32.mrf.mxu0
        %v3337 = vadd.f32 0.0, %v3336
        %v3338 = vpop.f32.mrf.mxu0
        %v3339 = vadd.f32 0.0, %v3338
        %3340 = vmatmul.bf16.gmra.mxu0 %v3062
        %v3341 = vpop.f32.mrf.mxu0
        %v3342 = vadd.f32 0.0, %v3341
        %v3343 = vpop.f32.mrf.mxu0
        %v3344 = vadd.f32 0.0, %v3343
        %3345 = vdwg.mxu0
        %3346 = vmatpush.bf16.msra.mxu0 %v3224
        %3347 = vmatpush.bf16.msra.mxu0 %v3223
        %3348 = vmatpush.bf16.msra.mxu0 %v3222
        %3349 = vmatpush.bf16.msra.mxu0 %v3221
        %3350 = vmatpush.bf16.msra.mxu0 %v3220
        %3351 = vmatpush.bf16.msra.mxu0 %v3219
        %3352 = vmatpush.bf16.msra.mxu0 %v3218
        %3353 = vmatpush.bf16.msra.mxu0 %v3217
        %3354 = vmatmul.bf16.gmra.mxu0 %v3018
        %v3355 = vpop.f32.mrf.mxu0
        %v3356 = vadd.f32 %v3267, %v3355
        %v3357 = vpop.f32.mrf.mxu0
        %v3358 = vadd.f32 %v3269, %v3357
        %3359 = vmatmul.bf16.gmra.mxu0 %v3021
        %v3360 = vpop.f32.mrf.mxu0
        %v3361 = vadd.f32 %v3272, %v3360
        %v3362 = vpop.f32.mrf.mxu0
        %v3363 = vadd.f32 %v3274, %v3362
        %3364 = vmatmul.bf16.gmra.mxu0 %v3024
        %v3365 = vpop.f32.mrf.mxu0
        %v3366 = vadd.f32 %v3277, %v3365
        %v3367 = vpop.f32.mrf.mxu0
        %v3368 = vadd.f32 %v3279, %v3367
        %3369 = vmatmul.bf16.gmra.mxu0 %v3027
        %v3370 = vpop.f32.mrf.mxu0
        %v3371 = vadd.f32 %v3282, %v3370
        %v3372 = vpop.f32.mrf.mxu0
        %v3373 = vadd.f32 %v3284, %v3372
        %3374 = vmatmul.bf16.gmra.mxu0 %v3030
        %v3375 = vpop.f32.mrf.mxu0
        %v3376 = vadd.f32 %v3287, %v3375
        %v3377 = vpop.f32.mrf.mxu0
        %v3378 = vadd.f32 %v3289, %v3377
        %3379 = vmatmul.bf16.gmra.mxu0 %v3033
        %v3380 = vpop.f32.mrf.mxu0
        %v3381 = vadd.f32 %v3292, %v3380
        %v3382 = vpop.f32.mrf.mxu0
        %v3383 = vadd.f32 %v3294, %v3382
        %3384 = vmatmul.bf16.gmra.mxu0 %v3036
        %v3385 = vpop.f32.mrf.mxu0
        %v3386 = vadd.f32 %v3297, %v3385
        %v3387 = vpop.f32.mrf.mxu0
        %v3388 = vadd.f32 %v3299, %v3387
        %3389 = vmatmul.bf16.gmra.mxu0 %v3039
        %v3390 = vpop.f32.mrf.mxu0
        %v3391 = vadd.f32 %v3302, %v3390
        %v3392 = vpop.f32.mrf.mxu0
        %v3393 = vadd.f32 %v3304, %v3392
        %3394 = vmatmul.bf16.gmra.mxu0 %v3042
        %v3395 = vpop.f32.mrf.mxu0
        %v3396 = vadd.f32 %v3307, %v3395
        %v3397 = vpop.f32.mrf.mxu0
        %v3398 = vadd.f32 %v3309, %v3397
        %3399 = vmatmul.bf16.gmra.mxu0 %v3045
        %v3400 = vpop.f32.mrf.mxu0
        %v3401 = vadd.f32 %v3312, %v3400
        %v3402 = vpop.f32.mrf.mxu0
        %v3403 = vadd.f32 %v3314, %v3402
        %3404 = vmatmul.bf16.gmra.mxu0 %v3048
        %v3405 = vpop.f32.mrf.mxu0
        %v3406 = vadd.f32 %v3317, %v3405
        %v3407 = vpop.f32.mrf.mxu0
        %v3408 = vadd.f32 %v3319, %v3407
        %3409 = vmatmul.bf16.gmra.mxu0 %v3051
        %v3410 = vpop.f32.mrf.mxu0
        %v3411 = vadd.f32 %v3322, %v3410
        %v3412 = vpop.f32.mrf.mxu0
        %v3413 = vadd.f32 %v3324, %v3412
        %3414 = vmatmul.bf16.gmra.mxu0 %v3054
        %v3415 = vpop.f32.mrf.mxu0
        %v3416 = vadd.f32 %v3327, %v3415
        %v3417 = vpop.f32.mrf.mxu0
        %v3418 = vadd.f32 %v3329, %v3417
        %3419 = vmatmul.bf16.gmra.mxu0 %v3057
        %v3420 = vpop.f32.mrf.mxu0
        %v3421 = vadd.f32 %v3332, %v3420
        %v3422 = vpop.f32.mrf.mxu0
        %v3423 = vadd.f32 %v3334, %v3422
        %3424 = vmatmul.bf16.gmra.mxu0 %v3060
        %v3425 = vpop.f32.mrf.mxu0
        %v3426 = vadd.f32 %v3337, %v3425
        %v3427 = vpop.f32.mrf.mxu0
        %v3428 = vadd.f32 %v3339, %v3427
        %3429 = vmatmul.bf16.gmra.mxu0 %v3063
        %v3430 = vpop.f32.mrf.mxu0
        %v3431 = vadd.f32 %v3342, %v3430
        %v3432 = vpop.f32.mrf.mxu0
        %v3433 = vadd.f32 %v3344, %v3432
        %3434 = vdwg.mxu0
        %3435 = vmatpush.bf16.msra.mxu0 %v3232
        %3436 = vmatpush.bf16.msra.mxu0 %v3231
        %3437 = vmatpush.bf16.msra.mxu0 %v3230
        %3438 = vmatpush.bf16.msra.mxu0 %v3229
        %3439 = vmatpush.bf16.msra.mxu0 %v3228
        %3440 = vmatpush.bf16.msra.mxu0 %v3227
        %3441 = vmatpush.bf16.msra.mxu0 %v3226
        %3442 = vmatpush.bf16.msra.mxu0 %v3225
        %3443 = vmatmul.bf16.gmra.mxu0 %v3019
        %v3444 = vpop.f32.mrf.mxu0
        %v3445 = vadd.f32 %v3356, %v3444
        %v3446 = vpop.f32.mrf.mxu0
        %v3447 = vadd.f32 %v3358, %v3446
        %3448 = vmatmul.bf16.gmra.mxu0 %v3022
        %v3449 = vpop.f32.mrf.mxu0
        %v3450 = vadd.f32 %v3361, %v3449
        %v3451 = vpop.f32.mrf.mxu0
        %v3452 = vadd.f32 %v3363, %v3451
        %3453 = vmatmul.bf16.gmra.mxu0 %v3025
        %v3454 = vpop.f32.mrf.mxu0
        %v3455 = vadd.f32 %v3366, %v3454
        %v3456 = vpop.f32.mrf.mxu0
        %v3457 = vadd.f32 %v3368, %v3456
        %3458 = vmatmul.bf16.gmra.mxu0 %v3028
        %v3459 = vpop.f32.mrf.mxu0
        %v3460 = vadd.f32 %v3371, %v3459
        %v3461 = vpop.f32.mrf.mxu0
        %v3462 = vadd.f32 %v3373, %v3461
        %3463 = vmatmul.bf16.gmra.mxu0 %v3031
        %v3464 = vpop.f32.mrf.mxu0
        %v3465 = vadd.f32 %v3376, %v3464
        %v3466 = vpop.f32.mrf.mxu0
        %v3467 = vadd.f32 %v3378, %v3466
        %3468 = vmatmul.bf16.gmra.mxu0 %v3034
        %v3469 = vpop.f32.mrf.mxu0
        %v3470 = vadd.f32 %v3381, %v3469
        %v3471 = vpop.f32.mrf.mxu0
        %v3472 = vadd.f32 %v3383, %v3471
        %3473 = vmatmul.bf16.gmra.mxu0 %v3037
        %v3474 = vpop.f32.mrf.mxu0
        %v3475 = vadd.f32 %v3386, %v3474
        %v3476 = vpop.f32.mrf.mxu0
        %v3477 = vadd.f32 %v3388, %v3476
        %3478 = vmatmul.bf16.gmra.mxu0 %v3040
        %v3479 = vpop.f32.mrf.mxu0
        %v3480 = vadd.f32 %v3391, %v3479
        %v3481 = vpop.f32.mrf.mxu0
        %v3482 = vadd.f32 %v3393, %v3481
        %3483 = vmatmul.bf16.gmra.mxu0 %v3043
        %v3484 = vpop.f32.mrf.mxu0
        %v3485 = vadd.f32 %v3396, %v3484
        %v3486 = vpop.f32.mrf.mxu0
        %v3487 = vadd.f32 %v3398, %v3486
        %3488 = vmatmul.bf16.gmra.mxu0 %v3046
        %v3489 = vpop.f32.mrf.mxu0
        %v3490 = vadd.f32 %v3401, %v3489
        %v3491 = vpop.f32.mrf.mxu0
        %v3492 = vadd.f32 %v3403, %v3491
        %3493 = vmatmul.bf16.gmra.mxu0 %v3049
        %v3494 = vpop.f32.mrf.mxu0
        %v3495 = vadd.f32 %v3406, %v3494
        %v3496 = vpop.f32.mrf.mxu0
        %v3497 = vadd.f32 %v3408, %v3496
        %3498 = vmatmul.bf16.gmra.mxu0 %v3052
        %v3499 = vpop.f32.mrf.mxu0
        %v3500 = vadd.f32 %v3411, %v3499
        %v3501 = vpop.f32.mrf.mxu0
        %v3502 = vadd.f32 %v3413, %v3501
        %3503 = vmatmul.bf16.gmra.mxu0 %v3055
        %v3504 = vpop.f32.mrf.mxu0
        %v3505 = vadd.f32 %v3416, %v3504
        %v3506 = vpop.f32.mrf.mxu0
        %v3507 = vadd.f32 %v3418, %v3506
        %3508 = vmatmul.bf16.gmra.mxu0 %v3058
        %v3509 = vpop.f32.mrf.mxu0
        %v3510 = vadd.f32 %v3421, %v3509
        %v3511 = vpop.f32.mrf.mxu0
        %v3512 = vadd.f32 %v3423, %v3511
        %3513 = vmatmul.bf16.gmra.mxu0 %v3061
        %v3514 = vpop.f32.mrf.mxu0
        %v3515 = vadd.f32 %v3426, %v3514
        %v3516 = vpop.f32.mrf.mxu0
        %v3517 = vadd.f32 %v3428, %v3516
        %3518 = vmatmul.bf16.gmra.mxu0 %v3064
        %v3519 = vpop.f32.mrf.mxu0
        %v3520 = vadd.f32 %v3431, %v3519
        %v3521 = vpop.f32.mrf.mxu0
        %v3522 = vadd.f32 %v3433, %v3521
        %3523 = vdwg.mxu0
        %v3524 = vadd.f32 %v2664, %v3445
        %v3525 = vadd.f32 %v2666, %v3447
        %v3526 = vadd.f32 %v2669, %v3450
        %v3527 = vadd.f32 %v2671, %v3452
        %v3528 = vadd.f32 %v2674, %v3455
        %v3529 = vadd.f32 %v2676, %v3457
        %v3530 = vadd.f32 %v2679, %v3460
        %v3531 = vadd.f32 %v2681, %v3462
        %v3532 = vadd.f32 %v2684, %v3465
        %v3533 = vadd.f32 %v2686, %v3467
        %v3534 = vadd.f32 %v2689, %v3470
        %v3535 = vadd.f32 %v2691, %v3472
        %v3536 = vadd.f32 %v2694, %v3475
        %v3537 = vadd.f32 %v2696, %v3477
        %v3538 = vadd.f32 %v2699, %v3480
        %v3539 = vadd.f32 %v2701, %v3482
        %v3540 = vadd.f32 %v2704, %v3485
        %v3541 = vadd.f32 %v2706, %v3487
        %v3542 = vadd.f32 %v2709, %v3490
        %v3543 = vadd.f32 %v2711, %v3492
        %v3544 = vadd.f32 %v2714, %v3495
        %v3545 = vadd.f32 %v2716, %v3497
        %v3546 = vadd.f32 %v2719, %v3500
        %v3547 = vadd.f32 %v2721, %v3502
        %v3548 = vadd.f32 %v2724, %v3505
        %v3549 = vadd.f32 %v2726, %v3507
        %v3550 = vadd.f32 %v2729, %v3510
        %v3551 = vadd.f32 %v2731, %v3512
        %v3552 = vadd.f32 %v2734, %v3515
        %v3553 = vadd.f32 %v2736, %v3517
        %v3554 = vadd.f32 %v2739, %v3520
        %v3555 = vadd.f32 %v2741, %v3522
        %v3556 = vld [vmem:[%s3] sm:$0x1]
        %v3558 = vperm.slane %v3556, 0
        %v3560 = vadd.f32 %v3524, %v3558
        %v3561 = vadd.f32 %v3525, %v3558
        %v3562 = vadd.f32 %v3526, %v3558
        %v3563 = vadd.f32 %v3527, %v3558
        %v3564 = vadd.f32 %v3528, %v3558
        %v3565 = vadd.f32 %v3529, %v3558
        %v3566 = vadd.f32 %v3530, %v3558
        %v3567 = vadd.f32 %v3531, %v3558
        %v3568 = vadd.f32 %v3532, %v3558
        %v3569 = vadd.f32 %v3533, %v3558
        %v3570 = vadd.f32 %v3534, %v3558
        %v3571 = vadd.f32 %v3535, %v3558
        %v3572 = vadd.f32 %v3536, %v3558
        %v3573 = vadd.f32 %v3537, %v3558
        %v3574 = vadd.f32 %v3538, %v3558
        %v3575 = vadd.f32 %v3539, %v3558
        %v3576 = vadd.f32 %v3540, %v3558
        %v3577 = vadd.f32 %v3541, %v3558
        %v3578 = vadd.f32 %v3542, %v3558
        %v3579 = vadd.f32 %v3543, %v3558
        %v3580 = vadd.f32 %v3544, %v3558
        %v3581 = vadd.f32 %v3545, %v3558
        %v3582 = vadd.f32 %v3546, %v3558
        %v3583 = vadd.f32 %v3547, %v3558
        %v3584 = vadd.f32 %v3548, %v3558
        %v3585 = vadd.f32 %v3549, %v3558
        %v3586 = vadd.f32 %v3550, %v3558
        %v3587 = vadd.f32 %v3551, %v3558
        %v3588 = vadd.f32 %v3552, %v3558
        %v3589 = vadd.f32 %v3553, %v3558
        %v3590 = vadd.f32 %v3554, %v3558
        %v3591 = vadd.f32 %v3555, %v3558
        %v3592 = vmax.f32 %v3560, 0.0
        %v3593 = vmax.f32 %v3561, 0.0
        %v3594 = vmax.f32 %v3562, 0.0
        %v3595 = vmax.f32 %v3563, 0.0
        %v3596 = vmax.f32 %v3564, 0.0
        %v3597 = vmax.f32 %v3565, 0.0
        %v3598 = vmax.f32 %v3566, 0.0
        %v3599 = vmax.f32 %v3567, 0.0
        %v3600 = vmax.f32 %v3568, 0.0
        %v3601 = vmax.f32 %v3569, 0.0
        %v3602 = vmax.f32 %v3570, 0.0
        %v3603 = vmax.f32 %v3571, 0.0
        %v3604 = vmax.f32 %v3572, 0.0
        %v3605 = vmax.f32 %v3573, 0.0
        %v3606 = vmax.f32 %v3574, 0.0
        %v3607 = vmax.f32 %v3575, 0.0
        %v3608 = vmax.f32 %v3576, 0.0
        %v3609 = vmax.f32 %v3577, 0.0
        %v3610 = vmax.f32 %v3578, 0.0
        %v3611 = vmax.f32 %v3579, 0.0
        %v3612 = vmax.f32 %v3580, 0.0
        %v3613 = vmax.f32 %v3581, 0.0
        %v3614 = vmax.f32 %v3582, 0.0
        %v3615 = vmax.f32 %v3583, 0.0
        %v3616 = vmax.f32 %v3584, 0.0
        %v3617 = vmax.f32 %v3585, 0.0
        %v3618 = vmax.f32 %v3586, 0.0
        %v3619 = vmax.f32 %v3587, 0.0
        %v3620 = vmax.f32 %v3588, 0.0
        %v3621 = vmax.f32 %v3589, 0.0
        %v3622 = vmax.f32 %v3590, 0.0
        %v3623 = vmax.f32 %v3591, 0.0
        %3624 = vst [vmem:[#allocation2] sm:$0xf] 0
        %3625 = vst [vmem:[#allocation2 + $0x4] sm:$0xf] 0
        %3626 = vst [vmem:[#allocation2 + $0x8] sm:$0x1] 0
        %s3627 = scalar_lea.vmem [#allocation2], 204
        %3628 = vst [vmem:[%s3627] sm:$0xf] 0
        %3629 = vst [vmem:[%s3627 + $0x4] sm:$0xf] 0
        %3630 = vst [vmem:[%s3627 + $0x8] sm:$0x1] 0
        %s3631 = scalar_lea.vmem [#allocation2], 12
        %vm3632 = vcmask 1040384
        %vm3633 = vsmask.f32 256
        %vm3634 = vmand %vm3632, %vm3633
        %v3635 = vld [vmem:[%s3631] sm:$0x1]
        %v3636 = vsel %vm3634, 0, %v3635
        %3637 = vst [vmem:[%s3631] sm:$0x1] %v3636
        %v3638 = vld [vmem:[%s3631 + $0xc] sm:$0x1]
        %v3639 = vsel %vm3634, 0, %v3638
        %3640 = vst [vmem:[%s3631 + $0xc] sm:$0x1] %v3639
        %v3641 = vld [vmem:[%s3631 + $0x18] sm:$0x1]
        %v3642 = vsel %vm3634, 0, %v3641
        %3643 = vst [vmem:[%s3631 + $0x18] sm:$0x1] %v3642
        %v3644 = vld [vmem:[%s3631 + $0x24] sm:$0x1]
        %v3645 = vsel %vm3634, 0, %v3644
        %3646 = vst [vmem:[%s3631 + $0x24] sm:$0x1] %v3645
        %v3647 = vld [vmem:[%s3631 + $0x30] sm:$0x1]
        %v3648 = vsel %vm3634, 0, %v3647
        %3649 = vst [vmem:[%s3631 + $0x30] sm:$0x1] %v3648
        %v3650 = vld [vmem:[%s3631 + $0x3c] sm:$0x1]
        %v3651 = vsel %vm3634, 0, %v3650
        %3652 = vst [vmem:[%s3631 + $0x3c] sm:$0x1] %v3651
        %v3653 = vld [vmem:[%s3631 + $0x48] sm:$0x1]
        %v3654 = vsel %vm3634, 0, %v3653
        %3655 = vst [vmem:[%s3631 + $0x48] sm:$0x1] %v3654
        %v3656 = vld [vmem:[%s3631 + $0x54] sm:$0x1]
        %v3657 = vsel %vm3634, 0, %v3656
        %3658 = vst [vmem:[%s3631 + $0x54] sm:$0x1] %v3657
        %v3659 = vld [vmem:[%s3631 + $0x60] sm:$0x1]
        %v3660 = vsel %vm3634, 0, %v3659
        %3661 = vst [vmem:[%s3631 + $0x60] sm:$0x1] %v3660
        %v3662 = vld [vmem:[%s3631 + $0x6c] sm:$0x1]
        %v3663 = vsel %vm3634, 0, %v3662
        %3664 = vst [vmem:[%s3631 + $0x6c] sm:$0x1] %v3663
        %v3665 = vld [vmem:[%s3631 + $0x78] sm:$0x1]
        %v3666 = vsel %vm3634, 0, %v3665
        %3667 = vst [vmem:[%s3631 + $0x78] sm:$0x1] %v3666
        %v3668 = vld [vmem:[%s3631 + $0x84] sm:$0x1]
        %v3669 = vsel %vm3634, 0, %v3668
        %3670 = vst [vmem:[%s3631 + $0x84] sm:$0x1] %v3669
        %v3671 = vld [vmem:[%s3631 + $0x90] sm:$0x1]
        %v3672 = vsel %vm3634, 0, %v3671
        %3673 = vst [vmem:[%s3631 + $0x90] sm:$0x1] %v3672
        %v3674 = vld [vmem:[%s3631 + $0x9c] sm:$0x1]
        %v3675 = vsel %vm3634, 0, %v3674
        %3676 = vst [vmem:[%s3631 + $0x9c] sm:$0x1] %v3675
        %v3677 = vld [vmem:[%s3631 + $0xa8] sm:$0x1]
        %v3678 = vsel %vm3634, 0, %v3677
        %3679 = vst [vmem:[%s3631 + $0xa8] sm:$0x1] %v3678
        %v3680 = vld [vmem:[%s3631 + $0xb4] sm:$0x1]
        %v3681 = vsel %vm3634, 0, %v3680
        %3682 = vst [vmem:[%s3631 + $0xb4] sm:$0x1] %v3681
        %vm3683 = vsmask.f32 7938
        %vm3684 = vmand %vm3632, %vm3683
        %v3685 = vld [vmem:[%s3631 + $0x8] sm:$0x1]
        %v3686 = vsel %vm3684, 0, %v3685
        %3687 = vst [vmem:[%s3631 + $0x8] sm:$0x1] %v3686
        %v3688 = vld [vmem:[%s3631 + $0x14] sm:$0x1]
        %v3689 = vsel %vm3684, 0, %v3688
        %3690 = vst [vmem:[%s3631 + $0x14] sm:$0x1] %v3689
        %v3691 = vld [vmem:[%s3631 + $0x20] sm:$0x1]
        %v3692 = vsel %vm3684, 0, %v3691
        %3693 = vst [vmem:[%s3631 + $0x20] sm:$0x1] %v3692
        %v3694 = vld [vmem:[%s3631 + $0x2c] sm:$0x1]
        %v3695 = vsel %vm3684, 0, %v3694
        %3696 = vst [vmem:[%s3631 + $0x2c] sm:$0x1] %v3695
        %v3697 = vld [vmem:[%s3631 + $0x38] sm:$0x1]
        %v3698 = vsel %vm3684, 0, %v3697
        %3699 = vst [vmem:[%s3631 + $0x38] sm:$0x1] %v3698
        %v3700 = vld [vmem:[%s3631 + $0x44] sm:$0x1]
        %v3701 = vsel %vm3684, 0, %v3700
        %3702 = vst [vmem:[%s3631 + $0x44] sm:$0x1] %v3701
        %v3703 = vld [vmem:[%s3631 + $0x50] sm:$0x1]
        %v3704 = vsel %vm3684, 0, %v3703
        %3705 = vst [vmem:[%s3631 + $0x50] sm:$0x1] %v3704
        %v3706 = vld [vmem:[%s3631 + $0x5c] sm:$0x1]
        %v3707 = vsel %vm3684, 0, %v3706
        %3708 = vst [vmem:[%s3631 + $0x5c] sm:$0x1] %v3707
        %v3709 = vld [vmem:[%s3631 + $0x68] sm:$0x1]
        %v3710 = vsel %vm3684, 0, %v3709
        %3711 = vst [vmem:[%s3631 + $0x68] sm:$0x1] %v3710
        %v3712 = vld [vmem:[%s3631 + $0x74] sm:$0x1]
        %v3713 = vsel %vm3684, 0, %v3712
        %3714 = vst [vmem:[%s3631 + $0x74] sm:$0x1] %v3713
        %v3715 = vld [vmem:[%s3631 + $0x80] sm:$0x1]
        %v3716 = vsel %vm3684, 0, %v3715
        %3717 = vst [vmem:[%s3631 + $0x80] sm:$0x1] %v3716
        %v3718 = vld [vmem:[%s3631 + $0x8c] sm:$0x1]
        %v3719 = vsel %vm3684, 0, %v3718
        %3720 = vst [vmem:[%s3631 + $0x8c] sm:$0x1] %v3719
        %v3721 = vld [vmem:[%s3631 + $0x98] sm:$0x1]
        %v3722 = vsel %vm3684, 0, %v3721
        %3723 = vst [vmem:[%s3631 + $0x98] sm:$0x1] %v3722
        %v3724 = vld [vmem:[%s3631 + $0xa4] sm:$0x1]
        %v3725 = vsel %vm3684, 0, %v3724
        %3726 = vst [vmem:[%s3631 + $0xa4] sm:$0x1] %v3725
        %v3727 = vld [vmem:[%s3631 + $0xb0] sm:$0x1]
        %v3728 = vsel %vm3684, 0, %v3727
        %3729 = vst [vmem:[%s3631 + $0xb0] sm:$0x1] %v3728
        %v3730 = vld [vmem:[%s3631 + $0xbc] sm:$0x1]
        %v3731 = vsel %vm3684, 0, %v3730
        %3732 = vst [vmem:[%s3631 + $0xbc] sm:$0x1] %v3731
        %v3733 = vpack.c.bf16 %v3592, %v3592
        %v3734 = vpack.c.bf16 %v3593, %v3593
        %v3735 = vpack.c.bf16 %v3594, %v3594
        %v3736 = vpack.c.bf16 %v3595, %v3595
        %v3737 = vpack.c.bf16 %v3596, %v3596
        %v3738 = vpack.c.bf16 %v3597, %v3597
        %v3739 = vpack.c.bf16 %v3598, %v3598
        %v3740 = vpack.c.bf16 %v3599, %v3599
        %v3741 = vpack.c.bf16 %v3600, %v3600
        %v3742 = vpack.c.bf16 %v3601, %v3601
        %v3743 = vpack.c.bf16 %v3602, %v3602
        %v3744 = vpack.c.bf16 %v3603, %v3603
        %v3745 = vpack.c.bf16 %v3604, %v3604
        %v3746 = vpack.c.bf16 %v3605, %v3605
        %v3747 = vpack.c.bf16 %v3606, %v3606
        %v3748 = vpack.c.bf16 %v3607, %v3607
        %v3749 = vpack.c.bf16 %v3608, %v3608
        %v3750 = vpack.c.bf16 %v3609, %v3609
        %v3751 = vpack.c.bf16 %v3610, %v3610
        %v3752 = vpack.c.bf16 %v3611, %v3611
        %v3753 = vpack.c.bf16 %v3612, %v3612
        %v3754 = vpack.c.bf16 %v3613, %v3613
        %v3755 = vpack.c.bf16 %v3614, %v3614
        %v3756 = vpack.c.bf16 %v3615, %v3615
        %v3757 = vpack.c.bf16 %v3616, %v3616
        %v3758 = vpack.c.bf16 %v3617, %v3617
        %v3759 = vpack.c.bf16 %v3618, %v3618
        %v3760 = vpack.c.bf16 %v3619, %v3619
        %v3761 = vpack.c.bf16 %v3620, %v3620
        %v3762 = vpack.c.bf16 %v3621, %v3621
        %v3763 = vpack.c.bf16 %v3622, %v3622
        %v3764 = vpack.c.bf16 %v3623, %v3623
        %vm3765 = vsmask.f32 4368
        %vm3766 = vmor %vm3633, %vm3765
        %v3768 = vshrl.u32 %v3733, 16
        %v3770 = vrot.slane %v3768, 7
        %v3771 = vshll.u32 %v3733, 16
        %v3773 = vor.u32 %v3770, %v3771
        %v3774 = vrot.slane %v3770, 4
        %v3776 = vshrl.u32 %v3734, 16
        %v3778 = vrot.slane %v3776, 7
        %v3779 = vshll.u32 %v3734, 16
        %v3781 = vor.u32 %v3778, %v3779
        %v3782 = vsel %vm3766, %v3774, %v3781
        %v3783 = vrot.slane %v3778, 4
        %v3785 = vshrl.u32 %v3735, 16
        %v3787 = vrot.slane %v3785, 7
        %v3788 = vshll.u32 %v3735, 16
        %v3790 = vor.u32 %v3787, %v3788
        %v3791 = vrot.slane %v3787, 4
        %v3793 = vshrl.u32 %v3736, 16
        %v3795 = vrot.slane %v3793, 7
        %v3796 = vshll.u32 %v3736, 16
        %v3798 = vor.u32 %v3795, %v3796
        %v3799 = vsel %vm3766, %v3791, %v3798
        %v3800 = vrot.slane %v3795, 4
        %v3802 = vshrl.u32 %v3737, 16
        %v3804 = vrot.slane %v3802, 7
        %v3805 = vshll.u32 %v3737, 16
        %v3807 = vor.u32 %v3804, %v3805
        %v3808 = vrot.slane %v3804, 4
        %v3810 = vshrl.u32 %v3738, 16
        %v3812 = vrot.slane %v3810, 7
        %v3813 = vshll.u32 %v3738, 16
        %v3815 = vor.u32 %v3812, %v3813
        %v3816 = vsel %vm3766, %v3808, %v3815
        %v3817 = vrot.slane %v3812, 4
        %v3819 = vshrl.u32 %v3739, 16
        %v3821 = vrot.slane %v3819, 7
        %v3822 = vshll.u32 %v3739, 16
        %v3824 = vor.u32 %v3821, %v3822
        %v3825 = vrot.slane %v3821, 4
        %v3827 = vshrl.u32 %v3740, 16
        %v3829 = vrot.slane %v3827, 7
        %v3830 = vshll.u32 %v3740, 16
        %v3832 = vor.u32 %v3829, %v3830
        %v3833 = vsel %vm3766, %v3825, %v3832
        %v3834 = vrot.slane %v3829, 4
        %v3836 = vshrl.u32 %v3741, 16
        %v3838 = vrot.slane %v3836, 7
        %v3839 = vshll.u32 %v3741, 16
        %v3841 = vor.u32 %v3838, %v3839
        %v3842 = vrot.slane %v3838, 4
        %v3844 = vshrl.u32 %v3742, 16
        %v3846 = vrot.slane %v3844, 7
        %v3847 = vshll.u32 %v3742, 16
        %v3849 = vor.u32 %v3846, %v3847
        %v3850 = vsel %vm3766, %v3842, %v3849
        %v3851 = vrot.slane %v3846, 4
        %v3853 = vshrl.u32 %v3743, 16
        %v3855 = vrot.slane %v3853, 7
        %v3856 = vshll.u32 %v3743, 16
        %v3858 = vor.u32 %v3855, %v3856
        %v3859 = vrot.slane %v3855, 4
        %v3861 = vshrl.u32 %v3744, 16
        %v3863 = vrot.slane %v3861, 7
        %v3864 = vshll.u32 %v3744, 16
        %v3866 = vor.u32 %v3863, %v3864
        %v3867 = vsel %vm3766, %v3859, %v3866
        %v3868 = vrot.slane %v3863, 4
        %v3870 = vshrl.u32 %v3745, 16
        %v3872 = vrot.slane %v3870, 7
        %v3873 = vshll.u32 %v3745, 16
        %v3875 = vor.u32 %v3872, %v3873
        %v3876 = vrot.slane %v3872, 4
        %v3878 = vshrl.u32 %v3746, 16
        %v3880 = vrot.slane %v3878, 7
        %v3881 = vshll.u32 %v3746, 16
        %v3883 = vor.u32 %v3880, %v3881
        %v3884 = vsel %vm3766, %v3876, %v3883
        %v3885 = vrot.slane %v3880, 4
        %v3887 = vshrl.u32 %v3747, 16
        %v3889 = vrot.slane %v3887, 7
        %v3890 = vshll.u32 %v3747, 16
        %v3892 = vor.u32 %v3889, %v3890
        %v3893 = vrot.slane %v3889, 4
        %v3895 = vshrl.u32 %v3748, 16
        %v3897 = vrot.slane %v3895, 7
        %v3898 = vshll.u32 %v3748, 16
        %v3900 = vor.u32 %v3897, %v3898
        %v3901 = vsel %vm3766, %v3893, %v3900
        %v3902 = vrot.slane %v3897, 4
        %v3904 = vshrl.u32 %v3749, 16
        %v3906 = vrot.slane %v3904, 7
        %v3907 = vshll.u32 %v3749, 16
        %v3909 = vor.u32 %v3906, %v3907
        %v3910 = vrot.slane %v3906, 4
        %v3912 = vshrl.u32 %v3750, 16
        %v3914 = vrot.slane %v3912, 7
        %v3915 = vshll.u32 %v3750, 16
        %v3917 = vor.u32 %v3914, %v3915
        %v3918 = vsel %vm3766, %v3910, %v3917
        %v3919 = vrot.slane %v3914, 4
        %v3921 = vshrl.u32 %v3751, 16
        %v3923 = vrot.slane %v3921, 7
        %v3924 = vshll.u32 %v3751, 16
        %v3926 = vor.u32 %v3923, %v3924
        %v3927 = vrot.slane %v3923, 4
        %v3929 = vshrl.u32 %v3752, 16
        %v3931 = vrot.slane %v3929, 7
        %v3932 = vshll.u32 %v3752, 16
        %v3934 = vor.u32 %v3931, %v3932
        %v3935 = vsel %vm3766, %v3927, %v3934
        %v3936 = vrot.slane %v3931, 4
        %v3938 = vshrl.u32 %v3753, 16
        %v3940 = vrot.slane %v3938, 7
        %v3941 = vshll.u32 %v3753, 16
        %v3943 = vor.u32 %v3940, %v3941
        %v3944 = vrot.slane %v3940, 4
        %v3946 = vshrl.u32 %v3754, 16
        %v3948 = vrot.slane %v3946, 7
        %v3949 = vshll.u32 %v3754, 16
        %v3951 = vor.u32 %v3948, %v3949
        %v3952 = vsel %vm3766, %v3944, %v3951
        %v3953 = vrot.slane %v3948, 4
        %v3955 = vshrl.u32 %v3755, 16
        %v3957 = vrot.slane %v3955, 7
        %v3958 = vshll.u32 %v3755, 16
        %v3960 = vor.u32 %v3957, %v3958
        %v3961 = vrot.slane %v3957, 4
        %v3963 = vshrl.u32 %v3756, 16
        %v3965 = vrot.slane %v3963, 7
        %v3966 = vshll.u32 %v3756, 16
        %v3968 = vor.u32 %v3965, %v3966
        %v3969 = vsel %vm3766, %v3961, %v3968
        %v3970 = vrot.slane %v3965, 4
        %v3972 = vshrl.u32 %v3757, 16
        %v3974 = vrot.slane %v3972, 7
        %v3975 = vshll.u32 %v3757, 16
        %v3977 = vor.u32 %v3974, %v3975
        %v3978 = vrot.slane %v3974, 4
        %v3980 = vshrl.u32 %v3758, 16
        %v3982 = vrot.slane %v3980, 7
        %v3983 = vshll.u32 %v3758, 16
        %v3985 = vor.u32 %v3982, %v3983
        %v3986 = vsel %vm3766, %v3978, %v3985
        %v3987 = vrot.slane %v3982, 4
        %v3989 = vshrl.u32 %v3759, 16
        %v3991 = vrot.slane %v3989, 7
        %v3992 = vshll.u32 %v3759, 16
        %v3994 = vor.u32 %v3991, %v3992
        %v3995 = vrot.slane %v3991, 4
        %v3997 = vshrl.u32 %v3760, 16
        %v3999 = vrot.slane %v3997, 7
        %v4000 = vshll.u32 %v3760, 16
        %v4002 = vor.u32 %v3999, %v4000
        %v4003 = vsel %vm3766, %v3995, %v4002
        %v4004 = vrot.slane %v3999, 4
        %v4006 = vshrl.u32 %v3761, 16
        %v4008 = vrot.slane %v4006, 7
        %v4009 = vshll.u32 %v3761, 16
        %v4011 = vor.u32 %v4008, %v4009
        %v4012 = vrot.slane %v4008, 4
        %v4014 = vshrl.u32 %v3762, 16
        %v4016 = vrot.slane %v4014, 7
        %v4017 = vshll.u32 %v3762, 16
        %v4019 = vor.u32 %v4016, %v4017
        %v4020 = vsel %vm3766, %v4012, %v4019
        %v4021 = vrot.slane %v4016, 4
        %v4023 = vshrl.u32 %v3763, 16
        %v4025 = vrot.slane %v4023, 7
        %v4026 = vshll.u32 %v3763, 16
        %v4028 = vor.u32 %v4025, %v4026
        %v4029 = vrot.slane %v4025, 4
        %v4031 = vshrl.u32 %v3764, 16
        %v4033 = vrot.slane %v4031, 7
        %v4034 = vshll.u32 %v3764, 16
        %v4036 = vor.u32 %v4033, %v4034
        %v4037 = vsel %vm3766, %v4029, %v4036
        %v4038 = vrot.slane %v4033, 4
        %vm4087 = vcmask 1043456
        %vm4088 = vmand %vm4087, %vm3683
        %v4089 = vld [vmem:[%s3631] sm:$0xf]
        %v4090 = vsel %vm4088, %v3773, %v4089
        %4091 = vst [vmem:[%s3631] sm:$0xf] %v4090
        %4092 = vst [vmem:[%s3631 + $0x4] sm:$0xf] %v3782
        %v4093 = vld [vmem:[%s3631 + $0x8] sm:$0x1]
        %v4094 = vsel %vm3634, %v3783, %v4093
        %4095 = vst [vmem:[%s3631 + $0x8] sm:$0x1] %v4094
        %v4096 = vld [vmem:[%s3631 + $0xc] sm:$0xf]
        %v4097 = vsel %vm4088, %v3790, %v4096
        %4098 = vst [vmem:[%s3631 + $0xc] sm:$0xf] %v4097
        %4099 = vst [vmem:[%s3631 + $0x10] sm:$0xf] %v3799
        %v4100 = vld [vmem:[%s3631 + $0x14] sm:$0x1]
        %v4101 = vsel %vm3634, %v3800, %v4100
        %4102 = vst [vmem:[%s3631 + $0x14] sm:$0x1] %v4101
        %v4103 = vld [vmem:[%s3631 + $0x18] sm:$0xf]
        %v4104 = vsel %vm4088, %v3807, %v4103
        %4105 = vst [vmem:[%s3631 + $0x18] sm:$0xf] %v4104
        %4106 = vst [vmem:[%s3631 + $0x1c] sm:$0xf] %v3816
        %v4107 = vld [vmem:[%s3631 + $0x20] sm:$0x1]
        %v4108 = vsel %vm3634, %v3817, %v4107
        %4109 = vst [vmem:[%s3631 + $0x20] sm:$0x1] %v4108
        %v4110 = vld [vmem:[%s3631 + $0x24] sm:$0xf]
        %v4111 = vsel %vm4088, %v3824, %v4110
        %4112 = vst [vmem:[%s3631 + $0x24] sm:$0xf] %v4111
        %4113 = vst [vmem:[%s3631 + $0x28] sm:$0xf] %v3833
        %v4114 = vld [vmem:[%s3631 + $0x2c] sm:$0x1]
        %v4115 = vsel %vm3634, %v3834, %v4114
        %4116 = vst [vmem:[%s3631 + $0x2c] sm:$0x1] %v4115
        %v4117 = vld [vmem:[%s3631 + $0x30] sm:$0xf]
        %v4118 = vsel %vm4088, %v3841, %v4117
        %4119 = vst [vmem:[%s3631 + $0x30] sm:$0xf] %v4118
        %4120 = vst [vmem:[%s3631 + $0x34] sm:$0xf] %v3850
        %v4121 = vld [vmem:[%s3631 + $0x38] sm:$0x1]
        %v4122 = vsel %vm3634, %v3851, %v4121
        %4123 = vst [vmem:[%s3631 + $0x38] sm:$0x1] %v4122
        %v4124 = vld [vmem:[%s3631 + $0x3c] sm:$0xf]
        %v4125 = vsel %vm4088, %v3858, %v4124
        %4126 = vst [vmem:[%s3631 + $0x3c] sm:$0xf] %v4125
        %4127 = vst [vmem:[%s3631 + $0x40] sm:$0xf] %v3867
        %v4128 = vld [vmem:[%s3631 + $0x44] sm:$0x1]
        %v4129 = vsel %vm3634, %v3868, %v4128
        %4130 = vst [vmem:[%s3631 + $0x44] sm:$0x1] %v4129
        %v4131 = vld [vmem:[%s3631 + $0x48] sm:$0xf]
        %v4132 = vsel %vm4088, %v3875, %v4131
        %4133 = vst [vmem:[%s3631 + $0x48] sm:$0xf] %v4132
        %4134 = vst [vmem:[%s3631 + $0x4c] sm:$0xf] %v3884
        %v4135 = vld [vmem:[%s3631 + $0x50] sm:$0x1]
        %v4136 = vsel %vm3634, %v3885, %v4135
        %4137 = vst [vmem:[%s3631 + $0x50] sm:$0x1] %v4136
        %v4138 = vld [vmem:[%s3631 + $0x54] sm:$0xf]
        %v4139 = vsel %vm4088, %v3892, %v4138
        %4140 = vst [vmem:[%s3631 + $0x54] sm:$0xf] %v4139
        %4141 = vst [vmem:[%s3631 + $0x58] sm:$0xf] %v3901
        %v4142 = vld [vmem:[%s3631 + $0x5c] sm:$0x1]
        %v4143 = vsel %vm3634, %v3902, %v4142
        %4144 = vst [vmem:[%s3631 + $0x5c] sm:$0x1] %v4143
        %v4145 = vld [vmem:[%s3631 + $0x60] sm:$0xf]
        %v4146 = vsel %vm4088, %v3909, %v4145
        %4147 = vst [vmem:[%s3631 + $0x60] sm:$0xf] %v4146
        %4148 = vst [vmem:[%s3631 + $0x64] sm:$0xf] %v3918
        %v4149 = vld [vmem:[%s3631 + $0x68] sm:$0x1]
        %v4150 = vsel %vm3634, %v3919, %v4149
        %4151 = vst [vmem:[%s3631 + $0x68] sm:$0x1] %v4150
        %v4152 = vld [vmem:[%s3631 + $0x6c] sm:$0xf]
        %v4153 = vsel %vm4088, %v3926, %v4152
        %4154 = vst [vmem:[%s3631 + $0x6c] sm:$0xf] %v4153
        %4155 = vst [vmem:[%s3631 + $0x70] sm:$0xf] %v3935
        %v4156 = vld [vmem:[%s3631 + $0x74] sm:$0x1]
        %v4157 = vsel %vm3634, %v3936, %v4156
        %4158 = vst [vmem:[%s3631 + $0x74] sm:$0x1] %v4157
        %v4159 = vld [vmem:[%s3631 + $0x78] sm:$0xf]
        %v4160 = vsel %vm4088, %v3943, %v4159
        %4161 = vst [vmem:[%s3631 + $0x78] sm:$0xf] %v4160
        %4162 = vst [vmem:[%s3631 + $0x7c] sm:$0xf] %v3952
        %v4163 = vld [vmem:[%s3631 + $0x80] sm:$0x1]
        %v4164 = vsel %vm3634, %v3953, %v4163
        %4165 = vst [vmem:[%s3631 + $0x80] sm:$0x1] %v4164
        %v4166 = vld [vmem:[%s3631 + $0x84] sm:$0xf]
        %v4167 = vsel %vm4088, %v3960, %v4166
        %4168 = vst [vmem:[%s3631 + $0x84] sm:$0xf] %v4167
        %4169 = vst [vmem:[%s3631 + $0x88] sm:$0xf] %v3969
        %v4170 = vld [vmem:[%s3631 + $0x8c] sm:$0x1]
        %v4171 = vsel %vm3634, %v3970, %v4170
        %4172 = vst [vmem:[%s3631 + $0x8c] sm:$0x1] %v4171
        %v4173 = vld [vmem:[%s3631 + $0x90] sm:$0xf]
        %v4174 = vsel %vm4088, %v3977, %v4173
        %4175 = vst [vmem:[%s3631 + $0x90] sm:$0xf] %v4174
        %4176 = vst [vmem:[%s3631 + $0x94] sm:$0xf] %v3986
        %v4177 = vld [vmem:[%s3631 + $0x98] sm:$0x1]
        %v4178 = vsel %vm3634, %v3987, %v4177
        %4179 = vst [vmem:[%s3631 + $0x98] sm:$0x1] %v4178
        %v4180 = vld [vmem:[%s3631 + $0x9c] sm:$0xf]
        %v4181 = vsel %vm4088, %v3994, %v4180
        %4182 = vst [vmem:[%s3631 + $0x9c] sm:$0xf] %v4181
        %4183 = vst [vmem:[%s3631 + $0xa0] sm:$0xf] %v4003
        %v4184 = vld [vmem:[%s3631 + $0xa4] sm:$0x1]
        %v4185 = vsel %vm3634, %v4004, %v4184
        %4186 = vst [vmem:[%s3631 + $0xa4] sm:$0x1] %v4185
        %v4187 = vld [vmem:[%s3631 + $0xa8] sm:$0xf]
        %v4188 = vsel %vm4088, %v4011, %v4187
        %4189 = vst [vmem:[%s3631 + $0xa8] sm:$0xf] %v4188
        %4190 = vst [vmem:[%s3631 + $0xac] sm:$0xf] %v4020
        %v4191 = vld [vmem:[%s3631 + $0xb0] sm:$0x1]
        %v4192 = vsel %vm3634, %v4021, %v4191
        %4193 = vst [vmem:[%s3631 + $0xb0] sm:$0x1] %v4192
        %v4194 = vld [vmem:[%s3631 + $0xb4] sm:$0xf]
        %v4195 = vsel %vm4088, %v4028, %v4194
        %4196 = vst [vmem:[%s3631 + $0xb4] sm:$0xf] %v4195
        %4197 = vst [vmem:[%s3631 + $0xb8] sm:$0xf] %v4037
        %v4198 = vld [vmem:[%s3631 + $0xbc] sm:$0x1]
        %v4199 = vsel %vm3634, %v4038, %v4198
        %4200 = vst [vmem:[%s3631 + $0xbc] sm:$0x1] %v4199
        %v4201 = vld [vmem:[#allocation2] sm:$0xf]
        %v4202 = vld [vmem:[#allocation2 + $0x4] sm:$0xf]
        %v4203 = vld [vmem:[#allocation2 + $0xc] sm:$0xf]
        %v4204 = vld [vmem:[#allocation2 + $0x10] sm:$0xf]
        %v4205 = vld [vmem:[#allocation2 + $0x18] sm:$0xf]
        %v4206 = vld [vmem:[#allocation2 + $0x1c] sm:$0xf]
        %v4207 = vld [vmem:[#allocation2 + $0x24] sm:$0xf]
        %v4208 = vld [vmem:[#allocation2 + $0x28] sm:$0xf]
        %v4209 = vld [vmem:[#allocation2 + $0x30] sm:$0xf]
        %v4210 = vld [vmem:[#allocation2 + $0x34] sm:$0xf]
        %v4211 = vld [vmem:[#allocation2 + $0x3c] sm:$0xf]
        %v4212 = vld [vmem:[#allocation2 + $0x40] sm:$0xf]
        %v4213 = vld [vmem:[#allocation2 + $0x48] sm:$0xf]
        %v4214 = vld [vmem:[#allocation2 + $0x4c] sm:$0xf]
        %v4215 = vld [vmem:[#allocation2 + $0x54] sm:$0xf]
        %v4216 = vld [vmem:[#allocation2 + $0x58] sm:$0xf]
        %v4217 = vld [vmem:[#allocation2 + $0x60] sm:$0xf]
        %v4218 = vld [vmem:[#allocation2 + $0x64] sm:$0xf]
        %v4219 = vld [vmem:[#allocation2 + $0x6c] sm:$0xf]
        %v4220 = vld [vmem:[#allocation2 + $0x70] sm:$0xf]
        %v4221 = vld [vmem:[#allocation2 + $0x78] sm:$0xf]
        %v4222 = vld [vmem:[#allocation2 + $0x7c] sm:$0xf]
        %v4223 = vld [vmem:[#allocation2 + $0x84] sm:$0xf]
        %v4224 = vld [vmem:[#allocation2 + $0x88] sm:$0xf]
        %v4225 = vld [vmem:[#allocation2 + $0x90] sm:$0xf]
        %v4226 = vld [vmem:[#allocation2 + $0x94] sm:$0xf]
        %v4227 = vld [vmem:[#allocation2 + $0x9c] sm:$0xf]
        %v4228 = vld [vmem:[#allocation2 + $0xa0] sm:$0xf]
        %v4229 = vld [vmem:[#allocation2 + $0xa8] sm:$0xf]
        %v4230 = vld [vmem:[#allocation2 + $0xac] sm:$0xf]
        %v4231 = vld [vmem:[#allocation2 + $0xb4] sm:$0xf]
        %v4232 = vld [vmem:[#allocation2 + $0xb8] sm:$0xf]
        %v4233 = vld [vmem:[#allocation2 + $0xc0] sm:$0xf]
        %v4234 = vld [vmem:[#allocation2 + $0xc4] sm:$0xf]
        %v4235 = vld [vmem:[#allocation2 + $0xcc] sm:$0xf]
        %v4236 = vld [vmem:[#allocation2 + $0xd0] sm:$0xf]
        %4237 = vst [vmem:[#allocation3] sm:$0xf] %v4201
        %4238 = vst [vmem:[#allocation3 + $0xc] sm:$0xf] %v4202
        %4239 = vst [vmem:[#allocation3 + $0x18] sm:$0xf] %v4203
        %4240 = vst [vmem:[#allocation3 + $0x24] sm:$0xf] %v4204
        %4241 = vst [vmem:[#allocation3 + $0x30] sm:$0xf] %v4205
        %4242 = vst [vmem:[#allocation3 + $0x3c] sm:$0xf] %v4206
        %4243 = vst [vmem:[#allocation3 + $0x48] sm:$0xf] %v4207
        %4244 = vst [vmem:[#allocation3 + $0x54] sm:$0xf] %v4208
        %4245 = vst [vmem:[#allocation3 + $0x60] sm:$0xf] %v4209
        %4246 = vst [vmem:[#allocation3 + $0x6c] sm:$0xf] %v4210
        %4247 = vst [vmem:[#allocation3 + $0x78] sm:$0xf] %v4211
        %4248 = vst [vmem:[#allocation3 + $0x84] sm:$0xf] %v4212
        %4249 = vst [vmem:[#allocation3 + $0x90] sm:$0xf] %v4213
        %4250 = vst [vmem:[#allocation3 + $0x9c] sm:$0xf] %v4214
        %4251 = vst [vmem:[#allocation3 + $0xa8] sm:$0xf] %v4215
        %4252 = vst [vmem:[#allocation3 + $0xb4] sm:$0xf] %v4216
        %4253 = vst [vmem:[#allocation3 + $0xc0] sm:$0xf] %v4217
        %4254 = vst [vmem:[#allocation3 + $0xcc] sm:$0xf] %v4218
        %4255 = vst [vmem:[#allocation3 + $0xd8] sm:$0xf] %v4219
        %4256 = vst [vmem:[#allocation3 + $0xe4] sm:$0xf] %v4220
        %4257 = vst [vmem:[#allocation3 + $0xf0] sm:$0xf] %v4221
        %4258 = vst [vmem:[#allocation3 + $0xfc] sm:$0xf] %v4222
        %4259 = vst [vmem:[#allocation3 + $0x108] sm:$0xf] %v4223
        %4260 = vst [vmem:[#allocation3 + $0x114] sm:$0xf] %v4224
        %4261 = vst [vmem:[#allocation3 + $0x120] sm:$0xf] %v4225
        %4262 = vst [vmem:[#allocation3 + $0x12c] sm:$0xf] %v4226
        %4263 = vst [vmem:[#allocation3 + $0x138] sm:$0xf] %v4227
        %4264 = vst [vmem:[#allocation3 + $0x144] sm:$0xf] %v4228
        %4265 = vst [vmem:[#allocation3 + $0x150] sm:$0xf] %v4229
        %4266 = vst [vmem:[#allocation3 + $0x15c] sm:$0xf] %v4230
        %4267 = vst [vmem:[#allocation3 + $0x168] sm:$0xf] %v4231
        %4268 = vst [vmem:[#allocation3 + $0x174] sm:$0xf] %v4232
        %4269 = vst [vmem:[#allocation3 + $0x180] sm:$0xf] %v4233
        %4270 = vst [vmem:[#allocation3 + $0x18c] sm:$0xf] %v4234
        %4271 = vst [vmem:[#allocation3 + $0x198] sm:$0xf] %v4235
        %4272 = vst [vmem:[#allocation3 + $0x1a4] sm:$0xf] %v4236
        %v4273 = vld [vmem:[#allocation2] sm:$0xf]
        %v4274 = vld [vmem:[#allocation2 + $0x4] sm:$0xf]
        %v4275 = vld [vmem:[#allocation2 + $0x8] sm:$0x1]
        %v4276 = vld [vmem:[#allocation2 + $0xc] sm:$0xf]
        %v4277 = vld [vmem:[#allocation2 + $0x10] sm:$0xf]
        %v4278 = vld [vmem:[#allocation2 + $0x14] sm:$0x1]
        %v4279 = vld [vmem:[#allocation2 + $0x18] sm:$0xf]
        %v4280 = vld [vmem:[#allocation2 + $0x1c] sm:$0xf]
        %v4281 = vld [vmem:[#allocation2 + $0x20] sm:$0x1]
        %v4282 = vld [vmem:[#allocation2 + $0x24] sm:$0xf]
        %v4283 = vld [vmem:[#allocation2 + $0x28] sm:$0xf]
        %v4284 = vld [vmem:[#allocation2 + $0x2c] sm:$0x1]
        %v4285 = vld [vmem:[#allocation2 + $0x30] sm:$0xf]
        %v4286 = vld [vmem:[#allocation2 + $0x34] sm:$0xf]
        %v4287 = vld [vmem:[#allocation2 + $0x38] sm:$0x1]
        %v4288 = vld [vmem:[#allocation2 + $0x3c] sm:$0xf]
        %v4289 = vld [vmem:[#allocation2 + $0x40] sm:$0xf]
        %v4290 = vld [vmem:[#allocation2 + $0x44] sm:$0x1]
        %v4291 = vld [vmem:[#allocation2 + $0x48] sm:$0xf]
        %v4292 = vld [vmem:[#allocation2 + $0x4c] sm:$0xf]
        %v4293 = vld [vmem:[#allocation2 + $0x50] sm:$0x1]
        %v4294 = vld [vmem:[#allocation2 + $0x54] sm:$0xf]
        %v4295 = vld [vmem:[#allocation2 + $0x58] sm:$0xf]
        %v4296 = vld [vmem:[#allocation2 + $0x5c] sm:$0x1]
        %v4297 = vld [vmem:[#allocation2 + $0x60] sm:$0xf]
        %v4298 = vld [vmem:[#allocation2 + $0x64] sm:$0xf]
        %v4299 = vld [vmem:[#allocation2 + $0x68] sm:$0x1]
        %v4300 = vld [vmem:[#allocation2 + $0x6c] sm:$0xf]
        %v4301 = vld [vmem:[#allocation2 + $0x70] sm:$0xf]
        %v4302 = vld [vmem:[#allocation2 + $0x74] sm:$0x1]
        %v4303 = vld [vmem:[#allocation2 + $0x78] sm:$0xf]
        %v4304 = vld [vmem:[#allocation2 + $0x7c] sm:$0xf]
        %v4305 = vld [vmem:[#allocation2 + $0x80] sm:$0x1]
        %v4306 = vld [vmem:[#allocation2 + $0x84] sm:$0xf]
        %v4307 = vld [vmem:[#allocation2 + $0x88] sm:$0xf]
        %v4308 = vld [vmem:[#allocation2 + $0x8c] sm:$0x1]
        %v4309 = vld [vmem:[#allocation2 + $0x90] sm:$0xf]
        %v4310 = vld [vmem:[#allocation2 + $0x94] sm:$0xf]
        %v4311 = vld [vmem:[#allocation2 + $0x98] sm:$0x1]
        %v4312 = vld [vmem:[#allocation2 + $0x9c] sm:$0xf]
        %v4313 = vld [vmem:[#allocation2 + $0xa0] sm:$0xf]
        %v4314 = vld [vmem:[#allocation2 + $0xa4] sm:$0x1]
        %v4315 = vld [vmem:[#allocation2 + $0xa8] sm:$0xf]
        %v4316 = vld [vmem:[#allocation2 + $0xac] sm:$0xf]
        %v4317 = vld [vmem:[#allocation2 + $0xb0] sm:$0x1]
        %v4318 = vld [vmem:[#allocation2 + $0xb4] sm:$0xf]
        %v4319 = vld [vmem:[#allocation2 + $0xb8] sm:$0xf]
        %v4320 = vld [vmem:[#allocation2 + $0xbc] sm:$0x1]
        %v4321 = vld [vmem:[#allocation2 + $0xc0] sm:$0xf]
        %v4322 = vld [vmem:[#allocation2 + $0xc4] sm:$0xf]
        %v4323 = vld [vmem:[#allocation2 + $0xc8] sm:$0x1]
        %v4324 = vld [vmem:[#allocation2 + $0xcc] sm:$0xf]
        %v4325 = vld [vmem:[#allocation2 + $0xd0] sm:$0xf]
        %v4326 = vld [vmem:[#allocation2 + $0xd4] sm:$0x1]
        %v4328 = vshrl.u32 %v4273, 16
        %v4330 = vrot.slane %v4328, 4
        %v4331 = vshll.u32 %v4273, 16
        %v4333 = vrot.slane %v4331, 5
        %v4334 = vor.u32 %v4330, %v4333
        %v4335 = vrot.slane %v4334, 4
        %v4337 = vshll.u32 %v4274, 16
        %v4339 = vrot.slane %v4337, 5
        %v4340 = vsel %vm369, %v4335, %v4339
        %v4341 = vshrl.u32 %v4274, 16
        %v4343 = vrot.slane %v4341, 4
        %v4344 = vor.u32 %v4343, %v4339
        %v4345 = vrot.slane %v4344, 4
        %v4347 = vshll.u32 %v4275, 16
        %v4349 = vrot.slane %v4347, 5
        %v4350 = vsel %vm369, %v4345, %v4349
        %v4352 = vshrl.u32 %v4276, 16
        %v4354 = vrot.slane %v4352, 4
        %v4355 = vshll.u32 %v4276, 16
        %v4357 = vrot.slane %v4355, 5
        %v4358 = vor.u32 %v4354, %v4357
        %v4359 = vrot.slane %v4358, 4
        %v4361 = vshll.u32 %v4277, 16
        %v4363 = vrot.slane %v4361, 5
        %v4364 = vsel %vm369, %v4359, %v4363
        %v4365 = vshrl.u32 %v4277, 16
        %v4367 = vrot.slane %v4365, 4
        %v4368 = vor.u32 %v4367, %v4363
        %v4369 = vrot.slane %v4368, 4
        %v4371 = vshll.u32 %v4278, 16
        %v4373 = vrot.slane %v4371, 5
        %v4374 = vsel %vm369, %v4369, %v4373
        %v4376 = vshrl.u32 %v4279, 16
        %v4378 = vrot.slane %v4376, 4
        %v4379 = vshll.u32 %v4279, 16
        %v4381 = vrot.slane %v4379, 5
        %v4382 = vor.u32 %v4378, %v4381
        %v4383 = vrot.slane %v4382, 4
        %v4385 = vshll.u32 %v4280, 16
        %v4387 = vrot.slane %v4385, 5
        %v4388 = vsel %vm369, %v4383, %v4387
        %v4389 = vshrl.u32 %v4280, 16
        %v4391 = vrot.slane %v4389, 4
        %v4392 = vor.u32 %v4391, %v4387
        %v4393 = vrot.slane %v4392, 4
        %v4395 = vshll.u32 %v4281, 16
        %v4397 = vrot.slane %v4395, 5
        %v4398 = vsel %vm369, %v4393, %v4397
        %v4400 = vshrl.u32 %v4282, 16
        %v4402 = vrot.slane %v4400, 4
        %v4403 = vshll.u32 %v4282, 16
        %v4405 = vrot.slane %v4403, 5
        %v4406 = vor.u32 %v4402, %v4405
        %v4407 = vrot.slane %v4406, 4
        %v4409 = vshll.u32 %v4283, 16
        %v4411 = vrot.slane %v4409, 5
        %v4412 = vsel %vm369, %v4407, %v4411
        %v4413 = vshrl.u32 %v4283, 16
        %v4415 = vrot.slane %v4413, 4
        %v4416 = vor.u32 %v4415, %v4411
        %v4417 = vrot.slane %v4416, 4
        %v4419 = vshll.u32 %v4284, 16
        %v4421 = vrot.slane %v4419, 5
        %v4422 = vsel %vm369, %v4417, %v4421
        %v4424 = vshrl.u32 %v4285, 16
        %v4426 = vrot.slane %v4424, 4
        %v4427 = vshll.u32 %v4285, 16
        %v4429 = vrot.slane %v4427, 5
        %v4430 = vor.u32 %v4426, %v4429
        %v4431 = vrot.slane %v4430, 4
        %v4433 = vshll.u32 %v4286, 16
        %v4435 = vrot.slane %v4433, 5
        %v4436 = vsel %vm369, %v4431, %v4435
        %v4437 = vshrl.u32 %v4286, 16
        %v4439 = vrot.slane %v4437, 4
        %v4440 = vor.u32 %v4439, %v4435
        %v4441 = vrot.slane %v4440, 4
        %v4443 = vshll.u32 %v4287, 16
        %v4445 = vrot.slane %v4443, 5
        %v4446 = vsel %vm369, %v4441, %v4445
        %v4448 = vshrl.u32 %v4288, 16
        %v4450 = vrot.slane %v4448, 4
        %v4451 = vshll.u32 %v4288, 16
        %v4453 = vrot.slane %v4451, 5
        %v4454 = vor.u32 %v4450, %v4453
        %v4455 = vrot.slane %v4454, 4
        %v4457 = vshll.u32 %v4289, 16
        %v4459 = vrot.slane %v4457, 5
        %v4460 = vsel %vm369, %v4455, %v4459
        %v4461 = vshrl.u32 %v4289, 16
        %v4463 = vrot.slane %v4461, 4
        %v4464 = vor.u32 %v4463, %v4459
        %v4465 = vrot.slane %v4464, 4
        %v4467 = vshll.u32 %v4290, 16
        %v4469 = vrot.slane %v4467, 5
        %v4470 = vsel %vm369, %v4465, %v4469
        %v4472 = vshrl.u32 %v4291, 16
        %v4474 = vrot.slane %v4472, 4
        %v4475 = vshll.u32 %v4291, 16
        %v4477 = vrot.slane %v4475, 5
        %v4478 = vor.u32 %v4474, %v4477
        %v4479 = vrot.slane %v4478, 4
        %v4481 = vshll.u32 %v4292, 16
        %v4483 = vrot.slane %v4481, 5
        %v4484 = vsel %vm369, %v4479, %v4483
        %v4485 = vshrl.u32 %v4292, 16
        %v4487 = vrot.slane %v4485, 4
        %v4488 = vor.u32 %v4487, %v4483
        %v4489 = vrot.slane %v4488, 4
        %v4491 = vshll.u32 %v4293, 16
        %v4493 = vrot.slane %v4491, 5
        %v4494 = vsel %vm369, %v4489, %v4493
        %v4496 = vshrl.u32 %v4294, 16
        %v4498 = vrot.slane %v4496, 4
        %v4499 = vshll.u32 %v4294, 16
        %v4501 = vrot.slane %v4499, 5
        %v4502 = vor.u32 %v4498, %v4501
        %v4503 = vrot.slane %v4502, 4
        %v4505 = vshll.u32 %v4295, 16
        %v4507 = vrot.slane %v4505, 5
        %v4508 = vsel %vm369, %v4503, %v4507
        %v4509 = vshrl.u32 %v4295, 16
        %v4511 = vrot.slane %v4509, 4
        %v4512 = vor.u32 %v4511, %v4507
        %v4513 = vrot.slane %v4512, 4
        %v4515 = vshll.u32 %v4296, 16
        %v4517 = vrot.slane %v4515, 5
        %v4518 = vsel %vm369, %v4513, %v4517
        %v4520 = vshrl.u32 %v4297, 16
        %v4522 = vrot.slane %v4520, 4
        %v4523 = vshll.u32 %v4297, 16
        %v4525 = vrot.slane %v4523, 5
        %v4526 = vor.u32 %v4522, %v4525
        %v4527 = vrot.slane %v4526, 4
        %v4529 = vshll.u32 %v4298, 16
        %v4531 = vrot.slane %v4529, 5
        %v4532 = vsel %vm369, %v4527, %v4531
        %v4533 = vshrl.u32 %v4298, 16
        %v4535 = vrot.slane %v4533, 4
        %v4536 = vor.u32 %v4535, %v4531
        %v4537 = vrot.slane %v4536, 4
        %v4539 = vshll.u32 %v4299, 16
        %v4541 = vrot.slane %v4539, 5
        %v4542 = vsel %vm369, %v4537, %v4541
        %v4544 = vshrl.u32 %v4300, 16
        %v4546 = vrot.slane %v4544, 4
        %v4547 = vshll.u32 %v4300, 16
        %v4549 = vrot.slane %v4547, 5
        %v4550 = vor.u32 %v4546, %v4549
        %v4551 = vrot.slane %v4550, 4
        %v4553 = vshll.u32 %v4301, 16
        %v4555 = vrot.slane %v4553, 5
        %v4556 = vsel %vm369, %v4551, %v4555
        %v4557 = vshrl.u32 %v4301, 16
        %v4559 = vrot.slane %v4557, 4
        %v4560 = vor.u32 %v4559, %v4555
        %v4561 = vrot.slane %v4560, 4
        %v4563 = vshll.u32 %v4302, 16
        %v4565 = vrot.slane %v4563, 5
        %v4566 = vsel %vm369, %v4561, %v4565
        %v4568 = vshrl.u32 %v4303, 16
        %v4570 = vrot.slane %v4568, 4
        %v4571 = vshll.u32 %v4303, 16
        %v4573 = vrot.slane %v4571, 5
        %v4574 = vor.u32 %v4570, %v4573
        %v4575 = vrot.slane %v4574, 4
        %v4577 = vshll.u32 %v4304, 16
        %v4579 = vrot.slane %v4577, 5
        %v4580 = vsel %vm369, %v4575, %v4579
        %v4581 = vshrl.u32 %v4304, 16
        %v4583 = vrot.slane %v4581, 4
        %v4584 = vor.u32 %v4583, %v4579
        %v4585 = vrot.slane %v4584, 4
        %v4587 = vshll.u32 %v4305, 16
        %v4589 = vrot.slane %v4587, 5
        %v4590 = vsel %vm369, %v4585, %v4589
        %v4592 = vshrl.u32 %v4306, 16
        %v4594 = vrot.slane %v4592, 4
        %v4595 = vshll.u32 %v4306, 16
        %v4597 = vrot.slane %v4595, 5
        %v4598 = vor.u32 %v4594, %v4597
        %v4599 = vrot.slane %v4598, 4
        %v4601 = vshll.u32 %v4307, 16
        %v4603 = vrot.slane %v4601, 5
        %v4604 = vsel %vm369, %v4599, %v4603
        %v4605 = vshrl.u32 %v4307, 16
        %v4607 = vrot.slane %v4605, 4
        %v4608 = vor.u32 %v4607, %v4603
        %v4609 = vrot.slane %v4608, 4
        %v4611 = vshll.u32 %v4308, 16
        %v4613 = vrot.slane %v4611, 5
        %v4614 = vsel %vm369, %v4609, %v4613
        %v4616 = vshrl.u32 %v4309, 16
        %v4618 = vrot.slane %v4616, 4
        %v4619 = vshll.u32 %v4309, 16
        %v4621 = vrot.slane %v4619, 5
        %v4622 = vor.u32 %v4618, %v4621
        %v4623 = vrot.slane %v4622, 4
        %v4625 = vshll.u32 %v4310, 16
        %v4627 = vrot.slane %v4625, 5
        %v4628 = vsel %vm369, %v4623, %v4627
        %v4629 = vshrl.u32 %v4310, 16
        %v4631 = vrot.slane %v4629, 4
        %v4632 = vor.u32 %v4631, %v4627
        %v4633 = vrot.slane %v4632, 4
        %v4635 = vshll.u32 %v4311, 16
        %v4637 = vrot.slane %v4635, 5
        %v4638 = vsel %vm369, %v4633, %v4637
        %v4640 = vshrl.u32 %v4312, 16
        %v4642 = vrot.slane %v4640, 4
        %v4643 = vshll.u32 %v4312, 16
        %v4645 = vrot.slane %v4643, 5
        %v4646 = vor.u32 %v4642, %v4645
        %v4647 = vrot.slane %v4646, 4
        %v4649 = vshll.u32 %v4313, 16
        %v4651 = vrot.slane %v4649, 5
        %v4652 = vsel %vm369, %v4647, %v4651
        %v4653 = vshrl.u32 %v4313, 16
        %v4655 = vrot.slane %v4653, 4
        %v4656 = vor.u32 %v4655, %v4651
        %v4657 = vrot.slane %v4656, 4
        %v4659 = vshll.u32 %v4314, 16
        %v4661 = vrot.slane %v4659, 5
        %v4662 = vsel %vm369, %v4657, %v4661
        %v4664 = vshrl.u32 %v4315, 16
        %v4666 = vrot.slane %v4664, 4
        %v4667 = vshll.u32 %v4315, 16
        %v4669 = vrot.slane %v4667, 5
        %v4670 = vor.u32 %v4666, %v4669
        %v4671 = vrot.slane %v4670, 4
        %v4673 = vshll.u32 %v4316, 16
        %v4675 = vrot.slane %v4673, 5
        %v4676 = vsel %vm369, %v4671, %v4675
        %v4677 = vshrl.u32 %v4316, 16
        %v4679 = vrot.slane %v4677, 4
        %v4680 = vor.u32 %v4679, %v4675
        %v4681 = vrot.slane %v4680, 4
        %v4683 = vshll.u32 %v4317, 16
        %v4685 = vrot.slane %v4683, 5
        %v4686 = vsel %vm369, %v4681, %v4685
        %v4688 = vshrl.u32 %v4318, 16
        %v4690 = vrot.slane %v4688, 4
        %v4691 = vshll.u32 %v4318, 16
        %v4693 = vrot.slane %v4691, 5
        %v4694 = vor.u32 %v4690, %v4693
        %v4695 = vrot.slane %v4694, 4
        %v4697 = vshll.u32 %v4319, 16
        %v4699 = vrot.slane %v4697, 5
        %v4700 = vsel %vm369, %v4695, %v4699
        %v4701 = vshrl.u32 %v4319, 16
        %v4703 = vrot.slane %v4701, 4
        %v4704 = vor.u32 %v4703, %v4699
        %v4705 = vrot.slane %v4704, 4
        %v4707 = vshll.u32 %v4320, 16
        %v4709 = vrot.slane %v4707, 5
        %v4710 = vsel %vm369, %v4705, %v4709
        %v4712 = vshrl.u32 %v4321, 16
        %v4714 = vrot.slane %v4712, 4
        %v4715 = vshll.u32 %v4321, 16
        %v4717 = vrot.slane %v4715, 5
        %v4718 = vor.u32 %v4714, %v4717
        %v4719 = vrot.slane %v4718, 4
        %v4721 = vshll.u32 %v4322, 16
        %v4723 = vrot.slane %v4721, 5
        %v4724 = vsel %vm369, %v4719, %v4723
        %v4725 = vshrl.u32 %v4322, 16
        %v4727 = vrot.slane %v4725, 4
        %v4728 = vor.u32 %v4727, %v4723
        %v4729 = vrot.slane %v4728, 4
        %v4731 = vshll.u32 %v4323, 16
        %v4733 = vrot.slane %v4731, 5
        %v4734 = vsel %vm369, %v4729, %v4733
        %v4736 = vshrl.u32 %v4324, 16
        %v4738 = vrot.slane %v4736, 4
        %v4739 = vshll.u32 %v4324, 16
        %v4741 = vrot.slane %v4739, 5
        %v4742 = vor.u32 %v4738, %v4741
        %v4743 = vrot.slane %v4742, 4
        %v4745 = vshll.u32 %v4325, 16
        %v4747 = vrot.slane %v4745, 5
        %v4748 = vsel %vm369, %v4743, %v4747
        %v4749 = vshrl.u32 %v4325, 16
        %v4751 = vrot.slane %v4749, 4
        %v4752 = vor.u32 %v4751, %v4747
        %v4753 = vrot.slane %v4752, 4
        %v4755 = vshll.u32 %v4326, 16
        %v4757 = vrot.slane %v4755, 5
        %v4758 = vsel %vm369, %v4753, %v4757
        %4795 = vst [vmem:[#allocation3 + $0x4] sm:$0xf] %v4340
        %4796 = vst [vmem:[#allocation3 + $0x10] sm:$0xf] %v4350
        %4797 = vst [vmem:[#allocation3 + $0x1c] sm:$0xf] %v4364
        %4798 = vst [vmem:[#allocation3 + $0x28] sm:$0xf] %v4374
        %4799 = vst [vmem:[#allocation3 + $0x34] sm:$0xf] %v4388
        %4800 = vst [vmem:[#allocation3 + $0x40] sm:$0xf] %v4398
        %4801 = vst [vmem:[#allocation3 + $0x4c] sm:$0xf] %v4412
        %4802 = vst [vmem:[#allocation3 + $0x58] sm:$0xf] %v4422
        %4803 = vst [vmem:[#allocation3 + $0x64] sm:$0xf] %v4436
        %4804 = vst [vmem:[#allocation3 + $0x70] sm:$0xf] %v4446
        %4805 = vst [vmem:[#allocation3 + $0x7c] sm:$0xf] %v4460
        %4806 = vst [vmem:[#allocation3 + $0x88] sm:$0xf] %v4470
        %4807 = vst [vmem:[#allocation3 + $0x94] sm:$0xf] %v4484
        %4808 = vst [vmem:[#allocation3 + $0xa0] sm:$0xf] %v4494
        %4809 = vst [vmem:[#allocation3 + $0xac] sm:$0xf] %v4508
        %4810 = vst [vmem:[#allocation3 + $0xb8] sm:$0xf] %v4518
        %4811 = vst [vmem:[#allocation3 + $0xc4] sm:$0xf] %v4532
        %4812 = vst [vmem:[#allocation3 + $0xd0] sm:$0xf] %v4542
        %4813 = vst [vmem:[#allocation3 + $0xdc] sm:$0xf] %v4556
        %4814 = vst [vmem:[#allocation3 + $0xe8] sm:$0xf] %v4566
        %4815 = vst [vmem:[#allocation3 + $0xf4] sm:$0xf] %v4580
        %4816 = vst [vmem:[#allocation3 + $0x100] sm:$0xf] %v4590
        %4817 = vst [vmem:[#allocation3 + $0x10c] sm:$0xf] %v4604
        %4818 = vst [vmem:[#allocation3 + $0x118] sm:$0xf] %v4614
        %4819 = vst [vmem:[#allocation3 + $0x124] sm:$0xf] %v4628
        %4820 = vst [vmem:[#allocation3 + $0x130] sm:$0xf] %v4638
        %4821 = vst [vmem:[#allocation3 + $0x13c] sm:$0xf] %v4652
        %4822 = vst [vmem:[#allocation3 + $0x148] sm:$0xf] %v4662
        %4823 = vst [vmem:[#allocation3 + $0x154] sm:$0xf] %v4676
        %4824 = vst [vmem:[#allocation3 + $0x160] sm:$0xf] %v4686
        %4825 = vst [vmem:[#allocation3 + $0x16c] sm:$0xf] %v4700
        %4826 = vst [vmem:[#allocation3 + $0x178] sm:$0xf] %v4710
        %4827 = vst [vmem:[#allocation3 + $0x184] sm:$0xf] %v4724
        %4828 = vst [vmem:[#allocation3 + $0x190] sm:$0xf] %v4734
        %4829 = vst [vmem:[#allocation3 + $0x19c] sm:$0xf] %v4748
        %4830 = vst [vmem:[#allocation3 + $0x1a8] sm:$0xf] %v4758
        %v4831 = vld [vmem:[#allocation2] sm:$0xe]
        %v4832 = vld [vmem:[#allocation2 + $0x4] sm:$0xf]
        %v4833 = vld [vmem:[#allocation2 + $0x8] sm:$0x1]
        %v4834 = vld [vmem:[#allocation2 + $0xc] sm:$0xe]
        %v4835 = vld [vmem:[#allocation2 + $0x10] sm:$0xf]
        %v4836 = vld [vmem:[#allocation2 + $0x14] sm:$0x1]
        %v4837 = vld [vmem:[#allocation2 + $0x18] sm:$0xe]
        %v4838 = vld [vmem:[#allocation2 + $0x1c] sm:$0xf]
        %v4839 = vld [vmem:[#allocation2 + $0x20] sm:$0x1]
        %v4840 = vld [vmem:[#allocation2 + $0x24] sm:$0xe]
        %v4841 = vld [vmem:[#allocation2 + $0x28] sm:$0xf]
        %v4842 = vld [vmem:[#allocation2 + $0x2c] sm:$0x1]
        %v4843 = vld [vmem:[#allocation2 + $0x30] sm:$0xe]
        %v4844 = vld [vmem:[#allocation2 + $0x34] sm:$0xf]
        %v4845 = vld [vmem:[#allocation2 + $0x38] sm:$0x1]
        %v4846 = vld [vmem:[#allocation2 + $0x3c] sm:$0xe]
        %v4847 = vld [vmem:[#allocation2 + $0x40] sm:$0xf]
        %v4848 = vld [vmem:[#allocation2 + $0x44] sm:$0x1]
        %v4849 = vld [vmem:[#allocation2 + $0x48] sm:$0xe]
        %v4850 = vld [vmem:[#allocation2 + $0x4c] sm:$0xf]
        %v4851 = vld [vmem:[#allocation2 + $0x50] sm:$0x1]
        %v4852 = vld [vmem:[#allocation2 + $0x54] sm:$0xe]
        %v4853 = vld [vmem:[#allocation2 + $0x58] sm:$0xf]
        %v4854 = vld [vmem:[#allocation2 + $0x5c] sm:$0x1]
        %v4855 = vld [vmem:[#allocation2 + $0x60] sm:$0xe]
        %v4856 = vld [vmem:[#allocation2 + $0x64] sm:$0xf]
        %v4857 = vld [vmem:[#allocation2 + $0x68] sm:$0x1]
        %v4858 = vld [vmem:[#allocation2 + $0x6c] sm:$0xe]
        %v4859 = vld [vmem:[#allocation2 + $0x70] sm:$0xf]
        %v4860 = vld [vmem:[#allocation2 + $0x74] sm:$0x1]
        %v4861 = vld [vmem:[#allocation2 + $0x78] sm:$0xe]
        %v4862 = vld [vmem:[#allocation2 + $0x7c] sm:$0xf]
        %v4863 = vld [vmem:[#allocation2 + $0x80] sm:$0x1]
        %v4864 = vld [vmem:[#allocation2 + $0x84] sm:$0xe]
        %v4865 = vld [vmem:[#allocation2 + $0x88] sm:$0xf]
        %v4866 = vld [vmem:[#allocation2 + $0x8c] sm:$0x1]
        %v4867 = vld [vmem:[#allocation2 + $0x90] sm:$0xe]
        %v4868 = vld [vmem:[#allocation2 + $0x94] sm:$0xf]
        %v4869 = vld [vmem:[#allocation2 + $0x98] sm:$0x1]
        %v4870 = vld [vmem:[#allocation2 + $0x9c] sm:$0xe]
        %v4871 = vld [vmem:[#allocation2 + $0xa0] sm:$0xf]
        %v4872 = vld [vmem:[#allocation2 + $0xa4] sm:$0x1]
        %v4873 = vld [vmem:[#allocation2 + $0xa8] sm:$0xe]
        %v4874 = vld [vmem:[#allocation2 + $0xac] sm:$0xf]
        %v4875 = vld [vmem:[#allocation2 + $0xb0] sm:$0x1]
        %v4876 = vld [vmem:[#allocation2 + $0xb4] sm:$0xe]
        %v4877 = vld [vmem:[#allocation2 + $0xb8] sm:$0xf]
        %v4878 = vld [vmem:[#allocation2 + $0xbc] sm:$0x1]
        %v4879 = vld [vmem:[#allocation2 + $0xc0] sm:$0xe]
        %v4880 = vld [vmem:[#allocation2 + $0xc4] sm:$0xf]
        %v4881 = vld [vmem:[#allocation2 + $0xc8] sm:$0x1]
        %v4882 = vld [vmem:[#allocation2 + $0xcc] sm:$0xe]
        %v4883 = vld [vmem:[#allocation2 + $0xd0] sm:$0xf]
        %v4884 = vld [vmem:[#allocation2 + $0xd4] sm:$0x1]
        %v4939 = vrot.slane %v4831, 5
        %v4940 = vrot.slane %v4939, 4
        %v4941 = vrot.slane %v4832, 5
        %v4942 = vsel %vm984, %v4940, %v4941
        %v4943 = vrot.slane %v4941, 4
        %v4944 = vrot.slane %v4833, 5
        %v4945 = vsel %vm984, %v4943, %v4944
        %v4946 = vrot.slane %v4834, 5
        %v4947 = vrot.slane %v4946, 4
        %v4948 = vrot.slane %v4835, 5
        %v4949 = vsel %vm984, %v4947, %v4948
        %v4950 = vrot.slane %v4948, 4
        %v4951 = vrot.slane %v4836, 5
        %v4952 = vsel %vm984, %v4950, %v4951
        %v4953 = vrot.slane %v4837, 5
        %v4954 = vrot.slane %v4953, 4
        %v4955 = vrot.slane %v4838, 5
        %v4956 = vsel %vm984, %v4954, %v4955
        %v4957 = vrot.slane %v4955, 4
        %v4958 = vrot.slane %v4839, 5
        %v4959 = vsel %vm984, %v4957, %v4958
        %v4960 = vrot.slane %v4840, 5
        %v4961 = vrot.slane %v4960, 4
        %v4962 = vrot.slane %v4841, 5
        %v4963 = vsel %vm984, %v4961, %v4962
        %v4964 = vrot.slane %v4962, 4
        %v4965 = vrot.slane %v4842, 5
        %v4966 = vsel %vm984, %v4964, %v4965
        %v4967 = vrot.slane %v4843, 5
        %v4968 = vrot.slane %v4967, 4
        %v4969 = vrot.slane %v4844, 5
        %v4970 = vsel %vm984, %v4968, %v4969
        %v4971 = vrot.slane %v4969, 4
        %v4972 = vrot.slane %v4845, 5
        %v4973 = vsel %vm984, %v4971, %v4972
        %v4974 = vrot.slane %v4846, 5
        %v4975 = vrot.slane %v4974, 4
        %v4976 = vrot.slane %v4847, 5
        %v4977 = vsel %vm984, %v4975, %v4976
        %v4978 = vrot.slane %v4976, 4
        %v4979 = vrot.slane %v4848, 5
        %v4980 = vsel %vm984, %v4978, %v4979
        %v4981 = vrot.slane %v4849, 5
        %v4982 = vrot.slane %v4981, 4
        %v4983 = vrot.slane %v4850, 5
        %v4984 = vsel %vm984, %v4982, %v4983
        %v4985 = vrot.slane %v4983, 4
        %v4986 = vrot.slane %v4851, 5
        %v4987 = vsel %vm984, %v4985, %v4986
        %v4988 = vrot.slane %v4852, 5
        %v4989 = vrot.slane %v4988, 4
        %v4990 = vrot.slane %v4853, 5
        %v4991 = vsel %vm984, %v4989, %v4990
        %v4992 = vrot.slane %v4990, 4
        %v4993 = vrot.slane %v4854, 5
        %v4994 = vsel %vm984, %v4992, %v4993
        %v4995 = vrot.slane %v4855, 5
        %v4996 = vrot.slane %v4995, 4
        %v4997 = vrot.slane %v4856, 5
        %v4998 = vsel %vm984, %v4996, %v4997
        %v4999 = vrot.slane %v4997, 4
        %v5000 = vrot.slane %v4857, 5
        %v5001 = vsel %vm984, %v4999, %v5000
        %v5002 = vrot.slane %v4858, 5
        %v5003 = vrot.slane %v5002, 4
        %v5004 = vrot.slane %v4859, 5
        %v5005 = vsel %vm984, %v5003, %v5004
        %v5006 = vrot.slane %v5004, 4
        %v5007 = vrot.slane %v4860, 5
        %v5008 = vsel %vm984, %v5006, %v5007
        %v5009 = vrot.slane %v4861, 5
        %v5010 = vrot.slane %v5009, 4
        %v5011 = vrot.slane %v4862, 5
        %v5012 = vsel %vm984, %v5010, %v5011
        %v5013 = vrot.slane %v5011, 4
        %v5014 = vrot.slane %v4863, 5
        %v5015 = vsel %vm984, %v5013, %v5014
        %v5016 = vrot.slane %v4864, 5
        %v5017 = vrot.slane %v5016, 4
        %v5018 = vrot.slane %v4865, 5
        %v5019 = vsel %vm984, %v5017, %v5018
        %v5020 = vrot.slane %v5018, 4
        %v5021 = vrot.slane %v4866, 5
        %v5022 = vsel %vm984, %v5020, %v5021
        %v5023 = vrot.slane %v4867, 5
        %v5024 = vrot.slane %v5023, 4
        %v5025 = vrot.slane %v4868, 5
        %v5026 = vsel %vm984, %v5024, %v5025
        %v5027 = vrot.slane %v5025, 4
        %v5028 = vrot.slane %v4869, 5
        %v5029 = vsel %vm984, %v5027, %v5028
        %v5030 = vrot.slane %v4870, 5
        %v5031 = vrot.slane %v5030, 4
        %v5032 = vrot.slane %v4871, 5
        %v5033 = vsel %vm984, %v5031, %v5032
        %v5034 = vrot.slane %v5032, 4
        %v5035 = vrot.slane %v4872, 5
        %v5036 = vsel %vm984, %v5034, %v5035
        %v5037 = vrot.slane %v4873, 5
        %v5038 = vrot.slane %v5037, 4
        %v5039 = vrot.slane %v4874, 5
        %v5040 = vsel %vm984, %v5038, %v5039
        %v5041 = vrot.slane %v5039, 4
        %v5042 = vrot.slane %v4875, 5
        %v5043 = vsel %vm984, %v5041, %v5042
        %v5044 = vrot.slane %v4876, 5
        %v5045 = vrot.slane %v5044, 4
        %v5046 = vrot.slane %v4877, 5
        %v5047 = vsel %vm984, %v5045, %v5046
        %v5048 = vrot.slane %v5046, 4
        %v5049 = vrot.slane %v4878, 5
        %v5050 = vsel %vm984, %v5048, %v5049
        %v5051 = vrot.slane %v4879, 5
        %v5052 = vrot.slane %v5051, 4
        %v5053 = vrot.slane %v4880, 5
        %v5054 = vsel %vm984, %v5052, %v5053
        %v5055 = vrot.slane %v5053, 4
        %v5056 = vrot.slane %v4881, 5
        %v5057 = vsel %vm984, %v5055, %v5056
        %v5058 = vrot.slane %v4882, 5
        %v5059 = vrot.slane %v5058, 4
        %v5060 = vrot.slane %v4883, 5
        %v5061 = vsel %vm984, %v5059, %v5060
        %v5062 = vrot.slane %v5060, 4
        %v5063 = vrot.slane %v4884, 5
        %v5064 = vsel %vm984, %v5062, %v5063
        %5101 = vst [vmem:[#allocation3 + $0x8] sm:$0xf] %v4942
        %5102 = vst [vmem:[#allocation3 + $0x14] sm:$0xf] %v4945
        %5103 = vst [vmem:[#allocation3 + $0x20] sm:$0xf] %v4949
        %5104 = vst [vmem:[#allocation3 + $0x2c] sm:$0xf] %v4952
        %5105 = vst [vmem:[#allocation3 + $0x38] sm:$0xf] %v4956
        %5106 = vst [vmem:[#allocation3 + $0x44] sm:$0xf] %v4959
        %5107 = vst [vmem:[#allocation3 + $0x50] sm:$0xf] %v4963
        %5108 = vst [vmem:[#allocation3 + $0x5c] sm:$0xf] %v4966
        %5109 = vst [vmem:[#allocation3 + $0x68] sm:$0xf] %v4970
        %5110 = vst [vmem:[#allocation3 + $0x74] sm:$0xf] %v4973
        %5111 = vst [vmem:[#allocation3 + $0x80] sm:$0xf] %v4977
        %5112 = vst [vmem:[#allocation3 + $0x8c] sm:$0xf] %v4980
        %5113 = vst [vmem:[#allocation3 + $0x98] sm:$0xf] %v4984
        %5114 = vst [vmem:[#allocation3 + $0xa4] sm:$0xf] %v4987
        %5115 = vst [vmem:[#allocation3 + $0xb0] sm:$0xf] %v4991
        %5116 = vst [vmem:[#allocation3 + $0xbc] sm:$0xf] %v4994
        %5117 = vst [vmem:[#allocation3 + $0xc8] sm:$0xf] %v4998
        %5118 = vst [vmem:[#allocation3 + $0xd4] sm:$0xf] %v5001
        %5119 = vst [vmem:[#allocation3 + $0xe0] sm:$0xf] %v5005
        %5120 = vst [vmem:[#allocation3 + $0xec] sm:$0xf] %v5008
        %5121 = vst [vmem:[#allocation3 + $0xf8] sm:$0xf] %v5012
        %5122 = vst [vmem:[#allocation3 + $0x104] sm:$0xf] %v5015
        %5123 = vst [vmem:[#allocation3 + $0x110] sm:$0xf] %v5019
        %5124 = vst [vmem:[#allocation3 + $0x11c] sm:$0xf] %v5022
        %5125 = vst [vmem:[#allocation3 + $0x128] sm:$0xf] %v5026
        %5126 = vst [vmem:[#allocation3 + $0x134] sm:$0xf] %v5029
        %5127 = vst [vmem:[#allocation3 + $0x140] sm:$0xf] %v5033
        %5128 = vst [vmem:[#allocation3 + $0x14c] sm:$0xf] %v5036
        %5129 = vst [vmem:[#allocation3 + $0x158] sm:$0xf] %v5040
        %5130 = vst [vmem:[#allocation3 + $0x164] sm:$0xf] %v5043
        %5131 = vst [vmem:[#allocation3 + $0x170] sm:$0xf] %v5047
        %5132 = vst [vmem:[#allocation3 + $0x17c] sm:$0xf] %v5050
        %5133 = vst [vmem:[#allocation3 + $0x188] sm:$0xf] %v5054
        %5134 = vst [vmem:[#allocation3 + $0x194] sm:$0xf] %v5057
        %5135 = vst [vmem:[#allocation3 + $0x1a0] sm:$0xf] %v5061
        %5136 = vst [vmem:[#allocation3 + $0x1ac] sm:$0xf] %v5064
        %v5137 = vld [vmem:[#allocation3] sm:$0xff]
        %v5138 = vld [vmem:[#allocation3 + $0x8] sm:$0xf]
        %v5139 = vld [vmem:[#allocation3 + $0xc] sm:$0xff]
        %v5140 = vld [vmem:[#allocation3 + $0x14] sm:$0xf]
        %v5141 = vld [vmem:[#allocation3 + $0x18] sm:$0xff]
        %v5142 = vld [vmem:[#allocation3 + $0x20] sm:$0xf]
        %v5143 = vld [vmem:[#allocation3 + $0x24] sm:$0xff]
        %v5144 = vld [vmem:[#allocation3 + $0x2c] sm:$0xf]
        %v5145 = vld [vmem:[#allocation3 + $0x30] sm:$0xff]
        %v5146 = vld [vmem:[#allocation3 + $0x38] sm:$0xf]
        %v5147 = vld [vmem:[#allocation3 + $0x3c] sm:$0xff]
        %v5148 = vld [vmem:[#allocation3 + $0x44] sm:$0xf]
        %v5149 = vld [vmem:[#allocation3 + $0x48] sm:$0xff]
        %v5150 = vld [vmem:[#allocation3 + $0x50] sm:$0xf]
        %v5151 = vld [vmem:[#allocation3 + $0x54] sm:$0xff]
        %v5152 = vld [vmem:[#allocation3 + $0x5c] sm:$0xf]
        %v5153 = vld [vmem:[#allocation3 + $0x60] sm:$0xff]
        %v5154 = vld [vmem:[#allocation3 + $0x68] sm:$0xf]
        %v5155 = vld [vmem:[#allocation3 + $0x6c] sm:$0xff]
        %v5156 = vld [vmem:[#allocation3 + $0x74] sm:$0xf]
        %v5157 = vld [vmem:[#allocation3 + $0x78] sm:$0xff]
        %v5158 = vld [vmem:[#allocation3 + $0x80] sm:$0xf]
        %v5159 = vld [vmem:[#allocation3 + $0x84] sm:$0xff]
        %v5160 = vld [vmem:[#allocation3 + $0x8c] sm:$0xf]
        %v5161 = vld [vmem:[#allocation3 + $0x90] sm:$0xff]
        %v5162 = vld [vmem:[#allocation3 + $0x98] sm:$0xf]
        %v5163 = vld [vmem:[#allocation3 + $0x9c] sm:$0xff]
        %v5164 = vld [vmem:[#allocation3 + $0xa4] sm:$0xf]
        %v5165 = vld [vmem:[#allocation3 + $0xa8] sm:$0xff]
        %v5166 = vld [vmem:[#allocation3 + $0xb0] sm:$0xf]
        %v5167 = vld [vmem:[#allocation3 + $0xb4] sm:$0xff]
        %v5168 = vld [vmem:[#allocation3 + $0xbc] sm:$0xf]
        %v5169 = vld [vmem:[#allocation3 + $0xc0] sm:$0xff]
        %v5170 = vld [vmem:[#allocation3 + $0xc8] sm:$0xf]
        %v5171 = vld [vmem:[#allocation3 + $0xcc] sm:$0xff]
        %v5172 = vld [vmem:[#allocation3 + $0xd4] sm:$0xf]
        %v5173 = vld [vmem:[#allocation3 + $0xd8] sm:$0xff]
        %v5174 = vld [vmem:[#allocation3 + $0xe0] sm:$0xf]
        %v5175 = vld [vmem:[#allocation3 + $0xe4] sm:$0xff]
        %v5176 = vld [vmem:[#allocation3 + $0xec] sm:$0xf]
        %v5177 = vld [vmem:[#allocation3 + $0xf0] sm:$0xff]
        %v5178 = vld [vmem:[#allocation3 + $0xf8] sm:$0xf]
        %v5179 = vld [vmem:[#allocation3 + $0xfc] sm:$0xff]
        %v5180 = vld [vmem:[#allocation3 + $0x104] sm:$0xf]
        %v5181 = vld [vmem:[#allocation3 + $0x108] sm:$0xff]
        %v5182 = vld [vmem:[#allocation3 + $0x110] sm:$0xf]
        %v5183 = vld [vmem:[#allocation3 + $0x114] sm:$0xff]
        %v5184 = vld [vmem:[#allocation3 + $0x11c] sm:$0xf]
        %v5185 = vld [vmem:[#allocation3 + $0x120] sm:$0xff]
        %v5186 = vld [vmem:[#allocation3 + $0x128] sm:$0xf]
        %v5187 = vld [vmem:[#allocation3 + $0x12c] sm:$0xff]
        %v5188 = vld [vmem:[#allocation3 + $0x134] sm:$0xf]
        %v5189 = vld [vmem:[#allocation3 + $0x138] sm:$0xff]
        %v5190 = vld [vmem:[#allocation3 + $0x140] sm:$0xf]
        %v5191 = vld [vmem:[#allocation3 + $0x144] sm:$0xff]
        %v5192 = vld [vmem:[#allocation3 + $0x14c] sm:$0xf]
        %v5193 = vld [vmem:[#allocation3 + $0x150] sm:$0xff]
        %v5194 = vld [vmem:[#allocation3 + $0x158] sm:$0xf]
        %v5195 = vld [vmem:[#allocation3 + $0x15c] sm:$0xff]
        %v5196 = vld [vmem:[#allocation3 + $0x164] sm:$0xf]
        %v5197 = vld [vmem:[#allocation3 + $0x168] sm:$0xff]
        %v5198 = vld [vmem:[#allocation3 + $0x170] sm:$0xf]
        %v5199 = vld [vmem:[#allocation3 + $0x174] sm:$0xff]
        %v5200 = vld [vmem:[#allocation3 + $0x17c] sm:$0xf]
        %v5201 = vld [vmem:[#allocation4] sm:$0xf]
        %v5202 = vld [vmem:[#allocation4 + $0x4] sm:$0xf]
        %v5203 = vld [vmem:[#allocation4 + $0x8] sm:$0xf]
        %v5204 = vld [vmem:[#allocation4 + $0xc] sm:$0xf]
        %v5205 = vld [vmem:[#allocation4 + $0x10] sm:$0xf]
        %v5206 = vld [vmem:[#allocation4 + $0x14] sm:$0xf]
        %v5207 = vld [vmem:[#allocation4 + $0x18] sm:$0xf]
        %v5208 = vld [vmem:[#allocation4 + $0x1c] sm:$0xf]
        %v5209 = vld [vmem:[#allocation4 + $0x20] sm:$0xf]
        %v5210 = vld [vmem:[#allocation4 + $0x24] sm:$0xf]
        %v5211 = vld [vmem:[#allocation4 + $0x28] sm:$0xf]
        %v5212 = vld [vmem:[#allocation4 + $0x2c] sm:$0xf]
        %v5213 = vld [vmem:[#allocation4 + $0x30] sm:$0xf]
        %v5214 = vld [vmem:[#allocation4 + $0x34] sm:$0xf]
        %v5215 = vld [vmem:[#allocation4 + $0x38] sm:$0xf]
        %v5216 = vld [vmem:[#allocation4 + $0x3c] sm:$0xf]
        %v5217 = vld [vmem:[#allocation4 + $0x40] sm:$0xf]
        %v5218 = vld [vmem:[#allocation4 + $0x44] sm:$0xf]
        %v5219 = vld [vmem:[#allocation4 + $0x48] sm:$0xf]
        %v5220 = vld [vmem:[#allocation4 + $0x4c] sm:$0xf]
        %v5221 = vld [vmem:[#allocation4 + $0x50] sm:$0xf]
        %v5222 = vld [vmem:[#allocation4 + $0x54] sm:$0xf]
        %v5223 = vld [vmem:[#allocation4 + $0x58] sm:$0xf]
        %v5224 = vld [vmem:[#allocation4 + $0x5c] sm:$0xf]
        %v5225 = vld [vmem:[#allocation4 + $0x60] sm:$0xf]
        %v5226 = vld [vmem:[#allocation4 + $0x64] sm:$0xf]
        %v5227 = vld [vmem:[#allocation4 + $0x68] sm:$0xf]
        %v5228 = vld [vmem:[#allocation4 + $0x6c] sm:$0xf]
        %v5229 = vld [vmem:[#allocation4 + $0x70] sm:$0xf]
        %v5230 = vld [vmem:[#allocation4 + $0x74] sm:$0xf]
        %v5231 = vld [vmem:[#allocation4 + $0x78] sm:$0xf]
        %v5232 = vld [vmem:[#allocation4 + $0x7c] sm:$0xf]
        %v5233 = vld [vmem:[#allocation4 + $0x80] sm:$0xf]
        %v5234 = vld [vmem:[#allocation4 + $0x84] sm:$0xf]
        %v5235 = vld [vmem:[#allocation4 + $0x88] sm:$0xf]
        %v5236 = vld [vmem:[#allocation4 + $0x8c] sm:$0xf]
        %v5237 = vld [vmem:[#allocation4 + $0x90] sm:$0xf]
        %v5238 = vld [vmem:[#allocation4 + $0x94] sm:$0xf]
        %v5239 = vld [vmem:[#allocation4 + $0x98] sm:$0xf]
        %v5240 = vld [vmem:[#allocation4 + $0x9c] sm:$0xf]
        %v5241 = vld [vmem:[#allocation4 + $0xa0] sm:$0xf]
        %v5242 = vld [vmem:[#allocation4 + $0xa4] sm:$0xf]
        %v5243 = vld [vmem:[#allocation4 + $0xa8] sm:$0xf]
        %v5244 = vld [vmem:[#allocation4 + $0xac] sm:$0xf]
        %v5245 = vld [vmem:[#allocation4 + $0xb0] sm:$0xf]
        %v5246 = vld [vmem:[#allocation4 + $0xb4] sm:$0xf]
        %v5247 = vld [vmem:[#allocation4 + $0xb8] sm:$0xf]
        %v5248 = vld [vmem:[#allocation4 + $0xbc] sm:$0xf]
        %v5249 = vld [vmem:[%s1295] sm:$0xff]
        %v5250 = vld [vmem:[%s1295 + $0x8] sm:$0xf]
        %v5251 = vld [vmem:[%s1295 + $0xc] sm:$0xff]
        %v5252 = vld [vmem:[%s1295 + $0x14] sm:$0xf]
        %v5253 = vld [vmem:[%s1295 + $0x18] sm:$0xff]
        %v5254 = vld [vmem:[%s1295 + $0x20] sm:$0xf]
        %v5255 = vld [vmem:[%s1295 + $0x24] sm:$0xff]
        %v5256 = vld [vmem:[%s1295 + $0x2c] sm:$0xf]
        %v5257 = vld [vmem:[%s1295 + $0x30] sm:$0xff]
        %v5258 = vld [vmem:[%s1295 + $0x38] sm:$0xf]
        %v5259 = vld [vmem:[%s1295 + $0x3c] sm:$0xff]
        %v5260 = vld [vmem:[%s1295 + $0x44] sm:$0xf]
        %v5261 = vld [vmem:[%s1295 + $0x48] sm:$0xff]
        %v5262 = vld [vmem:[%s1295 + $0x50] sm:$0xf]
        %v5263 = vld [vmem:[%s1295 + $0x54] sm:$0xff]
        %v5264 = vld [vmem:[%s1295 + $0x5c] sm:$0xf]
        %v5265 = vld [vmem:[%s1295 + $0x60] sm:$0xff]
        %v5266 = vld [vmem:[%s1295 + $0x68] sm:$0xf]
        %v5267 = vld [vmem:[%s1295 + $0x6c] sm:$0xff]
        %v5268 = vld [vmem:[%s1295 + $0x74] sm:$0xf]
        %v5269 = vld [vmem:[%s1295 + $0x78] sm:$0xff]
        %v5270 = vld [vmem:[%s1295 + $0x80] sm:$0xf]
        %v5271 = vld [vmem:[%s1295 + $0x84] sm:$0xff]
        %v5272 = vld [vmem:[%s1295 + $0x8c] sm:$0xf]
        %v5273 = vld [vmem:[%s1295 + $0x90] sm:$0xff]
        %v5274 = vld [vmem:[%s1295 + $0x98] sm:$0xf]
        %v5275 = vld [vmem:[%s1295 + $0x9c] sm:$0xff]
        %v5276 = vld [vmem:[%s1295 + $0xa4] sm:$0xf]
        %v5277 = vld [vmem:[%s1295 + $0xa8] sm:$0xff]
        %v5278 = vld [vmem:[%s1295 + $0xb0] sm:$0xf]
        %v5279 = vld [vmem:[%s1295 + $0xb4] sm:$0xff]
        %v5280 = vld [vmem:[%s1295 + $0xbc] sm:$0xf]
        %v5281 = vld [vmem:[%s1295 + $0xc0] sm:$0xff]
        %v5282 = vld [vmem:[%s1295 + $0xc8] sm:$0xf]
        %v5283 = vld [vmem:[%s1295 + $0xcc] sm:$0xff]
        %v5284 = vld [vmem:[%s1295 + $0xd4] sm:$0xf]
        %v5285 = vld [vmem:[%s1295 + $0xd8] sm:$0xff]
        %v5286 = vld [vmem:[%s1295 + $0xe0] sm:$0xf]
        %v5287 = vld [vmem:[%s1295 + $0xe4] sm:$0xff]
        %v5288 = vld [vmem:[%s1295 + $0xec] sm:$0xf]
        %v5289 = vld [vmem:[%s1295 + $0xf0] sm:$0xff]
        %v5290 = vld [vmem:[%s1295 + $0xf8] sm:$0xf]
        %v5291 = vld [vmem:[%s1295 + $0xfc] sm:$0xff]
        %v5292 = vld [vmem:[%s1295 + $0x104] sm:$0xf]
        %v5293 = vld [vmem:[%s1295 + $0x108] sm:$0xff]
        %v5294 = vld [vmem:[%s1295 + $0x110] sm:$0xf]
        %v5295 = vld [vmem:[%s1295 + $0x114] sm:$0xff]
        %v5296 = vld [vmem:[%s1295 + $0x11c] sm:$0xf]
        %v5297 = vld [vmem:[%s1295 + $0x120] sm:$0xff]
        %v5298 = vld [vmem:[%s1295 + $0x128] sm:$0xf]
        %v5299 = vld [vmem:[%s1295 + $0x12c] sm:$0xff]
        %v5300 = vld [vmem:[%s1295 + $0x134] sm:$0xf]
        %v5301 = vld [vmem:[%s1295 + $0x138] sm:$0xff]
        %v5302 = vld [vmem:[%s1295 + $0x140] sm:$0xf]
        %v5303 = vld [vmem:[%s1295 + $0x144] sm:$0xff]
        %v5304 = vld [vmem:[%s1295 + $0x14c] sm:$0xf]
        %v5305 = vld [vmem:[%s1295 + $0x150] sm:$0xff]
        %v5306 = vld [vmem:[%s1295 + $0x158] sm:$0xf]
        %v5307 = vld [vmem:[%s1295 + $0x15c] sm:$0xff]
        %v5308 = vld [vmem:[%s1295 + $0x164] sm:$0xf]
        %v5309 = vld [vmem:[%s1295 + $0x168] sm:$0xff]
        %v5310 = vld [vmem:[%s1295 + $0x170] sm:$0xf]
        %v5311 = vld [vmem:[%s1295 + $0x174] sm:$0xff]
        %v5312 = vld [vmem:[%s1295 + $0x17c] sm:$0xf]
        %s5313 = scalar_lea.vmem [#allocation4], 192
        %v5314 = vld [vmem:[%s5313] sm:$0xf]
        %v5315 = vld [vmem:[%s5313 + $0x4] sm:$0xf]
        %v5316 = vld [vmem:[%s5313 + $0x8] sm:$0xf]
        %v5317 = vld [vmem:[%s5313 + $0xc] sm:$0xf]
        %v5318 = vld [vmem:[%s5313 + $0x10] sm:$0xf]
        %v5319 = vld [vmem:[%s5313 + $0x14] sm:$0xf]
        %v5320 = vld [vmem:[%s5313 + $0x18] sm:$0xf]
        %v5321 = vld [vmem:[%s5313 + $0x1c] sm:$0xf]
        %v5322 = vld [vmem:[%s5313 + $0x20] sm:$0xf]
        %v5323 = vld [vmem:[%s5313 + $0x24] sm:$0xf]
        %v5324 = vld [vmem:[%s5313 + $0x28] sm:$0xf]
        %v5325 = vld [vmem:[%s5313 + $0x2c] sm:$0xf]
        %v5326 = vld [vmem:[%s5313 + $0x30] sm:$0xf]
        %v5327 = vld [vmem:[%s5313 + $0x34] sm:$0xf]
        %v5328 = vld [vmem:[%s5313 + $0x38] sm:$0xf]
        %v5329 = vld [vmem:[%s5313 + $0x3c] sm:$0xf]
        %v5330 = vld [vmem:[%s5313 + $0x40] sm:$0xf]
        %v5331 = vld [vmem:[%s5313 + $0x44] sm:$0xf]
        %v5332 = vld [vmem:[%s5313 + $0x48] sm:$0xf]
        %v5333 = vld [vmem:[%s5313 + $0x4c] sm:$0xf]
        %v5334 = vld [vmem:[%s5313 + $0x50] sm:$0xf]
        %v5335 = vld [vmem:[%s5313 + $0x54] sm:$0xf]
        %v5336 = vld [vmem:[%s5313 + $0x58] sm:$0xf]
        %v5337 = vld [vmem:[%s5313 + $0x5c] sm:$0xf]
        %v5338 = vld [vmem:[%s5313 + $0x60] sm:$0xf]
        %v5339 = vld [vmem:[%s5313 + $0x64] sm:$0xf]
        %v5340 = vld [vmem:[%s5313 + $0x68] sm:$0xf]
        %v5341 = vld [vmem:[%s5313 + $0x6c] sm:$0xf]
        %v5342 = vld [vmem:[%s5313 + $0x70] sm:$0xf]
        %v5343 = vld [vmem:[%s5313 + $0x74] sm:$0xf]
        %v5344 = vld [vmem:[%s5313 + $0x78] sm:$0xf]
        %v5345 = vld [vmem:[%s5313 + $0x7c] sm:$0xf]
        %v5346 = vld [vmem:[%s5313 + $0x80] sm:$0xf]
        %v5347 = vld [vmem:[%s5313 + $0x84] sm:$0xf]
        %v5348 = vld [vmem:[%s5313 + $0x88] sm:$0xf]
        %v5349 = vld [vmem:[%s5313 + $0x8c] sm:$0xf]
        %v5350 = vld [vmem:[%s5313 + $0x90] sm:$0xf]
        %v5351 = vld [vmem:[%s5313 + $0x94] sm:$0xf]
        %v5352 = vld [vmem:[%s5313 + $0x98] sm:$0xf]
        %v5353 = vld [vmem:[%s5313 + $0x9c] sm:$0xf]
        %v5354 = vld [vmem:[%s5313 + $0xa0] sm:$0xf]
        %v5355 = vld [vmem:[%s5313 + $0xa4] sm:$0xf]
        %v5356 = vld [vmem:[%s5313 + $0xa8] sm:$0xf]
        %v5357 = vld [vmem:[%s5313 + $0xac] sm:$0xf]
        %v5358 = vld [vmem:[%s5313 + $0xb0] sm:$0xf]
        %v5359 = vld [vmem:[%s5313 + $0xb4] sm:$0xf]
        %v5360 = vld [vmem:[%s5313 + $0xb8] sm:$0xf]
        %v5361 = vld [vmem:[%s5313 + $0xbc] sm:$0xf]
        %v5426 = vunpack.c.l.b16 %v5249
        %v5427 = vunpack.c.h.b16 %v5249
        %v5428 = vunpack.c.l.b16 %v5250
        %v5429 = vunpack.c.l.b16 %v5251
        %v5430 = vunpack.c.h.b16 %v5251
        %v5431 = vunpack.c.l.b16 %v5252
        %v5432 = vunpack.c.l.b16 %v5253
        %v5433 = vunpack.c.h.b16 %v5253
        %v5434 = vunpack.c.l.b16 %v5254
        %v5435 = vunpack.c.l.b16 %v5255
        %v5436 = vunpack.c.h.b16 %v5255
        %v5437 = vunpack.c.l.b16 %v5256
        %v5438 = vunpack.c.l.b16 %v5257
        %v5439 = vunpack.c.h.b16 %v5257
        %v5440 = vunpack.c.l.b16 %v5258
        %v5441 = vunpack.c.l.b16 %v5259
        %v5442 = vunpack.c.h.b16 %v5259
        %v5443 = vunpack.c.l.b16 %v5260
        %v5444 = vunpack.c.l.b16 %v5261
        %v5445 = vunpack.c.h.b16 %v5261
        %v5446 = vunpack.c.l.b16 %v5262
        %v5447 = vunpack.c.l.b16 %v5263
        %v5448 = vunpack.c.h.b16 %v5263
        %v5449 = vunpack.c.l.b16 %v5264
        %v5450 = vunpack.c.l.b16 %v5265
        %v5451 = vunpack.c.h.b16 %v5265
        %v5452 = vunpack.c.l.b16 %v5266
        %v5453 = vunpack.c.l.b16 %v5267
        %v5454 = vunpack.c.h.b16 %v5267
        %v5455 = vunpack.c.l.b16 %v5268
        %v5456 = vunpack.c.l.b16 %v5269
        %v5457 = vunpack.c.h.b16 %v5269
        %v5458 = vunpack.c.l.b16 %v5270
        %v5459 = vunpack.c.l.b16 %v5271
        %v5460 = vunpack.c.h.b16 %v5271
        %v5461 = vunpack.c.l.b16 %v5272
        %v5462 = vunpack.c.l.b16 %v5273
        %v5463 = vunpack.c.h.b16 %v5273
        %v5464 = vunpack.c.l.b16 %v5274
        %v5465 = vunpack.c.l.b16 %v5275
        %v5466 = vunpack.c.h.b16 %v5275
        %v5467 = vunpack.c.l.b16 %v5276
        %v5468 = vunpack.c.l.b16 %v5277
        %v5469 = vunpack.c.h.b16 %v5277
        %v5470 = vunpack.c.l.b16 %v5278
        %v5471 = vunpack.c.l.b16 %v5279
        %v5472 = vunpack.c.h.b16 %v5279
        %v5473 = vunpack.c.l.b16 %v5280
        %v5474 = vunpack.c.l.b16 %v5281
        %v5475 = vunpack.c.h.b16 %v5281
        %v5476 = vunpack.c.l.b16 %v5282
        %v5477 = vunpack.c.l.b16 %v5283
        %v5478 = vunpack.c.h.b16 %v5283
        %v5479 = vunpack.c.l.b16 %v5284
        %v5480 = vunpack.c.l.b16 %v5285
        %v5481 = vunpack.c.h.b16 %v5285
        %v5482 = vunpack.c.l.b16 %v5286
        %v5483 = vunpack.c.l.b16 %v5287
        %v5484 = vunpack.c.h.b16 %v5287
        %v5485 = vunpack.c.l.b16 %v5288
        %v5486 = vunpack.c.l.b16 %v5289
        %v5487 = vunpack.c.h.b16 %v5289
        %v5488 = vunpack.c.l.b16 %v5290
        %v5489 = vunpack.c.l.b16 %v5291
        %v5490 = vunpack.c.h.b16 %v5291
        %v5491 = vunpack.c.l.b16 %v5292
        %v5492 = vunpack.c.l.b16 %v5293
        %v5493 = vunpack.c.h.b16 %v5293
        %v5494 = vunpack.c.l.b16 %v5294
        %v5495 = vunpack.c.l.b16 %v5295
        %v5496 = vunpack.c.h.b16 %v5295
        %v5497 = vunpack.c.l.b16 %v5296
        %v5498 = vunpack.c.l.b16 %v5297
        %v5499 = vunpack.c.h.b16 %v5297
        %v5500 = vunpack.c.l.b16 %v5298
        %v5501 = vunpack.c.l.b16 %v5299
        %v5502 = vunpack.c.h.b16 %v5299
        %v5503 = vunpack.c.l.b16 %v5300
        %v5504 = vunpack.c.l.b16 %v5301
        %v5505 = vunpack.c.h.b16 %v5301
        %v5506 = vunpack.c.l.b16 %v5302
        %v5507 = vunpack.c.l.b16 %v5303
        %v5508 = vunpack.c.h.b16 %v5303
        %v5509 = vunpack.c.l.b16 %v5304
        %v5510 = vunpack.c.l.b16 %v5305
        %v5511 = vunpack.c.h.b16 %v5305
        %v5512 = vunpack.c.l.b16 %v5306
        %v5513 = vunpack.c.l.b16 %v5307
        %v5514 = vunpack.c.h.b16 %v5307
        %v5515 = vunpack.c.l.b16 %v5308
        %v5516 = vunpack.c.l.b16 %v5309
        %v5517 = vunpack.c.h.b16 %v5309
        %v5518 = vunpack.c.l.b16 %v5310
        %v5519 = vunpack.c.l.b16 %v5311
        %v5520 = vunpack.c.h.b16 %v5311
        %v5521 = vunpack.c.l.b16 %v5312
        %v5522 = vpack.c.b16 %v5429, %v5426
        %v5523 = vpack.c.b16 %v5430, %v5427
        %v5524 = vpack.c.b16 %v5431, %v5428
        %v5525 = vpack.c.b16 %v5435, %v5432
        %v5526 = vpack.c.b16 %v5436, %v5433
        %v5527 = vpack.c.b16 %v5437, %v5434
        %v5528 = vpack.c.b16 %v5441, %v5438
        %v5529 = vpack.c.b16 %v5442, %v5439
        %v5530 = vpack.c.b16 %v5443, %v5440
        %v5531 = vpack.c.b16 %v5447, %v5444
        %v5532 = vpack.c.b16 %v5448, %v5445
        %v5533 = vpack.c.b16 %v5449, %v5446
        %v5534 = vpack.c.b16 %v5453, %v5450
        %v5535 = vpack.c.b16 %v5454, %v5451
        %v5536 = vpack.c.b16 %v5455, %v5452
        %v5537 = vpack.c.b16 %v5459, %v5456
        %v5538 = vpack.c.b16 %v5460, %v5457
        %v5539 = vpack.c.b16 %v5461, %v5458
        %v5540 = vpack.c.b16 %v5465, %v5462
        %v5541 = vpack.c.b16 %v5466, %v5463
        %v5542 = vpack.c.b16 %v5467, %v5464
        %v5543 = vpack.c.b16 %v5471, %v5468
        %v5544 = vpack.c.b16 %v5472, %v5469
        %v5545 = vpack.c.b16 %v5473, %v5470
        %v5546 = vpack.c.b16 %v5477, %v5474
        %v5547 = vpack.c.b16 %v5478, %v5475
        %v5548 = vpack.c.b16 %v5479, %v5476
        %v5549 = vpack.c.b16 %v5483, %v5480
        %v5550 = vpack.c.b16 %v5484, %v5481
        %v5551 = vpack.c.b16 %v5485, %v5482
        %v5552 = vpack.c.b16 %v5489, %v5486
        %v5553 = vpack.c.b16 %v5490, %v5487
        %v5554 = vpack.c.b16 %v5491, %v5488
        %v5555 = vpack.c.b16 %v5495, %v5492
        %v5556 = vpack.c.b16 %v5496, %v5493
        %v5557 = vpack.c.b16 %v5497, %v5494
        %v5558 = vpack.c.b16 %v5501, %v5498
        %v5559 = vpack.c.b16 %v5502, %v5499
        %v5560 = vpack.c.b16 %v5503, %v5500
        %v5561 = vpack.c.b16 %v5507, %v5504
        %v5562 = vpack.c.b16 %v5508, %v5505
        %v5563 = vpack.c.b16 %v5509, %v5506
        %v5564 = vpack.c.b16 %v5513, %v5510
        %v5565 = vpack.c.b16 %v5514, %v5511
        %v5566 = vpack.c.b16 %v5515, %v5512
        %v5567 = vpack.c.b16 %v5519, %v5516
        %v5568 = vpack.c.b16 %v5520, %v5517
        %v5569 = vpack.c.b16 %v5521, %v5518
        %v5666 = vunpack.c.l.b16 %v5314
        %v5667 = vunpack.c.l.b16 %v5315
        %v5668 = vunpack.c.l.b16 %v5316
        %v5669 = vunpack.c.l.b16 %v5317
        %v5670 = vunpack.c.l.b16 %v5318
        %v5671 = vunpack.c.l.b16 %v5319
        %v5672 = vunpack.c.l.b16 %v5320
        %v5673 = vunpack.c.l.b16 %v5321
        %v5674 = vunpack.c.l.b16 %v5322
        %v5675 = vunpack.c.l.b16 %v5323
        %v5676 = vunpack.c.l.b16 %v5324
        %v5677 = vunpack.c.l.b16 %v5325
        %v5678 = vunpack.c.l.b16 %v5326
        %v5679 = vunpack.c.l.b16 %v5327
        %v5680 = vunpack.c.l.b16 %v5328
        %v5681 = vunpack.c.l.b16 %v5329
        %v5682 = vunpack.c.l.b16 %v5330
        %v5683 = vunpack.c.l.b16 %v5331
        %v5684 = vunpack.c.l.b16 %v5332
        %v5685 = vunpack.c.l.b16 %v5333
        %v5686 = vunpack.c.l.b16 %v5334
        %v5687 = vunpack.c.l.b16 %v5335
        %v5688 = vunpack.c.l.b16 %v5336
        %v5689 = vunpack.c.l.b16 %v5337
        %v5690 = vunpack.c.l.b16 %v5338
        %v5691 = vunpack.c.l.b16 %v5339
        %v5692 = vunpack.c.l.b16 %v5340
        %v5693 = vunpack.c.l.b16 %v5341
        %v5694 = vunpack.c.l.b16 %v5342
        %v5695 = vunpack.c.l.b16 %v5343
        %v5696 = vunpack.c.l.b16 %v5344
        %v5697 = vunpack.c.l.b16 %v5345
        %v5698 = vunpack.c.l.b16 %v5346
        %v5699 = vunpack.c.l.b16 %v5347
        %v5700 = vunpack.c.l.b16 %v5348
        %v5701 = vunpack.c.l.b16 %v5349
        %v5702 = vunpack.c.l.b16 %v5350
        %v5703 = vunpack.c.l.b16 %v5351
        %v5704 = vunpack.c.l.b16 %v5352
        %v5705 = vunpack.c.l.b16 %v5353
        %v5706 = vunpack.c.l.b16 %v5354
        %v5707 = vunpack.c.l.b16 %v5355
        %v5708 = vunpack.c.l.b16 %v5356
        %v5709 = vunpack.c.l.b16 %v5357
        %v5710 = vunpack.c.l.b16 %v5358
        %v5711 = vunpack.c.l.b16 %v5359
        %v5712 = vunpack.c.l.b16 %v5360
        %v5713 = vunpack.c.l.b16 %v5361
        %v5714 = vpack.c.b16 %v5667, %v5666
        %v5715 = vpack.c.b16 %v5669, %v5668
        %v5716 = vpack.c.b16 %v5671, %v5670
        %v5717 = vpack.c.b16 %v5673, %v5672
        %v5718 = vpack.c.b16 %v5675, %v5674
        %v5719 = vpack.c.b16 %v5677, %v5676
        %v5720 = vpack.c.b16 %v5679, %v5678
        %v5721 = vpack.c.b16 %v5681, %v5680
        %v5722 = vpack.c.b16 %v5683, %v5682
        %v5723 = vpack.c.b16 %v5685, %v5684
        %v5724 = vpack.c.b16 %v5687, %v5686
        %v5725 = vpack.c.b16 %v5689, %v5688
        %v5726 = vpack.c.b16 %v5691, %v5690
        %v5727 = vpack.c.b16 %v5693, %v5692
        %v5728 = vpack.c.b16 %v5695, %v5694
        %v5729 = vpack.c.b16 %v5697, %v5696
        %v5730 = vpack.c.b16 %v5699, %v5698
        %v5731 = vpack.c.b16 %v5701, %v5700
        %v5732 = vpack.c.b16 %v5703, %v5702
        %v5733 = vpack.c.b16 %v5705, %v5704
        %v5734 = vpack.c.b16 %v5707, %v5706
        %v5735 = vpack.c.b16 %v5709, %v5708
        %v5736 = vpack.c.b16 %v5711, %v5710
        %v5737 = vpack.c.b16 %v5713, %v5712
        %5762 = vmatpush.bf16.msra.mxu0 %v5721
        %5763 = vmatpush.bf16.msra.mxu0 %v5720
        %5764 = vmatpush.bf16.msra.mxu0 %v5719
        %5765 = vmatpush.bf16.msra.mxu0 %v5718
        %5766 = vmatpush.bf16.msra.mxu0 %v5717
        %5767 = vmatpush.bf16.msra.mxu0 %v5716
        %5768 = vmatpush.bf16.msra.mxu0 %v5715
        %5769 = vmatpush.bf16.msra.mxu0 %v5714
        %5770 = vmatmul.bf16.gmra.mxu0 %v5522
        %v5771 = vpop.f32.mrf.mxu0
        %v5772 = vadd.f32 0.0, %v5771
        %v5773 = vpop.f32.mrf.mxu0
        %v5774 = vadd.f32 0.0, %v5773
        %5775 = vmatmul.bf16.gmra.mxu0 %v5525
        %v5776 = vpop.f32.mrf.mxu0
        %v5777 = vadd.f32 0.0, %v5776
        %v5778 = vpop.f32.mrf.mxu0
        %v5779 = vadd.f32 0.0, %v5778
        %5780 = vmatmul.bf16.gmra.mxu0 %v5528
        %v5781 = vpop.f32.mrf.mxu0
        %v5782 = vadd.f32 0.0, %v5781
        %v5783 = vpop.f32.mrf.mxu0
        %v5784 = vadd.f32 0.0, %v5783
        %5785 = vmatmul.bf16.gmra.mxu0 %v5531
        %v5786 = vpop.f32.mrf.mxu0
        %v5787 = vadd.f32 0.0, %v5786
        %v5788 = vpop.f32.mrf.mxu0
        %v5789 = vadd.f32 0.0, %v5788
        %5790 = vmatmul.bf16.gmra.mxu0 %v5534
        %v5791 = vpop.f32.mrf.mxu0
        %v5792 = vadd.f32 0.0, %v5791
        %v5793 = vpop.f32.mrf.mxu0
        %v5794 = vadd.f32 0.0, %v5793
        %5795 = vmatmul.bf16.gmra.mxu0 %v5537
        %v5796 = vpop.f32.mrf.mxu0
        %v5797 = vadd.f32 0.0, %v5796
        %v5798 = vpop.f32.mrf.mxu0
        %v5799 = vadd.f32 0.0, %v5798
        %5800 = vmatmul.bf16.gmra.mxu0 %v5540
        %v5801 = vpop.f32.mrf.mxu0
        %v5802 = vadd.f32 0.0, %v5801
        %v5803 = vpop.f32.mrf.mxu0
        %v5804 = vadd.f32 0.0, %v5803
        %5805 = vmatmul.bf16.gmra.mxu0 %v5543
        %v5806 = vpop.f32.mrf.mxu0
        %v5807 = vadd.f32 0.0, %v5806
        %v5808 = vpop.f32.mrf.mxu0
        %v5809 = vadd.f32 0.0, %v5808
        %5810 = vmatmul.bf16.gmra.mxu0 %v5546
        %v5811 = vpop.f32.mrf.mxu0
        %v5812 = vadd.f32 0.0, %v5811
        %v5813 = vpop.f32.mrf.mxu0
        %v5814 = vadd.f32 0.0, %v5813
        %5815 = vmatmul.bf16.gmra.mxu0 %v5549
        %v5816 = vpop.f32.mrf.mxu0
        %v5817 = vadd.f32 0.0, %v5816
        %v5818 = vpop.f32.mrf.mxu0
        %v5819 = vadd.f32 0.0, %v5818
        %5820 = vmatmul.bf16.gmra.mxu0 %v5552
        %v5821 = vpop.f32.mrf.mxu0
        %v5822 = vadd.f32 0.0, %v5821
        %v5823 = vpop.f32.mrf.mxu0
        %v5824 = vadd.f32 0.0, %v5823
        %5825 = vmatmul.bf16.gmra.mxu0 %v5555
        %v5826 = vpop.f32.mrf.mxu0
        %v5827 = vadd.f32 0.0, %v5826
        %v5828 = vpop.f32.mrf.mxu0
        %v5829 = vadd.f32 0.0, %v5828
        %5830 = vmatmul.bf16.gmra.mxu0 %v5558
        %v5831 = vpop.f32.mrf.mxu0
        %v5832 = vadd.f32 0.0, %v5831
        %v5833 = vpop.f32.mrf.mxu0
        %v5834 = vadd.f32 0.0, %v5833
        %5835 = vmatmul.bf16.gmra.mxu0 %v5561
        %v5836 = vpop.f32.mrf.mxu0
        %v5837 = vadd.f32 0.0, %v5836
        %v5838 = vpop.f32.mrf.mxu0
        %v5839 = vadd.f32 0.0, %v5838
        %5840 = vmatmul.bf16.gmra.mxu0 %v5564
        %v5841 = vpop.f32.mrf.mxu0
        %v5842 = vadd.f32 0.0, %v5841
        %v5843 = vpop.f32.mrf.mxu0
        %v5844 = vadd.f32 0.0, %v5843
        %5845 = vmatmul.bf16.gmra.mxu0 %v5567
        %v5846 = vpop.f32.mrf.mxu0
        %v5847 = vadd.f32 0.0, %v5846
        %v5848 = vpop.f32.mrf.mxu0
        %v5849 = vadd.f32 0.0, %v5848
        %5850 = vdwg.mxu0
        %5851 = vmatpush.bf16.msra.mxu0 %v5729
        %5852 = vmatpush.bf16.msra.mxu0 %v5728
        %5853 = vmatpush.bf16.msra.mxu0 %v5727
        %5854 = vmatpush.bf16.msra.mxu0 %v5726
        %5855 = vmatpush.bf16.msra.mxu0 %v5725
        %5856 = vmatpush.bf16.msra.mxu0 %v5724
        %5857 = vmatpush.bf16.msra.mxu0 %v5723
        %5858 = vmatpush.bf16.msra.mxu0 %v5722
        %5859 = vmatmul.bf16.gmra.mxu0 %v5523
        %v5860 = vpop.f32.mrf.mxu0
        %v5861 = vadd.f32 %v5772, %v5860
        %v5862 = vpop.f32.mrf.mxu0
        %v5863 = vadd.f32 %v5774, %v5862
        %5864 = vmatmul.bf16.gmra.mxu0 %v5526
        %v5865 = vpop.f32.mrf.mxu0
        %v5866 = vadd.f32 %v5777, %v5865
        %v5867 = vpop.f32.mrf.mxu0
        %v5868 = vadd.f32 %v5779, %v5867
        %5869 = vmatmul.bf16.gmra.mxu0 %v5529
        %v5870 = vpop.f32.mrf.mxu0
        %v5871 = vadd.f32 %v5782, %v5870
        %v5872 = vpop.f32.mrf.mxu0
        %v5873 = vadd.f32 %v5784, %v5872
        %5874 = vmatmul.bf16.gmra.mxu0 %v5532
        %v5875 = vpop.f32.mrf.mxu0
        %v5876 = vadd.f32 %v5787, %v5875
        %v5877 = vpop.f32.mrf.mxu0
        %v5878 = vadd.f32 %v5789, %v5877
        %5879 = vmatmul.bf16.gmra.mxu0 %v5535
        %v5880 = vpop.f32.mrf.mxu0
        %v5881 = vadd.f32 %v5792, %v5880
        %v5882 = vpop.f32.mrf.mxu0
        %v5883 = vadd.f32 %v5794, %v5882
        %5884 = vmatmul.bf16.gmra.mxu0 %v5538
        %v5885 = vpop.f32.mrf.mxu0
        %v5886 = vadd.f32 %v5797, %v5885
        %v5887 = vpop.f32.mrf.mxu0
        %v5888 = vadd.f32 %v5799, %v5887
        %5889 = vmatmul.bf16.gmra.mxu0 %v5541
        %v5890 = vpop.f32.mrf.mxu0
        %v5891 = vadd.f32 %v5802, %v5890
        %v5892 = vpop.f32.mrf.mxu0
        %v5893 = vadd.f32 %v5804, %v5892
        %5894 = vmatmul.bf16.gmra.mxu0 %v5544
        %v5895 = vpop.f32.mrf.mxu0
        %v5896 = vadd.f32 %v5807, %v5895
        %v5897 = vpop.f32.mrf.mxu0
        %v5898 = vadd.f32 %v5809, %v5897
        %5899 = vmatmul.bf16.gmra.mxu0 %v5547
        %v5900 = vpop.f32.mrf.mxu0
        %v5901 = vadd.f32 %v5812, %v5900
        %v5902 = vpop.f32.mrf.mxu0
        %v5903 = vadd.f32 %v5814, %v5902
        %5904 = vmatmul.bf16.gmra.mxu0 %v5550
        %v5905 = vpop.f32.mrf.mxu0
        %v5906 = vadd.f32 %v5817, %v5905
        %v5907 = vpop.f32.mrf.mxu0
        %v5908 = vadd.f32 %v5819, %v5907
        %5909 = vmatmul.bf16.gmra.mxu0 %v5553
        %v5910 = vpop.f32.mrf.mxu0
        %v5911 = vadd.f32 %v5822, %v5910
        %v5912 = vpop.f32.mrf.mxu0
        %v5913 = vadd.f32 %v5824, %v5912
        %5914 = vmatmul.bf16.gmra.mxu0 %v5556
        %v5915 = vpop.f32.mrf.mxu0
        %v5916 = vadd.f32 %v5827, %v5915
        %v5917 = vpop.f32.mrf.mxu0
        %v5918 = vadd.f32 %v5829, %v5917
        %5919 = vmatmul.bf16.gmra.mxu0 %v5559
        %v5920 = vpop.f32.mrf.mxu0
        %v5921 = vadd.f32 %v5832, %v5920
        %v5922 = vpop.f32.mrf.mxu0
        %v5923 = vadd.f32 %v5834, %v5922
        %5924 = vmatmul.bf16.gmra.mxu0 %v5562
        %v5925 = vpop.f32.mrf.mxu0
        %v5926 = vadd.f32 %v5837, %v5925
        %v5927 = vpop.f32.mrf.mxu0
        %v5928 = vadd.f32 %v5839, %v5927
        %5929 = vmatmul.bf16.gmra.mxu0 %v5565
        %v5930 = vpop.f32.mrf.mxu0
        %v5931 = vadd.f32 %v5842, %v5930
        %v5932 = vpop.f32.mrf.mxu0
        %v5933 = vadd.f32 %v5844, %v5932
        %5934 = vmatmul.bf16.gmra.mxu0 %v5568
        %v5935 = vpop.f32.mrf.mxu0
        %v5936 = vadd.f32 %v5847, %v5935
        %v5937 = vpop.f32.mrf.mxu0
        %v5938 = vadd.f32 %v5849, %v5937
        %5939 = vdwg.mxu0
        %5940 = vmatpush.bf16.msra.mxu0 %v5737
        %5941 = vmatpush.bf16.msra.mxu0 %v5736
        %5942 = vmatpush.bf16.msra.mxu0 %v5735
        %5943 = vmatpush.bf16.msra.mxu0 %v5734
        %5944 = vmatpush.bf16.msra.mxu0 %v5733
        %5945 = vmatpush.bf16.msra.mxu0 %v5732
        %5946 = vmatpush.bf16.msra.mxu0 %v5731
        %5947 = vmatpush.bf16.msra.mxu0 %v5730
        %5948 = vmatmul.bf16.gmra.mxu0 %v5524
        %v5949 = vpop.f32.mrf.mxu0
        %v5950 = vadd.f32 %v5861, %v5949
        %v5951 = vpop.f32.mrf.mxu0
        %v5952 = vadd.f32 %v5863, %v5951
        %5953 = vmatmul.bf16.gmra.mxu0 %v5527
        %v5954 = vpop.f32.mrf.mxu0
        %v5955 = vadd.f32 %v5866, %v5954
        %v5956 = vpop.f32.mrf.mxu0
        %v5957 = vadd.f32 %v5868, %v5956
        %5958 = vmatmul.bf16.gmra.mxu0 %v5530
        %v5959 = vpop.f32.mrf.mxu0
        %v5960 = vadd.f32 %v5871, %v5959
        %v5961 = vpop.f32.mrf.mxu0
        %v5962 = vadd.f32 %v5873, %v5961
        %5963 = vmatmul.bf16.gmra.mxu0 %v5533
        %v5964 = vpop.f32.mrf.mxu0
        %v5965 = vadd.f32 %v5876, %v5964
        %v5966 = vpop.f32.mrf.mxu0
        %v5967 = vadd.f32 %v5878, %v5966
        %5968 = vmatmul.bf16.gmra.mxu0 %v5536
        %v5969 = vpop.f32.mrf.mxu0
        %v5970 = vadd.f32 %v5881, %v5969
        %v5971 = vpop.f32.mrf.mxu0
        %v5972 = vadd.f32 %v5883, %v5971
        %5973 = vmatmul.bf16.gmra.mxu0 %v5539
        %v5974 = vpop.f32.mrf.mxu0
        %v5975 = vadd.f32 %v5886, %v5974
        %v5976 = vpop.f32.mrf.mxu0
        %v5977 = vadd.f32 %v5888, %v5976
        %5978 = vmatmul.bf16.gmra.mxu0 %v5542
        %v5979 = vpop.f32.mrf.mxu0
        %v5980 = vadd.f32 %v5891, %v5979
        %v5981 = vpop.f32.mrf.mxu0
        %v5982 = vadd.f32 %v5893, %v5981
        %5983 = vmatmul.bf16.gmra.mxu0 %v5545
        %v5984 = vpop.f32.mrf.mxu0
        %v5985 = vadd.f32 %v5896, %v5984
        %v5986 = vpop.f32.mrf.mxu0
        %v5987 = vadd.f32 %v5898, %v5986
        %5988 = vmatmul.bf16.gmra.mxu0 %v5548
        %v5989 = vpop.f32.mrf.mxu0
        %v5990 = vadd.f32 %v5901, %v5989
        %v5991 = vpop.f32.mrf.mxu0
        %v5992 = vadd.f32 %v5903, %v5991
        %5993 = vmatmul.bf16.gmra.mxu0 %v5551
        %v5994 = vpop.f32.mrf.mxu0
        %v5995 = vadd.f32 %v5906, %v5994
        %v5996 = vpop.f32.mrf.mxu0
        %v5997 = vadd.f32 %v5908, %v5996
        %5998 = vmatmul.bf16.gmra.mxu0 %v5554
        %v5999 = vpop.f32.mrf.mxu0
        %v6000 = vadd.f32 %v5911, %v5999
        %v6001 = vpop.f32.mrf.mxu0
        %v6002 = vadd.f32 %v5913, %v6001
        %6003 = vmatmul.bf16.gmra.mxu0 %v5557
        %v6004 = vpop.f32.mrf.mxu0
        %v6005 = vadd.f32 %v5916, %v6004
        %v6006 = vpop.f32.mrf.mxu0
        %v6007 = vadd.f32 %v5918, %v6006
        %6008 = vmatmul.bf16.gmra.mxu0 %v5560
        %v6009 = vpop.f32.mrf.mxu0
        %v6010 = vadd.f32 %v5921, %v6009
        %v6011 = vpop.f32.mrf.mxu0
        %v6012 = vadd.f32 %v5923, %v6011
        %6013 = vmatmul.bf16.gmra.mxu0 %v5563
        %v6014 = vpop.f32.mrf.mxu0
        %v6015 = vadd.f32 %v5926, %v6014
        %v6016 = vpop.f32.mrf.mxu0
        %v6017 = vadd.f32 %v5928, %v6016
        %6018 = vmatmul.bf16.gmra.mxu0 %v5566
        %v6019 = vpop.f32.mrf.mxu0
        %v6020 = vadd.f32 %v5931, %v6019
        %v6021 = vpop.f32.mrf.mxu0
        %v6022 = vadd.f32 %v5933, %v6021
        %6023 = vmatmul.bf16.gmra.mxu0 %v5569
        %v6024 = vpop.f32.mrf.mxu0
        %v6025 = vadd.f32 %v5936, %v6024
        %v6026 = vpop.f32.mrf.mxu0
        %v6027 = vadd.f32 %v5938, %v6026
        %6028 = vdwg.mxu0
        %v6093 = vunpack.c.l.b16 %v5137
        %v6094 = vunpack.c.h.b16 %v5137
        %v6095 = vunpack.c.l.b16 %v5138
        %v6096 = vunpack.c.l.b16 %v5139
        %v6097 = vunpack.c.h.b16 %v5139
        %v6098 = vunpack.c.l.b16 %v5140
        %v6099 = vunpack.c.l.b16 %v5141
        %v6100 = vunpack.c.h.b16 %v5141
        %v6101 = vunpack.c.l.b16 %v5142
        %v6102 = vunpack.c.l.b16 %v5143
        %v6103 = vunpack.c.h.b16 %v5143
        %v6104 = vunpack.c.l.b16 %v5144
        %v6105 = vunpack.c.l.b16 %v5145
        %v6106 = vunpack.c.h.b16 %v5145
        %v6107 = vunpack.c.l.b16 %v5146
        %v6108 = vunpack.c.l.b16 %v5147
        %v6109 = vunpack.c.h.b16 %v5147
        %v6110 = vunpack.c.l.b16 %v5148
        %v6111 = vunpack.c.l.b16 %v5149
        %v6112 = vunpack.c.h.b16 %v5149
        %v6113 = vunpack.c.l.b16 %v5150
        %v6114 = vunpack.c.l.b16 %v5151
        %v6115 = vunpack.c.h.b16 %v5151
        %v6116 = vunpack.c.l.b16 %v5152
        %v6117 = vunpack.c.l.b16 %v5153
        %v6118 = vunpack.c.h.b16 %v5153
        %v6119 = vunpack.c.l.b16 %v5154
        %v6120 = vunpack.c.l.b16 %v5155
        %v6121 = vunpack.c.h.b16 %v5155
        %v6122 = vunpack.c.l.b16 %v5156
        %v6123 = vunpack.c.l.b16 %v5157
        %v6124 = vunpack.c.h.b16 %v5157
        %v6125 = vunpack.c.l.b16 %v5158
        %v6126 = vunpack.c.l.b16 %v5159
        %v6127 = vunpack.c.h.b16 %v5159
        %v6128 = vunpack.c.l.b16 %v5160
        %v6129 = vunpack.c.l.b16 %v5161
        %v6130 = vunpack.c.h.b16 %v5161
        %v6131 = vunpack.c.l.b16 %v5162
        %v6132 = vunpack.c.l.b16 %v5163
        %v6133 = vunpack.c.h.b16 %v5163
        %v6134 = vunpack.c.l.b16 %v5164
        %v6135 = vunpack.c.l.b16 %v5165
        %v6136 = vunpack.c.h.b16 %v5165
        %v6137 = vunpack.c.l.b16 %v5166
        %v6138 = vunpack.c.l.b16 %v5167
        %v6139 = vunpack.c.h.b16 %v5167
        %v6140 = vunpack.c.l.b16 %v5168
        %v6141 = vunpack.c.l.b16 %v5169
        %v6142 = vunpack.c.h.b16 %v5169
        %v6143 = vunpack.c.l.b16 %v5170
        %v6144 = vunpack.c.l.b16 %v5171
        %v6145 = vunpack.c.h.b16 %v5171
        %v6146 = vunpack.c.l.b16 %v5172
        %v6147 = vunpack.c.l.b16 %v5173
        %v6148 = vunpack.c.h.b16 %v5173
        %v6149 = vunpack.c.l.b16 %v5174
        %v6150 = vunpack.c.l.b16 %v5175
        %v6151 = vunpack.c.h.b16 %v5175
        %v6152 = vunpack.c.l.b16 %v5176
        %v6153 = vunpack.c.l.b16 %v5177
        %v6154 = vunpack.c.h.b16 %v5177
        %v6155 = vunpack.c.l.b16 %v5178
        %v6156 = vunpack.c.l.b16 %v5179
        %v6157 = vunpack.c.h.b16 %v5179
        %v6158 = vunpack.c.l.b16 %v5180
        %v6159 = vunpack.c.l.b16 %v5181
        %v6160 = vunpack.c.h.b16 %v5181
        %v6161 = vunpack.c.l.b16 %v5182
        %v6162 = vunpack.c.l.b16 %v5183
        %v6163 = vunpack.c.h.b16 %v5183
        %v6164 = vunpack.c.l.b16 %v5184
        %v6165 = vunpack.c.l.b16 %v5185
        %v6166 = vunpack.c.h.b16 %v5185
        %v6167 = vunpack.c.l.b16 %v5186
        %v6168 = vunpack.c.l.b16 %v5187
        %v6169 = vunpack.c.h.b16 %v5187
        %v6170 = vunpack.c.l.b16 %v5188
        %v6171 = vunpack.c.l.b16 %v5189
        %v6172 = vunpack.c.h.b16 %v5189
        %v6173 = vunpack.c.l.b16 %v5190
        %v6174 = vunpack.c.l.b16 %v5191
        %v6175 = vunpack.c.h.b16 %v5191
        %v6176 = vunpack.c.l.b16 %v5192
        %v6177 = vunpack.c.l.b16 %v5193
        %v6178 = vunpack.c.h.b16 %v5193
        %v6179 = vunpack.c.l.b16 %v5194
        %v6180 = vunpack.c.l.b16 %v5195
        %v6181 = vunpack.c.h.b16 %v5195
        %v6182 = vunpack.c.l.b16 %v5196
        %v6183 = vunpack.c.l.b16 %v5197
        %v6184 = vunpack.c.h.b16 %v5197
        %v6185 = vunpack.c.l.b16 %v5198
        %v6186 = vunpack.c.l.b16 %v5199
        %v6187 = vunpack.c.h.b16 %v5199
        %v6188 = vunpack.c.l.b16 %v5200
        %v6189 = vpack.c.b16 %v6096, %v6093
        %v6190 = vpack.c.b16 %v6097, %v6094
        %v6191 = vpack.c.b16 %v6098, %v6095
        %v6192 = vpack.c.b16 %v6102, %v6099
        %v6193 = vpack.c.b16 %v6103, %v6100
        %v6194 = vpack.c.b16 %v6104, %v6101
        %v6195 = vpack.c.b16 %v6108, %v6105
        %v6196 = vpack.c.b16 %v6109, %v6106
        %v6197 = vpack.c.b16 %v6110, %v6107
        %v6198 = vpack.c.b16 %v6114, %v6111
        %v6199 = vpack.c.b16 %v6115, %v6112
        %v6200 = vpack.c.b16 %v6116, %v6113
        %v6201 = vpack.c.b16 %v6120, %v6117
        %v6202 = vpack.c.b16 %v6121, %v6118
        %v6203 = vpack.c.b16 %v6122, %v6119
        %v6204 = vpack.c.b16 %v6126, %v6123
        %v6205 = vpack.c.b16 %v6127, %v6124
        %v6206 = vpack.c.b16 %v6128, %v6125
        %v6207 = vpack.c.b16 %v6132, %v6129
        %v6208 = vpack.c.b16 %v6133, %v6130
        %v6209 = vpack.c.b16 %v6134, %v6131
        %v6210 = vpack.c.b16 %v6138, %v6135
        %v6211 = vpack.c.b16 %v6139, %v6136
        %v6212 = vpack.c.b16 %v6140, %v6137
        %v6213 = vpack.c.b16 %v6144, %v6141
        %v6214 = vpack.c.b16 %v6145, %v6142
        %v6215 = vpack.c.b16 %v6146, %v6143
        %v6216 = vpack.c.b16 %v6150, %v6147
        %v6217 = vpack.c.b16 %v6151, %v6148
        %v6218 = vpack.c.b16 %v6152, %v6149
        %v6219 = vpack.c.b16 %v6156, %v6153
        %v6220 = vpack.c.b16 %v6157, %v6154
        %v6221 = vpack.c.b16 %v6158, %v6155
        %v6222 = vpack.c.b16 %v6162, %v6159
        %v6223 = vpack.c.b16 %v6163, %v6160
        %v6224 = vpack.c.b16 %v6164, %v6161
        %v6225 = vpack.c.b16 %v6168, %v6165
        %v6226 = vpack.c.b16 %v6169, %v6166
        %v6227 = vpack.c.b16 %v6170, %v6167
        %v6228 = vpack.c.b16 %v6174, %v6171
        %v6229 = vpack.c.b16 %v6175, %v6172
        %v6230 = vpack.c.b16 %v6176, %v6173
        %v6231 = vpack.c.b16 %v6180, %v6177
        %v6232 = vpack.c.b16 %v6181, %v6178
        %v6233 = vpack.c.b16 %v6182, %v6179
        %v6234 = vpack.c.b16 %v6186, %v6183
        %v6235 = vpack.c.b16 %v6187, %v6184
        %v6236 = vpack.c.b16 %v6188, %v6185
        %v6333 = vunpack.c.l.b16 %v5201
        %v6334 = vunpack.c.l.b16 %v5202
        %v6335 = vunpack.c.l.b16 %v5203
        %v6336 = vunpack.c.l.b16 %v5204
        %v6337 = vunpack.c.l.b16 %v5205
        %v6338 = vunpack.c.l.b16 %v5206
        %v6339 = vunpack.c.l.b16 %v5207
        %v6340 = vunpack.c.l.b16 %v5208
        %v6341 = vunpack.c.l.b16 %v5209
        %v6342 = vunpack.c.l.b16 %v5210
        %v6343 = vunpack.c.l.b16 %v5211
        %v6344 = vunpack.c.l.b16 %v5212
        %v6345 = vunpack.c.l.b16 %v5213
        %v6346 = vunpack.c.l.b16 %v5214
        %v6347 = vunpack.c.l.b16 %v5215
        %v6348 = vunpack.c.l.b16 %v5216
        %v6349 = vunpack.c.l.b16 %v5217
        %v6350 = vunpack.c.l.b16 %v5218
        %v6351 = vunpack.c.l.b16 %v5219
        %v6352 = vunpack.c.l.b16 %v5220
        %v6353 = vunpack.c.l.b16 %v5221
        %v6354 = vunpack.c.l.b16 %v5222
        %v6355 = vunpack.c.l.b16 %v5223
        %v6356 = vunpack.c.l.b16 %v5224
        %v6357 = vunpack.c.l.b16 %v5225
        %v6358 = vunpack.c.l.b16 %v5226
        %v6359 = vunpack.c.l.b16 %v5227
        %v6360 = vunpack.c.l.b16 %v5228
        %v6361 = vunpack.c.l.b16 %v5229
        %v6362 = vunpack.c.l.b16 %v5230
        %v6363 = vunpack.c.l.b16 %v5231
        %v6364 = vunpack.c.l.b16 %v5232
        %v6365 = vunpack.c.l.b16 %v5233
        %v6366 = vunpack.c.l.b16 %v5234
        %v6367 = vunpack.c.l.b16 %v5235
        %v6368 = vunpack.c.l.b16 %v5236
        %v6369 = vunpack.c.l.b16 %v5237
        %v6370 = vunpack.c.l.b16 %v5238
        %v6371 = vunpack.c.l.b16 %v5239
        %v6372 = vunpack.c.l.b16 %v5240
        %v6373 = vunpack.c.l.b16 %v5241
        %v6374 = vunpack.c.l.b16 %v5242
        %v6375 = vunpack.c.l.b16 %v5243
        %v6376 = vunpack.c.l.b16 %v5244
        %v6377 = vunpack.c.l.b16 %v5245
        %v6378 = vunpack.c.l.b16 %v5246
        %v6379 = vunpack.c.l.b16 %v5247
        %v6380 = vunpack.c.l.b16 %v5248
        %v6381 = vpack.c.b16 %v6334, %v6333
        %v6382 = vpack.c.b16 %v6336, %v6335
        %v6383 = vpack.c.b16 %v6338, %v6337
        %v6384 = vpack.c.b16 %v6340, %v6339
        %v6385 = vpack.c.b16 %v6342, %v6341
        %v6386 = vpack.c.b16 %v6344, %v6343
        %v6387 = vpack.c.b16 %v6346, %v6345
        %v6388 = vpack.c.b16 %v6348, %v6347
        %v6389 = vpack.c.b16 %v6350, %v6349
        %v6390 = vpack.c.b16 %v6352, %v6351
        %v6391 = vpack.c.b16 %v6354, %v6353
        %v6392 = vpack.c.b16 %v6356, %v6355
        %v6393 = vpack.c.b16 %v6358, %v6357
        %v6394 = vpack.c.b16 %v6360, %v6359
        %v6395 = vpack.c.b16 %v6362, %v6361
        %v6396 = vpack.c.b16 %v6364, %v6363
        %v6397 = vpack.c.b16 %v6366, %v6365
        %v6398 = vpack.c.b16 %v6368, %v6367
        %v6399 = vpack.c.b16 %v6370, %v6369
        %v6400 = vpack.c.b16 %v6372, %v6371
        %v6401 = vpack.c.b16 %v6374, %v6373
        %v6402 = vpack.c.b16 %v6376, %v6375
        %v6403 = vpack.c.b16 %v6378, %v6377
        %v6404 = vpack.c.b16 %v6380, %v6379
        %6429 = vmatpush.bf16.msra.mxu0 %v6388
        %6430 = vmatpush.bf16.msra.mxu0 %v6387
        %6431 = vmatpush.bf16.msra.mxu0 %v6386
        %6432 = vmatpush.bf16.msra.mxu0 %v6385
        %6433 = vmatpush.bf16.msra.mxu0 %v6384
        %6434 = vmatpush.bf16.msra.mxu0 %v6383
        %6435 = vmatpush.bf16.msra.mxu0 %v6382
        %6436 = vmatpush.bf16.msra.mxu0 %v6381
        %6437 = vmatmul.bf16.gmra.mxu0 %v6189
        %v6438 = vpop.f32.mrf.mxu0
        %v6439 = vadd.f32 %v5950, %v6438
        %v6440 = vpop.f32.mrf.mxu0
        %v6441 = vadd.f32 %v5952, %v6440
        %6442 = vmatmul.bf16.gmra.mxu0 %v6192
        %v6443 = vpop.f32.mrf.mxu0
        %v6444 = vadd.f32 %v5955, %v6443
        %v6445 = vpop.f32.mrf.mxu0
        %v6446 = vadd.f32 %v5957, %v6445
        %6447 = vmatmul.bf16.gmra.mxu0 %v6195
        %v6448 = vpop.f32.mrf.mxu0
        %v6449 = vadd.f32 %v5960, %v6448
        %v6450 = vpop.f32.mrf.mxu0
        %v6451 = vadd.f32 %v5962, %v6450
        %6452 = vmatmul.bf16.gmra.mxu0 %v6198
        %v6453 = vpop.f32.mrf.mxu0
        %v6454 = vadd.f32 %v5965, %v6453
        %v6455 = vpop.f32.mrf.mxu0
        %v6456 = vadd.f32 %v5967, %v6455
        %6457 = vmatmul.bf16.gmra.mxu0 %v6201
        %v6458 = vpop.f32.mrf.mxu0
        %v6459 = vadd.f32 %v5970, %v6458
        %v6460 = vpop.f32.mrf.mxu0
        %v6461 = vadd.f32 %v5972, %v6460
        %6462 = vmatmul.bf16.gmra.mxu0 %v6204
        %v6463 = vpop.f32.mrf.mxu0
        %v6464 = vadd.f32 %v5975, %v6463
        %v6465 = vpop.f32.mrf.mxu0
        %v6466 = vadd.f32 %v5977, %v6465
        %6467 = vmatmul.bf16.gmra.mxu0 %v6207
        %v6468 = vpop.f32.mrf.mxu0
        %v6469 = vadd.f32 %v5980, %v6468
        %v6470 = vpop.f32.mrf.mxu0
        %v6471 = vadd.f32 %v5982, %v6470
        %6472 = vmatmul.bf16.gmra.mxu0 %v6210
        %v6473 = vpop.f32.mrf.mxu0
        %v6474 = vadd.f32 %v5985, %v6473
        %v6475 = vpop.f32.mrf.mxu0
        %v6476 = vadd.f32 %v5987, %v6475
        %6477 = vmatmul.bf16.gmra.mxu0 %v6213
        %v6478 = vpop.f32.mrf.mxu0
        %v6479 = vadd.f32 %v5990, %v6478
        %v6480 = vpop.f32.mrf.mxu0
        %v6481 = vadd.f32 %v5992, %v6480
        %6482 = vmatmul.bf16.gmra.mxu0 %v6216
        %v6483 = vpop.f32.mrf.mxu0
        %v6484 = vadd.f32 %v5995, %v6483
        %v6485 = vpop.f32.mrf.mxu0
        %v6486 = vadd.f32 %v5997, %v6485
        %6487 = vmatmul.bf16.gmra.mxu0 %v6219
        %v6488 = vpop.f32.mrf.mxu0
        %v6489 = vadd.f32 %v6000, %v6488
        %v6490 = vpop.f32.mrf.mxu0
        %v6491 = vadd.f32 %v6002, %v6490
        %6492 = vmatmul.bf16.gmra.mxu0 %v6222
        %v6493 = vpop.f32.mrf.mxu0
        %v6494 = vadd.f32 %v6005, %v6493
        %v6495 = vpop.f32.mrf.mxu0
        %v6496 = vadd.f32 %v6007, %v6495
        %6497 = vmatmul.bf16.gmra.mxu0 %v6225
        %v6498 = vpop.f32.mrf.mxu0
        %v6499 = vadd.f32 %v6010, %v6498
        %v6500 = vpop.f32.mrf.mxu0
        %v6501 = vadd.f32 %v6012, %v6500
        %6502 = vmatmul.bf16.gmra.mxu0 %v6228
        %v6503 = vpop.f32.mrf.mxu0
        %v6504 = vadd.f32 %v6015, %v6503
        %v6505 = vpop.f32.mrf.mxu0
        %v6506 = vadd.f32 %v6017, %v6505
        %6507 = vmatmul.bf16.gmra.mxu0 %v6231
        %v6508 = vpop.f32.mrf.mxu0
        %v6509 = vadd.f32 %v6020, %v6508
        %v6510 = vpop.f32.mrf.mxu0
        %v6511 = vadd.f32 %v6022, %v6510
        %6512 = vmatmul.bf16.gmra.mxu0 %v6234
        %v6513 = vpop.f32.mrf.mxu0
        %v6514 = vadd.f32 %v6025, %v6513
        %v6515 = vpop.f32.mrf.mxu0
        %v6516 = vadd.f32 %v6027, %v6515
        %6517 = vdwg.mxu0
        %6518 = vmatpush.bf16.msra.mxu0 %v6396
        %6519 = vmatpush.bf16.msra.mxu0 %v6395
        %6520 = vmatpush.bf16.msra.mxu0 %v6394
        %6521 = vmatpush.bf16.msra.mxu0 %v6393
        %6522 = vmatpush.bf16.msra.mxu0 %v6392
        %6523 = vmatpush.bf16.msra.mxu0 %v6391
        %6524 = vmatpush.bf16.msra.mxu0 %v6390
        %6525 = vmatpush.bf16.msra.mxu0 %v6389
        %6526 = vmatmul.bf16.gmra.mxu0 %v6190
        %v6527 = vpop.f32.mrf.mxu0
        %v6528 = vadd.f32 %v6439, %v6527
        %v6529 = vpop.f32.mrf.mxu0
        %v6530 = vadd.f32 %v6441, %v6529
        %6531 = vmatmul.bf16.gmra.mxu0 %v6193
        %v6532 = vpop.f32.mrf.mxu0
        %v6533 = vadd.f32 %v6444, %v6532
        %v6534 = vpop.f32.mrf.mxu0
        %v6535 = vadd.f32 %v6446, %v6534
        %6536 = vmatmul.bf16.gmra.mxu0 %v6196
        %v6537 = vpop.f32.mrf.mxu0
        %v6538 = vadd.f32 %v6449, %v6537
        %v6539 = vpop.f32.mrf.mxu0
        %v6540 = vadd.f32 %v6451, %v6539
        %6541 = vmatmul.bf16.gmra.mxu0 %v6199
        %v6542 = vpop.f32.mrf.mxu0
        %v6543 = vadd.f32 %v6454, %v6542
        %v6544 = vpop.f32.mrf.mxu0
        %v6545 = vadd.f32 %v6456, %v6544
        %6546 = vmatmul.bf16.gmra.mxu0 %v6202
        %v6547 = vpop.f32.mrf.mxu0
        %v6548 = vadd.f32 %v6459, %v6547
        %v6549 = vpop.f32.mrf.mxu0
        %v6550 = vadd.f32 %v6461, %v6549
        %6551 = vmatmul.bf16.gmra.mxu0 %v6205
        %v6552 = vpop.f32.mrf.mxu0
        %v6553 = vadd.f32 %v6464, %v6552
        %v6554 = vpop.f32.mrf.mxu0
        %v6555 = vadd.f32 %v6466, %v6554
        %6556 = vmatmul.bf16.gmra.mxu0 %v6208
        %v6557 = vpop.f32.mrf.mxu0
        %v6558 = vadd.f32 %v6469, %v6557
        %v6559 = vpop.f32.mrf.mxu0
        %v6560 = vadd.f32 %v6471, %v6559
        %6561 = vmatmul.bf16.gmra.mxu0 %v6211
        %v6562 = vpop.f32.mrf.mxu0
        %v6563 = vadd.f32 %v6474, %v6562
        %v6564 = vpop.f32.mrf.mxu0
        %v6565 = vadd.f32 %v6476, %v6564
        %6566 = vmatmul.bf16.gmra.mxu0 %v6214
        %v6567 = vpop.f32.mrf.mxu0
        %v6568 = vadd.f32 %v6479, %v6567
        %v6569 = vpop.f32.mrf.mxu0
        %v6570 = vadd.f32 %v6481, %v6569
        %6571 = vmatmul.bf16.gmra.mxu0 %v6217
        %v6572 = vpop.f32.mrf.mxu0
        %v6573 = vadd.f32 %v6484, %v6572
        %v6574 = vpop.f32.mrf.mxu0
        %v6575 = vadd.f32 %v6486, %v6574
        %6576 = vmatmul.bf16.gmra.mxu0 %v6220
        %v6577 = vpop.f32.mrf.mxu0
        %v6578 = vadd.f32 %v6489, %v6577
        %v6579 = vpop.f32.mrf.mxu0
        %v6580 = vadd.f32 %v6491, %v6579
        %6581 = vmatmul.bf16.gmra.mxu0 %v6223
        %v6582 = vpop.f32.mrf.mxu0
        %v6583 = vadd.f32 %v6494, %v6582
        %v6584 = vpop.f32.mrf.mxu0
        %v6585 = vadd.f32 %v6496, %v6584
        %6586 = vmatmul.bf16.gmra.mxu0 %v6226
        %v6587 = vpop.f32.mrf.mxu0
        %v6588 = vadd.f32 %v6499, %v6587
        %v6589 = vpop.f32.mrf.mxu0
        %v6590 = vadd.f32 %v6501, %v6589
        %6591 = vmatmul.bf16.gmra.mxu0 %v6229
        %v6592 = vpop.f32.mrf.mxu0
        %v6593 = vadd.f32 %v6504, %v6592
        %v6594 = vpop.f32.mrf.mxu0
        %v6595 = vadd.f32 %v6506, %v6594
        %6596 = vmatmul.bf16.gmra.mxu0 %v6232
        %v6597 = vpop.f32.mrf.mxu0
        %v6598 = vadd.f32 %v6509, %v6597
        %v6599 = vpop.f32.mrf.mxu0
        %v6600 = vadd.f32 %v6511, %v6599
        %6601 = vmatmul.bf16.gmra.mxu0 %v6235
        %v6602 = vpop.f32.mrf.mxu0
        %v6603 = vadd.f32 %v6514, %v6602
        %v6604 = vpop.f32.mrf.mxu0
        %v6605 = vadd.f32 %v6516, %v6604
        %6606 = vdwg.mxu0
        %6607 = vmatpush.bf16.msra.mxu0 %v6404
        %6608 = vmatpush.bf16.msra.mxu0 %v6403
        %6609 = vmatpush.bf16.msra.mxu0 %v6402
        %6610 = vmatpush.bf16.msra.mxu0 %v6401
        %6611 = vmatpush.bf16.msra.mxu0 %v6400
        %6612 = vmatpush.bf16.msra.mxu0 %v6399
        %6613 = vmatpush.bf16.msra.mxu0 %v6398
        %6614 = vmatpush.bf16.msra.mxu0 %v6397
        %6615 = vmatmul.bf16.gmra.mxu0 %v6191
        %v6616 = vpop.f32.mrf.mxu0
        %v6617 = vadd.f32 %v6528, %v6616
        %v6618 = vpop.f32.mrf.mxu0
        %v6619 = vadd.f32 %v6530, %v6618
        %6620 = vmatmul.bf16.gmra.mxu0 %v6194
        %v6621 = vpop.f32.mrf.mxu0
        %v6622 = vadd.f32 %v6533, %v6621
        %v6623 = vpop.f32.mrf.mxu0
        %v6624 = vadd.f32 %v6535, %v6623
        %6625 = vmatmul.bf16.gmra.mxu0 %v6197
        %v6626 = vpop.f32.mrf.mxu0
        %v6627 = vadd.f32 %v6538, %v6626
        %v6628 = vpop.f32.mrf.mxu0
        %v6629 = vadd.f32 %v6540, %v6628
        %6630 = vmatmul.bf16.gmra.mxu0 %v6200
        %v6631 = vpop.f32.mrf.mxu0
        %v6632 = vadd.f32 %v6543, %v6631
        %v6633 = vpop.f32.mrf.mxu0
        %v6634 = vadd.f32 %v6545, %v6633
        %6635 = vmatmul.bf16.gmra.mxu0 %v6203
        %v6636 = vpop.f32.mrf.mxu0
        %v6637 = vadd.f32 %v6548, %v6636
        %v6638 = vpop.f32.mrf.mxu0
        %v6639 = vadd.f32 %v6550, %v6638
        %6640 = vmatmul.bf16.gmra.mxu0 %v6206
        %v6641 = vpop.f32.mrf.mxu0
        %v6642 = vadd.f32 %v6553, %v6641
        %v6643 = vpop.f32.mrf.mxu0
        %v6644 = vadd.f32 %v6555, %v6643
        %6645 = vmatmul.bf16.gmra.mxu0 %v6209
        %v6646 = vpop.f32.mrf.mxu0
        %v6647 = vadd.f32 %v6558, %v6646
        %v6648 = vpop.f32.mrf.mxu0
        %v6649 = vadd.f32 %v6560, %v6648
        %6650 = vmatmul.bf16.gmra.mxu0 %v6212
        %v6651 = vpop.f32.mrf.mxu0
        %v6652 = vadd.f32 %v6563, %v6651
        %v6653 = vpop.f32.mrf.mxu0
        %v6654 = vadd.f32 %v6565, %v6653
        %6655 = vmatmul.bf16.gmra.mxu0 %v6215
        %v6656 = vpop.f32.mrf.mxu0
        %v6657 = vadd.f32 %v6568, %v6656
        %v6658 = vpop.f32.mrf.mxu0
        %v6659 = vadd.f32 %v6570, %v6658
        %6660 = vmatmul.bf16.gmra.mxu0 %v6218
        %v6661 = vpop.f32.mrf.mxu0
        %v6662 = vadd.f32 %v6573, %v6661
        %v6663 = vpop.f32.mrf.mxu0
        %v6664 = vadd.f32 %v6575, %v6663
        %6665 = vmatmul.bf16.gmra.mxu0 %v6221
        %v6666 = vpop.f32.mrf.mxu0
        %v6667 = vadd.f32 %v6578, %v6666
        %v6668 = vpop.f32.mrf.mxu0
        %v6669 = vadd.f32 %v6580, %v6668
        %6670 = vmatmul.bf16.gmra.mxu0 %v6224
        %v6671 = vpop.f32.mrf.mxu0
        %v6672 = vadd.f32 %v6583, %v6671
        %v6673 = vpop.f32.mrf.mxu0
        %v6674 = vadd.f32 %v6585, %v6673
        %6675 = vmatmul.bf16.gmra.mxu0 %v6227
        %v6676 = vpop.f32.mrf.mxu0
        %v6677 = vadd.f32 %v6588, %v6676
        %v6678 = vpop.f32.mrf.mxu0
        %v6679 = vadd.f32 %v6590, %v6678
        %6680 = vmatmul.bf16.gmra.mxu0 %v6230
        %v6681 = vpop.f32.mrf.mxu0
        %v6682 = vadd.f32 %v6593, %v6681
        %v6683 = vpop.f32.mrf.mxu0
        %v6684 = vadd.f32 %v6595, %v6683
        %6685 = vmatmul.bf16.gmra.mxu0 %v6233
        %v6686 = vpop.f32.mrf.mxu0
        %v6687 = vadd.f32 %v6598, %v6686
        %v6688 = vpop.f32.mrf.mxu0
        %v6689 = vadd.f32 %v6600, %v6688
        %6690 = vmatmul.bf16.gmra.mxu0 %v6236
        %v6691 = vpop.f32.mrf.mxu0
        %v6692 = vadd.f32 %v6603, %v6691
        %v6693 = vpop.f32.mrf.mxu0
        %v6694 = vadd.f32 %v6605, %v6693
        %6695 = vdwg.mxu0
        %v6696 = vld [vmem:[%s2743] sm:$0xff]
        %v6697 = vld [vmem:[%s2743 + $0x8] sm:$0xf]
        %v6698 = vld [vmem:[%s2743 + $0xc] sm:$0xff]
        %v6699 = vld [vmem:[%s2743 + $0x14] sm:$0xf]
        %v6700 = vld [vmem:[%s2743 + $0x18] sm:$0xff]
        %v6701 = vld [vmem:[%s2743 + $0x20] sm:$0xf]
        %v6702 = vld [vmem:[%s2743 + $0x24] sm:$0xff]
        %v6703 = vld [vmem:[%s2743 + $0x2c] sm:$0xf]
        %v6704 = vld [vmem:[%s2743 + $0x30] sm:$0xff]
        %v6705 = vld [vmem:[%s2743 + $0x38] sm:$0xf]
        %v6706 = vld [vmem:[%s2743 + $0x3c] sm:$0xff]
        %v6707 = vld [vmem:[%s2743 + $0x44] sm:$0xf]
        %v6708 = vld [vmem:[%s2743 + $0x48] sm:$0xff]
        %v6709 = vld [vmem:[%s2743 + $0x50] sm:$0xf]
        %v6710 = vld [vmem:[%s2743 + $0x54] sm:$0xff]
        %v6711 = vld [vmem:[%s2743 + $0x5c] sm:$0xf]
        %v6712 = vld [vmem:[%s2743 + $0x60] sm:$0xff]
        %v6713 = vld [vmem:[%s2743 + $0x68] sm:$0xf]
        %v6714 = vld [vmem:[%s2743 + $0x6c] sm:$0xff]
        %v6715 = vld [vmem:[%s2743 + $0x74] sm:$0xf]
        %v6716 = vld [vmem:[%s2743 + $0x78] sm:$0xff]
        %v6717 = vld [vmem:[%s2743 + $0x80] sm:$0xf]
        %v6718 = vld [vmem:[%s2743 + $0x84] sm:$0xff]
        %v6719 = vld [vmem:[%s2743 + $0x8c] sm:$0xf]
        %v6720 = vld [vmem:[%s2743 + $0x90] sm:$0xff]
        %v6721 = vld [vmem:[%s2743 + $0x98] sm:$0xf]
        %v6722 = vld [vmem:[%s2743 + $0x9c] sm:$0xff]
        %v6723 = vld [vmem:[%s2743 + $0xa4] sm:$0xf]
        %v6724 = vld [vmem:[%s2743 + $0xa8] sm:$0xff]
        %v6725 = vld [vmem:[%s2743 + $0xb0] sm:$0xf]
        %v6726 = vld [vmem:[%s2743 + $0xb4] sm:$0xff]
        %v6727 = vld [vmem:[%s2743 + $0xbc] sm:$0xf]
        %v6728 = vld [vmem:[%s2743 + $0xc0] sm:$0xff]
        %v6729 = vld [vmem:[%s2743 + $0xc8] sm:$0xf]
        %v6730 = vld [vmem:[%s2743 + $0xcc] sm:$0xff]
        %v6731 = vld [vmem:[%s2743 + $0xd4] sm:$0xf]
        %v6732 = vld [vmem:[%s2743 + $0xd8] sm:$0xff]
        %v6733 = vld [vmem:[%s2743 + $0xe0] sm:$0xf]
        %v6734 = vld [vmem:[%s2743 + $0xe4] sm:$0xff]
        %v6735 = vld [vmem:[%s2743 + $0xec] sm:$0xf]
        %v6736 = vld [vmem:[%s2743 + $0xf0] sm:$0xff]
        %v6737 = vld [vmem:[%s2743 + $0xf8] sm:$0xf]
        %v6738 = vld [vmem:[%s2743 + $0xfc] sm:$0xff]
        %v6739 = vld [vmem:[%s2743 + $0x104] sm:$0xf]
        %v6740 = vld [vmem:[%s2743 + $0x108] sm:$0xff]
        %v6741 = vld [vmem:[%s2743 + $0x110] sm:$0xf]
        %v6742 = vld [vmem:[%s2743 + $0x114] sm:$0xff]
        %v6743 = vld [vmem:[%s2743 + $0x11c] sm:$0xf]
        %v6744 = vld [vmem:[%s2743 + $0x120] sm:$0xff]
        %v6745 = vld [vmem:[%s2743 + $0x128] sm:$0xf]
        %v6746 = vld [vmem:[%s2743 + $0x12c] sm:$0xff]
        %v6747 = vld [vmem:[%s2743 + $0x134] sm:$0xf]
        %v6748 = vld [vmem:[%s2743 + $0x138] sm:$0xff]
        %v6749 = vld [vmem:[%s2743 + $0x140] sm:$0xf]
        %v6750 = vld [vmem:[%s2743 + $0x144] sm:$0xff]
        %v6751 = vld [vmem:[%s2743 + $0x14c] sm:$0xf]
        %v6752 = vld [vmem:[%s2743 + $0x150] sm:$0xff]
        %v6753 = vld [vmem:[%s2743 + $0x158] sm:$0xf]
        %v6754 = vld [vmem:[%s2743 + $0x15c] sm:$0xff]
        %v6755 = vld [vmem:[%s2743 + $0x164] sm:$0xf]
        %v6756 = vld [vmem:[%s2743 + $0x168] sm:$0xff]
        %v6757 = vld [vmem:[%s2743 + $0x170] sm:$0xf]
        %v6758 = vld [vmem:[%s2743 + $0x174] sm:$0xff]
        %v6759 = vld [vmem:[%s2743 + $0x17c] sm:$0xf]
        %s6760 = scalar_lea.vmem [#allocation4], 384
        %v6761 = vld [vmem:[%s6760] sm:$0xf]
        %v6762 = vld [vmem:[%s6760 + $0x4] sm:$0xf]
        %v6763 = vld [vmem:[%s6760 + $0x8] sm:$0xf]
        %v6764 = vld [vmem:[%s6760 + $0xc] sm:$0xf]
        %v6765 = vld [vmem:[%s6760 + $0x10] sm:$0xf]
        %v6766 = vld [vmem:[%s6760 + $0x14] sm:$0xf]
        %v6767 = vld [vmem:[%s6760 + $0x18] sm:$0xf]
        %v6768 = vld [vmem:[%s6760 + $0x1c] sm:$0xf]
        %v6769 = vld [vmem:[%s6760 + $0x20] sm:$0xf]
        %v6770 = vld [vmem:[%s6760 + $0x24] sm:$0xf]
        %v6771 = vld [vmem:[%s6760 + $0x28] sm:$0xf]
        %v6772 = vld [vmem:[%s6760 + $0x2c] sm:$0xf]
        %v6773 = vld [vmem:[%s6760 + $0x30] sm:$0xf]
        %v6774 = vld [vmem:[%s6760 + $0x34] sm:$0xf]
        %v6775 = vld [vmem:[%s6760 + $0x38] sm:$0xf]
        %v6776 = vld [vmem:[%s6760 + $0x3c] sm:$0xf]
        %v6777 = vld [vmem:[%s6760 + $0x40] sm:$0xf]
        %v6778 = vld [vmem:[%s6760 + $0x44] sm:$0xf]
        %v6779 = vld [vmem:[%s6760 + $0x48] sm:$0xf]
        %v6780 = vld [vmem:[%s6760 + $0x4c] sm:$0xf]
        %v6781 = vld [vmem:[%s6760 + $0x50] sm:$0xf]
        %v6782 = vld [vmem:[%s6760 + $0x54] sm:$0xf]
        %v6783 = vld [vmem:[%s6760 + $0x58] sm:$0xf]
        %v6784 = vld [vmem:[%s6760 + $0x5c] sm:$0xf]
        %v6785 = vld [vmem:[%s6760 + $0x60] sm:$0xf]
        %v6786 = vld [vmem:[%s6760 + $0x64] sm:$0xf]
        %v6787 = vld [vmem:[%s6760 + $0x68] sm:$0xf]
        %v6788 = vld [vmem:[%s6760 + $0x6c] sm:$0xf]
        %v6789 = vld [vmem:[%s6760 + $0x70] sm:$0xf]
        %v6790 = vld [vmem:[%s6760 + $0x74] sm:$0xf]
        %v6791 = vld [vmem:[%s6760 + $0x78] sm:$0xf]
        %v6792 = vld [vmem:[%s6760 + $0x7c] sm:$0xf]
        %v6793 = vld [vmem:[%s6760 + $0x80] sm:$0xf]
        %v6794 = vld [vmem:[%s6760 + $0x84] sm:$0xf]
        %v6795 = vld [vmem:[%s6760 + $0x88] sm:$0xf]
        %v6796 = vld [vmem:[%s6760 + $0x8c] sm:$0xf]
        %v6797 = vld [vmem:[%s6760 + $0x90] sm:$0xf]
        %v6798 = vld [vmem:[%s6760 + $0x94] sm:$0xf]
        %v6799 = vld [vmem:[%s6760 + $0x98] sm:$0xf]
        %v6800 = vld [vmem:[%s6760 + $0x9c] sm:$0xf]
        %v6801 = vld [vmem:[%s6760 + $0xa0] sm:$0xf]
        %v6802 = vld [vmem:[%s6760 + $0xa4] sm:$0xf]
        %v6803 = vld [vmem:[%s6760 + $0xa8] sm:$0xf]
        %v6804 = vld [vmem:[%s6760 + $0xac] sm:$0xf]
        %v6805 = vld [vmem:[%s6760 + $0xb0] sm:$0xf]
        %v6806 = vld [vmem:[%s6760 + $0xb4] sm:$0xf]
        %v6807 = vld [vmem:[%s6760 + $0xb8] sm:$0xf]
        %v6808 = vld [vmem:[%s6760 + $0xbc] sm:$0xf]
        %v6873 = vunpack.c.l.b16 %v6696
        %v6874 = vunpack.c.h.b16 %v6696
        %v6875 = vunpack.c.l.b16 %v6697
        %v6876 = vunpack.c.l.b16 %v6698
        %v6877 = vunpack.c.h.b16 %v6698
        %v6878 = vunpack.c.l.b16 %v6699
        %v6879 = vunpack.c.l.b16 %v6700
        %v6880 = vunpack.c.h.b16 %v6700
        %v6881 = vunpack.c.l.b16 %v6701
        %v6882 = vunpack.c.l.b16 %v6702
        %v6883 = vunpack.c.h.b16 %v6702
        %v6884 = vunpack.c.l.b16 %v6703
        %v6885 = vunpack.c.l.b16 %v6704
        %v6886 = vunpack.c.h.b16 %v6704
        %v6887 = vunpack.c.l.b16 %v6705
        %v6888 = vunpack.c.l.b16 %v6706
        %v6889 = vunpack.c.h.b16 %v6706
        %v6890 = vunpack.c.l.b16 %v6707
        %v6891 = vunpack.c.l.b16 %v6708
        %v6892 = vunpack.c.h.b16 %v6708
        %v6893 = vunpack.c.l.b16 %v6709
        %v6894 = vunpack.c.l.b16 %v6710
        %v6895 = vunpack.c.h.b16 %v6710
        %v6896 = vunpack.c.l.b16 %v6711
        %v6897 = vunpack.c.l.b16 %v6712
        %v6898 = vunpack.c.h.b16 %v6712
        %v6899 = vunpack.c.l.b16 %v6713
        %v6900 = vunpack.c.l.b16 %v6714
        %v6901 = vunpack.c.h.b16 %v6714
        %v6902 = vunpack.c.l.b16 %v6715
        %v6903 = vunpack.c.l.b16 %v6716
        %v6904 = vunpack.c.h.b16 %v6716
        %v6905 = vunpack.c.l.b16 %v6717
        %v6906 = vunpack.c.l.b16 %v6718
        %v6907 = vunpack.c.h.b16 %v6718
        %v6908 = vunpack.c.l.b16 %v6719
        %v6909 = vunpack.c.l.b16 %v6720
        %v6910 = vunpack.c.h.b16 %v6720
        %v6911 = vunpack.c.l.b16 %v6721
        %v6912 = vunpack.c.l.b16 %v6722
        %v6913 = vunpack.c.h.b16 %v6722
        %v6914 = vunpack.c.l.b16 %v6723
        %v6915 = vunpack.c.l.b16 %v6724
        %v6916 = vunpack.c.h.b16 %v6724
        %v6917 = vunpack.c.l.b16 %v6725
        %v6918 = vunpack.c.l.b16 %v6726
        %v6919 = vunpack.c.h.b16 %v6726
        %v6920 = vunpack.c.l.b16 %v6727
        %v6921 = vunpack.c.l.b16 %v6728
        %v6922 = vunpack.c.h.b16 %v6728
        %v6923 = vunpack.c.l.b16 %v6729
        %v6924 = vunpack.c.l.b16 %v6730
        %v6925 = vunpack.c.h.b16 %v6730
        %v6926 = vunpack.c.l.b16 %v6731
        %v6927 = vunpack.c.l.b16 %v6732
        %v6928 = vunpack.c.h.b16 %v6732
        %v6929 = vunpack.c.l.b16 %v6733
        %v6930 = vunpack.c.l.b16 %v6734
        %v6931 = vunpack.c.h.b16 %v6734
        %v6932 = vunpack.c.l.b16 %v6735
        %v6933 = vunpack.c.l.b16 %v6736
        %v6934 = vunpack.c.h.b16 %v6736
        %v6935 = vunpack.c.l.b16 %v6737
        %v6936 = vunpack.c.l.b16 %v6738
        %v6937 = vunpack.c.h.b16 %v6738
        %v6938 = vunpack.c.l.b16 %v6739
        %v6939 = vunpack.c.l.b16 %v6740
        %v6940 = vunpack.c.h.b16 %v6740
        %v6941 = vunpack.c.l.b16 %v6741
        %v6942 = vunpack.c.l.b16 %v6742
        %v6943 = vunpack.c.h.b16 %v6742
        %v6944 = vunpack.c.l.b16 %v6743
        %v6945 = vunpack.c.l.b16 %v6744
        %v6946 = vunpack.c.h.b16 %v6744
        %v6947 = vunpack.c.l.b16 %v6745
        %v6948 = vunpack.c.l.b16 %v6746
        %v6949 = vunpack.c.h.b16 %v6746
        %v6950 = vunpack.c.l.b16 %v6747
        %v6951 = vunpack.c.l.b16 %v6748
        %v6952 = vunpack.c.h.b16 %v6748
        %v6953 = vunpack.c.l.b16 %v6749
        %v6954 = vunpack.c.l.b16 %v6750
        %v6955 = vunpack.c.h.b16 %v6750
        %v6956 = vunpack.c.l.b16 %v6751
        %v6957 = vunpack.c.l.b16 %v6752
        %v6958 = vunpack.c.h.b16 %v6752
        %v6959 = vunpack.c.l.b16 %v6753
        %v6960 = vunpack.c.l.b16 %v6754
        %v6961 = vunpack.c.h.b16 %v6754
        %v6962 = vunpack.c.l.b16 %v6755
        %v6963 = vunpack.c.l.b16 %v6756
        %v6964 = vunpack.c.h.b16 %v6756
        %v6965 = vunpack.c.l.b16 %v6757
        %v6966 = vunpack.c.l.b16 %v6758
        %v6967 = vunpack.c.h.b16 %v6758
        %v6968 = vunpack.c.l.b16 %v6759
        %v6969 = vpack.c.b16 %v6876, %v6873
        %v6970 = vpack.c.b16 %v6877, %v6874
        %v6971 = vpack.c.b16 %v6878, %v6875
        %v6972 = vpack.c.b16 %v6882, %v6879
        %v6973 = vpack.c.b16 %v6883, %v6880
        %v6974 = vpack.c.b16 %v6884, %v6881
        %v6975 = vpack.c.b16 %v6888, %v6885
        %v6976 = vpack.c.b16 %v6889, %v6886
        %v6977 = vpack.c.b16 %v6890, %v6887
        %v6978 = vpack.c.b16 %v6894, %v6891
        %v6979 = vpack.c.b16 %v6895, %v6892
        %v6980 = vpack.c.b16 %v6896, %v6893
        %v6981 = vpack.c.b16 %v6900, %v6897
        %v6982 = vpack.c.b16 %v6901, %v6898
        %v6983 = vpack.c.b16 %v6902, %v6899
        %v6984 = vpack.c.b16 %v6906, %v6903
        %v6985 = vpack.c.b16 %v6907, %v6904
        %v6986 = vpack.c.b16 %v6908, %v6905
        %v6987 = vpack.c.b16 %v6912, %v6909
        %v6988 = vpack.c.b16 %v6913, %v6910
        %v6989 = vpack.c.b16 %v6914, %v6911
        %v6990 = vpack.c.b16 %v6918, %v6915
        %v6991 = vpack.c.b16 %v6919, %v6916
        %v6992 = vpack.c.b16 %v6920, %v6917
        %v6993 = vpack.c.b16 %v6924, %v6921
        %v6994 = vpack.c.b16 %v6925, %v6922
        %v6995 = vpack.c.b16 %v6926, %v6923
        %v6996 = vpack.c.b16 %v6930, %v6927
        %v6997 = vpack.c.b16 %v6931, %v6928
        %v6998 = vpack.c.b16 %v6932, %v6929
        %v6999 = vpack.c.b16 %v6936, %v6933
        %v7000 = vpack.c.b16 %v6937, %v6934
        %v7001 = vpack.c.b16 %v6938, %v6935
        %v7002 = vpack.c.b16 %v6942, %v6939
        %v7003 = vpack.c.b16 %v6943, %v6940
        %v7004 = vpack.c.b16 %v6944, %v6941
        %v7005 = vpack.c.b16 %v6948, %v6945
        %v7006 = vpack.c.b16 %v6949, %v6946
        %v7007 = vpack.c.b16 %v6950, %v6947
        %v7008 = vpack.c.b16 %v6954, %v6951
        %v7009 = vpack.c.b16 %v6955, %v6952
        %v7010 = vpack.c.b16 %v6956, %v6953
        %v7011 = vpack.c.b16 %v6960, %v6957
        %v7012 = vpack.c.b16 %v6961, %v6958
        %v7013 = vpack.c.b16 %v6962, %v6959
        %v7014 = vpack.c.b16 %v6966, %v6963
        %v7015 = vpack.c.b16 %v6967, %v6964
        %v7016 = vpack.c.b16 %v6968, %v6965
        %v7113 = vunpack.c.l.b16 %v6761
        %v7114 = vunpack.c.l.b16 %v6762
        %v7115 = vunpack.c.l.b16 %v6763
        %v7116 = vunpack.c.l.b16 %v6764
        %v7117 = vunpack.c.l.b16 %v6765
        %v7118 = vunpack.c.l.b16 %v6766
        %v7119 = vunpack.c.l.b16 %v6767
        %v7120 = vunpack.c.l.b16 %v6768
        %v7121 = vunpack.c.l.b16 %v6769
        %v7122 = vunpack.c.l.b16 %v6770
        %v7123 = vunpack.c.l.b16 %v6771
        %v7124 = vunpack.c.l.b16 %v6772
        %v7125 = vunpack.c.l.b16 %v6773
        %v7126 = vunpack.c.l.b16 %v6774
        %v7127 = vunpack.c.l.b16 %v6775
        %v7128 = vunpack.c.l.b16 %v6776
        %v7129 = vunpack.c.l.b16 %v6777
        %v7130 = vunpack.c.l.b16 %v6778
        %v7131 = vunpack.c.l.b16 %v6779
        %v7132 = vunpack.c.l.b16 %v6780
        %v7133 = vunpack.c.l.b16 %v6781
        %v7134 = vunpack.c.l.b16 %v6782
        %v7135 = vunpack.c.l.b16 %v6783
        %v7136 = vunpack.c.l.b16 %v6784
        %v7137 = vunpack.c.l.b16 %v6785
        %v7138 = vunpack.c.l.b16 %v6786
        %v7139 = vunpack.c.l.b16 %v6787
        %v7140 = vunpack.c.l.b16 %v6788
        %v7141 = vunpack.c.l.b16 %v6789
        %v7142 = vunpack.c.l.b16 %v6790
        %v7143 = vunpack.c.l.b16 %v6791
        %v7144 = vunpack.c.l.b16 %v6792
        %v7145 = vunpack.c.l.b16 %v6793
        %v7146 = vunpack.c.l.b16 %v6794
        %v7147 = vunpack.c.l.b16 %v6795
        %v7148 = vunpack.c.l.b16 %v6796
        %v7149 = vunpack.c.l.b16 %v6797
        %v7150 = vunpack.c.l.b16 %v6798
        %v7151 = vunpack.c.l.b16 %v6799
        %v7152 = vunpack.c.l.b16 %v6800
        %v7153 = vunpack.c.l.b16 %v6801
        %v7154 = vunpack.c.l.b16 %v6802
        %v7155 = vunpack.c.l.b16 %v6803
        %v7156 = vunpack.c.l.b16 %v6804
        %v7157 = vunpack.c.l.b16 %v6805
        %v7158 = vunpack.c.l.b16 %v6806
        %v7159 = vunpack.c.l.b16 %v6807
        %v7160 = vunpack.c.l.b16 %v6808
        %v7161 = vpack.c.b16 %v7114, %v7113
        %v7162 = vpack.c.b16 %v7116, %v7115
        %v7163 = vpack.c.b16 %v7118, %v7117
        %v7164 = vpack.c.b16 %v7120, %v7119
        %v7165 = vpack.c.b16 %v7122, %v7121
        %v7166 = vpack.c.b16 %v7124, %v7123
        %v7167 = vpack.c.b16 %v7126, %v7125
        %v7168 = vpack.c.b16 %v7128, %v7127
        %v7169 = vpack.c.b16 %v7130, %v7129
        %v7170 = vpack.c.b16 %v7132, %v7131
        %v7171 = vpack.c.b16 %v7134, %v7133
        %v7172 = vpack.c.b16 %v7136, %v7135
        %v7173 = vpack.c.b16 %v7138, %v7137
        %v7174 = vpack.c.b16 %v7140, %v7139
        %v7175 = vpack.c.b16 %v7142, %v7141
        %v7176 = vpack.c.b16 %v7144, %v7143
        %v7177 = vpack.c.b16 %v7146, %v7145
        %v7178 = vpack.c.b16 %v7148, %v7147
        %v7179 = vpack.c.b16 %v7150, %v7149
        %v7180 = vpack.c.b16 %v7152, %v7151
        %v7181 = vpack.c.b16 %v7154, %v7153
        %v7182 = vpack.c.b16 %v7156, %v7155
        %v7183 = vpack.c.b16 %v7158, %v7157
        %v7184 = vpack.c.b16 %v7160, %v7159
        %7209 = vmatpush.bf16.msra.mxu0 %v7168
        %7210 = vmatpush.bf16.msra.mxu0 %v7167
        %7211 = vmatpush.bf16.msra.mxu0 %v7166
        %7212 = vmatpush.bf16.msra.mxu0 %v7165
        %7213 = vmatpush.bf16.msra.mxu0 %v7164
        %7214 = vmatpush.bf16.msra.mxu0 %v7163
        %7215 = vmatpush.bf16.msra.mxu0 %v7162
        %7216 = vmatpush.bf16.msra.mxu0 %v7161
        %7217 = vmatmul.bf16.gmra.mxu0 %v6969
        %v7218 = vpop.f32.mrf.mxu0
        %v7219 = vadd.f32 0.0, %v7218
        %v7220 = vpop.f32.mrf.mxu0
        %v7221 = vadd.f32 0.0, %v7220
        %7222 = vmatmul.bf16.gmra.mxu0 %v6972
        %v7223 = vpop.f32.mrf.mxu0
        %v7224 = vadd.f32 0.0, %v7223
        %v7225 = vpop.f32.mrf.mxu0
        %v7226 = vadd.f32 0.0, %v7225
        %7227 = vmatmul.bf16.gmra.mxu0 %v6975
        %v7228 = vpop.f32.mrf.mxu0
        %v7229 = vadd.f32 0.0, %v7228
        %v7230 = vpop.f32.mrf.mxu0
        %v7231 = vadd.f32 0.0, %v7230
        %7232 = vmatmul.bf16.gmra.mxu0 %v6978
        %v7233 = vpop.f32.mrf.mxu0
        %v7234 = vadd.f32 0.0, %v7233
        %v7235 = vpop.f32.mrf.mxu0
        %v7236 = vadd.f32 0.0, %v7235
        %7237 = vmatmul.bf16.gmra.mxu0 %v6981
        %v7238 = vpop.f32.mrf.mxu0
        %v7239 = vadd.f32 0.0, %v7238
        %v7240 = vpop.f32.mrf.mxu0
        %v7241 = vadd.f32 0.0, %v7240
        %7242 = vmatmul.bf16.gmra.mxu0 %v6984
        %v7243 = vpop.f32.mrf.mxu0
        %v7244 = vadd.f32 0.0, %v7243
        %v7245 = vpop.f32.mrf.mxu0
        %v7246 = vadd.f32 0.0, %v7245
        %7247 = vmatmul.bf16.gmra.mxu0 %v6987
        %v7248 = vpop.f32.mrf.mxu0
        %v7249 = vadd.f32 0.0, %v7248
        %v7250 = vpop.f32.mrf.mxu0
        %v7251 = vadd.f32 0.0, %v7250
        %7252 = vmatmul.bf16.gmra.mxu0 %v6990
        %v7253 = vpop.f32.mrf.mxu0
        %v7254 = vadd.f32 0.0, %v7253
        %v7255 = vpop.f32.mrf.mxu0
        %v7256 = vadd.f32 0.0, %v7255
        %7257 = vmatmul.bf16.gmra.mxu0 %v6993
        %v7258 = vpop.f32.mrf.mxu0
        %v7259 = vadd.f32 0.0, %v7258
        %v7260 = vpop.f32.mrf.mxu0
        %v7261 = vadd.f32 0.0, %v7260
        %7262 = vmatmul.bf16.gmra.mxu0 %v6996
        %v7263 = vpop.f32.mrf.mxu0
        %v7264 = vadd.f32 0.0, %v7263
        %v7265 = vpop.f32.mrf.mxu0
        %v7266 = vadd.f32 0.0, %v7265
        %7267 = vmatmul.bf16.gmra.mxu0 %v6999
        %v7268 = vpop.f32.mrf.mxu0
        %v7269 = vadd.f32 0.0, %v7268
        %v7270 = vpop.f32.mrf.mxu0
        %v7271 = vadd.f32 0.0, %v7270
        %7272 = vmatmul.bf16.gmra.mxu0 %v7002
        %v7273 = vpop.f32.mrf.mxu0
        %v7274 = vadd.f32 0.0, %v7273
        %v7275 = vpop.f32.mrf.mxu0
        %v7276 = vadd.f32 0.0, %v7275
        %7277 = vmatmul.bf16.gmra.mxu0 %v7005
        %v7278 = vpop.f32.mrf.mxu0
        %v7279 = vadd.f32 0.0, %v7278
        %v7280 = vpop.f32.mrf.mxu0
        %v7281 = vadd.f32 0.0, %v7280
        %7282 = vmatmul.bf16.gmra.mxu0 %v7008
        %v7283 = vpop.f32.mrf.mxu0
        %v7284 = vadd.f32 0.0, %v7283
        %v7285 = vpop.f32.mrf.mxu0
        %v7286 = vadd.f32 0.0, %v7285
        %7287 = vmatmul.bf16.gmra.mxu0 %v7011
        %v7288 = vpop.f32.mrf.mxu0
        %v7289 = vadd.f32 0.0, %v7288
        %v7290 = vpop.f32.mrf.mxu0
        %v7291 = vadd.f32 0.0, %v7290
        %7292 = vmatmul.bf16.gmra.mxu0 %v7014
        %v7293 = vpop.f32.mrf.mxu0
        %v7294 = vadd.f32 0.0, %v7293
        %v7295 = vpop.f32.mrf.mxu0
        %v7296 = vadd.f32 0.0, %v7295
        %7297 = vdwg.mxu0
        %7298 = vmatpush.bf16.msra.mxu0 %v7176
        %7299 = vmatpush.bf16.msra.mxu0 %v7175
        %7300 = vmatpush.bf16.msra.mxu0 %v7174
        %7301 = vmatpush.bf16.msra.mxu0 %v7173
        %7302 = vmatpush.bf16.msra.mxu0 %v7172
        %7303 = vmatpush.bf16.msra.mxu0 %v7171
        %7304 = vmatpush.bf16.msra.mxu0 %v7170
        %7305 = vmatpush.bf16.msra.mxu0 %v7169
        %7306 = vmatmul.bf16.gmra.mxu0 %v6970
        %v7307 = vpop.f32.mrf.mxu0
        %v7308 = vadd.f32 %v7219, %v7307
        %v7309 = vpop.f32.mrf.mxu0
        %v7310 = vadd.f32 %v7221, %v7309
        %7311 = vmatmul.bf16.gmra.mxu0 %v6973
        %v7312 = vpop.f32.mrf.mxu0
        %v7313 = vadd.f32 %v7224, %v7312
        %v7314 = vpop.f32.mrf.mxu0
        %v7315 = vadd.f32 %v7226, %v7314
        %7316 = vmatmul.bf16.gmra.mxu0 %v6976
        %v7317 = vpop.f32.mrf.mxu0
        %v7318 = vadd.f32 %v7229, %v7317
        %v7319 = vpop.f32.mrf.mxu0
        %v7320 = vadd.f32 %v7231, %v7319
        %7321 = vmatmul.bf16.gmra.mxu0 %v6979
        %v7322 = vpop.f32.mrf.mxu0
        %v7323 = vadd.f32 %v7234, %v7322
        %v7324 = vpop.f32.mrf.mxu0
        %v7325 = vadd.f32 %v7236, %v7324
        %7326 = vmatmul.bf16.gmra.mxu0 %v6982
        %v7327 = vpop.f32.mrf.mxu0
        %v7328 = vadd.f32 %v7239, %v7327
        %v7329 = vpop.f32.mrf.mxu0
        %v7330 = vadd.f32 %v7241, %v7329
        %7331 = vmatmul.bf16.gmra.mxu0 %v6985
        %v7332 = vpop.f32.mrf.mxu0
        %v7333 = vadd.f32 %v7244, %v7332
        %v7334 = vpop.f32.mrf.mxu0
        %v7335 = vadd.f32 %v7246, %v7334
        %7336 = vmatmul.bf16.gmra.mxu0 %v6988
        %v7337 = vpop.f32.mrf.mxu0
        %v7338 = vadd.f32 %v7249, %v7337
        %v7339 = vpop.f32.mrf.mxu0
        %v7340 = vadd.f32 %v7251, %v7339
        %7341 = vmatmul.bf16.gmra.mxu0 %v6991
        %v7342 = vpop.f32.mrf.mxu0
        %v7343 = vadd.f32 %v7254, %v7342
        %v7344 = vpop.f32.mrf.mxu0
        %v7345 = vadd.f32 %v7256, %v7344
        %7346 = vmatmul.bf16.gmra.mxu0 %v6994
        %v7347 = vpop.f32.mrf.mxu0
        %v7348 = vadd.f32 %v7259, %v7347
        %v7349 = vpop.f32.mrf.mxu0
        %v7350 = vadd.f32 %v7261, %v7349
        %7351 = vmatmul.bf16.gmra.mxu0 %v6997
        %v7352 = vpop.f32.mrf.mxu0
        %v7353 = vadd.f32 %v7264, %v7352
        %v7354 = vpop.f32.mrf.mxu0
        %v7355 = vadd.f32 %v7266, %v7354
        %7356 = vmatmul.bf16.gmra.mxu0 %v7000
        %v7357 = vpop.f32.mrf.mxu0
        %v7358 = vadd.f32 %v7269, %v7357
        %v7359 = vpop.f32.mrf.mxu0
        %v7360 = vadd.f32 %v7271, %v7359
        %7361 = vmatmul.bf16.gmra.mxu0 %v7003
        %v7362 = vpop.f32.mrf.mxu0
        %v7363 = vadd.f32 %v7274, %v7362
        %v7364 = vpop.f32.mrf.mxu0
        %v7365 = vadd.f32 %v7276, %v7364
        %7366 = vmatmul.bf16.gmra.mxu0 %v7006
        %v7367 = vpop.f32.mrf.mxu0
        %v7368 = vadd.f32 %v7279, %v7367
        %v7369 = vpop.f32.mrf.mxu0
        %v7370 = vadd.f32 %v7281, %v7369
        %7371 = vmatmul.bf16.gmra.mxu0 %v7009
        %v7372 = vpop.f32.mrf.mxu0
        %v7373 = vadd.f32 %v7284, %v7372
        %v7374 = vpop.f32.mrf.mxu0
        %v7375 = vadd.f32 %v7286, %v7374
        %7376 = vmatmul.bf16.gmra.mxu0 %v7012
        %v7377 = vpop.f32.mrf.mxu0
        %v7378 = vadd.f32 %v7289, %v7377
        %v7379 = vpop.f32.mrf.mxu0
        %v7380 = vadd.f32 %v7291, %v7379
        %7381 = vmatmul.bf16.gmra.mxu0 %v7015
        %v7382 = vpop.f32.mrf.mxu0
        %v7383 = vadd.f32 %v7294, %v7382
        %v7384 = vpop.f32.mrf.mxu0
        %v7385 = vadd.f32 %v7296, %v7384
        %7386 = vdwg.mxu0
        %7387 = vmatpush.bf16.msra.mxu0 %v7184
        %7388 = vmatpush.bf16.msra.mxu0 %v7183
        %7389 = vmatpush.bf16.msra.mxu0 %v7182
        %7390 = vmatpush.bf16.msra.mxu0 %v7181
        %7391 = vmatpush.bf16.msra.mxu0 %v7180
        %7392 = vmatpush.bf16.msra.mxu0 %v7179
        %7393 = vmatpush.bf16.msra.mxu0 %v7178
        %7394 = vmatpush.bf16.msra.mxu0 %v7177
        %7395 = vmatmul.bf16.gmra.mxu0 %v6971
        %v7396 = vpop.f32.mrf.mxu0
        %v7397 = vadd.f32 %v7308, %v7396
        %v7398 = vpop.f32.mrf.mxu0
        %v7399 = vadd.f32 %v7310, %v7398
        %7400 = vmatmul.bf16.gmra.mxu0 %v6974
        %v7401 = vpop.f32.mrf.mxu0
        %v7402 = vadd.f32 %v7313, %v7401
        %v7403 = vpop.f32.mrf.mxu0
        %v7404 = vadd.f32 %v7315, %v7403
        %7405 = vmatmul.bf16.gmra.mxu0 %v6977
        %v7406 = vpop.f32.mrf.mxu0
        %v7407 = vadd.f32 %v7318, %v7406
        %v7408 = vpop.f32.mrf.mxu0
        %v7409 = vadd.f32 %v7320, %v7408
        %7410 = vmatmul.bf16.gmra.mxu0 %v6980
        %v7411 = vpop.f32.mrf.mxu0
        %v7412 = vadd.f32 %v7323, %v7411
        %v7413 = vpop.f32.mrf.mxu0
        %v7414 = vadd.f32 %v7325, %v7413
        %7415 = vmatmul.bf16.gmra.mxu0 %v6983
        %v7416 = vpop.f32.mrf.mxu0
        %v7417 = vadd.f32 %v7328, %v7416
        %v7418 = vpop.f32.mrf.mxu0
        %v7419 = vadd.f32 %v7330, %v7418
        %7420 = vmatmul.bf16.gmra.mxu0 %v6986
        %v7421 = vpop.f32.mrf.mxu0
        %v7422 = vadd.f32 %v7333, %v7421
        %v7423 = vpop.f32.mrf.mxu0
        %v7424 = vadd.f32 %v7335, %v7423
        %7425 = vmatmul.bf16.gmra.mxu0 %v6989
        %v7426 = vpop.f32.mrf.mxu0
        %v7427 = vadd.f32 %v7338, %v7426
        %v7428 = vpop.f32.mrf.mxu0
        %v7429 = vadd.f32 %v7340, %v7428
        %7430 = vmatmul.bf16.gmra.mxu0 %v6992
        %v7431 = vpop.f32.mrf.mxu0
        %v7432 = vadd.f32 %v7343, %v7431
        %v7433 = vpop.f32.mrf.mxu0
        %v7434 = vadd.f32 %v7345, %v7433
        %7435 = vmatmul.bf16.gmra.mxu0 %v6995
        %v7436 = vpop.f32.mrf.mxu0
        %v7437 = vadd.f32 %v7348, %v7436
        %v7438 = vpop.f32.mrf.mxu0
        %v7439 = vadd.f32 %v7350, %v7438
        %7440 = vmatmul.bf16.gmra.mxu0 %v6998
        %v7441 = vpop.f32.mrf.mxu0
        %v7442 = vadd.f32 %v7353, %v7441
        %v7443 = vpop.f32.mrf.mxu0
        %v7444 = vadd.f32 %v7355, %v7443
        %7445 = vmatmul.bf16.gmra.mxu0 %v7001
        %v7446 = vpop.f32.mrf.mxu0
        %v7447 = vadd.f32 %v7358, %v7446
        %v7448 = vpop.f32.mrf.mxu0
        %v7449 = vadd.f32 %v7360, %v7448
        %7450 = vmatmul.bf16.gmra.mxu0 %v7004
        %v7451 = vpop.f32.mrf.mxu0
        %v7452 = vadd.f32 %v7363, %v7451
        %v7453 = vpop.f32.mrf.mxu0
        %v7454 = vadd.f32 %v7365, %v7453
        %7455 = vmatmul.bf16.gmra.mxu0 %v7007
        %v7456 = vpop.f32.mrf.mxu0
        %v7457 = vadd.f32 %v7368, %v7456
        %v7458 = vpop.f32.mrf.mxu0
        %v7459 = vadd.f32 %v7370, %v7458
        %7460 = vmatmul.bf16.gmra.mxu0 %v7010
        %v7461 = vpop.f32.mrf.mxu0
        %v7462 = vadd.f32 %v7373, %v7461
        %v7463 = vpop.f32.mrf.mxu0
        %v7464 = vadd.f32 %v7375, %v7463
        %7465 = vmatmul.bf16.gmra.mxu0 %v7013
        %v7466 = vpop.f32.mrf.mxu0
        %v7467 = vadd.f32 %v7378, %v7466
        %v7468 = vpop.f32.mrf.mxu0
        %v7469 = vadd.f32 %v7380, %v7468
        %7470 = vmatmul.bf16.gmra.mxu0 %v7016
        %v7471 = vpop.f32.mrf.mxu0
        %v7472 = vadd.f32 %v7383, %v7471
        %v7473 = vpop.f32.mrf.mxu0
        %v7474 = vadd.f32 %v7385, %v7473
        %7475 = vdwg.mxu0
        %v7476 = vadd.f32 %v6617, %v7397
        %v7477 = vadd.f32 %v6619, %v7399
        %v7478 = vadd.f32 %v6622, %v7402
        %v7479 = vadd.f32 %v6624, %v7404
        %v7480 = vadd.f32 %v6627, %v7407
        %v7481 = vadd.f32 %v6629, %v7409
        %v7482 = vadd.f32 %v6632, %v7412
        %v7483 = vadd.f32 %v6634, %v7414
        %v7484 = vadd.f32 %v6637, %v7417
        %v7485 = vadd.f32 %v6639, %v7419
        %v7486 = vadd.f32 %v6642, %v7422
        %v7487 = vadd.f32 %v6644, %v7424
        %v7488 = vadd.f32 %v6647, %v7427
        %v7489 = vadd.f32 %v6649, %v7429
        %v7490 = vadd.f32 %v6652, %v7432
        %v7491 = vadd.f32 %v6654, %v7434
        %v7492 = vadd.f32 %v6657, %v7437
        %v7493 = vadd.f32 %v6659, %v7439
        %v7494 = vadd.f32 %v6662, %v7442
        %v7495 = vadd.f32 %v6664, %v7444
        %v7496 = vadd.f32 %v6667, %v7447
        %v7497 = vadd.f32 %v6669, %v7449
        %v7498 = vadd.f32 %v6672, %v7452
        %v7499 = vadd.f32 %v6674, %v7454
        %v7500 = vadd.f32 %v6677, %v7457
        %v7501 = vadd.f32 %v6679, %v7459
        %v7502 = vadd.f32 %v6682, %v7462
        %v7503 = vadd.f32 %v6684, %v7464
        %v7504 = vadd.f32 %v6687, %v7467
        %v7505 = vadd.f32 %v6689, %v7469
        %v7506 = vadd.f32 %v6692, %v7472
        %v7507 = vadd.f32 %v6694, %v7474
        %s7508 = scalar_lea.vmem %s239, 12
        %v7509 = vld [vmem:[%s7508] sm:$0xf]
        %v7510 = vld [vmem:[%s7508 + $0x4] sm:$0xf]
        %v7511 = vld [vmem:[%s7508 + $0x8] sm:$0x1]
        %v7512 = vld [vmem:[%s7508 + $0xc] sm:$0xf]
        %v7513 = vld [vmem:[%s7508 + $0x10] sm:$0xf]
        %v7514 = vld [vmem:[%s7508 + $0x14] sm:$0x1]
        %v7515 = vld [vmem:[%s7508 + $0x18] sm:$0xf]
        %v7516 = vld [vmem:[%s7508 + $0x1c] sm:$0xf]
        %v7517 = vld [vmem:[%s7508 + $0x20] sm:$0x1]
        %v7518 = vld [vmem:[%s7508 + $0x24] sm:$0xf]
        %v7519 = vld [vmem:[%s7508 + $0x28] sm:$0xf]
        %v7520 = vld [vmem:[%s7508 + $0x2c] sm:$0x1]
        %v7521 = vld [vmem:[%s7508 + $0x30] sm:$0xf]
        %v7522 = vld [vmem:[%s7508 + $0x34] sm:$0xf]
        %v7523 = vld [vmem:[%s7508 + $0x38] sm:$0x1]
        %v7524 = vld [vmem:[%s7508 + $0x3c] sm:$0xf]
        %v7525 = vld [vmem:[%s7508 + $0x40] sm:$0xf]
        %v7526 = vld [vmem:[%s7508 + $0x44] sm:$0x1]
        %v7527 = vld [vmem:[%s7508 + $0x48] sm:$0xf]
        %v7528 = vld [vmem:[%s7508 + $0x4c] sm:$0xf]
        %v7529 = vld [vmem:[%s7508 + $0x50] sm:$0x1]
        %v7530 = vld [vmem:[%s7508 + $0x54] sm:$0xf]
        %v7531 = vld [vmem:[%s7508 + $0x58] sm:$0xf]
        %v7532 = vld [vmem:[%s7508 + $0x5c] sm:$0x1]
        %v7533 = vld [vmem:[%s7508 + $0x60] sm:$0xf]
        %v7534 = vld [vmem:[%s7508 + $0x64] sm:$0xf]
        %v7535 = vld [vmem:[%s7508 + $0x68] sm:$0x1]
        %v7536 = vld [vmem:[%s7508 + $0x6c] sm:$0xf]
        %v7537 = vld [vmem:[%s7508 + $0x70] sm:$0xf]
        %v7538 = vld [vmem:[%s7508 + $0x74] sm:$0x1]
        %v7539 = vld [vmem:[%s7508 + $0x78] sm:$0xf]
        %v7540 = vld [vmem:[%s7508 + $0x7c] sm:$0xf]
        %v7541 = vld [vmem:[%s7508 + $0x80] sm:$0x1]
        %v7542 = vld [vmem:[%s7508 + $0x84] sm:$0xf]
        %v7543 = vld [vmem:[%s7508 + $0x88] sm:$0xf]
        %v7544 = vld [vmem:[%s7508 + $0x8c] sm:$0x1]
        %v7545 = vld [vmem:[%s7508 + $0x90] sm:$0xf]
        %v7546 = vld [vmem:[%s7508 + $0x94] sm:$0xf]
        %v7547 = vld [vmem:[%s7508 + $0x98] sm:$0x1]
        %v7548 = vld [vmem:[%s7508 + $0x9c] sm:$0xf]
        %v7549 = vld [vmem:[%s7508 + $0xa0] sm:$0xf]
        %v7550 = vld [vmem:[%s7508 + $0xa4] sm:$0x1]
        %v7551 = vld [vmem:[%s7508 + $0xa8] sm:$0xf]
        %v7552 = vld [vmem:[%s7508 + $0xac] sm:$0xf]
        %v7553 = vld [vmem:[%s7508 + $0xb0] sm:$0x1]
        %v7554 = vld [vmem:[%s7508 + $0xb4] sm:$0xf]
        %v7555 = vld [vmem:[%s7508 + $0xb8] sm:$0xf]
        %v7556 = vld [vmem:[%s7508 + $0xbc] sm:$0x1]
        %v7557 = vunpack.c.l.bf16 %v7509
        %v7558 = vunpack.c.l.bf16 %v7510
        %v7559 = vunpack.c.l.bf16 %v7511
        %v7560 = vunpack.c.l.bf16 %v7512
        %v7561 = vunpack.c.l.bf16 %v7513
        %v7562 = vunpack.c.l.bf16 %v7514
        %v7563 = vunpack.c.l.bf16 %v7515
        %v7564 = vunpack.c.l.bf16 %v7516
        %v7565 = vunpack.c.l.bf16 %v7517
        %v7566 = vunpack.c.l.bf16 %v7518
        %v7567 = vunpack.c.l.bf16 %v7519
        %v7568 = vunpack.c.l.bf16 %v7520
        %v7569 = vunpack.c.l.bf16 %v7521
        %v7570 = vunpack.c.l.bf16 %v7522
        %v7571 = vunpack.c.l.bf16 %v7523
        %v7572 = vunpack.c.l.bf16 %v7524
        %v7573 = vunpack.c.l.bf16 %v7525
        %v7574 = vunpack.c.l.bf16 %v7526
        %v7575 = vunpack.c.l.bf16 %v7527
        %v7576 = vunpack.c.l.bf16 %v7528
        %v7577 = vunpack.c.l.bf16 %v7529
        %v7578 = vunpack.c.l.bf16 %v7530
        %v7579 = vunpack.c.l.bf16 %v7531
        %v7580 = vunpack.c.l.bf16 %v7532
        %v7581 = vunpack.c.l.bf16 %v7533
        %v7582 = vunpack.c.l.bf16 %v7534
        %v7583 = vunpack.c.l.bf16 %v7535
        %v7584 = vunpack.c.l.bf16 %v7536
        %v7585 = vunpack.c.l.bf16 %v7537
        %v7586 = vunpack.c.l.bf16 %v7538
        %v7587 = vunpack.c.l.bf16 %v7539
        %v7588 = vunpack.c.l.bf16 %v7540
        %v7589 = vunpack.c.l.bf16 %v7541
        %v7590 = vunpack.c.l.bf16 %v7542
        %v7591 = vunpack.c.l.bf16 %v7543
        %v7592 = vunpack.c.l.bf16 %v7544
        %v7593 = vunpack.c.l.bf16 %v7545
        %v7594 = vunpack.c.l.bf16 %v7546
        %v7595 = vunpack.c.l.bf16 %v7547
        %v7596 = vunpack.c.l.bf16 %v7548
        %v7597 = vunpack.c.l.bf16 %v7549
        %v7598 = vunpack.c.l.bf16 %v7550
        %v7599 = vunpack.c.l.bf16 %v7551
        %v7600 = vunpack.c.l.bf16 %v7552
        %v7601 = vunpack.c.l.bf16 %v7553
        %v7602 = vunpack.c.l.bf16 %v7554
        %v7603 = vunpack.c.l.bf16 %v7555
        %v7604 = vunpack.c.l.bf16 %v7556
        %v7605 = vld [vmem:[%s4] sm:$0x1]
        %v7607 = vperm.slane %v7605, 0
        %v7609 = vadd.f32 %v7476, %v7607
        %v7610 = vadd.f32 %v7477, %v7607
        %v7611 = vadd.f32 %v7478, %v7607
        %v7612 = vadd.f32 %v7479, %v7607
        %v7613 = vadd.f32 %v7480, %v7607
        %v7614 = vadd.f32 %v7481, %v7607
        %v7615 = vadd.f32 %v7482, %v7607
        %v7616 = vadd.f32 %v7483, %v7607
        %v7617 = vadd.f32 %v7484, %v7607
        %v7618 = vadd.f32 %v7485, %v7607
        %v7619 = vadd.f32 %v7486, %v7607
        %v7620 = vadd.f32 %v7487, %v7607
        %v7621 = vadd.f32 %v7488, %v7607
        %v7622 = vadd.f32 %v7489, %v7607
        %v7623 = vadd.f32 %v7490, %v7607
        %v7624 = vadd.f32 %v7491, %v7607
        %v7625 = vadd.f32 %v7492, %v7607
        %v7626 = vadd.f32 %v7493, %v7607
        %v7627 = vadd.f32 %v7494, %v7607
        %v7628 = vadd.f32 %v7495, %v7607
        %v7629 = vadd.f32 %v7496, %v7607
        %v7630 = vadd.f32 %v7497, %v7607
        %v7631 = vadd.f32 %v7498, %v7607
        %v7632 = vadd.f32 %v7499, %v7607
        %v7633 = vadd.f32 %v7500, %v7607
        %v7634 = vadd.f32 %v7501, %v7607
        %v7635 = vadd.f32 %v7502, %v7607
        %v7636 = vadd.f32 %v7503, %v7607
        %v7637 = vadd.f32 %v7504, %v7607
        %v7638 = vadd.f32 %v7505, %v7607
        %v7639 = vadd.f32 %v7506, %v7607
        %v7640 = vadd.f32 %v7507, %v7607
        %vm7689 = vcmask 1046528
        %v7690 = vrot.slane %v7557, 1
        %v7691 = vrot.slane %v7558, 1
        %v7692 = vsel %vm7689, %v7690, %v7691
        %v7693 = vrot.slane %v7559, 1
        %v7694 = vsel %vm7689, %v7691, %v7693
        %v7695 = vrot.slane %v7560, 1
        %v7696 = vrot.slane %v7561, 1
        %v7697 = vsel %vm7689, %v7695, %v7696
        %v7698 = vrot.slane %v7562, 1
        %v7699 = vsel %vm7689, %v7696, %v7698
        %v7700 = vrot.slane %v7563, 1
        %v7701 = vrot.slane %v7564, 1
        %v7702 = vsel %vm7689, %v7700, %v7701
        %v7703 = vrot.slane %v7565, 1
        %v7704 = vsel %vm7689, %v7701, %v7703
        %v7705 = vrot.slane %v7566, 1
        %v7706 = vrot.slane %v7567, 1
        %v7707 = vsel %vm7689, %v7705, %v7706
        %v7708 = vrot.slane %v7568, 1
        %v7709 = vsel %vm7689, %v7706, %v7708
        %v7710 = vrot.slane %v7569, 1
        %v7711 = vrot.slane %v7570, 1
        %v7712 = vsel %vm7689, %v7710, %v7711
        %v7713 = vrot.slane %v7571, 1
        %v7714 = vsel %vm7689, %v7711, %v7713
        %v7715 = vrot.slane %v7572, 1
        %v7716 = vrot.slane %v7573, 1
        %v7717 = vsel %vm7689, %v7715, %v7716
        %v7718 = vrot.slane %v7574, 1
        %v7719 = vsel %vm7689, %v7716, %v7718
        %v7720 = vrot.slane %v7575, 1
        %v7721 = vrot.slane %v7576, 1
        %v7722 = vsel %vm7689, %v7720, %v7721
        %v7723 = vrot.slane %v7577, 1
        %v7724 = vsel %vm7689, %v7721, %v7723
        %v7725 = vrot.slane %v7578, 1
        %v7726 = vrot.slane %v7579, 1
        %v7727 = vsel %vm7689, %v7725, %v7726
        %v7728 = vrot.slane %v7580, 1
        %v7729 = vsel %vm7689, %v7726, %v7728
        %v7730 = vrot.slane %v7581, 1
        %v7731 = vrot.slane %v7582, 1
        %v7732 = vsel %vm7689, %v7730, %v7731
        %v7733 = vrot.slane %v7583, 1
        %v7734 = vsel %vm7689, %v7731, %v7733
        %v7735 = vrot.slane %v7584, 1
        %v7736 = vrot.slane %v7585, 1
        %v7737 = vsel %vm7689, %v7735, %v7736
        %v7738 = vrot.slane %v7586, 1
        %v7739 = vsel %vm7689, %v7736, %v7738
        %v7740 = vrot.slane %v7587, 1
        %v7741 = vrot.slane %v7588, 1
        %v7742 = vsel %vm7689, %v7740, %v7741
        %v7743 = vrot.slane %v7589, 1
        %v7744 = vsel %vm7689, %v7741, %v7743
        %v7745 = vrot.slane %v7590, 1
        %v7746 = vrot.slane %v7591, 1
        %v7747 = vsel %vm7689, %v7745, %v7746
        %v7748 = vrot.slane %v7592, 1
        %v7749 = vsel %vm7689, %v7746, %v7748
        %v7750 = vrot.slane %v7593, 1
        %v7751 = vrot.slane %v7594, 1
        %v7752 = vsel %vm7689, %v7750, %v7751
        %v7753 = vrot.slane %v7595, 1
        %v7754 = vsel %vm7689, %v7751, %v7753
        %v7755 = vrot.slane %v7596, 1
        %v7756 = vrot.slane %v7597, 1
        %v7757 = vsel %vm7689, %v7755, %v7756
        %v7758 = vrot.slane %v7598, 1
        %v7759 = vsel %vm7689, %v7756, %v7758
        %v7760 = vrot.slane %v7599, 1
        %v7761 = vrot.slane %v7600, 1
        %v7762 = vsel %vm7689, %v7760, %v7761
        %v7763 = vrot.slane %v7601, 1
        %v7764 = vsel %vm7689, %v7761, %v7763
        %v7765 = vrot.slane %v7602, 1
        %v7766 = vrot.slane %v7603, 1
        %v7767 = vsel %vm7689, %v7765, %v7766
        %v7768 = vrot.slane %v7604, 1
        %v7769 = vsel %vm7689, %v7766, %v7768
        %v7802 = vadd.f32 %v7609, %v7692
        %v7803 = vadd.f32 %v7610, %v7694
        %v7804 = vadd.f32 %v7611, %v7697
        %v7805 = vadd.f32 %v7612, %v7699
        %v7806 = vadd.f32 %v7613, %v7702
        %v7807 = vadd.f32 %v7614, %v7704
        %v7808 = vadd.f32 %v7615, %v7707
        %v7809 = vadd.f32 %v7616, %v7709
        %v7810 = vadd.f32 %v7617, %v7712
        %v7811 = vadd.f32 %v7618, %v7714
        %v7812 = vadd.f32 %v7619, %v7717
        %v7813 = vadd.f32 %v7620, %v7719
        %v7814 = vadd.f32 %v7621, %v7722
        %v7815 = vadd.f32 %v7622, %v7724
        %v7816 = vadd.f32 %v7623, %v7727
        %v7817 = vadd.f32 %v7624, %v7729
        %v7818 = vadd.f32 %v7625, %v7732
        %v7819 = vadd.f32 %v7626, %v7734
        %v7820 = vadd.f32 %v7627, %v7737
        %v7821 = vadd.f32 %v7628, %v7739
        %v7822 = vadd.f32 %v7629, %v7742
        %v7823 = vadd.f32 %v7630, %v7744
        %v7824 = vadd.f32 %v7631, %v7747
        %v7825 = vadd.f32 %v7632, %v7749
        %v7826 = vadd.f32 %v7633, %v7752
        %v7827 = vadd.f32 %v7634, %v7754
        %v7828 = vadd.f32 %v7635, %v7757
        %v7829 = vadd.f32 %v7636, %v7759
        %v7830 = vadd.f32 %v7637, %v7762
        %v7831 = vadd.f32 %v7638, %v7764
        %v7832 = vadd.f32 %v7639, %v7767
        %v7833 = vadd.f32 %v7640, %v7769
        %v7834 = vmax.f32 %v7802, 0.0
        %v7835 = vmax.f32 %v7803, 0.0
        %v7836 = vmax.f32 %v7804, 0.0
        %v7837 = vmax.f32 %v7805, 0.0
        %v7838 = vmax.f32 %v7806, 0.0
        %v7839 = vmax.f32 %v7807, 0.0
        %v7840 = vmax.f32 %v7808, 0.0
        %v7841 = vmax.f32 %v7809, 0.0
        %v7842 = vmax.f32 %v7810, 0.0
        %v7843 = vmax.f32 %v7811, 0.0
        %v7844 = vmax.f32 %v7812, 0.0
        %v7845 = vmax.f32 %v7813, 0.0
        %v7846 = vmax.f32 %v7814, 0.0
        %v7847 = vmax.f32 %v7815, 0.0
        %v7848 = vmax.f32 %v7816, 0.0
        %v7849 = vmax.f32 %v7817, 0.0
        %v7850 = vmax.f32 %v7818, 0.0
        %v7851 = vmax.f32 %v7819, 0.0
        %v7852 = vmax.f32 %v7820, 0.0
        %v7853 = vmax.f32 %v7821, 0.0
        %v7854 = vmax.f32 %v7822, 0.0
        %v7855 = vmax.f32 %v7823, 0.0
        %v7856 = vmax.f32 %v7824, 0.0
        %v7857 = vmax.f32 %v7825, 0.0
        %v7858 = vmax.f32 %v7826, 0.0
        %v7859 = vmax.f32 %v7827, 0.0
        %v7860 = vmax.f32 %v7828, 0.0
        %v7861 = vmax.f32 %v7829, 0.0
        %v7862 = vmax.f32 %v7830, 0.0
        %v7863 = vmax.f32 %v7831, 0.0
        %v7864 = vmax.f32 %v7832, 0.0
        %v7865 = vmax.f32 %v7833, 0.0
        %7866 = vst [vmem:[%s234] sm:$0xff] %v7834
        %7867 = vst [vmem:[%s234 + $0x8] sm:$0xff] %v7835
        %7868 = vst [vmem:[%s234 + $0x10] sm:$0xff] %v7836
        %7869 = vst [vmem:[%s234 + $0x18] sm:$0xff] %v7837
        %7870 = vst [vmem:[%s234 + $0x20] sm:$0xff] %v7838
        %7871 = vst [vmem:[%s234 + $0x28] sm:$0xff] %v7839
        %7872 = vst [vmem:[%s234 + $0x30] sm:$0xff] %v7840
        %7873 = vst [vmem:[%s234 + $0x38] sm:$0xff] %v7841
        %7874 = vst [vmem:[%s234 + $0x40] sm:$0xff] %v7842
        %7875 = vst [vmem:[%s234 + $0x48] sm:$0xff] %v7843
        %7876 = vst [vmem:[%s234 + $0x50] sm:$0xff] %v7844
        %7877 = vst [vmem:[%s234 + $0x58] sm:$0xff] %v7845
        %7878 = vst [vmem:[%s234 + $0x60] sm:$0xff] %v7846
        %7879 = vst [vmem:[%s234 + $0x68] sm:$0xff] %v7847
        %7880 = vst [vmem:[%s234 + $0x70] sm:$0xff] %v7848
        %7881 = vst [vmem:[%s234 + $0x78] sm:$0xff] %v7849
        %7882 = vst [vmem:[%s234 + $0x80] sm:$0xff] %v7850
        %7883 = vst [vmem:[%s234 + $0x88] sm:$0xff] %v7851
        %7884 = vst [vmem:[%s234 + $0x90] sm:$0xff] %v7852
        %7885 = vst [vmem:[%s234 + $0x98] sm:$0xff] %v7853
        %7886 = vst [vmem:[%s234 + $0xa0] sm:$0xff] %v7854
        %7887 = vst [vmem:[%s234 + $0xa8] sm:$0xff] %v7855
        %7888 = vst [vmem:[%s234 + $0xb0] sm:$0xff] %v7856
        %7889 = vst [vmem:[%s234 + $0xb8] sm:$0xff] %v7857
        %7890 = vst [vmem:[%s234 + $0xc0] sm:$0xff] %v7858
        %7891 = vst [vmem:[%s234 + $0xc8] sm:$0xff] %v7859
        %7892 = vst [vmem:[%s234 + $0xd0] sm:$0xff] %v7860
        %7893 = vst [vmem:[%s234 + $0xd8] sm:$0xff] %v7861
        %7894 = vst [vmem:[%s234 + $0xe0] sm:$0xff] %v7862
        %7895 = vst [vmem:[%s234 + $0xe8] sm:$0xff] %v7863
        %7896 = vst [vmem:[%s234 + $0xf0] sm:$0xff] %v7864
        %7897 = vst [vmem:[%s234 + $0xf8] sm:$0xff] %v7865
        %s7898 = sand.u32 %s138, 1
        %s7899 = scalar_lea.sflag [#allocation6], %s7898
        %s7900 = sand.u32 %s138, 1
        %s7901 = smul.addr %s7900, 256
        %s7902 = scalar_lea.vmem [#allocation7], %s7901
        // Predicated region
        $region45: #{tpu_custom_call.1} parent=39 // pred_check
          %p7903 = pneg %p148
        $region46: #{tpu_custom_call.1} parent=39 // pred_check_branch
          %7905 = sbr.rel (%p7903) target = $region48
        $region47: #{tpu_custom_call.1} parent=39 // pred_region
          %7907 = vsyncadd %s7899, 0
          %s7908 = smul.addr %s20, 32
          %s7909 = smul.addr %s7908, 8
          %s7910 = scalar_lea.hbm %s5, %s7909
          %s7911 = sshll.u32 %s7902, 4
          %s7912 = int_to_ptr.vmem [resolvable:$true] %s7911
          %s7913 = sshll.u32 %s7910, 4
          %s7914 = int_to_ptr.hbm [resolvable:$true] %s7913
          %7919 = dma.vmem_to_hbm [thread:$0]  %s7912, 4096, %s7914, %s7899, 128, 128, 8
        $region48: #{tpu_custom_call.1} parent=39 // pred_fallthru
          _
      $region40: #{tpu_custom_call.1} parent=5 // pred_fallthru
        _
      %p7920 = scmp.le.s32.totalorder 2, %s15
      // Predicated region
      $region49: #{tpu_custom_call.1} parent=5 // pred_check
        %p7921 = pneg %p7920
      $region50: #{tpu_custom_call.1} parent=5 // pred_check_branch
        %7923 = sbr.rel (%p7921) target = $region52
      $region51: #{tpu_custom_call.1} parent=5 // pred_region
        %s7924 = ssub.s32 %s15, 2
        // Predicated region
        $region53: #{tpu_custom_call.1} parent=51 // pred_check
          %p7925 = pneg %p154
        $region54: #{tpu_custom_call.1} parent=51 // pred_check_branch
          %7927 = sbr.rel (%p7925) target = $region56
        $region55: #{tpu_custom_call.1} parent=51 // pred_region
          %s7928 = sand.u32 %s139, 1
          %s7929 = scalar_lea.sflag [#allocation6], %s7928
          %s7930 = sand.u32 %s139, 1
          %s7931 = smul.addr %s7930, 256
          %s7932 = scalar_lea.vmem [#allocation7], %s7931
          %7934 = dma.done %s7929, 4096
        $region56: #{tpu_custom_call.1} parent=51 // pred_fallthru
          _
      $region52: #{tpu_custom_call.1} parent=5 // pred_fallthru
        _
    $region6: #{tpu_custom_call.1} parent=1 // loop_footer
      %s19 = sadd.s32 1, %s15
    $region7: #{tpu_custom_call.1} parent=1 // loop_footer_branch
      %14 = sbr.rel target = $region3
    $region8: #{tpu_custom_call.1} parent=1 // loop_exit
      _
    %7935 = vsyncpa [#allocation5], 1
    %s7936 = scalar_lea.sflag [#allocation5], 1
    %7937 = vsyncpa %s7936, 1
    %7938 = vsyncpa [#allocation6], 1
    %s7939 = scalar_lea.sflag [#allocation6], 1
    %7940 = vsyncpa %s7939, 1

</llo_original>
